<compile_context>
chip_gen: v7x
topology: tpu7x:2x2x1
jax: 0.10.0
libtpu: 0.0.40
codegen_flags: <defaults>
</compile_context>

<pallas_src>
import numpy as np
import jax
import jax.numpy as jnp
from jax import lax
from jax.experimental import pallas as pl
from jax.experimental.pallas import tpu as pltpu

ALPHABET = "ACDEFGHIKLMNPQRSTVWY*"          # 21 symbols (amino acids + stop)

# ---- architecture constants (mirror CNN_Paired.__init__ / conv_embed) ----
C_IN = len(ALPHABET)                        # conv1 in-channels (21)
C1, C2 = 20, 20                             # conv1 / conv2 out-channels
H_IN, W_IN = 2, 32                          # paired chains: 2 rows x 32 positions
OH1, OW1 = H_IN + 1, W_IN                   # conv1 (k=(2,5), pad=(1,2)) -> (3, 32)
PH1, PW1 = OH1, OW1 // 4                    # maxpool (1,4)              -> (3, 8)
OH2, OW2 = PH1 - 1, PW1                     # conv2 (k=(2,3), pad=(0,1)) -> (2, 8)
PH2, PW2 = OH2 // 2, OW2 // 2               # maxpool (2,2)              -> (1, 4)

X_FLAT = C_IN * H_IN * W_IN                 # 1344 flattened NCHW input features
P1_VALID = C1 * PH1 * PW1                   # 480 pooled conv1 features / branch
P1_PAD = 512                                # 480 -> lane-dense 512
FLAT = C2 * PH2 * PW2                       # 80 == 4 * 20 in the reference module
FLAT_PAD = 128                              # 80 -> lane-dense 128

# TODO(synk): torch.nn.Dropout(0.3) is declared in __init__ but never used in
# forward(), so it is intentionally omitted; only the use_vj=True path (the
# spec's default) is implemented.


def _round_up(n, m):
    return ((n + m - 1) // m) * m


# --------------------------------------------------------------------------
# Glue: lower each conv (with its padding) to a dense matrix, fuse the 4
# max-pool branches along columns with per-branch zero padding to 128-multiple
# widths, so pooling is an elementwise max over lane-aligned slabs in-kernel.
# --------------------------------------------------------------------------
def build_conv1_matrix(W1, b1):
    # W1: (C1, C_IN, 2, 5) torch OIHW.  Rows index flattened NCHW input.
    M1 = np.zeros((X_FLAT, C1 * OH1 * OW1), np.float32)
    M1v = M1.reshape(C_IN, H_IN, W_IN, C1, OH1, OW1)
    for kh in range(2):
        for kw in range(5):
            wk = W1[:, :, kh, kw].T                       # (C_IN, C1)
            for oh in range(OH1):
                ih = oh + kh - 1                          # pad_h = 1
                if ih < 0 or ih >= H_IN:
                    continue
                for ow in range(OW1):
                    iw = ow + kw - 2                      # pad_w = 2
                    if iw < 0 or iw >= W_IN:
                        continue
                    M1v[:, ih, iw, :, oh, ow] += wk
    # maxpool(1, 4): ow = 4*g + r.  Branch column order = ci*24 + oh*8 + g,
    # each branch zero-padded 480 -> 512, then concatenated -> (1344, 2048).
    cols = M1.reshape(X_FLAT, C1, OH1, PW1, 4)
    branches = []
    for r in range(4):
        br = np.zeros((X_FLAT, P1_PAD), np.float32)
        br[:, :P1_VALID] = cols[..., r].reshape(X_FLAT, P1_VALID)
        branches.append(br)
    M1f = np.concatenate(branches, axis=1)                # (1344, 4*512)
    b1c = np.zeros((1, P1_PAD), np.float32)
    b1c[0, :P1_VALID] = np.repeat(b1, OH1 * PW1)
    return jnp.asarray(M1f, jnp.bfloat16), jnp.asarray(b1c)


def build_conv2_matrix(W2, b2):
    # Input rows: pooled conv1 features flattened as ci*24 + oh*8 + g, padded
    # 480 -> 512 (padded rows are zero so they contribute nothing).
    M2 = np.zeros((P1_VALID, C2 * OH2 * OW2), np.float32)
    M2v = M2.reshape(C1, PH1, PW1, C2, OH2, OW2)
    for kh in range(2):
        for kw in range(3):
            wk = W2[:, :, kh, kw].T                       # (C1, C2)
            for oh in range(OH2):
                ih = oh + kh                              # pad_h = 0
                for ow in range(OW2):
                    iw = ow + kw - 1                      # pad_w = 1
                    if iw < 0 or iw >= PW1:
                        continue
                    M2v[:, ih, iw, :, oh, ow] += wk
    # maxpool(2, 2): output position (0, w_out) pools (dh, 2*w_out + dw).
    # Branch column order = co*4 + w_out (matches torch.flatten of (N,20,1,4)),
    # each branch zero-padded 80 -> 128, then concatenated -> (512, 512).
    cols = M2.reshape(P1_VALID, C2, OH2, PW2, 2)
    branches = []
    for r in range(4):
        dh, dw = r // 2, r % 2
        br = np.zeros((P1_PAD, FLAT_PAD), np.float32)
        br[:P1_VALID, :FLAT] = cols[:, :, dh, :, dw].reshape(P1_VALID, FLAT)
        branches.append(br)
    M2f = np.concatenate(branches, axis=1)                # (512, 4*128)
    b2c = np.zeros((1, FLAT_PAD), np.float32)
    b2c[0, :FLAT] = np.repeat(b2, PW2)
    return jnp.asarray(M2f, jnp.bfloat16), jnp.asarray(b2c)


# --------------------------------------------------------------------------
# Pallas kernel: conv1+relu+pool, conv2+relu+pool, fc1 (x-part) for one batch
# tile.  Pure MXU matmuls + VPU elementwise max/add — no in-kernel reshapes.
# --------------------------------------------------------------------------
def cnn_paired_kernel(x_ref, vj_ref, m1_ref, b1_ref, m2_ref, b2_ref, wx_ref,
                      out_ref):
    xb = x_ref[...].astype(jnp.bfloat16)                  # (TB, 1344)

    # conv1: one fused MXU pass over all 4 pool branches -> (TB, 2048)
    h1 = jnp.dot(xb, m1_ref[...], preferred_element_type=jnp.float32)
    m1 = jnp.maximum(jnp.maximum(h1[:, 0:512], h1[:, 512:1024]),
                     jnp.maximum(h1[:, 1024:1536], h1[:, 1536:2048]))
    p1 = jnp.maximum(m1 + b1_ref[...], 0.0)               # (TB, 512)

    # conv2: one fused MXU pass over all 4 pool branches -> (TB, 512)
    h2 = jnp.dot(p1.astype(jnp.bfloat16), m2_ref[...],
                 preferred_element_type=jnp.float32)
    m2 = jnp.maximum(jnp.maximum(h2[:, 0:128], h2[:, 128:256]),
                     jnp.maximum(h2[:, 256:384], h2[:, 384:512]))
    p2 = jnp.maximum(m2 + b2_ref[...], 0.0)               # (TB, 128)

    # fc1 (x-part) + precomputed (v,j,bias) term -> lane-dense (TB, 128)
    y = jnp.dot(p2, wx_ref[...], preferred_element_type=jnp.float32)
    out_ref[...] = y + vj_ref[...]


def make_forward(params, num_v, num_j, out_dim, batch_tile=512):
    W1, b1, W2, b2, Wfc, bfc = [np.asarray(p, np.float32) for p in params]
    out_pad = _round_up(max(out_dim, 1), 128)

    m1, b1c = build_conv1_matrix(W1, b1)                  # (1344, 2048) bf16
    m2, b2c = build_conv2_matrix(W2, b2)                  # (512, 512)   bf16
    wx_np = np.zeros((FLAT_PAD, out_pad), np.float32)
    wx_np[:FLAT, :out_dim] = Wfc[:, :FLAT].T
    wx = jnp.asarray(wx_np)                               # (128, out_pad) f32
    wv = jnp.asarray(Wfc[:, FLAT:FLAT + num_v].T)         # (num_v, out_dim)
    wj = jnp.asarray(Wfc[:, FLAT + num_v:].T)             # (num_j, out_dim)
    bf = jnp.asarray(bfc)

    def forward(x, v, j):
        n = x.shape[0]
        tb = batch_tile if n >= batch_tile else _round_up(n, 8)
        n_pad = _round_up(n, tb)
        x_flat = x.reshape(n, -1)                         # NCHW row-major flatten
        x_pad = jnp.zeros((n_pad, X_FLAT), jnp.float32).at[:n].set(x_flat)

        # Tiny v/j matmuls + fc bias folded into one additive term (wrapper).
        vj = (jnp.dot(v, wv, precision=lax.Precision.HIGHEST)
              + jnp.dot(j, wj, precision=lax.Precision.HIGHEST) + bf)
        vj_pad = jnp.zeros((n_pad, out_pad), jnp.float32).at[:n, :out_dim].set(vj)

        out = pl.pallas_call(
            cnn_paired_kernel,
            out_shape=jax.ShapeDtypeStruct((n_pad, out_pad), jnp.float32),
            grid=(n_pad // tb,),
            in_specs=[
                pl.BlockSpec((tb, X_FLAT), lambda i: (i, 0)),        # x tile
                pl.BlockSpec((tb, out_pad), lambda i: (i, 0)),       # vj tile
                pl.BlockSpec((X_FLAT, 4 * P1_PAD), lambda i: (0, 0)),   # m1
                pl.BlockSpec((1, P1_PAD), lambda i: (0, 0)),            # b1
                pl.BlockSpec((P1_PAD, 4 * FLAT_PAD), lambda i: (0, 0)), # m2
                pl.BlockSpec((1, FLAT_PAD), lambda i: (0, 0)),          # b2
                pl.BlockSpec((FLAT_PAD, out_pad), lambda i: (0, 0)),    # wx
            ],
            out_specs=pl.BlockSpec((tb, out_pad), lambda i: (i, 0)),
            compiler_params=pltpu.CompilerParams(
                dimension_semantics=("parallel",),
                vmem_limit_bytes=48 * 1024 * 1024),
        )(x_pad, vj_pad, m1, b1c, m2, b2c, wx)
        return out[:n, :out_dim]

    return jax.jit(forward)


# --------------------------------------------------------------------------
# Pure-JAX reference (mirrors the PyTorch forward exactly) for verification.
# --------------------------------------------------------------------------
def reference_forward(x, v, j, params):
    W1, b1, W2, b2, Wfc, bfc = [jnp.asarray(p, jnp.float32) for p in params]
    dn = ('NCHW', 'OIHW', 'NCHW')
    hi = lax.Precision.HIGHEST
    y = lax.conv_general_dilated(x, W1, (1, 1), ((1, 1), (2, 2)),
                                 dimension_numbers=dn, precision=hi)
    y = jnp.maximum(y + b1[None, :, None, None], 0.0)
    y = lax.reduce_window(y, -jnp.inf, lax.max, (1, 1, 1, 4), (1, 1, 1, 4), 'VALID')
    y = lax.conv_general_dilated(y, W2, (1, 1), ((0, 0), (1, 1)),
                                 dimension_numbers=dn, precision=hi)
    y = jnp.maximum(y + b2[None, :, None, None], 0.0)
    y = lax.reduce_window(y, -jnp.inf, lax.max, (1, 1, 2, 2), (1, 1, 2, 2), 'VALID')
    y = y.reshape(y.shape[0], -1)                         # torch.flatten(x, 1)
    feats = jnp.concatenate([y, v, j], axis=1)
    return jnp.dot(feats, Wfc.T, precision=hi) + bfc


def init_params(key, num_v, num_j, out_dim):
    ks = jax.random.split(key, 6)

    def u(k, shape, fan_in):
        bound = 1.0 / np.sqrt(fan_in)
        return jax.random.uniform(k, shape, jnp.float32, -bound, bound)

    W1 = u(ks[0], (C1, C_IN, 2, 5), C_IN * 2 * 5)
    b1 = u(ks[1], (C1,), C_IN * 2 * 5)
    W2 = u(ks[2], (C2, C1, 2, 3), C1 * 2 * 3)
    b2 = u(ks[3], (C2,), C1 * 2 * 3)
    fan = FLAT + num_v + num_j
    Wfc = u(ks[4], (out_dim, fan), fan)
    bfc = u(ks[5], (out_dim,), fan)
    return (W1, b1, W2, b2, Wfc, bfc)


if __name__ == "__main__":
    N, num_v, num_j, out_dim = 2, 8, 6, 2
    key = jax.random.PRNGKey(0)
    kp, kx, kv, kj = jax.random.split(key, 4)

    params = init_params(kp, num_v, num_j, out_dim)
    x = jax.random.normal(kx, (N, C_IN, H_IN, W_IN), jnp.float32)
    v = jax.random.normal(kv, (N, num_v), jnp.float32)
    j = jax.random.normal(kj, (N, num_j), jnp.float32)

    forward = make_forward(params, num_v, num_j, out_dim)
    out = forward(x, v, j)
    jax.block_until_ready(out)

    ref = reference_forward(x, v, j, params)
    # bf16 conv weights / activations (f32 accumulation) -> loosened tolerance.
    np.testing.assert_allclose(np.asarray(out), np.asarray(ref),
                               rtol=5e-2, atol=2e-2)
    print("KERNEL_OK")
</pallas_src>

<mosaic_0001>
module attributes {stable_mosaic.version = 11 : i64} {
  func.func @cnn_paired_kernel(%arg0: i32, %arg1: memref<8x1344xf32, #tpu.memory_space<vmem>>, %arg2: memref<8x128xf32, #tpu.memory_space<vmem>>, %arg3: memref<1344x2048xbf16, #tpu.memory_space<vmem>>, %arg4: memref<1x512xf32, #tpu.memory_space<vmem>>, %arg5: memref<512x512xbf16, #tpu.memory_space<vmem>>, %arg6: memref<1x128xf32, #tpu.memory_space<vmem>>, %arg7: memref<128x128xf32, #tpu.memory_space<vmem>>, %arg8: memref<8x128xf32, #tpu.memory_space<vmem>>) attributes {dimension_semantics = [#tpu.dimension_semantics<parallel>], iteration_bounds = array<i64: 1>, scalar_prefetch = 0 : i64, scratch_operands = 0 : i64, tpu.core_type = #tpu.core_type<tc>, window_params = [{transform_indices = @transform_0, window_bounds = array<i64: 8, 1344>}, {transform_indices = @transform_1, window_bounds = array<i64: 8, 128>}, {pipeline_mode = #tpu.pipeline_mode<synchronous>, transform_indices = @transform_2, window_bounds = array<i64: 1344, 2048>}, {pipeline_mode = #tpu.pipeline_mode<synchronous>, transform_indices = @transform_3, window_bounds = array<i64: 1, 512>}, {pipeline_mode = #tpu.pipeline_mode<synchronous>, transform_indices = @transform_4, window_bounds = array<i64: 512, 512>}, {pipeline_mode = #tpu.pipeline_mode<synchronous>, transform_indices = @transform_5, window_bounds = array<i64: 1, 128>}, {pipeline_mode = #tpu.pipeline_mode<synchronous>, transform_indices = @transform_6, window_bounds = array<i64: 128, 128>}, {transform_indices = @transform_7, window_bounds = array<i64: 8, 128>}]} {
    %c0 = arith.constant 0 : index
    %c0_0 = arith.constant 0 : index
    %0 = vector.load %arg1[%c0, %c0_0] : memref<8x1344xf32, #tpu.memory_space<vmem>>, vector<8x1344xf32>
    %1 = arith.truncf %0 : vector<8x1344xf32> to vector<8x1344xbf16>
    %c0_1 = arith.constant 0 : index
    %c0_2 = arith.constant 0 : index
    %2 = vector.load %arg3[%c0_1, %c0_2] : memref<1344x2048xbf16, #tpu.memory_space<vmem>>, vector<1344x2048xbf16>
    %cst = arith.constant dense<0.000000e+00> : vector<8x2048xf32>
    %3 = tpu.matmul %1, %2, %cst {dimension_numbers = #tpu.dot_dimension_numbers<[1], [0], [0], [1], [0, 0, 1, 1], [], []>} : vector<8x1344xbf16>, vector<1344x2048xbf16>, vector<8x2048xf32> -> vector<8x2048xf32>
    %4 = vector.extract_strided_slice %3 {offsets = [0, 0], sizes = [8, 512], strides = [1, 1]} : vector<8x2048xf32> to vector<8x512xf32>
    %5 = vector.extract_strided_slice %3 {offsets = [0, 512], sizes = [8, 512], strides = [1, 1]} : vector<8x2048xf32> to vector<8x512xf32>
    %6 = arith.maximumf %4, %5 : vector<8x512xf32>
    %7 = vector.extract_strided_slice %3 {offsets = [0, 1024], sizes = [8, 512], strides = [1, 1]} : vector<8x2048xf32> to vector<8x512xf32>
    %8 = vector.extract_strided_slice %3 {offsets = [0, 1536], sizes = [8, 512], strides = [1, 1]} : vector<8x2048xf32> to vector<8x512xf32>
    %9 = arith.maximumf %7, %8 : vector<8x512xf32>
    %10 = arith.maximumf %6, %9 : vector<8x512xf32>
    %c0_3 = arith.constant 0 : index
    %c0_4 = arith.constant 0 : index
    %11 = vector.load %arg4[%c0_3, %c0_4] : memref<1x512xf32, #tpu.memory_space<vmem>>, vector<1x512xf32>
    %12 = vector.broadcast %11 : vector<1x512xf32> to vector<8x512xf32>
    %13 = arith.addf %10, %12 : vector<8x512xf32>
    %cst_5 = arith.constant 0.000000e+00 : f32
    %14 = vector.broadcast %cst_5 : f32 to vector<8x512xf32>
    %15 = arith.maximumf %13, %14 : vector<8x512xf32>
    %16 = arith.truncf %15 : vector<8x512xf32> to vector<8x512xbf16>
    %c0_6 = arith.constant 0 : index
    %c0_7 = arith.constant 0 : index
    %17 = vector.load %arg5[%c0_6, %c0_7] : memref<512x512xbf16, #tpu.memory_space<vmem>>, vector<512x512xbf16>
    %cst_8 = arith.constant dense<0.000000e+00> : vector<8x512xf32>
    %18 = tpu.matmul %16, %17, %cst_8 {dimension_numbers = #tpu.dot_dimension_numbers<[1], [0], [0], [1], [0, 0, 1, 1], [], []>} : vector<8x512xbf16>, vector<512x512xbf16>, vector<8x512xf32> -> vector<8x512xf32>
    %19 = vector.extract_strided_slice %18 {offsets = [0, 0], sizes = [8, 128], strides = [1, 1]} : vector<8x512xf32> to vector<8x128xf32>
    %20 = vector.extract_strided_slice %18 {offsets = [0, 128], sizes = [8, 128], strides = [1, 1]} : vector<8x512xf32> to vector<8x128xf32>
    %21 = arith.maximumf %19, %20 : vector<8x128xf32>
    %22 = vector.extract_strided_slice %18 {offsets = [0, 256], sizes = [8, 128], strides = [1, 1]} : vector<8x512xf32> to vector<8x128xf32>
    %23 = vector.extract_strided_slice %18 {offsets = [0, 384], sizes = [8, 128], strides = [1, 1]} : vector<8x512xf32> to vector<8x128xf32>
    %24 = arith.maximumf %22, %23 : vector<8x128xf32>
    %25 = arith.maximumf %21, %24 : vector<8x128xf32>
    %c0_9 = arith.constant 0 : index
    %c0_10 = arith.constant 0 : index
    %26 = vector.load %arg6[%c0_9, %c0_10] : memref<1x128xf32, #tpu.memory_space<vmem>>, vector<1x128xf32>
    %27 = vector.broadcast %26 : vector<1x128xf32> to vector<8x128xf32>
    %28 = arith.addf %25, %27 : vector<8x128xf32>
    %cst_11 = arith.constant 0.000000e+00 : f32
    %29 = vector.broadcast %cst_11 : f32 to vector<8x128xf32>
    %30 = arith.maximumf %28, %29 : vector<8x128xf32>
    %c0_12 = arith.constant 0 : index
    %c0_13 = arith.constant 0 : index
    %31 = vector.load %arg7[%c0_12, %c0_13] : memref<128x128xf32, #tpu.memory_space<vmem>>, vector<128x128xf32>
    %cst_14 = arith.constant dense<0.000000e+00> : vector<8x128xf32>
    %32 = tpu.matmul %30, %31, %cst_14 {dimension_numbers = #tpu.dot_dimension_numbers<[1], [0], [0], [1], [0, 0, 1, 1], [], []>} : vector<8x128xf32>, vector<128x128xf32>, vector<8x128xf32> -> vector<8x128xf32>
    %c0_15 = arith.constant 0 : index
    %c0_16 = arith.constant 0 : index
    %33 = vector.load %arg2[%c0_15, %c0_16] : memref<8x128xf32, #tpu.memory_space<vmem>>, vector<8x128xf32>
    %34 = arith.addf %32, %33 : vector<8x128xf32>
    %c0_17 = arith.constant 0 : index
    %c0_18 = arith.constant 0 : index
    %35 = vector.load %arg8[%c0_17, %c0_18] : memref<8x128xf32, #tpu.memory_space<vmem>>, vector<8x128xf32>
    tpu.vector_store %arg8[%c0_17, %c0_18], %34 {strides = array<i32>} : memref<8x128xf32, #tpu.memory_space<vmem>>, vector<8x128xf32>,
    return
  }
  func.func @transform_0(%arg0: i32) -> (i32, i32) {
    %c0_i32 = arith.constant 0 : i32
    %c0_i32_0 = arith.constant 0 : i32
    return %arg0, %c0_i32 : i32, i32
  }
  func.func @transform_1(%arg0: i32) -> (i32, i32) {
    %c0_i32 = arith.constant 0 : i32
    %c0_i32_0 = arith.constant 0 : i32
    return %arg0, %c0_i32 : i32, i32
  }
  func.func @transform_2(%arg0: i32) -> (i32, i32) {
    %c0_i32 = arith.constant 0 : i32
    %c0_i32_0 = arith.constant 0 : i32
    %c0_i32_1 = arith.constant 0 : i32
    return %c0_i32, %c0_i32_0 : i32, i32
  }
  func.func @transform_3(%arg0: i32) -> (i32, i32) {
    %c0_i32 = arith.constant 0 : i32
    %c0_i32_0 = arith.constant 0 : i32
    %c0_i32_1 = arith.constant 0 : i32
    return %c0_i32, %c0_i32_0 : i32, i32
  }
  func.func @transform_4(%arg0: i32) -> (i32, i32) {
    %c0_i32 = arith.constant 0 : i32
    %c0_i32_0 = arith.constant 0 : i32
    %c0_i32_1 = arith.constant 0 : i32
    return %c0_i32, %c0_i32_0 : i32, i32
  }
  func.func @transform_5(%arg0: i32) -> (i32, i32) {
    %c0_i32 = arith.constant 0 : i32
    %c0_i32_0 = arith.constant 0 : i32
    %c0_i32_1 = arith.constant 0 : i32
    return %c0_i32, %c0_i32_0 : i32, i32
  }
  func.func @transform_6(%arg0: i32) -> (i32, i32) {
    %c0_i32 = arith.constant 0 : i32
    %c0_i32_0 = arith.constant 0 : i32
    %c0_i32_1 = arith.constant 0 : i32
    return %c0_i32, %c0_i32_0 : i32, i32
  }
  func.func @transform_7(%arg0: i32) -> (i32, i32) {
    %c0_i32 = arith.constant 0 : i32
    %c0_i32_0 = arith.constant 0 : i32
    return %arg0, %c0_i32 : i32, i32
  }
}

</mosaic_0001>

<llo_original>
// kernel: forward.1
$region0: #{forward.1}
  #allocation0 [shape = 'u32[]', space=smem, size = 0x4, offset = 0x4, fixed_abs, tag = 'smem constant byte address 0x4 - core index']
  #allocation1 [shape = 'u32[144,128]{1,0:T(1,128)}', space=vmem, size = 0x12000, scoped, tag = 'internal scratch']
  %s0 = inlined_call_operand.vmem [shape: f32[8,1344], index: 0, kind: input, shape index: {}]
  %s1 = inlined_call_operand.vmem [shape: f32[8,128], index: 1, kind: input, shape index: {}]
  %s2 = inlined_call_operand.vmem [shape: bf16[1344,2048], index: 2, kind: input, shape index: {}]
  %s3 = inlined_call_operand.vmem [shape: f32[1,512], index: 3, kind: input, shape index: {}]
  %s4 = inlined_call_operand.vmem [shape: bf16[512,512], index: 4, kind: input, shape index: {}]
  %s5 = inlined_call_operand.vmem [shape: f32[1,128], index: 5, kind: input, shape index: {}]
  %s6 = inlined_call_operand.vmem [shape: f32[128,128], index: 6, kind: input, shape index: {}]
  %s7 = inlined_call_operand.vmem [shape: f32[8,128], index: 7, kind: output, shape index: {}]
  %s8 = sld [smem:[#allocation0]]
  $region38: #{forward.1} parent=0
    _
  %s10 = ssub.s32 1, %s8
  %s11 = scalar_select 0, %s10, %s8
  // Predicated region
  $region2: #{forward.1} parent=0 // pred_check
    _
  $region3: #{forward.1} parent=0 // pred_check_branch
    %13 = sbr.rel (0) target = $region5
  $region4: #{forward.1} parent=0 // pred_region
    _
  $region5: #{forward.1} parent=0 // pred_fallthru
    _
  // Predicated region
  $region6: #{forward.1} parent=0 // pred_check
    _
  $region7: #{forward.1} parent=0 // pred_check_branch
    %15 = sbr.rel (0) target = $region9
  $region8: #{forward.1} parent=0 // pred_region
    _
  $region9: #{forward.1} parent=0 // pred_fallthru
    _
  // Predicated region
  $region10: #{forward.1} parent=0 // pred_check
    _
  $region11: #{forward.1} parent=0 // pred_check_branch
    %17 = sbr.rel (0) target = $region13
  $region12: #{forward.1} parent=0 // pred_region
    _
  $region13: #{forward.1} parent=0 // pred_fallthru
    _
  // Predicated region
  $region14: #{forward.1} parent=0 // pred_check
    _
  $region15: #{forward.1} parent=0 // pred_check_branch
    %19 = sbr.rel (0) target = $region17
  $region16: #{forward.1} parent=0 // pred_region
    _
  $region17: #{forward.1} parent=0 // pred_fallthru
    _
  // Predicated region
  $region18: #{forward.1} parent=0 // pred_check
    _
  $region19: #{forward.1} parent=0 // pred_check_branch
    %21 = sbr.rel (0) target = $region21
  $region20: #{forward.1} parent=0 // pred_region
    _
  $region21: #{forward.1} parent=0 // pred_fallthru
    _
  // Predicated region
  $region22: #{forward.1} parent=0 // pred_check
    _
  $region23: #{forward.1} parent=0 // pred_check_branch
    %23 = sbr.rel (0) target = $region25
  $region24: #{forward.1} parent=0 // pred_region
    _
  $region25: #{forward.1} parent=0 // pred_fallthru
    _
  // Predicated region
  $region26: #{forward.1} parent=0 // pred_check
    _
  $region27: #{forward.1} parent=0 // pred_check_branch
    %25 = sbr.rel (0) target = $region29
  $region28: #{forward.1} parent=0 // pred_region
    _
  $region29: #{forward.1} parent=0 // pred_fallthru
    _
  %v27 = vld [vmem:[%s0] sm:$0xff]
  %v28 = vld [vmem:[%s0 + $0x8] sm:$0xff]
  %v29 = vld [vmem:[%s0 + $0x10] sm:$0xff]
  %v30 = vld [vmem:[%s0 + $0x18] sm:$0xff]
  %v31 = vld [vmem:[%s0 + $0x20] sm:$0xff]
  %v32 = vld [vmem:[%s0 + $0x28] sm:$0xff]
  %v33 = vld [vmem:[%s0 + $0x30] sm:$0xff]
  %v34 = vld [vmem:[%s0 + $0x38] sm:$0xff]
  %v35 = vld [vmem:[%s0 + $0x40] sm:$0xff]
  %v36 = vld [vmem:[%s0 + $0x48] sm:$0xff]
  %v37 = vld [vmem:[%s0 + $0x50] sm:$0xff]
  %v38 = vpack.c.bf16 %v27, %v27
  %v39 = vpack.c.bf16 %v28, %v28
  %v40 = vpack.c.bf16 %v29, %v29
  %v41 = vpack.c.bf16 %v30, %v30
  %v42 = vpack.c.bf16 %v31, %v31
  %v43 = vpack.c.bf16 %v32, %v32
  %v44 = vpack.c.bf16 %v33, %v33
  %v45 = vpack.c.bf16 %v34, %v34
  %v46 = vpack.c.bf16 %v35, %v35
  %v47 = vpack.c.bf16 %v36, %v36
  %v48 = vpack.c.bf16 %v37, %v37
  %v49 = vld [vmem:[%s2] sm:$0xff]
  %v50 = vld [vmem:[%s2 + $0x8] sm:$0xff]
  %v51 = vld [vmem:[%s2 + $0x10] sm:$0xff]
  %v52 = vld [vmem:[%s2 + $0x18] sm:$0xff]
  %v53 = vld [vmem:[%s2 + $0x20] sm:$0xff]
  %v54 = vld [vmem:[%s2 + $0x28] sm:$0xff]
  %v55 = vld [vmem:[%s2 + $0x30] sm:$0xff]
  %v56 = vld [vmem:[%s2 + $0x38] sm:$0xff]
  %v57 = vld [vmem:[%s2 + $0x40] sm:$0xff]
  %v58 = vld [vmem:[%s2 + $0x48] sm:$0xff]
  %v59 = vld [vmem:[%s2 + $0x50] sm:$0xff]
  %v60 = vld [vmem:[%s2 + $0x58] sm:$0xff]
  %v61 = vld [vmem:[%s2 + $0x60] sm:$0xff]
  %v62 = vld [vmem:[%s2 + $0x68] sm:$0xff]
  %v63 = vld [vmem:[%s2 + $0x70] sm:$0xff]
  %v64 = vld [vmem:[%s2 + $0x78] sm:$0xff]
  %v65 = vld [vmem:[%s2 + $0x80] sm:$0xff]
  %v66 = vld [vmem:[%s2 + $0x88] sm:$0xff]
  %v67 = vld [vmem:[%s2 + $0x90] sm:$0xff]
  %v68 = vld [vmem:[%s2 + $0x98] sm:$0xff]
  %v69 = vld [vmem:[%s2 + $0xa0] sm:$0xff]
  %v70 = vld [vmem:[%s2 + $0xa8] sm:$0xff]
  %v71 = vld [vmem:[%s2 + $0xb0] sm:$0xff]
  %v72 = vld [vmem:[%s2 + $0xb8] sm:$0xff]
  %v73 = vld [vmem:[%s2 + $0xc0] sm:$0xff]
  %v74 = vld [vmem:[%s2 + $0xc8] sm:$0xff]
  %v75 = vld [vmem:[%s2 + $0xd0] sm:$0xff]
  %v76 = vld [vmem:[%s2 + $0xd8] sm:$0xff]
  %v77 = vld [vmem:[%s2 + $0xe0] sm:$0xff]
  %v78 = vld [vmem:[%s2 + $0xe8] sm:$0xff]
  %v79 = vld [vmem:[%s2 + $0xf0] sm:$0xff]
  %v80 = vld [vmem:[%s2 + $0xf8] sm:$0xff]
  %v81 = vld [vmem:[%s2 + $0x100] sm:$0xff]
  %v82 = vld [vmem:[%s2 + $0x108] sm:$0xff]
  %v83 = vld [vmem:[%s2 + $0x110] sm:$0xff]
  %v84 = vld [vmem:[%s2 + $0x118] sm:$0xff]
  %v85 = vld [vmem:[%s2 + $0x120] sm:$0xff]
  %v86 = vld [vmem:[%s2 + $0x128] sm:$0xff]
  %v87 = vld [vmem:[%s2 + $0x130] sm:$0xff]
  %v88 = vld [vmem:[%s2 + $0x138] sm:$0xff]
  %v89 = vld [vmem:[%s2 + $0x140] sm:$0xff]
  %v90 = vld [vmem:[%s2 + $0x148] sm:$0xff]
  %v91 = vld [vmem:[%s2 + $0x150] sm:$0xff]
  %v92 = vld [vmem:[%s2 + $0x158] sm:$0xff]
  %v93 = vld [vmem:[%s2 + $0x160] sm:$0xff]
  %v94 = vld [vmem:[%s2 + $0x168] sm:$0xff]
  %v95 = vld [vmem:[%s2 + $0x170] sm:$0xff]
  %v96 = vld [vmem:[%s2 + $0x178] sm:$0xff]
  %v97 = vld [vmem:[%s2 + $0x180] sm:$0xff]
  %v98 = vld [vmem:[%s2 + $0x188] sm:$0xff]
  %v99 = vld [vmem:[%s2 + $0x190] sm:$0xff]
  %v100 = vld [vmem:[%s2 + $0x198] sm:$0xff]
  %v101 = vld [vmem:[%s2 + $0x1a0] sm:$0xff]
  %v102 = vld [vmem:[%s2 + $0x1a8] sm:$0xff]
  %v103 = vld [vmem:[%s2 + $0x1b0] sm:$0xff]
  %v104 = vld [vmem:[%s2 + $0x1b8] sm:$0xff]
  %v105 = vld [vmem:[%s2 + $0x1c0] sm:$0xff]
  %v106 = vld [vmem:[%s2 + $0x1c8] sm:$0xff]
  %v107 = vld [vmem:[%s2 + $0x1d0] sm:$0xff]
  %v108 = vld [vmem:[%s2 + $0x1d8] sm:$0xff]
  %v109 = vld [vmem:[%s2 + $0x1e0] sm:$0xff]
  %v110 = vld [vmem:[%s2 + $0x1e8] sm:$0xff]
  %v111 = vld [vmem:[%s2 + $0x1f0] sm:$0xff]
  %v112 = vld [vmem:[%s2 + $0x1f8] sm:$0xff]
  %v113 = vld [vmem:[%s2 + $0x200] sm:$0xff]
  %v114 = vld [vmem:[%s2 + $0x208] sm:$0xff]
  %v115 = vld [vmem:[%s2 + $0x210] sm:$0xff]
  %v116 = vld [vmem:[%s2 + $0x218] sm:$0xff]
  %v117 = vld [vmem:[%s2 + $0x220] sm:$0xff]
  %v118 = vld [vmem:[%s2 + $0x228] sm:$0xff]
  %v119 = vld [vmem:[%s2 + $0x230] sm:$0xff]
  %v120 = vld [vmem:[%s2 + $0x238] sm:$0xff]
  %v121 = vld [vmem:[%s2 + $0x240] sm:$0xff]
  %v122 = vld [vmem:[%s2 + $0x248] sm:$0xff]
  %v123 = vld [vmem:[%s2 + $0x250] sm:$0xff]
  %v124 = vld [vmem:[%s2 + $0x258] sm:$0xff]
  %v125 = vld [vmem:[%s2 + $0x260] sm:$0xff]
  %v126 = vld [vmem:[%s2 + $0x268] sm:$0xff]
  %v127 = vld [vmem:[%s2 + $0x270] sm:$0xff]
  %v128 = vld [vmem:[%s2 + $0x278] sm:$0xff]
  %v129 = vld [vmem:[%s2 + $0x280] sm:$0xff]
  %v130 = vld [vmem:[%s2 + $0x288] sm:$0xff]
  %v131 = vld [vmem:[%s2 + $0x290] sm:$0xff]
  %v132 = vld [vmem:[%s2 + $0x298] sm:$0xff]
  %v133 = vld [vmem:[%s2 + $0x2a0] sm:$0xff]
  %v134 = vld [vmem:[%s2 + $0x2a8] sm:$0xff]
  %v135 = vld [vmem:[%s2 + $0x2b0] sm:$0xff]
  %v136 = vld [vmem:[%s2 + $0x2b8] sm:$0xff]
  %v137 = vld [vmem:[%s2 + $0x2c0] sm:$0xff]
  %v138 = vld [vmem:[%s2 + $0x2c8] sm:$0xff]
  %v139 = vld [vmem:[%s2 + $0x2d0] sm:$0xff]
  %v140 = vld [vmem:[%s2 + $0x2d8] sm:$0xff]
  %v141 = vld [vmem:[%s2 + $0x2e0] sm:$0xff]
  %v142 = vld [vmem:[%s2 + $0x2e8] sm:$0xff]
  %v143 = vld [vmem:[%s2 + $0x2f0] sm:$0xff]
  %v144 = vld [vmem:[%s2 + $0x2f8] sm:$0xff]
  %v145 = vld [vmem:[%s2 + $0x300] sm:$0xff]
  %v146 = vld [vmem:[%s2 + $0x308] sm:$0xff]
  %v147 = vld [vmem:[%s2 + $0x310] sm:$0xff]
  %v148 = vld [vmem:[%s2 + $0x318] sm:$0xff]
  %v149 = vld [vmem:[%s2 + $0x320] sm:$0xff]
  %v150 = vld [vmem:[%s2 + $0x328] sm:$0xff]
  %v151 = vld [vmem:[%s2 + $0x330] sm:$0xff]
  %v152 = vld [vmem:[%s2 + $0x338] sm:$0xff]
  %v153 = vld [vmem:[%s2 + $0x340] sm:$0xff]
  %v154 = vld [vmem:[%s2 + $0x348] sm:$0xff]
  %v155 = vld [vmem:[%s2 + $0x350] sm:$0xff]
  %v156 = vld [vmem:[%s2 + $0x358] sm:$0xff]
  %v157 = vld [vmem:[%s2 + $0x360] sm:$0xff]
  %v158 = vld [vmem:[%s2 + $0x368] sm:$0xff]
  %v159 = vld [vmem:[%s2 + $0x370] sm:$0xff]
  %v160 = vld [vmem:[%s2 + $0x378] sm:$0xff]
  %v161 = vld [vmem:[%s2 + $0x380] sm:$0xff]
  %v162 = vld [vmem:[%s2 + $0x388] sm:$0xff]
  %v163 = vld [vmem:[%s2 + $0x390] sm:$0xff]
  %v164 = vld [vmem:[%s2 + $0x398] sm:$0xff]
  %v165 = vld [vmem:[%s2 + $0x3a0] sm:$0xff]
  %v166 = vld [vmem:[%s2 + $0x3a8] sm:$0xff]
  %v167 = vld [vmem:[%s2 + $0x3b0] sm:$0xff]
  %v168 = vld [vmem:[%s2 + $0x3b8] sm:$0xff]
  %v169 = vld [vmem:[%s2 + $0x3c0] sm:$0xff]
  %v170 = vld [vmem:[%s2 + $0x3c8] sm:$0xff]
  %v171 = vld [vmem:[%s2 + $0x3d0] sm:$0xff]
  %v172 = vld [vmem:[%s2 + $0x3d8] sm:$0xff]
  %v173 = vld [vmem:[%s2 + $0x3e0] sm:$0xff]
  %v174 = vld [vmem:[%s2 + $0x3e8] sm:$0xff]
  %v175 = vld [vmem:[%s2 + $0x3f0] sm:$0xff]
  %v176 = vld [vmem:[%s2 + $0x3f8] sm:$0xff]
  %v177 = vld [vmem:[%s2 + $0x400] sm:$0xff]
  %v178 = vld [vmem:[%s2 + $0x408] sm:$0xff]
  %v179 = vld [vmem:[%s2 + $0x410] sm:$0xff]
  %v180 = vld [vmem:[%s2 + $0x418] sm:$0xff]
  %v181 = vld [vmem:[%s2 + $0x420] sm:$0xff]
  %v182 = vld [vmem:[%s2 + $0x428] sm:$0xff]
  %v183 = vld [vmem:[%s2 + $0x430] sm:$0xff]
  %v184 = vld [vmem:[%s2 + $0x438] sm:$0xff]
  %v185 = vld [vmem:[%s2 + $0x440] sm:$0xff]
  %v186 = vld [vmem:[%s2 + $0x448] sm:$0xff]
  %v187 = vld [vmem:[%s2 + $0x450] sm:$0xff]
  %v188 = vld [vmem:[%s2 + $0x458] sm:$0xff]
  %v189 = vld [vmem:[%s2 + $0x460] sm:$0xff]
  %v190 = vld [vmem:[%s2 + $0x468] sm:$0xff]
  %v191 = vld [vmem:[%s2 + $0x470] sm:$0xff]
  %v192 = vld [vmem:[%s2 + $0x478] sm:$0xff]
  %v193 = vld [vmem:[%s2 + $0x480] sm:$0xff]
  %v194 = vld [vmem:[%s2 + $0x488] sm:$0xff]
  %v195 = vld [vmem:[%s2 + $0x490] sm:$0xff]
  %v196 = vld [vmem:[%s2 + $0x498] sm:$0xff]
  %v197 = vld [vmem:[%s2 + $0x4a0] sm:$0xff]
  %v198 = vld [vmem:[%s2 + $0x4a8] sm:$0xff]
  %v199 = vld [vmem:[%s2 + $0x4b0] sm:$0xff]
  %v200 = vld [vmem:[%s2 + $0x4b8] sm:$0xff]
  %v201 = vld [vmem:[%s2 + $0x4c0] sm:$0xff]
  %v202 = vld [vmem:[%s2 + $0x4c8] sm:$0xff]
  %v203 = vld [vmem:[%s2 + $0x4d0] sm:$0xff]
  %v204 = vld [vmem:[%s2 + $0x4d8] sm:$0xff]
  %v205 = vld [vmem:[%s2 + $0x4e0] sm:$0xff]
  %v206 = vld [vmem:[%s2 + $0x4e8] sm:$0xff]
  %v207 = vld [vmem:[%s2 + $0x4f0] sm:$0xff]
  %v208 = vld [vmem:[%s2 + $0x4f8] sm:$0xff]
  %v209 = vld [vmem:[%s2 + $0x500] sm:$0xff]
  %v210 = vld [vmem:[%s2 + $0x508] sm:$0xff]
  %v211 = vld [vmem:[%s2 + $0x510] sm:$0xff]
  %v212 = vld [vmem:[%s2 + $0x518] sm:$0xff]
  %v213 = vld [vmem:[%s2 + $0x520] sm:$0xff]
  %v214 = vld [vmem:[%s2 + $0x528] sm:$0xff]
  %v215 = vld [vmem:[%s2 + $0x530] sm:$0xff]
  %v216 = vld [vmem:[%s2 + $0x538] sm:$0xff]
  %v217 = vld [vmem:[%s2 + $0x540] sm:$0xff]
  %v218 = vld [vmem:[%s2 + $0x548] sm:$0xff]
  %v219 = vld [vmem:[%s2 + $0x550] sm:$0xff]
  %v220 = vld [vmem:[%s2 + $0x558] sm:$0xff]
  %v221 = vld [vmem:[%s2 + $0x560] sm:$0xff]
  %v222 = vld [vmem:[%s2 + $0x568] sm:$0xff]
  %v223 = vld [vmem:[%s2 + $0x570] sm:$0xff]
  %v224 = vld [vmem:[%s2 + $0x578] sm:$0xff]
  %v225 = vld [vmem:[%s2 + $0x580] sm:$0xff]
  %v226 = vld [vmem:[%s2 + $0x588] sm:$0xff]
  %v227 = vld [vmem:[%s2 + $0x590] sm:$0xff]
  %v228 = vld [vmem:[%s2 + $0x598] sm:$0xff]
  %v229 = vld [vmem:[%s2 + $0x5a0] sm:$0xff]
  %v230 = vld [vmem:[%s2 + $0x5a8] sm:$0xff]
  %v231 = vld [vmem:[%s2 + $0x5b0] sm:$0xff]
  %v232 = vld [vmem:[%s2 + $0x5b8] sm:$0xff]
  %v233 = vld [vmem:[%s2 + $0x5c0] sm:$0xff]
  %v234 = vld [vmem:[%s2 + $0x5c8] sm:$0xff]
  %v235 = vld [vmem:[%s2 + $0x5d0] sm:$0xff]
  %v236 = vld [vmem:[%s2 + $0x5d8] sm:$0xff]
  %v237 = vld [vmem:[%s2 + $0x5e0] sm:$0xff]
  %v238 = vld [vmem:[%s2 + $0x5e8] sm:$0xff]
  %v239 = vld [vmem:[%s2 + $0x5f0] sm:$0xff]
  %v240 = vld [vmem:[%s2 + $0x5f8] sm:$0xff]
  %v241 = vld [vmem:[%s2 + $0x600] sm:$0xff]
  %v242 = vld [vmem:[%s2 + $0x608] sm:$0xff]
  %v243 = vld [vmem:[%s2 + $0x610] sm:$0xff]
  %v244 = vld [vmem:[%s2 + $0x618] sm:$0xff]
  %v245 = vld [vmem:[%s2 + $0x620] sm:$0xff]
  %v246 = vld [vmem:[%s2 + $0x628] sm:$0xff]
  %v247 = vld [vmem:[%s2 + $0x630] sm:$0xff]
  %v248 = vld [vmem:[%s2 + $0x638] sm:$0xff]
  %v249 = vld [vmem:[%s2 + $0x640] sm:$0xff]
  %v250 = vld [vmem:[%s2 + $0x648] sm:$0xff]
  %v251 = vld [vmem:[%s2 + $0x650] sm:$0xff]
  %v252 = vld [vmem:[%s2 + $0x658] sm:$0xff]
  %v253 = vld [vmem:[%s2 + $0x660] sm:$0xff]
  %v254 = vld [vmem:[%s2 + $0x668] sm:$0xff]
  %v255 = vld [vmem:[%s2 + $0x670] sm:$0xff]
  %v256 = vld [vmem:[%s2 + $0x678] sm:$0xff]
  %v257 = vld [vmem:[%s2 + $0x680] sm:$0xff]
  %v258 = vld [vmem:[%s2 + $0x688] sm:$0xff]
  %v259 = vld [vmem:[%s2 + $0x690] sm:$0xff]
  %v260 = vld [vmem:[%s2 + $0x698] sm:$0xff]
  %v261 = vld [vmem:[%s2 + $0x6a0] sm:$0xff]
  %v262 = vld [vmem:[%s2 + $0x6a8] sm:$0xff]
  %v263 = vld [vmem:[%s2 + $0x6b0] sm:$0xff]
  %v264 = vld [vmem:[%s2 + $0x6b8] sm:$0xff]
  %v265 = vld [vmem:[%s2 + $0x6c0] sm:$0xff]
  %v266 = vld [vmem:[%s2 + $0x6c8] sm:$0xff]
  %v267 = vld [vmem:[%s2 + $0x6d0] sm:$0xff]
  %v268 = vld [vmem:[%s2 + $0x6d8] sm:$0xff]
  %v269 = vld [vmem:[%s2 + $0x6e0] sm:$0xff]
  %v270 = vld [vmem:[%s2 + $0x6e8] sm:$0xff]
  %v271 = vld [vmem:[%s2 + $0x6f0] sm:$0xff]
  %v272 = vld [vmem:[%s2 + $0x6f8] sm:$0xff]
  %v273 = vld [vmem:[%s2 + $0x700] sm:$0xff]
  %v274 = vld [vmem:[%s2 + $0x708] sm:$0xff]
  %v275 = vld [vmem:[%s2 + $0x710] sm:$0xff]
  %v276 = vld [vmem:[%s2 + $0x718] sm:$0xff]
  %v277 = vld [vmem:[%s2 + $0x720] sm:$0xff]
  %v278 = vld [vmem:[%s2 + $0x728] sm:$0xff]
  %v279 = vld [vmem:[%s2 + $0x730] sm:$0xff]
  %v280 = vld [vmem:[%s2 + $0x738] sm:$0xff]
  %v281 = vld [vmem:[%s2 + $0x740] sm:$0xff]
  %v282 = vld [vmem:[%s2 + $0x748] sm:$0xff]
  %v283 = vld [vmem:[%s2 + $0x750] sm:$0xff]
  %v284 = vld [vmem:[%s2 + $0x758] sm:$0xff]
  %v285 = vld [vmem:[%s2 + $0x760] sm:$0xff]
  %v286 = vld [vmem:[%s2 + $0x768] sm:$0xff]
  %v287 = vld [vmem:[%s2 + $0x770] sm:$0xff]
  %v288 = vld [vmem:[%s2 + $0x778] sm:$0xff]
  %v289 = vld [vmem:[%s2 + $0x780] sm:$0xff]
  %v290 = vld [vmem:[%s2 + $0x788] sm:$0xff]
  %v291 = vld [vmem:[%s2 + $0x790] sm:$0xff]
  %v292 = vld [vmem:[%s2 + $0x798] sm:$0xff]
  %v293 = vld [vmem:[%s2 + $0x7a0] sm:$0xff]
  %v294 = vld [vmem:[%s2 + $0x7a8] sm:$0xff]
  %v295 = vld [vmem:[%s2 + $0x7b0] sm:$0xff]
  %v296 = vld [vmem:[%s2 + $0x7b8] sm:$0xff]
  %v297 = vld [vmem:[%s2 + $0x7c0] sm:$0xff]
  %v298 = vld [vmem:[%s2 + $0x7c8] sm:$0xff]
  %v299 = vld [vmem:[%s2 + $0x7d0] sm:$0xff]
  %v300 = vld [vmem:[%s2 + $0x7d8] sm:$0xff]
  %v301 = vld [vmem:[%s2 + $0x7e0] sm:$0xff]
  %v302 = vld [vmem:[%s2 + $0x7e8] sm:$0xff]
  %v303 = vld [vmem:[%s2 + $0x7f0] sm:$0xff]
  %v304 = vld [vmem:[%s2 + $0x7f8] sm:$0xff]
  %v305 = vld [vmem:[%s2 + $0x800] sm:$0xff]
  %v306 = vld [vmem:[%s2 + $0x808] sm:$0xff]
  %v307 = vld [vmem:[%s2 + $0x810] sm:$0xff]
  %v308 = vld [vmem:[%s2 + $0x818] sm:$0xff]
  %v309 = vld [vmem:[%s2 + $0x820] sm:$0xff]
  %v310 = vld [vmem:[%s2 + $0x828] sm:$0xff]
  %v311 = vld [vmem:[%s2 + $0x830] sm:$0xff]
  %v312 = vld [vmem:[%s2 + $0x838] sm:$0xff]
  %v313 = vld [vmem:[%s2 + $0x840] sm:$0xff]
  %v314 = vld [vmem:[%s2 + $0x848] sm:$0xff]
  %v315 = vld [vmem:[%s2 + $0x850] sm:$0xff]
  %v316 = vld [vmem:[%s2 + $0x858] sm:$0xff]
  %v317 = vld [vmem:[%s2 + $0x860] sm:$0xff]
  %v318 = vld [vmem:[%s2 + $0x868] sm:$0xff]
  %v319 = vld [vmem:[%s2 + $0x870] sm:$0xff]
  %v320 = vld [vmem:[%s2 + $0x878] sm:$0xff]
  %v321 = vld [vmem:[%s2 + $0x880] sm:$0xff]
  %v322 = vld [vmem:[%s2 + $0x888] sm:$0xff]
  %v323 = vld [vmem:[%s2 + $0x890] sm:$0xff]
  %v324 = vld [vmem:[%s2 + $0x898] sm:$0xff]
  %v325 = vld [vmem:[%s2 + $0x8a0] sm:$0xff]
  %v326 = vld [vmem:[%s2 + $0x8a8] sm:$0xff]
  %v327 = vld [vmem:[%s2 + $0x8b0] sm:$0xff]
  %v328 = vld [vmem:[%s2 + $0x8b8] sm:$0xff]
  %v329 = vld [vmem:[%s2 + $0x8c0] sm:$0xff]
  %v330 = vld [vmem:[%s2 + $0x8c8] sm:$0xff]
  %v331 = vld [vmem:[%s2 + $0x8d0] sm:$0xff]
  %v332 = vld [vmem:[%s2 + $0x8d8] sm:$0xff]
  %v333 = vld [vmem:[%s2 + $0x8e0] sm:$0xff]
  %v334 = vld [vmem:[%s2 + $0x8e8] sm:$0xff]
  %v335 = vld [vmem:[%s2 + $0x8f0] sm:$0xff]
  %v336 = vld [vmem:[%s2 + $0x8f8] sm:$0xff]
  %v337 = vld [vmem:[%s2 + $0x900] sm:$0xff]
  %v338 = vld [vmem:[%s2 + $0x908] sm:$0xff]
  %v339 = vld [vmem:[%s2 + $0x910] sm:$0xff]
  %v340 = vld [vmem:[%s2 + $0x918] sm:$0xff]
  %v341 = vld [vmem:[%s2 + $0x920] sm:$0xff]
  %v342 = vld [vmem:[%s2 + $0x928] sm:$0xff]
  %v343 = vld [vmem:[%s2 + $0x930] sm:$0xff]
  %v344 = vld [vmem:[%s2 + $0x938] sm:$0xff]
  %v345 = vld [vmem:[%s2 + $0x940] sm:$0xff]
  %v346 = vld [vmem:[%s2 + $0x948] sm:$0xff]
  %v347 = vld [vmem:[%s2 + $0x950] sm:$0xff]
  %v348 = vld [vmem:[%s2 + $0x958] sm:$0xff]
  %v349 = vld [vmem:[%s2 + $0x960] sm:$0xff]
  %v350 = vld [vmem:[%s2 + $0x968] sm:$0xff]
  %v351 = vld [vmem:[%s2 + $0x970] sm:$0xff]
  %v352 = vld [vmem:[%s2 + $0x978] sm:$0xff]
  %v353 = vld [vmem:[%s2 + $0x980] sm:$0xff]
  %v354 = vld [vmem:[%s2 + $0x988] sm:$0xff]
  %v355 = vld [vmem:[%s2 + $0x990] sm:$0xff]
  %v356 = vld [vmem:[%s2 + $0x998] sm:$0xff]
  %v357 = vld [vmem:[%s2 + $0x9a0] sm:$0xff]
  %v358 = vld [vmem:[%s2 + $0x9a8] sm:$0xff]
  %v359 = vld [vmem:[%s2 + $0x9b0] sm:$0xff]
  %v360 = vld [vmem:[%s2 + $0x9b8] sm:$0xff]
  %v361 = vld [vmem:[%s2 + $0x9c0] sm:$0xff]
  %v362 = vld [vmem:[%s2 + $0x9c8] sm:$0xff]
  %v363 = vld [vmem:[%s2 + $0x9d0] sm:$0xff]
  %v364 = vld [vmem:[%s2 + $0x9d8] sm:$0xff]
  %v365 = vld [vmem:[%s2 + $0x9e0] sm:$0xff]
  %v366 = vld [vmem:[%s2 + $0x9e8] sm:$0xff]
  %v367 = vld [vmem:[%s2 + $0x9f0] sm:$0xff]
  %v368 = vld [vmem:[%s2 + $0x9f8] sm:$0xff]
  %v369 = vld [vmem:[%s2 + $0xa00] sm:$0xff]
  %v370 = vld [vmem:[%s2 + $0xa08] sm:$0xff]
  %v371 = vld [vmem:[%s2 + $0xa10] sm:$0xff]
  %v372 = vld [vmem:[%s2 + $0xa18] sm:$0xff]
  %v373 = vld [vmem:[%s2 + $0xa20] sm:$0xff]
  %v374 = vld [vmem:[%s2 + $0xa28] sm:$0xff]
  %v375 = vld [vmem:[%s2 + $0xa30] sm:$0xff]
  %v376 = vld [vmem:[%s2 + $0xa38] sm:$0xff]
  %v377 = vld [vmem:[%s2 + $0xa40] sm:$0xff]
  %v378 = vld [vmem:[%s2 + $0xa48] sm:$0xff]
  %v379 = vld [vmem:[%s2 + $0xa50] sm:$0xff]
  %v380 = vld [vmem:[%s2 + $0xa58] sm:$0xff]
  %v381 = vld [vmem:[%s2 + $0xa60] sm:$0xff]
  %v382 = vld [vmem:[%s2 + $0xa68] sm:$0xff]
  %v383 = vld [vmem:[%s2 + $0xa70] sm:$0xff]
  %v384 = vld [vmem:[%s2 + $0xa78] sm:$0xff]
  %v385 = vld [vmem:[%s2 + $0xa80] sm:$0xff]
  %v386 = vld [vmem:[%s2 + $0xa88] sm:$0xff]
  %v387 = vld [vmem:[%s2 + $0xa90] sm:$0xff]
  %v388 = vld [vmem:[%s2 + $0xa98] sm:$0xff]
  %v389 = vld [vmem:[%s2 + $0xaa0] sm:$0xff]
  %v390 = vld [vmem:[%s2 + $0xaa8] sm:$0xff]
  %v391 = vld [vmem:[%s2 + $0xab0] sm:$0xff]
  %v392 = vld [vmem:[%s2 + $0xab8] sm:$0xff]
  %v393 = vld [vmem:[%s2 + $0xac0] sm:$0xff]
  %v394 = vld [vmem:[%s2 + $0xac8] sm:$0xff]
  %v395 = vld [vmem:[%s2 + $0xad0] sm:$0xff]
  %v396 = vld [vmem:[%s2 + $0xad8] sm:$0xff]
  %v397 = vld [vmem:[%s2 + $0xae0] sm:$0xff]
  %v398 = vld [vmem:[%s2 + $0xae8] sm:$0xff]
  %v399 = vld [vmem:[%s2 + $0xaf0] sm:$0xff]
  %v400 = vld [vmem:[%s2 + $0xaf8] sm:$0xff]
  %v401 = vld [vmem:[%s2 + $0xb00] sm:$0xff]
  %v402 = vld [vmem:[%s2 + $0xb08] sm:$0xff]
  %v403 = vld [vmem:[%s2 + $0xb10] sm:$0xff]
  %v404 = vld [vmem:[%s2 + $0xb18] sm:$0xff]
  %v405 = vld [vmem:[%s2 + $0xb20] sm:$0xff]
  %v406 = vld [vmem:[%s2 + $0xb28] sm:$0xff]
  %v407 = vld [vmem:[%s2 + $0xb30] sm:$0xff]
  %v408 = vld [vmem:[%s2 + $0xb38] sm:$0xff]
  %v409 = vld [vmem:[%s2 + $0xb40] sm:$0xff]
  %v410 = vld [vmem:[%s2 + $0xb48] sm:$0xff]
  %v411 = vld [vmem:[%s2 + $0xb50] sm:$0xff]
  %v412 = vld [vmem:[%s2 + $0xb58] sm:$0xff]
  %v413 = vld [vmem:[%s2 + $0xb60] sm:$0xff]
  %v414 = vld [vmem:[%s2 + $0xb68] sm:$0xff]
  %v415 = vld [vmem:[%s2 + $0xb70] sm:$0xff]
  %v416 = vld [vmem:[%s2 + $0xb78] sm:$0xff]
  %v417 = vld [vmem:[%s2 + $0xb80] sm:$0xff]
  %v418 = vld [vmem:[%s2 + $0xb88] sm:$0xff]
  %v419 = vld [vmem:[%s2 + $0xb90] sm:$0xff]
  %v420 = vld [vmem:[%s2 + $0xb98] sm:$0xff]
  %v421 = vld [vmem:[%s2 + $0xba0] sm:$0xff]
  %v422 = vld [vmem:[%s2 + $0xba8] sm:$0xff]
  %v423 = vld [vmem:[%s2 + $0xbb0] sm:$0xff]
  %v424 = vld [vmem:[%s2 + $0xbb8] sm:$0xff]
  %v425 = vld [vmem:[%s2 + $0xbc0] sm:$0xff]
  %v426 = vld [vmem:[%s2 + $0xbc8] sm:$0xff]
  %v427 = vld [vmem:[%s2 + $0xbd0] sm:$0xff]
  %v428 = vld [vmem:[%s2 + $0xbd8] sm:$0xff]
  %v429 = vld [vmem:[%s2 + $0xbe0] sm:$0xff]
  %v430 = vld [vmem:[%s2 + $0xbe8] sm:$0xff]
  %v431 = vld [vmem:[%s2 + $0xbf0] sm:$0xff]
  %v432 = vld [vmem:[%s2 + $0xbf8] sm:$0xff]
  %v433 = vld [vmem:[%s2 + $0xc00] sm:$0xff]
  %v434 = vld [vmem:[%s2 + $0xc08] sm:$0xff]
  %v435 = vld [vmem:[%s2 + $0xc10] sm:$0xff]
  %v436 = vld [vmem:[%s2 + $0xc18] sm:$0xff]
  %v437 = vld [vmem:[%s2 + $0xc20] sm:$0xff]
  %v438 = vld [vmem:[%s2 + $0xc28] sm:$0xff]
  %v439 = vld [vmem:[%s2 + $0xc30] sm:$0xff]
  %v440 = vld [vmem:[%s2 + $0xc38] sm:$0xff]
  %v441 = vld [vmem:[%s2 + $0xc40] sm:$0xff]
  %v442 = vld [vmem:[%s2 + $0xc48] sm:$0xff]
  %v443 = vld [vmem:[%s2 + $0xc50] sm:$0xff]
  %v444 = vld [vmem:[%s2 + $0xc58] sm:$0xff]
  %v445 = vld [vmem:[%s2 + $0xc60] sm:$0xff]
  %v446 = vld [vmem:[%s2 + $0xc68] sm:$0xff]
  %v447 = vld [vmem:[%s2 + $0xc70] sm:$0xff]
  %v448 = vld [vmem:[%s2 + $0xc78] sm:$0xff]
  %v449 = vld [vmem:[%s2 + $0xc80] sm:$0xff]
  %v450 = vld [vmem:[%s2 + $0xc88] sm:$0xff]
  %v451 = vld [vmem:[%s2 + $0xc90] sm:$0xff]
  %v452 = vld [vmem:[%s2 + $0xc98] sm:$0xff]
  %v453 = vld [vmem:[%s2 + $0xca0] sm:$0xff]
  %v454 = vld [vmem:[%s2 + $0xca8] sm:$0xff]
  %v455 = vld [vmem:[%s2 + $0xcb0] sm:$0xff]
  %v456 = vld [vmem:[%s2 + $0xcb8] sm:$0xff]
  %v457 = vld [vmem:[%s2 + $0xcc0] sm:$0xff]
  %v458 = vld [vmem:[%s2 + $0xcc8] sm:$0xff]
  %v459 = vld [vmem:[%s2 + $0xcd0] sm:$0xff]
  %v460 = vld [vmem:[%s2 + $0xcd8] sm:$0xff]
  %v461 = vld [vmem:[%s2 + $0xce0] sm:$0xff]
  %v462 = vld [vmem:[%s2 + $0xce8] sm:$0xff]
  %v463 = vld [vmem:[%s2 + $0xcf0] sm:$0xff]
  %v464 = vld [vmem:[%s2 + $0xcf8] sm:$0xff]
  %v465 = vld [vmem:[%s2 + $0xd00] sm:$0xff]
  %v466 = vld [vmem:[%s2 + $0xd08] sm:$0xff]
  %v467 = vld [vmem:[%s2 + $0xd10] sm:$0xff]
  %v468 = vld [vmem:[%s2 + $0xd18] sm:$0xff]
  %v469 = vld [vmem:[%s2 + $0xd20] sm:$0xff]
  %v470 = vld [vmem:[%s2 + $0xd28] sm:$0xff]
  %v471 = vld [vmem:[%s2 + $0xd30] sm:$0xff]
  %v472 = vld [vmem:[%s2 + $0xd38] sm:$0xff]
  %v473 = vld [vmem:[%s2 + $0xd40] sm:$0xff]
  %v474 = vld [vmem:[%s2 + $0xd48] sm:$0xff]
  %v475 = vld [vmem:[%s2 + $0xd50] sm:$0xff]
  %v476 = vld [vmem:[%s2 + $0xd58] sm:$0xff]
  %v477 = vld [vmem:[%s2 + $0xd60] sm:$0xff]
  %v478 = vld [vmem:[%s2 + $0xd68] sm:$0xff]
  %v479 = vld [vmem:[%s2 + $0xd70] sm:$0xff]
  %v480 = vld [vmem:[%s2 + $0xd78] sm:$0xff]
  %v481 = vld [vmem:[%s2 + $0xd80] sm:$0xff]
  %v482 = vld [vmem:[%s2 + $0xd88] sm:$0xff]
  %v483 = vld [vmem:[%s2 + $0xd90] sm:$0xff]
  %v484 = vld [vmem:[%s2 + $0xd98] sm:$0xff]
  %v485 = vld [vmem:[%s2 + $0xda0] sm:$0xff]
  %v486 = vld [vmem:[%s2 + $0xda8] sm:$0xff]
  %v487 = vld [vmem:[%s2 + $0xdb0] sm:$0xff]
  %v488 = vld [vmem:[%s2 + $0xdb8] sm:$0xff]
  %v489 = vld [vmem:[%s2 + $0xdc0] sm:$0xff]
  %v490 = vld [vmem:[%s2 + $0xdc8] sm:$0xff]
  %v491 = vld [vmem:[%s2 + $0xdd0] sm:$0xff]
  %v492 = vld [vmem:[%s2 + $0xdd8] sm:$0xff]
  %v493 = vld [vmem:[%s2 + $0xde0] sm:$0xff]
  %v494 = vld [vmem:[%s2 + $0xde8] sm:$0xff]
  %v495 = vld [vmem:[%s2 + $0xdf0] sm:$0xff]
  %v496 = vld [vmem:[%s2 + $0xdf8] sm:$0xff]
  %v497 = vld [vmem:[%s2 + $0xe00] sm:$0xff]
  %v498 = vld [vmem:[%s2 + $0xe08] sm:$0xff]
  %v499 = vld [vmem:[%s2 + $0xe10] sm:$0xff]
  %v500 = vld [vmem:[%s2 + $0xe18] sm:$0xff]
  %v501 = vld [vmem:[%s2 + $0xe20] sm:$0xff]
  %v502 = vld [vmem:[%s2 + $0xe28] sm:$0xff]
  %v503 = vld [vmem:[%s2 + $0xe30] sm:$0xff]
  %v504 = vld [vmem:[%s2 + $0xe38] sm:$0xff]
  %v505 = vld [vmem:[%s2 + $0xe40] sm:$0xff]
  %v506 = vld [vmem:[%s2 + $0xe48] sm:$0xff]
  %v507 = vld [vmem:[%s2 + $0xe50] sm:$0xff]
  %v508 = vld [vmem:[%s2 + $0xe58] sm:$0xff]
  %v509 = vld [vmem:[%s2 + $0xe60] sm:$0xff]
  %v510 = vld [vmem:[%s2 + $0xe68] sm:$0xff]
  %v511 = vld [vmem:[%s2 + $0xe70] sm:$0xff]
  %v512 = vld [vmem:[%s2 + $0xe78] sm:$0xff]
  %v513 = vld [vmem:[%s2 + $0xe80] sm:$0xff]
  %v514 = vld [vmem:[%s2 + $0xe88] sm:$0xff]
  %v515 = vld [vmem:[%s2 + $0xe90] sm:$0xff]
  %v516 = vld [vmem:[%s2 + $0xe98] sm:$0xff]
  %v517 = vld [vmem:[%s2 + $0xea0] sm:$0xff]
  %v518 = vld [vmem:[%s2 + $0xea8] sm:$0xff]
  %v519 = vld [vmem:[%s2 + $0xeb0] sm:$0xff]
  %v520 = vld [vmem:[%s2 + $0xeb8] sm:$0xff]
  %v521 = vld [vmem:[%s2 + $0xec0] sm:$0xff]
  %v522 = vld [vmem:[%s2 + $0xec8] sm:$0xff]
  %v523 = vld [vmem:[%s2 + $0xed0] sm:$0xff]
  %v524 = vld [vmem:[%s2 + $0xed8] sm:$0xff]
  %v525 = vld [vmem:[%s2 + $0xee0] sm:$0xff]
  %v526 = vld [vmem:[%s2 + $0xee8] sm:$0xff]
  %v527 = vld [vmem:[%s2 + $0xef0] sm:$0xff]
  %v528 = vld [vmem:[%s2 + $0xef8] sm:$0xff]
  %v529 = vld [vmem:[%s2 + $0xf00] sm:$0xff]
  %v530 = vld [vmem:[%s2 + $0xf08] sm:$0xff]
  %v531 = vld [vmem:[%s2 + $0xf10] sm:$0xff]
  %v532 = vld [vmem:[%s2 + $0xf18] sm:$0xff]
  %v533 = vld [vmem:[%s2 + $0xf20] sm:$0xff]
  %v534 = vld [vmem:[%s2 + $0xf28] sm:$0xff]
  %v535 = vld [vmem:[%s2 + $0xf30] sm:$0xff]
  %v536 = vld [vmem:[%s2 + $0xf38] sm:$0xff]
  %v537 = vld [vmem:[%s2 + $0xf40] sm:$0xff]
  %v538 = vld [vmem:[%s2 + $0xf48] sm:$0xff]
  %v539 = vld [vmem:[%s2 + $0xf50] sm:$0xff]
  %v540 = vld [vmem:[%s2 + $0xf58] sm:$0xff]
  %v541 = vld [vmem:[%s2 + $0xf60] sm:$0xff]
  %v542 = vld [vmem:[%s2 + $0xf68] sm:$0xff]
  %v543 = vld [vmem:[%s2 + $0xf70] sm:$0xff]
  %v544 = vld [vmem:[%s2 + $0xf78] sm:$0xff]
  %v545 = vld [vmem:[%s2 + $0xf80] sm:$0xff]
  %v546 = vld [vmem:[%s2 + $0xf88] sm:$0xff]
  %v547 = vld [vmem:[%s2 + $0xf90] sm:$0xff]
  %v548 = vld [vmem:[%s2 + $0xf98] sm:$0xff]
  %v549 = vld [vmem:[%s2 + $0xfa0] sm:$0xff]
  %v550 = vld [vmem:[%s2 + $0xfa8] sm:$0xff]
  %v551 = vld [vmem:[%s2 + $0xfb0] sm:$0xff]
  %v552 = vld [vmem:[%s2 + $0xfb8] sm:$0xff]
  %v553 = vld [vmem:[%s2 + $0xfc0] sm:$0xff]
  %v554 = vld [vmem:[%s2 + $0xfc8] sm:$0xff]
  %v555 = vld [vmem:[%s2 + $0xfd0] sm:$0xff]
  %v556 = vld [vmem:[%s2 + $0xfd8] sm:$0xff]
  %v557 = vld [vmem:[%s2 + $0xfe0] sm:$0xff]
  %v558 = vld [vmem:[%s2 + $0xfe8] sm:$0xff]
  %v559 = vld [vmem:[%s2 + $0xff0] sm:$0xff]
  %v560 = vld [vmem:[%s2 + $0xff8] sm:$0xff]
  %v561 = vld [vmem:[%s2 + $0x1000] sm:$0xff]
  %v562 = vld [vmem:[%s2 + $0x1008] sm:$0xff]
  %v563 = vld [vmem:[%s2 + $0x1010] sm:$0xff]
  %v564 = vld [vmem:[%s2 + $0x1018] sm:$0xff]
  %v565 = vld [vmem:[%s2 + $0x1020] sm:$0xff]
  %v566 = vld [vmem:[%s2 + $0x1028] sm:$0xff]
  %v567 = vld [vmem:[%s2 + $0x1030] sm:$0xff]
  %v568 = vld [vmem:[%s2 + $0x1038] sm:$0xff]
  %v569 = vld [vmem:[%s2 + $0x1040] sm:$0xff]
  %v570 = vld [vmem:[%s2 + $0x1048] sm:$0xff]
  %v571 = vld [vmem:[%s2 + $0x1050] sm:$0xff]
  %v572 = vld [vmem:[%s2 + $0x1058] sm:$0xff]
  %v573 = vld [vmem:[%s2 + $0x1060] sm:$0xff]
  %v574 = vld [vmem:[%s2 + $0x1068] sm:$0xff]
  %v575 = vld [vmem:[%s2 + $0x1070] sm:$0xff]
  %v576 = vld [vmem:[%s2 + $0x1078] sm:$0xff]
  %v577 = vld [vmem:[%s2 + $0x1080] sm:$0xff]
  %v578 = vld [vmem:[%s2 + $0x1088] sm:$0xff]
  %v579 = vld [vmem:[%s2 + $0x1090] sm:$0xff]
  %v580 = vld [vmem:[%s2 + $0x1098] sm:$0xff]
  %v581 = vld [vmem:[%s2 + $0x10a0] sm:$0xff]
  %v582 = vld [vmem:[%s2 + $0x10a8] sm:$0xff]
  %v583 = vld [vmem:[%s2 + $0x10b0] sm:$0xff]
  %v584 = vld [vmem:[%s2 + $0x10b8] sm:$0xff]
  %v585 = vld [vmem:[%s2 + $0x10c0] sm:$0xff]
  %v586 = vld [vmem:[%s2 + $0x10c8] sm:$0xff]
  %v587 = vld [vmem:[%s2 + $0x10d0] sm:$0xff]
  %v588 = vld [vmem:[%s2 + $0x10d8] sm:$0xff]
  %v589 = vld [vmem:[%s2 + $0x10e0] sm:$0xff]
  %v590 = vld [vmem:[%s2 + $0x10e8] sm:$0xff]
  %v591 = vld [vmem:[%s2 + $0x10f0] sm:$0xff]
  %v592 = vld [vmem:[%s2 + $0x10f8] sm:$0xff]
  %v593 = vld [vmem:[%s2 + $0x1100] sm:$0xff]
  %v594 = vld [vmem:[%s2 + $0x1108] sm:$0xff]
  %v595 = vld [vmem:[%s2 + $0x1110] sm:$0xff]
  %v596 = vld [vmem:[%s2 + $0x1118] sm:$0xff]
  %v597 = vld [vmem:[%s2 + $0x1120] sm:$0xff]
  %v598 = vld [vmem:[%s2 + $0x1128] sm:$0xff]
  %v599 = vld [vmem:[%s2 + $0x1130] sm:$0xff]
  %v600 = vld [vmem:[%s2 + $0x1138] sm:$0xff]
  %v601 = vld [vmem:[%s2 + $0x1140] sm:$0xff]
  %v602 = vld [vmem:[%s2 + $0x1148] sm:$0xff]
  %v603 = vld [vmem:[%s2 + $0x1150] sm:$0xff]
  %v604 = vld [vmem:[%s2 + $0x1158] sm:$0xff]
  %v605 = vld [vmem:[%s2 + $0x1160] sm:$0xff]
  %v606 = vld [vmem:[%s2 + $0x1168] sm:$0xff]
  %v607 = vld [vmem:[%s2 + $0x1170] sm:$0xff]
  %v608 = vld [vmem:[%s2 + $0x1178] sm:$0xff]
  %v609 = vld [vmem:[%s2 + $0x1180] sm:$0xff]
  %v610 = vld [vmem:[%s2 + $0x1188] sm:$0xff]
  %v611 = vld [vmem:[%s2 + $0x1190] sm:$0xff]
  %v612 = vld [vmem:[%s2 + $0x1198] sm:$0xff]
  %v613 = vld [vmem:[%s2 + $0x11a0] sm:$0xff]
  %v614 = vld [vmem:[%s2 + $0x11a8] sm:$0xff]
  %v615 = vld [vmem:[%s2 + $0x11b0] sm:$0xff]
  %v616 = vld [vmem:[%s2 + $0x11b8] sm:$0xff]
  %v617 = vld [vmem:[%s2 + $0x11c0] sm:$0xff]
  %v618 = vld [vmem:[%s2 + $0x11c8] sm:$0xff]
  %v619 = vld [vmem:[%s2 + $0x11d0] sm:$0xff]
  %v620 = vld [vmem:[%s2 + $0x11d8] sm:$0xff]
  %v621 = vld [vmem:[%s2 + $0x11e0] sm:$0xff]
  %v622 = vld [vmem:[%s2 + $0x11e8] sm:$0xff]
  %v623 = vld [vmem:[%s2 + $0x11f0] sm:$0xff]
  %v624 = vld [vmem:[%s2 + $0x11f8] sm:$0xff]
  %v625 = vld [vmem:[%s2 + $0x1200] sm:$0xff]
  %v626 = vld [vmem:[%s2 + $0x1208] sm:$0xff]
  %v627 = vld [vmem:[%s2 + $0x1210] sm:$0xff]
  %v628 = vld [vmem:[%s2 + $0x1218] sm:$0xff]
  %v629 = vld [vmem:[%s2 + $0x1220] sm:$0xff]
  %v630 = vld [vmem:[%s2 + $0x1228] sm:$0xff]
  %v631 = vld [vmem:[%s2 + $0x1230] sm:$0xff]
  %v632 = vld [vmem:[%s2 + $0x1238] sm:$0xff]
  %v633 = vld [vmem:[%s2 + $0x1240] sm:$0xff]
  %v634 = vld [vmem:[%s2 + $0x1248] sm:$0xff]
  %v635 = vld [vmem:[%s2 + $0x1250] sm:$0xff]
  %v636 = vld [vmem:[%s2 + $0x1258] sm:$0xff]
  %v637 = vld [vmem:[%s2 + $0x1260] sm:$0xff]
  %v638 = vld [vmem:[%s2 + $0x1268] sm:$0xff]
  %v639 = vld [vmem:[%s2 + $0x1270] sm:$0xff]
  %v640 = vld [vmem:[%s2 + $0x1278] sm:$0xff]
  %v641 = vld [vmem:[%s2 + $0x1280] sm:$0xff]
  %v642 = vld [vmem:[%s2 + $0x1288] sm:$0xff]
  %v643 = vld [vmem:[%s2 + $0x1290] sm:$0xff]
  %v644 = vld [vmem:[%s2 + $0x1298] sm:$0xff]
  %v645 = vld [vmem:[%s2 + $0x12a0] sm:$0xff]
  %v646 = vld [vmem:[%s2 + $0x12a8] sm:$0xff]
  %v647 = vld [vmem:[%s2 + $0x12b0] sm:$0xff]
  %v648 = vld [vmem:[%s2 + $0x12b8] sm:$0xff]
  %v649 = vld [vmem:[%s2 + $0x12c0] sm:$0xff]
  %v650 = vld [vmem:[%s2 + $0x12c8] sm:$0xff]
  %v651 = vld [vmem:[%s2 + $0x12d0] sm:$0xff]
  %v652 = vld [vmem:[%s2 + $0x12d8] sm:$0xff]
  %v653 = vld [vmem:[%s2 + $0x12e0] sm:$0xff]
  %v654 = vld [vmem:[%s2 + $0x12e8] sm:$0xff]
  %v655 = vld [vmem:[%s2 + $0x12f0] sm:$0xff]
  %v656 = vld [vmem:[%s2 + $0x12f8] sm:$0xff]
  %v657 = vld [vmem:[%s2 + $0x1300] sm:$0xff]
  %v658 = vld [vmem:[%s2 + $0x1308] sm:$0xff]
  %v659 = vld [vmem:[%s2 + $0x1310] sm:$0xff]
  %v660 = vld [vmem:[%s2 + $0x1318] sm:$0xff]
  %v661 = vld [vmem:[%s2 + $0x1320] sm:$0xff]
  %v662 = vld [vmem:[%s2 + $0x1328] sm:$0xff]
  %v663 = vld [vmem:[%s2 + $0x1330] sm:$0xff]
  %v664 = vld [vmem:[%s2 + $0x1338] sm:$0xff]
  %v665 = vld [vmem:[%s2 + $0x1340] sm:$0xff]
  %v666 = vld [vmem:[%s2 + $0x1348] sm:$0xff]
  %v667 = vld [vmem:[%s2 + $0x1350] sm:$0xff]
  %v668 = vld [vmem:[%s2 + $0x1358] sm:$0xff]
  %v669 = vld [vmem:[%s2 + $0x1360] sm:$0xff]
  %v670 = vld [vmem:[%s2 + $0x1368] sm:$0xff]
  %v671 = vld [vmem:[%s2 + $0x1370] sm:$0xff]
  %v672 = vld [vmem:[%s2 + $0x1378] sm:$0xff]
  %v673 = vld [vmem:[%s2 + $0x1380] sm:$0xff]
  %v674 = vld [vmem:[%s2 + $0x1388] sm:$0xff]
  %v675 = vld [vmem:[%s2 + $0x1390] sm:$0xff]
  %v676 = vld [vmem:[%s2 + $0x1398] sm:$0xff]
  %v677 = vld [vmem:[%s2 + $0x13a0] sm:$0xff]
  %v678 = vld [vmem:[%s2 + $0x13a8] sm:$0xff]
  %v679 = vld [vmem:[%s2 + $0x13b0] sm:$0xff]
  %v680 = vld [vmem:[%s2 + $0x13b8] sm:$0xff]
  %v681 = vld [vmem:[%s2 + $0x13c0] sm:$0xff]
  %v682 = vld [vmem:[%s2 + $0x13c8] sm:$0xff]
  %v683 = vld [vmem:[%s2 + $0x13d0] sm:$0xff]
  %v684 = vld [vmem:[%s2 + $0x13d8] sm:$0xff]
  %v685 = vld [vmem:[%s2 + $0x13e0] sm:$0xff]
  %v686 = vld [vmem:[%s2 + $0x13e8] sm:$0xff]
  %v687 = vld [vmem:[%s2 + $0x13f0] sm:$0xff]
  %v688 = vld [vmem:[%s2 + $0x13f8] sm:$0xff]
  %v689 = vld [vmem:[%s2 + $0x1400] sm:$0xff]
  %v690 = vld [vmem:[%s2 + $0x1408] sm:$0xff]
  %v691 = vld [vmem:[%s2 + $0x1410] sm:$0xff]
  %v692 = vld [vmem:[%s2 + $0x1418] sm:$0xff]
  %v693 = vld [vmem:[%s2 + $0x1420] sm:$0xff]
  %v694 = vld [vmem:[%s2 + $0x1428] sm:$0xff]
  %v695 = vld [vmem:[%s2 + $0x1430] sm:$0xff]
  %v696 = vld [vmem:[%s2 + $0x1438] sm:$0xff]
  %v697 = vld [vmem:[%s2 + $0x1440] sm:$0xff]
  %v698 = vld [vmem:[%s2 + $0x1448] sm:$0xff]
  %v699 = vld [vmem:[%s2 + $0x1450] sm:$0xff]
  %v700 = vld [vmem:[%s2 + $0x1458] sm:$0xff]
  %v701 = vld [vmem:[%s2 + $0x1460] sm:$0xff]
  %v702 = vld [vmem:[%s2 + $0x1468] sm:$0xff]
  %v703 = vld [vmem:[%s2 + $0x1470] sm:$0xff]
  %v704 = vld [vmem:[%s2 + $0x1478] sm:$0xff]
  %v705 = vld [vmem:[%s2 + $0x1480] sm:$0xff]
  %v706 = vld [vmem:[%s2 + $0x1488] sm:$0xff]
  %v707 = vld [vmem:[%s2 + $0x1490] sm:$0xff]
  %v708 = vld [vmem:[%s2 + $0x1498] sm:$0xff]
  %v709 = vld [vmem:[%s2 + $0x14a0] sm:$0xff]
  %v710 = vld [vmem:[%s2 + $0x14a8] sm:$0xff]
  %v711 = vld [vmem:[%s2 + $0x14b0] sm:$0xff]
  %v712 = vld [vmem:[%s2 + $0x14b8] sm:$0xff]
  %v713 = vld [vmem:[%s2 + $0x14c0] sm:$0xff]
  %v714 = vld [vmem:[%s2 + $0x14c8] sm:$0xff]
  %v715 = vld [vmem:[%s2 + $0x14d0] sm:$0xff]
  %v716 = vld [vmem:[%s2 + $0x14d8] sm:$0xff]
  %v717 = vld [vmem:[%s2 + $0x14e0] sm:$0xff]
  %v718 = vld [vmem:[%s2 + $0x14e8] sm:$0xff]
  %v719 = vld [vmem:[%s2 + $0x14f0] sm:$0xff]
  %v720 = vld [vmem:[%s2 + $0x14f8] sm:$0xff]
  %v721 = vld [vmem:[%s2 + $0x1500] sm:$0xff]
  %v722 = vld [vmem:[%s2 + $0x1508] sm:$0xff]
  %v723 = vld [vmem:[%s2 + $0x1510] sm:$0xff]
  %v724 = vld [vmem:[%s2 + $0x1518] sm:$0xff]
  %v725 = vld [vmem:[%s2 + $0x1520] sm:$0xff]
  %v726 = vld [vmem:[%s2 + $0x1528] sm:$0xff]
  %v727 = vld [vmem:[%s2 + $0x1530] sm:$0xff]
  %v728 = vld [vmem:[%s2 + $0x1538] sm:$0xff]
  %v729 = vld [vmem:[%s2 + $0x1540] sm:$0xff]
  %v730 = vld [vmem:[%s2 + $0x1548] sm:$0xff]
  %v731 = vld [vmem:[%s2 + $0x1550] sm:$0xff]
  %v732 = vld [vmem:[%s2 + $0x1558] sm:$0xff]
  %v733 = vld [vmem:[%s2 + $0x1560] sm:$0xff]
  %v734 = vld [vmem:[%s2 + $0x1568] sm:$0xff]
  %v735 = vld [vmem:[%s2 + $0x1570] sm:$0xff]
  %v736 = vld [vmem:[%s2 + $0x1578] sm:$0xff]
  %v737 = vld [vmem:[%s2 + $0x1580] sm:$0xff]
  %v738 = vld [vmem:[%s2 + $0x1588] sm:$0xff]
  %v739 = vld [vmem:[%s2 + $0x1590] sm:$0xff]
  %v740 = vld [vmem:[%s2 + $0x1598] sm:$0xff]
  %v741 = vld [vmem:[%s2 + $0x15a0] sm:$0xff]
  %v742 = vld [vmem:[%s2 + $0x15a8] sm:$0xff]
  %v743 = vld [vmem:[%s2 + $0x15b0] sm:$0xff]
  %v744 = vld [vmem:[%s2 + $0x15b8] sm:$0xff]
  %v745 = vld [vmem:[%s2 + $0x15c0] sm:$0xff]
  %v746 = vld [vmem:[%s2 + $0x15c8] sm:$0xff]
  %v747 = vld [vmem:[%s2 + $0x15d0] sm:$0xff]
  %v748 = vld [vmem:[%s2 + $0x15d8] sm:$0xff]
  %v749 = vld [vmem:[%s2 + $0x15e0] sm:$0xff]
  %v750 = vld [vmem:[%s2 + $0x15e8] sm:$0xff]
  %v751 = vld [vmem:[%s2 + $0x15f0] sm:$0xff]
  %v752 = vld [vmem:[%s2 + $0x15f8] sm:$0xff]
  %v753 = vld [vmem:[%s2 + $0x1600] sm:$0xff]
  %v754 = vld [vmem:[%s2 + $0x1608] sm:$0xff]
  %v755 = vld [vmem:[%s2 + $0x1610] sm:$0xff]
  %v756 = vld [vmem:[%s2 + $0x1618] sm:$0xff]
  %v757 = vld [vmem:[%s2 + $0x1620] sm:$0xff]
  %v758 = vld [vmem:[%s2 + $0x1628] sm:$0xff]
  %v759 = vld [vmem:[%s2 + $0x1630] sm:$0xff]
  %v760 = vld [vmem:[%s2 + $0x1638] sm:$0xff]
  %v761 = vld [vmem:[%s2 + $0x1640] sm:$0xff]
  %v762 = vld [vmem:[%s2 + $0x1648] sm:$0xff]
  %v763 = vld [vmem:[%s2 + $0x1650] sm:$0xff]
  %v764 = vld [vmem:[%s2 + $0x1658] sm:$0xff]
  %v765 = vld [vmem:[%s2 + $0x1660] sm:$0xff]
  %v766 = vld [vmem:[%s2 + $0x1668] sm:$0xff]
  %v767 = vld [vmem:[%s2 + $0x1670] sm:$0xff]
  %v768 = vld [vmem:[%s2 + $0x1678] sm:$0xff]
  %v769 = vld [vmem:[%s2 + $0x1680] sm:$0xff]
  %v770 = vld [vmem:[%s2 + $0x1688] sm:$0xff]
  %v771 = vld [vmem:[%s2 + $0x1690] sm:$0xff]
  %v772 = vld [vmem:[%s2 + $0x1698] sm:$0xff]
  %v773 = vld [vmem:[%s2 + $0x16a0] sm:$0xff]
  %v774 = vld [vmem:[%s2 + $0x16a8] sm:$0xff]
  %v775 = vld [vmem:[%s2 + $0x16b0] sm:$0xff]
  %v776 = vld [vmem:[%s2 + $0x16b8] sm:$0xff]
  %v777 = vld [vmem:[%s2 + $0x16c0] sm:$0xff]
  %v778 = vld [vmem:[%s2 + $0x16c8] sm:$0xff]
  %v779 = vld [vmem:[%s2 + $0x16d0] sm:$0xff]
  %v780 = vld [vmem:[%s2 + $0x16d8] sm:$0xff]
  %v781 = vld [vmem:[%s2 + $0x16e0] sm:$0xff]
  %v782 = vld [vmem:[%s2 + $0x16e8] sm:$0xff]
  %v783 = vld [vmem:[%s2 + $0x16f0] sm:$0xff]
  %v784 = vld [vmem:[%s2 + $0x16f8] sm:$0xff]
  %v785 = vld [vmem:[%s2 + $0x1700] sm:$0xff]
  %v786 = vld [vmem:[%s2 + $0x1708] sm:$0xff]
  %v787 = vld [vmem:[%s2 + $0x1710] sm:$0xff]
  %v788 = vld [vmem:[%s2 + $0x1718] sm:$0xff]
  %v789 = vld [vmem:[%s2 + $0x1720] sm:$0xff]
  %v790 = vld [vmem:[%s2 + $0x1728] sm:$0xff]
  %v791 = vld [vmem:[%s2 + $0x1730] sm:$0xff]
  %v792 = vld [vmem:[%s2 + $0x1738] sm:$0xff]
  %v793 = vld [vmem:[%s2 + $0x1740] sm:$0xff]
  %v794 = vld [vmem:[%s2 + $0x1748] sm:$0xff]
  %v795 = vld [vmem:[%s2 + $0x1750] sm:$0xff]
  %v796 = vld [vmem:[%s2 + $0x1758] sm:$0xff]
  %v797 = vld [vmem:[%s2 + $0x1760] sm:$0xff]
  %v798 = vld [vmem:[%s2 + $0x1768] sm:$0xff]
  %v799 = vld [vmem:[%s2 + $0x1770] sm:$0xff]
  %v800 = vld [vmem:[%s2 + $0x1778] sm:$0xff]
  %v801 = vld [vmem:[%s2 + $0x1780] sm:$0xff]
  %v802 = vld [vmem:[%s2 + $0x1788] sm:$0xff]
  %v803 = vld [vmem:[%s2 + $0x1790] sm:$0xff]
  %v804 = vld [vmem:[%s2 + $0x1798] sm:$0xff]
  %v805 = vld [vmem:[%s2 + $0x17a0] sm:$0xff]
  %v806 = vld [vmem:[%s2 + $0x17a8] sm:$0xff]
  %v807 = vld [vmem:[%s2 + $0x17b0] sm:$0xff]
  %v808 = vld [vmem:[%s2 + $0x17b8] sm:$0xff]
  %v809 = vld [vmem:[%s2 + $0x17c0] sm:$0xff]
  %v810 = vld [vmem:[%s2 + $0x17c8] sm:$0xff]
  %v811 = vld [vmem:[%s2 + $0x17d0] sm:$0xff]
  %v812 = vld [vmem:[%s2 + $0x17d8] sm:$0xff]
  %v813 = vld [vmem:[%s2 + $0x17e0] sm:$0xff]
  %v814 = vld [vmem:[%s2 + $0x17e8] sm:$0xff]
  %v815 = vld [vmem:[%s2 + $0x17f0] sm:$0xff]
  %v816 = vld [vmem:[%s2 + $0x17f8] sm:$0xff]
  %v817 = vld [vmem:[%s2 + $0x1800] sm:$0xff]
  %v818 = vld [vmem:[%s2 + $0x1808] sm:$0xff]
  %v819 = vld [vmem:[%s2 + $0x1810] sm:$0xff]
  %v820 = vld [vmem:[%s2 + $0x1818] sm:$0xff]
  %v821 = vld [vmem:[%s2 + $0x1820] sm:$0xff]
  %v822 = vld [vmem:[%s2 + $0x1828] sm:$0xff]
  %v823 = vld [vmem:[%s2 + $0x1830] sm:$0xff]
  %v824 = vld [vmem:[%s2 + $0x1838] sm:$0xff]
  %v825 = vld [vmem:[%s2 + $0x1840] sm:$0xff]
  %v826 = vld [vmem:[%s2 + $0x1848] sm:$0xff]
  %v827 = vld [vmem:[%s2 + $0x1850] sm:$0xff]
  %v828 = vld [vmem:[%s2 + $0x1858] sm:$0xff]
  %v829 = vld [vmem:[%s2 + $0x1860] sm:$0xff]
  %v830 = vld [vmem:[%s2 + $0x1868] sm:$0xff]
  %v831 = vld [vmem:[%s2 + $0x1870] sm:$0xff]
  %v832 = vld [vmem:[%s2 + $0x1878] sm:$0xff]
  %v833 = vld [vmem:[%s2 + $0x1880] sm:$0xff]
  %v834 = vld [vmem:[%s2 + $0x1888] sm:$0xff]
  %v835 = vld [vmem:[%s2 + $0x1890] sm:$0xff]
  %v836 = vld [vmem:[%s2 + $0x1898] sm:$0xff]
  %v837 = vld [vmem:[%s2 + $0x18a0] sm:$0xff]
  %v838 = vld [vmem:[%s2 + $0x18a8] sm:$0xff]
  %v839 = vld [vmem:[%s2 + $0x18b0] sm:$0xff]
  %v840 = vld [vmem:[%s2 + $0x18b8] sm:$0xff]
  %v841 = vld [vmem:[%s2 + $0x18c0] sm:$0xff]
  %v842 = vld [vmem:[%s2 + $0x18c8] sm:$0xff]
  %v843 = vld [vmem:[%s2 + $0x18d0] sm:$0xff]
  %v844 = vld [vmem:[%s2 + $0x18d8] sm:$0xff]
  %v845 = vld [vmem:[%s2 + $0x18e0] sm:$0xff]
  %v846 = vld [vmem:[%s2 + $0x18e8] sm:$0xff]
  %v847 = vld [vmem:[%s2 + $0x18f0] sm:$0xff]
  %v848 = vld [vmem:[%s2 + $0x18f8] sm:$0xff]
  %v849 = vld [vmem:[%s2 + $0x1900] sm:$0xff]
  %v850 = vld [vmem:[%s2 + $0x1908] sm:$0xff]
  %v851 = vld [vmem:[%s2 + $0x1910] sm:$0xff]
  %v852 = vld [vmem:[%s2 + $0x1918] sm:$0xff]
  %v853 = vld [vmem:[%s2 + $0x1920] sm:$0xff]
  %v854 = vld [vmem:[%s2 + $0x1928] sm:$0xff]
  %v855 = vld [vmem:[%s2 + $0x1930] sm:$0xff]
  %v856 = vld [vmem:[%s2 + $0x1938] sm:$0xff]
  %v857 = vld [vmem:[%s2 + $0x1940] sm:$0xff]
  %v858 = vld [vmem:[%s2 + $0x1948] sm:$0xff]
  %v859 = vld [vmem:[%s2 + $0x1950] sm:$0xff]
  %v860 = vld [vmem:[%s2 + $0x1958] sm:$0xff]
  %v861 = vld [vmem:[%s2 + $0x1960] sm:$0xff]
  %v862 = vld [vmem:[%s2 + $0x1968] sm:$0xff]
  %v863 = vld [vmem:[%s2 + $0x1970] sm:$0xff]
  %v864 = vld [vmem:[%s2 + $0x1978] sm:$0xff]
  %v865 = vld [vmem:[%s2 + $0x1980] sm:$0xff]
  %v866 = vld [vmem:[%s2 + $0x1988] sm:$0xff]
  %v867 = vld [vmem:[%s2 + $0x1990] sm:$0xff]
  %v868 = vld [vmem:[%s2 + $0x1998] sm:$0xff]
  %v869 = vld [vmem:[%s2 + $0x19a0] sm:$0xff]
  %v870 = vld [vmem:[%s2 + $0x19a8] sm:$0xff]
  %v871 = vld [vmem:[%s2 + $0x19b0] sm:$0xff]
  %v872 = vld [vmem:[%s2 + $0x19b8] sm:$0xff]
  %v873 = vld [vmem:[%s2 + $0x19c0] sm:$0xff]
  %v874 = vld [vmem:[%s2 + $0x19c8] sm:$0xff]
  %v875 = vld [vmem:[%s2 + $0x19d0] sm:$0xff]
  %v876 = vld [vmem:[%s2 + $0x19d8] sm:$0xff]
  %v877 = vld [vmem:[%s2 + $0x19e0] sm:$0xff]
  %v878 = vld [vmem:[%s2 + $0x19e8] sm:$0xff]
  %v879 = vld [vmem:[%s2 + $0x19f0] sm:$0xff]
  %v880 = vld [vmem:[%s2 + $0x19f8] sm:$0xff]
  %v881 = vld [vmem:[%s2 + $0x1a00] sm:$0xff]
  %v882 = vld [vmem:[%s2 + $0x1a08] sm:$0xff]
  %v883 = vld [vmem:[%s2 + $0x1a10] sm:$0xff]
  %v884 = vld [vmem:[%s2 + $0x1a18] sm:$0xff]
  %v885 = vld [vmem:[%s2 + $0x1a20] sm:$0xff]
  %v886 = vld [vmem:[%s2 + $0x1a28] sm:$0xff]
  %v887 = vld [vmem:[%s2 + $0x1a30] sm:$0xff]
  %v888 = vld [vmem:[%s2 + $0x1a38] sm:$0xff]
  %v889 = vld [vmem:[%s2 + $0x1a40] sm:$0xff]
  %v890 = vld [vmem:[%s2 + $0x1a48] sm:$0xff]
  %v891 = vld [vmem:[%s2 + $0x1a50] sm:$0xff]
  %v892 = vld [vmem:[%s2 + $0x1a58] sm:$0xff]
  %v893 = vld [vmem:[%s2 + $0x1a60] sm:$0xff]
  %v894 = vld [vmem:[%s2 + $0x1a68] sm:$0xff]
  %v895 = vld [vmem:[%s2 + $0x1a70] sm:$0xff]
  %v896 = vld [vmem:[%s2 + $0x1a78] sm:$0xff]
  %v897 = vld [vmem:[%s2 + $0x1a80] sm:$0xff]
  %v898 = vld [vmem:[%s2 + $0x1a88] sm:$0xff]
  %v899 = vld [vmem:[%s2 + $0x1a90] sm:$0xff]
  %v900 = vld [vmem:[%s2 + $0x1a98] sm:$0xff]
  %v901 = vld [vmem:[%s2 + $0x1aa0] sm:$0xff]
  %v902 = vld [vmem:[%s2 + $0x1aa8] sm:$0xff]
  %v903 = vld [vmem:[%s2 + $0x1ab0] sm:$0xff]
  %v904 = vld [vmem:[%s2 + $0x1ab8] sm:$0xff]
  %v905 = vld [vmem:[%s2 + $0x1ac0] sm:$0xff]
  %v906 = vld [vmem:[%s2 + $0x1ac8] sm:$0xff]
  %v907 = vld [vmem:[%s2 + $0x1ad0] sm:$0xff]
  %v908 = vld [vmem:[%s2 + $0x1ad8] sm:$0xff]
  %v909 = vld [vmem:[%s2 + $0x1ae0] sm:$0xff]
  %v910 = vld [vmem:[%s2 + $0x1ae8] sm:$0xff]
  %v911 = vld [vmem:[%s2 + $0x1af0] sm:$0xff]
  %v912 = vld [vmem:[%s2 + $0x1af8] sm:$0xff]
  %v913 = vld [vmem:[%s2 + $0x1b00] sm:$0xff]
  %v914 = vld [vmem:[%s2 + $0x1b08] sm:$0xff]
  %v915 = vld [vmem:[%s2 + $0x1b10] sm:$0xff]
  %v916 = vld [vmem:[%s2 + $0x1b18] sm:$0xff]
  %v917 = vld [vmem:[%s2 + $0x1b20] sm:$0xff]
  %v918 = vld [vmem:[%s2 + $0x1b28] sm:$0xff]
  %v919 = vld [vmem:[%s2 + $0x1b30] sm:$0xff]
  %v920 = vld [vmem:[%s2 + $0x1b38] sm:$0xff]
  %v921 = vld [vmem:[%s2 + $0x1b40] sm:$0xff]
  %v922 = vld [vmem:[%s2 + $0x1b48] sm:$0xff]
  %v923 = vld [vmem:[%s2 + $0x1b50] sm:$0xff]
  %v924 = vld [vmem:[%s2 + $0x1b58] sm:$0xff]
  %v925 = vld [vmem:[%s2 + $0x1b60] sm:$0xff]
  %v926 = vld [vmem:[%s2 + $0x1b68] sm:$0xff]
  %v927 = vld [vmem:[%s2 + $0x1b70] sm:$0xff]
  %v928 = vld [vmem:[%s2 + $0x1b78] sm:$0xff]
  %v929 = vld [vmem:[%s2 + $0x1b80] sm:$0xff]
  %v930 = vld [vmem:[%s2 + $0x1b88] sm:$0xff]
  %v931 = vld [vmem:[%s2 + $0x1b90] sm:$0xff]
  %v932 = vld [vmem:[%s2 + $0x1b98] sm:$0xff]
  %v933 = vld [vmem:[%s2 + $0x1ba0] sm:$0xff]
  %v934 = vld [vmem:[%s2 + $0x1ba8] sm:$0xff]
  %v935 = vld [vmem:[%s2 + $0x1bb0] sm:$0xff]
  %v936 = vld [vmem:[%s2 + $0x1bb8] sm:$0xff]
  %v937 = vld [vmem:[%s2 + $0x1bc0] sm:$0xff]
  %v938 = vld [vmem:[%s2 + $0x1bc8] sm:$0xff]
  %v939 = vld [vmem:[%s2 + $0x1bd0] sm:$0xff]
  %v940 = vld [vmem:[%s2 + $0x1bd8] sm:$0xff]
  %v941 = vld [vmem:[%s2 + $0x1be0] sm:$0xff]
  %v942 = vld [vmem:[%s2 + $0x1be8] sm:$0xff]
  %v943 = vld [vmem:[%s2 + $0x1bf0] sm:$0xff]
  %v944 = vld [vmem:[%s2 + $0x1bf8] sm:$0xff]
  %v945 = vld [vmem:[%s2 + $0x1c00] sm:$0xff]
  %v946 = vld [vmem:[%s2 + $0x1c08] sm:$0xff]
  %v947 = vld [vmem:[%s2 + $0x1c10] sm:$0xff]
  %v948 = vld [vmem:[%s2 + $0x1c18] sm:$0xff]
  %v949 = vld [vmem:[%s2 + $0x1c20] sm:$0xff]
  %v950 = vld [vmem:[%s2 + $0x1c28] sm:$0xff]
  %v951 = vld [vmem:[%s2 + $0x1c30] sm:$0xff]
  %v952 = vld [vmem:[%s2 + $0x1c38] sm:$0xff]
  %v953 = vld [vmem:[%s2 + $0x1c40] sm:$0xff]
  %v954 = vld [vmem:[%s2 + $0x1c48] sm:$0xff]
  %v955 = vld [vmem:[%s2 + $0x1c50] sm:$0xff]
  %v956 = vld [vmem:[%s2 + $0x1c58] sm:$0xff]
  %v957 = vld [vmem:[%s2 + $0x1c60] sm:$0xff]
  %v958 = vld [vmem:[%s2 + $0x1c68] sm:$0xff]
  %v959 = vld [vmem:[%s2 + $0x1c70] sm:$0xff]
  %v960 = vld [vmem:[%s2 + $0x1c78] sm:$0xff]
  %v961 = vld [vmem:[%s2 + $0x1c80] sm:$0xff]
  %v962 = vld [vmem:[%s2 + $0x1c88] sm:$0xff]
  %v963 = vld [vmem:[%s2 + $0x1c90] sm:$0xff]
  %v964 = vld [vmem:[%s2 + $0x1c98] sm:$0xff]
  %v965 = vld [vmem:[%s2 + $0x1ca0] sm:$0xff]
  %v966 = vld [vmem:[%s2 + $0x1ca8] sm:$0xff]
  %v967 = vld [vmem:[%s2 + $0x1cb0] sm:$0xff]
  %v968 = vld [vmem:[%s2 + $0x1cb8] sm:$0xff]
  %v969 = vld [vmem:[%s2 + $0x1cc0] sm:$0xff]
  %v970 = vld [vmem:[%s2 + $0x1cc8] sm:$0xff]
  %v971 = vld [vmem:[%s2 + $0x1cd0] sm:$0xff]
  %v972 = vld [vmem:[%s2 + $0x1cd8] sm:$0xff]
  %v973 = vld [vmem:[%s2 + $0x1ce0] sm:$0xff]
  %v974 = vld [vmem:[%s2 + $0x1ce8] sm:$0xff]
  %v975 = vld [vmem:[%s2 + $0x1cf0] sm:$0xff]
  %v976 = vld [vmem:[%s2 + $0x1cf8] sm:$0xff]
  %v977 = vld [vmem:[%s2 + $0x1d00] sm:$0xff]
  %v978 = vld [vmem:[%s2 + $0x1d08] sm:$0xff]
  %v979 = vld [vmem:[%s2 + $0x1d10] sm:$0xff]
  %v980 = vld [vmem:[%s2 + $0x1d18] sm:$0xff]
  %v981 = vld [vmem:[%s2 + $0x1d20] sm:$0xff]
  %v982 = vld [vmem:[%s2 + $0x1d28] sm:$0xff]
  %v983 = vld [vmem:[%s2 + $0x1d30] sm:$0xff]
  %v984 = vld [vmem:[%s2 + $0x1d38] sm:$0xff]
  %v985 = vld [vmem:[%s2 + $0x1d40] sm:$0xff]
  %v986 = vld [vmem:[%s2 + $0x1d48] sm:$0xff]
  %v987 = vld [vmem:[%s2 + $0x1d50] sm:$0xff]
  %v988 = vld [vmem:[%s2 + $0x1d58] sm:$0xff]
  %v989 = vld [vmem:[%s2 + $0x1d60] sm:$0xff]
  %v990 = vld [vmem:[%s2 + $0x1d68] sm:$0xff]
  %v991 = vld [vmem:[%s2 + $0x1d70] sm:$0xff]
  %v992 = vld [vmem:[%s2 + $0x1d78] sm:$0xff]
  %v993 = vld [vmem:[%s2 + $0x1d80] sm:$0xff]
  %v994 = vld [vmem:[%s2 + $0x1d88] sm:$0xff]
  %v995 = vld [vmem:[%s2 + $0x1d90] sm:$0xff]
  %v996 = vld [vmem:[%s2 + $0x1d98] sm:$0xff]
  %v997 = vld [vmem:[%s2 + $0x1da0] sm:$0xff]
  %v998 = vld [vmem:[%s2 + $0x1da8] sm:$0xff]
  %v999 = vld [vmem:[%s2 + $0x1db0] sm:$0xff]
  %v1000 = vld [vmem:[%s2 + $0x1db8] sm:$0xff]
  %v1001 = vld [vmem:[%s2 + $0x1dc0] sm:$0xff]
  %v1002 = vld [vmem:[%s2 + $0x1dc8] sm:$0xff]
  %v1003 = vld [vmem:[%s2 + $0x1dd0] sm:$0xff]
  %v1004 = vld [vmem:[%s2 + $0x1dd8] sm:$0xff]
  %v1005 = vld [vmem:[%s2 + $0x1de0] sm:$0xff]
  %v1006 = vld [vmem:[%s2 + $0x1de8] sm:$0xff]
  %v1007 = vld [vmem:[%s2 + $0x1df0] sm:$0xff]
  %v1008 = vld [vmem:[%s2 + $0x1df8] sm:$0xff]
  %v1009 = vld [vmem:[%s2 + $0x1e00] sm:$0xff]
  %v1010 = vld [vmem:[%s2 + $0x1e08] sm:$0xff]
  %v1011 = vld [vmem:[%s2 + $0x1e10] sm:$0xff]
  %v1012 = vld [vmem:[%s2 + $0x1e18] sm:$0xff]
  %v1013 = vld [vmem:[%s2 + $0x1e20] sm:$0xff]
  %v1014 = vld [vmem:[%s2 + $0x1e28] sm:$0xff]
  %v1015 = vld [vmem:[%s2 + $0x1e30] sm:$0xff]
  %v1016 = vld [vmem:[%s2 + $0x1e38] sm:$0xff]
  %v1017 = vld [vmem:[%s2 + $0x1e40] sm:$0xff]
  %v1018 = vld [vmem:[%s2 + $0x1e48] sm:$0xff]
  %v1019 = vld [vmem:[%s2 + $0x1e50] sm:$0xff]
  %v1020 = vld [vmem:[%s2 + $0x1e58] sm:$0xff]
  %v1021 = vld [vmem:[%s2 + $0x1e60] sm:$0xff]
  %v1022 = vld [vmem:[%s2 + $0x1e68] sm:$0xff]
  %v1023 = vld [vmem:[%s2 + $0x1e70] sm:$0xff]
  %v1024 = vld [vmem:[%s2 + $0x1e78] sm:$0xff]
  %v1025 = vld [vmem:[%s2 + $0x1e80] sm:$0xff]
  %v1026 = vld [vmem:[%s2 + $0x1e88] sm:$0xff]
  %v1027 = vld [vmem:[%s2 + $0x1e90] sm:$0xff]
  %v1028 = vld [vmem:[%s2 + $0x1e98] sm:$0xff]
  %v1029 = vld [vmem:[%s2 + $0x1ea0] sm:$0xff]
  %v1030 = vld [vmem:[%s2 + $0x1ea8] sm:$0xff]
  %v1031 = vld [vmem:[%s2 + $0x1eb0] sm:$0xff]
  %v1032 = vld [vmem:[%s2 + $0x1eb8] sm:$0xff]
  %v1033 = vld [vmem:[%s2 + $0x1ec0] sm:$0xff]
  %v1034 = vld [vmem:[%s2 + $0x1ec8] sm:$0xff]
  %v1035 = vld [vmem:[%s2 + $0x1ed0] sm:$0xff]
  %v1036 = vld [vmem:[%s2 + $0x1ed8] sm:$0xff]
  %v1037 = vld [vmem:[%s2 + $0x1ee0] sm:$0xff]
  %v1038 = vld [vmem:[%s2 + $0x1ee8] sm:$0xff]
  %v1039 = vld [vmem:[%s2 + $0x1ef0] sm:$0xff]
  %v1040 = vld [vmem:[%s2 + $0x1ef8] sm:$0xff]
  %v1041 = vld [vmem:[%s2 + $0x1f00] sm:$0xff]
  %v1042 = vld [vmem:[%s2 + $0x1f08] sm:$0xff]
  %v1043 = vld [vmem:[%s2 + $0x1f10] sm:$0xff]
  %v1044 = vld [vmem:[%s2 + $0x1f18] sm:$0xff]
  %v1045 = vld [vmem:[%s2 + $0x1f20] sm:$0xff]
  %v1046 = vld [vmem:[%s2 + $0x1f28] sm:$0xff]
  %v1047 = vld [vmem:[%s2 + $0x1f30] sm:$0xff]
  %v1048 = vld [vmem:[%s2 + $0x1f38] sm:$0xff]
  %v1049 = vld [vmem:[%s2 + $0x1f40] sm:$0xff]
  %v1050 = vld [vmem:[%s2 + $0x1f48] sm:$0xff]
  %v1051 = vld [vmem:[%s2 + $0x1f50] sm:$0xff]
  %v1052 = vld [vmem:[%s2 + $0x1f58] sm:$0xff]
  %v1053 = vld [vmem:[%s2 + $0x1f60] sm:$0xff]
  %v1054 = vld [vmem:[%s2 + $0x1f68] sm:$0xff]
  %v1055 = vld [vmem:[%s2 + $0x1f70] sm:$0xff]
  %v1056 = vld [vmem:[%s2 + $0x1f78] sm:$0xff]
  %v1057 = vld [vmem:[%s2 + $0x1f80] sm:$0xff]
  %v1058 = vld [vmem:[%s2 + $0x1f88] sm:$0xff]
  %v1059 = vld [vmem:[%s2 + $0x1f90] sm:$0xff]
  %v1060 = vld [vmem:[%s2 + $0x1f98] sm:$0xff]
  %v1061 = vld [vmem:[%s2 + $0x1fa0] sm:$0xff]
  %v1062 = vld [vmem:[%s2 + $0x1fa8] sm:$0xff]
  %v1063 = vld [vmem:[%s2 + $0x1fb0] sm:$0xff]
  %v1064 = vld [vmem:[%s2 + $0x1fb8] sm:$0xff]
  %v1065 = vld [vmem:[%s2 + $0x1fc0] sm:$0xff]
  %v1066 = vld [vmem:[%s2 + $0x1fc8] sm:$0xff]
  %v1067 = vld [vmem:[%s2 + $0x1fd0] sm:$0xff]
  %v1068 = vld [vmem:[%s2 + $0x1fd8] sm:$0xff]
  %v1069 = vld [vmem:[%s2 + $0x1fe0] sm:$0xff]
  %v1070 = vld [vmem:[%s2 + $0x1fe8] sm:$0xff]
  %v1071 = vld [vmem:[%s2 + $0x1ff0] sm:$0xff]
  %v1072 = vld [vmem:[%s2 + $0x1ff8] sm:$0xff]
  %v1073 = vld [vmem:[%s2 + $0x2000] sm:$0xff]
  %v1074 = vld [vmem:[%s2 + $0x2008] sm:$0xff]
  %v1075 = vld [vmem:[%s2 + $0x2010] sm:$0xff]
  %v1076 = vld [vmem:[%s2 + $0x2018] sm:$0xff]
  %v1077 = vld [vmem:[%s2 + $0x2020] sm:$0xff]
  %v1078 = vld [vmem:[%s2 + $0x2028] sm:$0xff]
  %v1079 = vld [vmem:[%s2 + $0x2030] sm:$0xff]
  %v1080 = vld [vmem:[%s2 + $0x2038] sm:$0xff]
  %v1081 = vld [vmem:[%s2 + $0x2040] sm:$0xff]
  %v1082 = vld [vmem:[%s2 + $0x2048] sm:$0xff]
  %v1083 = vld [vmem:[%s2 + $0x2050] sm:$0xff]
  %v1084 = vld [vmem:[%s2 + $0x2058] sm:$0xff]
  %v1085 = vld [vmem:[%s2 + $0x2060] sm:$0xff]
  %v1086 = vld [vmem:[%s2 + $0x2068] sm:$0xff]
  %v1087 = vld [vmem:[%s2 + $0x2070] sm:$0xff]
  %v1088 = vld [vmem:[%s2 + $0x2078] sm:$0xff]
  %v1089 = vld [vmem:[%s2 + $0x2080] sm:$0xff]
  %v1090 = vld [vmem:[%s2 + $0x2088] sm:$0xff]
  %v1091 = vld [vmem:[%s2 + $0x2090] sm:$0xff]
  %v1092 = vld [vmem:[%s2 + $0x2098] sm:$0xff]
  %v1093 = vld [vmem:[%s2 + $0x20a0] sm:$0xff]
  %v1094 = vld [vmem:[%s2 + $0x20a8] sm:$0xff]
  %v1095 = vld [vmem:[%s2 + $0x20b0] sm:$0xff]
  %v1096 = vld [vmem:[%s2 + $0x20b8] sm:$0xff]
  %v1097 = vld [vmem:[%s2 + $0x20c0] sm:$0xff]
  %v1098 = vld [vmem:[%s2 + $0x20c8] sm:$0xff]
  %v1099 = vld [vmem:[%s2 + $0x20d0] sm:$0xff]
  %v1100 = vld [vmem:[%s2 + $0x20d8] sm:$0xff]
  %v1101 = vld [vmem:[%s2 + $0x20e0] sm:$0xff]
  %v1102 = vld [vmem:[%s2 + $0x20e8] sm:$0xff]
  %v1103 = vld [vmem:[%s2 + $0x20f0] sm:$0xff]
  %v1104 = vld [vmem:[%s2 + $0x20f8] sm:$0xff]
  %v1105 = vld [vmem:[%s2 + $0x2100] sm:$0xff]
  %v1106 = vld [vmem:[%s2 + $0x2108] sm:$0xff]
  %v1107 = vld [vmem:[%s2 + $0x2110] sm:$0xff]
  %v1108 = vld [vmem:[%s2 + $0x2118] sm:$0xff]
  %v1109 = vld [vmem:[%s2 + $0x2120] sm:$0xff]
  %v1110 = vld [vmem:[%s2 + $0x2128] sm:$0xff]
  %v1111 = vld [vmem:[%s2 + $0x2130] sm:$0xff]
  %v1112 = vld [vmem:[%s2 + $0x2138] sm:$0xff]
  %v1113 = vld [vmem:[%s2 + $0x2140] sm:$0xff]
  %v1114 = vld [vmem:[%s2 + $0x2148] sm:$0xff]
  %v1115 = vld [vmem:[%s2 + $0x2150] sm:$0xff]
  %v1116 = vld [vmem:[%s2 + $0x2158] sm:$0xff]
  %v1117 = vld [vmem:[%s2 + $0x2160] sm:$0xff]
  %v1118 = vld [vmem:[%s2 + $0x2168] sm:$0xff]
  %v1119 = vld [vmem:[%s2 + $0x2170] sm:$0xff]
  %v1120 = vld [vmem:[%s2 + $0x2178] sm:$0xff]
  %v1121 = vld [vmem:[%s2 + $0x2180] sm:$0xff]
  %v1122 = vld [vmem:[%s2 + $0x2188] sm:$0xff]
  %v1123 = vld [vmem:[%s2 + $0x2190] sm:$0xff]
  %v1124 = vld [vmem:[%s2 + $0x2198] sm:$0xff]
  %v1125 = vld [vmem:[%s2 + $0x21a0] sm:$0xff]
  %v1126 = vld [vmem:[%s2 + $0x21a8] sm:$0xff]
  %v1127 = vld [vmem:[%s2 + $0x21b0] sm:$0xff]
  %v1128 = vld [vmem:[%s2 + $0x21b8] sm:$0xff]
  %v1129 = vld [vmem:[%s2 + $0x21c0] sm:$0xff]
  %v1130 = vld [vmem:[%s2 + $0x21c8] sm:$0xff]
  %v1131 = vld [vmem:[%s2 + $0x21d0] sm:$0xff]
  %v1132 = vld [vmem:[%s2 + $0x21d8] sm:$0xff]
  %v1133 = vld [vmem:[%s2 + $0x21e0] sm:$0xff]
  %v1134 = vld [vmem:[%s2 + $0x21e8] sm:$0xff]
  %v1135 = vld [vmem:[%s2 + $0x21f0] sm:$0xff]
  %v1136 = vld [vmem:[%s2 + $0x21f8] sm:$0xff]
  %v1137 = vld [vmem:[%s2 + $0x2200] sm:$0xff]
  %v1138 = vld [vmem:[%s2 + $0x2208] sm:$0xff]
  %v1139 = vld [vmem:[%s2 + $0x2210] sm:$0xff]
  %v1140 = vld [vmem:[%s2 + $0x2218] sm:$0xff]
  %v1141 = vld [vmem:[%s2 + $0x2220] sm:$0xff]
  %v1142 = vld [vmem:[%s2 + $0x2228] sm:$0xff]
  %v1143 = vld [vmem:[%s2 + $0x2230] sm:$0xff]
  %v1144 = vld [vmem:[%s2 + $0x2238] sm:$0xff]
  %v1145 = vld [vmem:[%s2 + $0x2240] sm:$0xff]
  %v1146 = vld [vmem:[%s2 + $0x2248] sm:$0xff]
  %v1147 = vld [vmem:[%s2 + $0x2250] sm:$0xff]
  %v1148 = vld [vmem:[%s2 + $0x2258] sm:$0xff]
  %v1149 = vld [vmem:[%s2 + $0x2260] sm:$0xff]
  %v1150 = vld [vmem:[%s2 + $0x2268] sm:$0xff]
  %v1151 = vld [vmem:[%s2 + $0x2270] sm:$0xff]
  %v1152 = vld [vmem:[%s2 + $0x2278] sm:$0xff]
  %v1153 = vld [vmem:[%s2 + $0x2280] sm:$0xff]
  %v1154 = vld [vmem:[%s2 + $0x2288] sm:$0xff]
  %v1155 = vld [vmem:[%s2 + $0x2290] sm:$0xff]
  %v1156 = vld [vmem:[%s2 + $0x2298] sm:$0xff]
  %v1157 = vld [vmem:[%s2 + $0x22a0] sm:$0xff]
  %v1158 = vld [vmem:[%s2 + $0x22a8] sm:$0xff]
  %v1159 = vld [vmem:[%s2 + $0x22b0] sm:$0xff]
  %v1160 = vld [vmem:[%s2 + $0x22b8] sm:$0xff]
  %v1161 = vld [vmem:[%s2 + $0x22c0] sm:$0xff]
  %v1162 = vld [vmem:[%s2 + $0x22c8] sm:$0xff]
  %v1163 = vld [vmem:[%s2 + $0x22d0] sm:$0xff]
  %v1164 = vld [vmem:[%s2 + $0x22d8] sm:$0xff]
  %v1165 = vld [vmem:[%s2 + $0x22e0] sm:$0xff]
  %v1166 = vld [vmem:[%s2 + $0x22e8] sm:$0xff]
  %v1167 = vld [vmem:[%s2 + $0x22f0] sm:$0xff]
  %v1168 = vld [vmem:[%s2 + $0x22f8] sm:$0xff]
  %v1169 = vld [vmem:[%s2 + $0x2300] sm:$0xff]
  %v1170 = vld [vmem:[%s2 + $0x2308] sm:$0xff]
  %v1171 = vld [vmem:[%s2 + $0x2310] sm:$0xff]
  %v1172 = vld [vmem:[%s2 + $0x2318] sm:$0xff]
  %v1173 = vld [vmem:[%s2 + $0x2320] sm:$0xff]
  %v1174 = vld [vmem:[%s2 + $0x2328] sm:$0xff]
  %v1175 = vld [vmem:[%s2 + $0x2330] sm:$0xff]
  %v1176 = vld [vmem:[%s2 + $0x2338] sm:$0xff]
  %v1177 = vld [vmem:[%s2 + $0x2340] sm:$0xff]
  %v1178 = vld [vmem:[%s2 + $0x2348] sm:$0xff]
  %v1179 = vld [vmem:[%s2 + $0x2350] sm:$0xff]
  %v1180 = vld [vmem:[%s2 + $0x2358] sm:$0xff]
  %v1181 = vld [vmem:[%s2 + $0x2360] sm:$0xff]
  %v1182 = vld [vmem:[%s2 + $0x2368] sm:$0xff]
  %v1183 = vld [vmem:[%s2 + $0x2370] sm:$0xff]
  %v1184 = vld [vmem:[%s2 + $0x2378] sm:$0xff]
  %v1185 = vld [vmem:[%s2 + $0x2380] sm:$0xff]
  %v1186 = vld [vmem:[%s2 + $0x2388] sm:$0xff]
  %v1187 = vld [vmem:[%s2 + $0x2390] sm:$0xff]
  %v1188 = vld [vmem:[%s2 + $0x2398] sm:$0xff]
  %v1189 = vld [vmem:[%s2 + $0x23a0] sm:$0xff]
  %v1190 = vld [vmem:[%s2 + $0x23a8] sm:$0xff]
  %v1191 = vld [vmem:[%s2 + $0x23b0] sm:$0xff]
  %v1192 = vld [vmem:[%s2 + $0x23b8] sm:$0xff]
  %v1193 = vld [vmem:[%s2 + $0x23c0] sm:$0xff]
  %v1194 = vld [vmem:[%s2 + $0x23c8] sm:$0xff]
  %v1195 = vld [vmem:[%s2 + $0x23d0] sm:$0xff]
  %v1196 = vld [vmem:[%s2 + $0x23d8] sm:$0xff]
  %v1197 = vld [vmem:[%s2 + $0x23e0] sm:$0xff]
  %v1198 = vld [vmem:[%s2 + $0x23e8] sm:$0xff]
  %v1199 = vld [vmem:[%s2 + $0x23f0] sm:$0xff]
  %v1200 = vld [vmem:[%s2 + $0x23f8] sm:$0xff]
  %v1201 = vld [vmem:[%s2 + $0x2400] sm:$0xff]
  %v1202 = vld [vmem:[%s2 + $0x2408] sm:$0xff]
  %v1203 = vld [vmem:[%s2 + $0x2410] sm:$0xff]
  %v1204 = vld [vmem:[%s2 + $0x2418] sm:$0xff]
  %v1205 = vld [vmem:[%s2 + $0x2420] sm:$0xff]
  %v1206 = vld [vmem:[%s2 + $0x2428] sm:$0xff]
  %v1207 = vld [vmem:[%s2 + $0x2430] sm:$0xff]
  %v1208 = vld [vmem:[%s2 + $0x2438] sm:$0xff]
  %v1209 = vld [vmem:[%s2 + $0x2440] sm:$0xff]
  %v1210 = vld [vmem:[%s2 + $0x2448] sm:$0xff]
  %v1211 = vld [vmem:[%s2 + $0x2450] sm:$0xff]
  %v1212 = vld [vmem:[%s2 + $0x2458] sm:$0xff]
  %v1213 = vld [vmem:[%s2 + $0x2460] sm:$0xff]
  %v1214 = vld [vmem:[%s2 + $0x2468] sm:$0xff]
  %v1215 = vld [vmem:[%s2 + $0x2470] sm:$0xff]
  %v1216 = vld [vmem:[%s2 + $0x2478] sm:$0xff]
  %v1217 = vld [vmem:[%s2 + $0x2480] sm:$0xff]
  %v1218 = vld [vmem:[%s2 + $0x2488] sm:$0xff]
  %v1219 = vld [vmem:[%s2 + $0x2490] sm:$0xff]
  %v1220 = vld [vmem:[%s2 + $0x2498] sm:$0xff]
  %v1221 = vld [vmem:[%s2 + $0x24a0] sm:$0xff]
  %v1222 = vld [vmem:[%s2 + $0x24a8] sm:$0xff]
  %v1223 = vld [vmem:[%s2 + $0x24b0] sm:$0xff]
  %v1224 = vld [vmem:[%s2 + $0x24b8] sm:$0xff]
  %v1225 = vld [vmem:[%s2 + $0x24c0] sm:$0xff]
  %v1226 = vld [vmem:[%s2 + $0x24c8] sm:$0xff]
  %v1227 = vld [vmem:[%s2 + $0x24d0] sm:$0xff]
  %v1228 = vld [vmem:[%s2 + $0x24d8] sm:$0xff]
  %v1229 = vld [vmem:[%s2 + $0x24e0] sm:$0xff]
  %v1230 = vld [vmem:[%s2 + $0x24e8] sm:$0xff]
  %v1231 = vld [vmem:[%s2 + $0x24f0] sm:$0xff]
  %v1232 = vld [vmem:[%s2 + $0x24f8] sm:$0xff]
  %v1233 = vld [vmem:[%s2 + $0x2500] sm:$0xff]
  %v1234 = vld [vmem:[%s2 + $0x2508] sm:$0xff]
  %v1235 = vld [vmem:[%s2 + $0x2510] sm:$0xff]
  %v1236 = vld [vmem:[%s2 + $0x2518] sm:$0xff]
  %v1237 = vld [vmem:[%s2 + $0x2520] sm:$0xff]
  %v1238 = vld [vmem:[%s2 + $0x2528] sm:$0xff]
  %v1239 = vld [vmem:[%s2 + $0x2530] sm:$0xff]
  %v1240 = vld [vmem:[%s2 + $0x2538] sm:$0xff]
  %v1241 = vld [vmem:[%s2 + $0x2540] sm:$0xff]
  %v1242 = vld [vmem:[%s2 + $0x2548] sm:$0xff]
  %v1243 = vld [vmem:[%s2 + $0x2550] sm:$0xff]
  %v1244 = vld [vmem:[%s2 + $0x2558] sm:$0xff]
  %v1245 = vld [vmem:[%s2 + $0x2560] sm:$0xff]
  %v1246 = vld [vmem:[%s2 + $0x2568] sm:$0xff]
  %v1247 = vld [vmem:[%s2 + $0x2570] sm:$0xff]
  %v1248 = vld [vmem:[%s2 + $0x2578] sm:$0xff]
  %v1249 = vld [vmem:[%s2 + $0x2580] sm:$0xff]
  %v1250 = vld [vmem:[%s2 + $0x2588] sm:$0xff]
  %v1251 = vld [vmem:[%s2 + $0x2590] sm:$0xff]
  %v1252 = vld [vmem:[%s2 + $0x2598] sm:$0xff]
  %v1253 = vld [vmem:[%s2 + $0x25a0] sm:$0xff]
  %v1254 = vld [vmem:[%s2 + $0x25a8] sm:$0xff]
  %v1255 = vld [vmem:[%s2 + $0x25b0] sm:$0xff]
  %v1256 = vld [vmem:[%s2 + $0x25b8] sm:$0xff]
  %v1257 = vld [vmem:[%s2 + $0x25c0] sm:$0xff]
  %v1258 = vld [vmem:[%s2 + $0x25c8] sm:$0xff]
  %v1259 = vld [vmem:[%s2 + $0x25d0] sm:$0xff]
  %v1260 = vld [vmem:[%s2 + $0x25d8] sm:$0xff]
  %v1261 = vld [vmem:[%s2 + $0x25e0] sm:$0xff]
  %v1262 = vld [vmem:[%s2 + $0x25e8] sm:$0xff]
  %v1263 = vld [vmem:[%s2 + $0x25f0] sm:$0xff]
  %v1264 = vld [vmem:[%s2 + $0x25f8] sm:$0xff]
  %v1265 = vld [vmem:[%s2 + $0x2600] sm:$0xff]
  %v1266 = vld [vmem:[%s2 + $0x2608] sm:$0xff]
  %v1267 = vld [vmem:[%s2 + $0x2610] sm:$0xff]
  %v1268 = vld [vmem:[%s2 + $0x2618] sm:$0xff]
  %v1269 = vld [vmem:[%s2 + $0x2620] sm:$0xff]
  %v1270 = vld [vmem:[%s2 + $0x2628] sm:$0xff]
  %v1271 = vld [vmem:[%s2 + $0x2630] sm:$0xff]
  %v1272 = vld [vmem:[%s2 + $0x2638] sm:$0xff]
  %v1273 = vld [vmem:[%s2 + $0x2640] sm:$0xff]
  %v1274 = vld [vmem:[%s2 + $0x2648] sm:$0xff]
  %v1275 = vld [vmem:[%s2 + $0x2650] sm:$0xff]
  %v1276 = vld [vmem:[%s2 + $0x2658] sm:$0xff]
  %v1277 = vld [vmem:[%s2 + $0x2660] sm:$0xff]
  %v1278 = vld [vmem:[%s2 + $0x2668] sm:$0xff]
  %v1279 = vld [vmem:[%s2 + $0x2670] sm:$0xff]
  %v1280 = vld [vmem:[%s2 + $0x2678] sm:$0xff]
  %v1281 = vld [vmem:[%s2 + $0x2680] sm:$0xff]
  %v1282 = vld [vmem:[%s2 + $0x2688] sm:$0xff]
  %v1283 = vld [vmem:[%s2 + $0x2690] sm:$0xff]
  %v1284 = vld [vmem:[%s2 + $0x2698] sm:$0xff]
  %v1285 = vld [vmem:[%s2 + $0x26a0] sm:$0xff]
  %v1286 = vld [vmem:[%s2 + $0x26a8] sm:$0xff]
  %v1287 = vld [vmem:[%s2 + $0x26b0] sm:$0xff]
  %v1288 = vld [vmem:[%s2 + $0x26b8] sm:$0xff]
  %v1289 = vld [vmem:[%s2 + $0x26c0] sm:$0xff]
  %v1290 = vld [vmem:[%s2 + $0x26c8] sm:$0xff]
  %v1291 = vld [vmem:[%s2 + $0x26d0] sm:$0xff]
  %v1292 = vld [vmem:[%s2 + $0x26d8] sm:$0xff]
  %v1293 = vld [vmem:[%s2 + $0x26e0] sm:$0xff]
  %v1294 = vld [vmem:[%s2 + $0x26e8] sm:$0xff]
  %v1295 = vld [vmem:[%s2 + $0x26f0] sm:$0xff]
  %v1296 = vld [vmem:[%s2 + $0x26f8] sm:$0xff]
  %v1297 = vld [vmem:[%s2 + $0x2700] sm:$0xff]
  %v1298 = vld [vmem:[%s2 + $0x2708] sm:$0xff]
  %v1299 = vld [vmem:[%s2 + $0x2710] sm:$0xff]
  %v1300 = vld [vmem:[%s2 + $0x2718] sm:$0xff]
  %v1301 = vld [vmem:[%s2 + $0x2720] sm:$0xff]
  %v1302 = vld [vmem:[%s2 + $0x2728] sm:$0xff]
  %v1303 = vld [vmem:[%s2 + $0x2730] sm:$0xff]
  %v1304 = vld [vmem:[%s2 + $0x2738] sm:$0xff]
  %v1305 = vld [vmem:[%s2 + $0x2740] sm:$0xff]
  %v1306 = vld [vmem:[%s2 + $0x2748] sm:$0xff]
  %v1307 = vld [vmem:[%s2 + $0x2750] sm:$0xff]
  %v1308 = vld [vmem:[%s2 + $0x2758] sm:$0xff]
  %v1309 = vld [vmem:[%s2 + $0x2760] sm:$0xff]
  %v1310 = vld [vmem:[%s2 + $0x2768] sm:$0xff]
  %v1311 = vld [vmem:[%s2 + $0x2770] sm:$0xff]
  %v1312 = vld [vmem:[%s2 + $0x2778] sm:$0xff]
  %v1313 = vld [vmem:[%s2 + $0x2780] sm:$0xff]
  %v1314 = vld [vmem:[%s2 + $0x2788] sm:$0xff]
  %v1315 = vld [vmem:[%s2 + $0x2790] sm:$0xff]
  %v1316 = vld [vmem:[%s2 + $0x2798] sm:$0xff]
  %v1317 = vld [vmem:[%s2 + $0x27a0] sm:$0xff]
  %v1318 = vld [vmem:[%s2 + $0x27a8] sm:$0xff]
  %v1319 = vld [vmem:[%s2 + $0x27b0] sm:$0xff]
  %v1320 = vld [vmem:[%s2 + $0x27b8] sm:$0xff]
  %v1321 = vld [vmem:[%s2 + $0x27c0] sm:$0xff]
  %v1322 = vld [vmem:[%s2 + $0x27c8] sm:$0xff]
  %v1323 = vld [vmem:[%s2 + $0x27d0] sm:$0xff]
  %v1324 = vld [vmem:[%s2 + $0x27d8] sm:$0xff]
  %v1325 = vld [vmem:[%s2 + $0x27e0] sm:$0xff]
  %v1326 = vld [vmem:[%s2 + $0x27e8] sm:$0xff]
  %v1327 = vld [vmem:[%s2 + $0x27f0] sm:$0xff]
  %v1328 = vld [vmem:[%s2 + $0x27f8] sm:$0xff]
  %v1329 = vld [vmem:[%s2 + $0x2800] sm:$0xff]
  %v1330 = vld [vmem:[%s2 + $0x2808] sm:$0xff]
  %v1331 = vld [vmem:[%s2 + $0x2810] sm:$0xff]
  %v1332 = vld [vmem:[%s2 + $0x2818] sm:$0xff]
  %v1333 = vld [vmem:[%s2 + $0x2820] sm:$0xff]
  %v1334 = vld [vmem:[%s2 + $0x2828] sm:$0xff]
  %v1335 = vld [vmem:[%s2 + $0x2830] sm:$0xff]
  %v1336 = vld [vmem:[%s2 + $0x2838] sm:$0xff]
  %v1337 = vld [vmem:[%s2 + $0x2840] sm:$0xff]
  %v1338 = vld [vmem:[%s2 + $0x2848] sm:$0xff]
  %v1339 = vld [vmem:[%s2 + $0x2850] sm:$0xff]
  %v1340 = vld [vmem:[%s2 + $0x2858] sm:$0xff]
  %v1341 = vld [vmem:[%s2 + $0x2860] sm:$0xff]
  %v1342 = vld [vmem:[%s2 + $0x2868] sm:$0xff]
  %v1343 = vld [vmem:[%s2 + $0x2870] sm:$0xff]
  %v1344 = vld [vmem:[%s2 + $0x2878] sm:$0xff]
  %v1345 = vld [vmem:[%s2 + $0x2880] sm:$0xff]
  %v1346 = vld [vmem:[%s2 + $0x2888] sm:$0xff]
  %v1347 = vld [vmem:[%s2 + $0x2890] sm:$0xff]
  %v1348 = vld [vmem:[%s2 + $0x2898] sm:$0xff]
  %v1349 = vld [vmem:[%s2 + $0x28a0] sm:$0xff]
  %v1350 = vld [vmem:[%s2 + $0x28a8] sm:$0xff]
  %v1351 = vld [vmem:[%s2 + $0x28b0] sm:$0xff]
  %v1352 = vld [vmem:[%s2 + $0x28b8] sm:$0xff]
  %v1353 = vld [vmem:[%s2 + $0x28c0] sm:$0xff]
  %v1354 = vld [vmem:[%s2 + $0x28c8] sm:$0xff]
  %v1355 = vld [vmem:[%s2 + $0x28d0] sm:$0xff]
  %v1356 = vld [vmem:[%s2 + $0x28d8] sm:$0xff]
  %v1357 = vld [vmem:[%s2 + $0x28e0] sm:$0xff]
  %v1358 = vld [vmem:[%s2 + $0x28e8] sm:$0xff]
  %v1359 = vld [vmem:[%s2 + $0x28f0] sm:$0xff]
  %v1360 = vld [vmem:[%s2 + $0x28f8] sm:$0xff]
  %v1361 = vld [vmem:[%s2 + $0x2900] sm:$0xff]
  %v1362 = vld [vmem:[%s2 + $0x2908] sm:$0xff]
  %v1363 = vld [vmem:[%s2 + $0x2910] sm:$0xff]
  %v1364 = vld [vmem:[%s2 + $0x2918] sm:$0xff]
  %v1365 = vld [vmem:[%s2 + $0x2920] sm:$0xff]
  %v1366 = vld [vmem:[%s2 + $0x2928] sm:$0xff]
  %v1367 = vld [vmem:[%s2 + $0x2930] sm:$0xff]
  %v1368 = vld [vmem:[%s2 + $0x2938] sm:$0xff]
  %v1369 = vld [vmem:[%s2 + $0x2940] sm:$0xff]
  %v1370 = vld [vmem:[%s2 + $0x2948] sm:$0xff]
  %v1371 = vld [vmem:[%s2 + $0x2950] sm:$0xff]
  %v1372 = vld [vmem:[%s2 + $0x2958] sm:$0xff]
  %v1373 = vld [vmem:[%s2 + $0x2960] sm:$0xff]
  %v1374 = vld [vmem:[%s2 + $0x2968] sm:$0xff]
  %v1375 = vld [vmem:[%s2 + $0x2970] sm:$0xff]
  %v1376 = vld [vmem:[%s2 + $0x2978] sm:$0xff]
  %v1377 = vld [vmem:[%s2 + $0x2980] sm:$0xff]
  %v1378 = vld [vmem:[%s2 + $0x2988] sm:$0xff]
  %v1379 = vld [vmem:[%s2 + $0x2990] sm:$0xff]
  %v1380 = vld [vmem:[%s2 + $0x2998] sm:$0xff]
  %v1381 = vld [vmem:[%s2 + $0x29a0] sm:$0xff]
  %v1382 = vld [vmem:[%s2 + $0x29a8] sm:$0xff]
  %v1383 = vld [vmem:[%s2 + $0x29b0] sm:$0xff]
  %v1384 = vld [vmem:[%s2 + $0x29b8] sm:$0xff]
  %v1385 = vld [vmem:[%s2 + $0x29c0] sm:$0xff]
  %v1386 = vld [vmem:[%s2 + $0x29c8] sm:$0xff]
  %v1387 = vld [vmem:[%s2 + $0x29d0] sm:$0xff]
  %v1388 = vld [vmem:[%s2 + $0x29d8] sm:$0xff]
  %v1389 = vld [vmem:[%s2 + $0x29e0] sm:$0xff]
  %v1390 = vld [vmem:[%s2 + $0x29e8] sm:$0xff]
  %v1391 = vld [vmem:[%s2 + $0x29f0] sm:$0xff]
  %v1392 = vld [vmem:[%s2 + $0x29f8] sm:$0xff]
  %v2737 = vunpack.c.l.b16 %v49
  %v2738 = vunpack.c.h.b16 %v49
  %v2739 = vunpack.c.l.b16 %v50
  %v2740 = vunpack.c.h.b16 %v50
  %v2741 = vunpack.c.l.b16 %v51
  %v2742 = vunpack.c.h.b16 %v51
  %v2743 = vunpack.c.l.b16 %v52
  %v2744 = vunpack.c.h.b16 %v52
  %v2745 = vunpack.c.l.b16 %v53
  %v2746 = vunpack.c.h.b16 %v53
  %v2747 = vunpack.c.l.b16 %v54
  %v2748 = vunpack.c.h.b16 %v54
  %v2749 = vunpack.c.l.b16 %v55
  %v2750 = vunpack.c.h.b16 %v55
  %v2751 = vunpack.c.l.b16 %v56
  %v2752 = vunpack.c.h.b16 %v56
  %v2753 = vunpack.c.l.b16 %v57
  %v2754 = vunpack.c.h.b16 %v57
  %v2755 = vunpack.c.l.b16 %v58
  %v2756 = vunpack.c.h.b16 %v58
  %v2757 = vunpack.c.l.b16 %v59
  %v2758 = vunpack.c.h.b16 %v59
  %v2759 = vunpack.c.l.b16 %v60
  %v2760 = vunpack.c.h.b16 %v60
  %v2761 = vunpack.c.l.b16 %v61
  %v2762 = vunpack.c.h.b16 %v61
  %v2763 = vunpack.c.l.b16 %v62
  %v2764 = vunpack.c.h.b16 %v62
  %v2765 = vunpack.c.l.b16 %v63
  %v2766 = vunpack.c.h.b16 %v63
  %v2767 = vunpack.c.l.b16 %v64
  %v2768 = vunpack.c.h.b16 %v64
  %v2769 = vunpack.c.l.b16 %v65
  %v2770 = vunpack.c.h.b16 %v65
  %v2771 = vunpack.c.l.b16 %v66
  %v2772 = vunpack.c.h.b16 %v66
  %v2773 = vunpack.c.l.b16 %v67
  %v2774 = vunpack.c.h.b16 %v67
  %v2775 = vunpack.c.l.b16 %v68
  %v2776 = vunpack.c.h.b16 %v68
  %v2777 = vunpack.c.l.b16 %v69
  %v2778 = vunpack.c.h.b16 %v69
  %v2779 = vunpack.c.l.b16 %v70
  %v2780 = vunpack.c.h.b16 %v70
  %v2781 = vunpack.c.l.b16 %v71
  %v2782 = vunpack.c.h.b16 %v71
  %v2783 = vunpack.c.l.b16 %v72
  %v2784 = vunpack.c.h.b16 %v72
  %v2785 = vunpack.c.l.b16 %v73
  %v2786 = vunpack.c.h.b16 %v73
  %v2787 = vunpack.c.l.b16 %v74
  %v2788 = vunpack.c.h.b16 %v74
  %v2789 = vunpack.c.l.b16 %v75
  %v2790 = vunpack.c.h.b16 %v75
  %v2791 = vunpack.c.l.b16 %v76
  %v2792 = vunpack.c.h.b16 %v76
  %v2793 = vunpack.c.l.b16 %v77
  %v2794 = vunpack.c.h.b16 %v77
  %v2795 = vunpack.c.l.b16 %v78
  %v2796 = vunpack.c.h.b16 %v78
  %v2797 = vunpack.c.l.b16 %v79
  %v2798 = vunpack.c.h.b16 %v79
  %v2799 = vunpack.c.l.b16 %v80
  %v2800 = vunpack.c.h.b16 %v80
  %v2801 = vunpack.c.l.b16 %v81
  %v2802 = vunpack.c.h.b16 %v81
  %v2803 = vunpack.c.l.b16 %v82
  %v2804 = vunpack.c.h.b16 %v82
  %v2805 = vunpack.c.l.b16 %v83
  %v2806 = vunpack.c.h.b16 %v83
  %v2807 = vunpack.c.l.b16 %v84
  %v2808 = vunpack.c.h.b16 %v84
  %v2809 = vunpack.c.l.b16 %v85
  %v2810 = vunpack.c.h.b16 %v85
  %v2811 = vunpack.c.l.b16 %v86
  %v2812 = vunpack.c.h.b16 %v86
  %v2813 = vunpack.c.l.b16 %v87
  %v2814 = vunpack.c.h.b16 %v87
  %v2815 = vunpack.c.l.b16 %v88
  %v2816 = vunpack.c.h.b16 %v88
  %v2817 = vunpack.c.l.b16 %v89
  %v2818 = vunpack.c.h.b16 %v89
  %v2819 = vunpack.c.l.b16 %v90
  %v2820 = vunpack.c.h.b16 %v90
  %v2821 = vunpack.c.l.b16 %v91
  %v2822 = vunpack.c.h.b16 %v91
  %v2823 = vunpack.c.l.b16 %v92
  %v2824 = vunpack.c.h.b16 %v92
  %v2825 = vunpack.c.l.b16 %v93
  %v2826 = vunpack.c.h.b16 %v93
  %v2827 = vunpack.c.l.b16 %v94
  %v2828 = vunpack.c.h.b16 %v94
  %v2829 = vunpack.c.l.b16 %v95
  %v2830 = vunpack.c.h.b16 %v95
  %v2831 = vunpack.c.l.b16 %v96
  %v2832 = vunpack.c.h.b16 %v96
  %v2833 = vunpack.c.l.b16 %v97
  %v2834 = vunpack.c.h.b16 %v97
  %v2835 = vunpack.c.l.b16 %v98
  %v2836 = vunpack.c.h.b16 %v98
  %v2837 = vunpack.c.l.b16 %v99
  %v2838 = vunpack.c.h.b16 %v99
  %v2839 = vunpack.c.l.b16 %v100
  %v2840 = vunpack.c.h.b16 %v100
  %v2841 = vunpack.c.l.b16 %v101
  %v2842 = vunpack.c.h.b16 %v101
  %v2843 = vunpack.c.l.b16 %v102
  %v2844 = vunpack.c.h.b16 %v102
  %v2845 = vunpack.c.l.b16 %v103
  %v2846 = vunpack.c.h.b16 %v103
  %v2847 = vunpack.c.l.b16 %v104
  %v2848 = vunpack.c.h.b16 %v104
  %v2849 = vunpack.c.l.b16 %v105
  %v2850 = vunpack.c.h.b16 %v105
  %v2851 = vunpack.c.l.b16 %v106
  %v2852 = vunpack.c.h.b16 %v106
  %v2853 = vunpack.c.l.b16 %v107
  %v2854 = vunpack.c.h.b16 %v107
  %v2855 = vunpack.c.l.b16 %v108
  %v2856 = vunpack.c.h.b16 %v108
  %v2857 = vunpack.c.l.b16 %v109
  %v2858 = vunpack.c.h.b16 %v109
  %v2859 = vunpack.c.l.b16 %v110
  %v2860 = vunpack.c.h.b16 %v110
  %v2861 = vunpack.c.l.b16 %v111
  %v2862 = vunpack.c.h.b16 %v111
  %v2863 = vunpack.c.l.b16 %v112
  %v2864 = vunpack.c.h.b16 %v112
  %v2865 = vunpack.c.l.b16 %v113
  %v2866 = vunpack.c.h.b16 %v113
  %v2867 = vunpack.c.l.b16 %v114
  %v2868 = vunpack.c.h.b16 %v114
  %v2869 = vunpack.c.l.b16 %v115
  %v2870 = vunpack.c.h.b16 %v115
  %v2871 = vunpack.c.l.b16 %v116
  %v2872 = vunpack.c.h.b16 %v116
  %v2873 = vunpack.c.l.b16 %v117
  %v2874 = vunpack.c.h.b16 %v117
  %v2875 = vunpack.c.l.b16 %v118
  %v2876 = vunpack.c.h.b16 %v118
  %v2877 = vunpack.c.l.b16 %v119
  %v2878 = vunpack.c.h.b16 %v119
  %v2879 = vunpack.c.l.b16 %v120
  %v2880 = vunpack.c.h.b16 %v120
  %v2881 = vunpack.c.l.b16 %v121
  %v2882 = vunpack.c.h.b16 %v121
  %v2883 = vunpack.c.l.b16 %v122
  %v2884 = vunpack.c.h.b16 %v122
  %v2885 = vunpack.c.l.b16 %v123
  %v2886 = vunpack.c.h.b16 %v123
  %v2887 = vunpack.c.l.b16 %v124
  %v2888 = vunpack.c.h.b16 %v124
  %v2889 = vunpack.c.l.b16 %v125
  %v2890 = vunpack.c.h.b16 %v125
  %v2891 = vunpack.c.l.b16 %v126
  %v2892 = vunpack.c.h.b16 %v126
  %v2893 = vunpack.c.l.b16 %v127
  %v2894 = vunpack.c.h.b16 %v127
  %v2895 = vunpack.c.l.b16 %v128
  %v2896 = vunpack.c.h.b16 %v128
  %v2897 = vunpack.c.l.b16 %v129
  %v2898 = vunpack.c.h.b16 %v129
  %v2899 = vunpack.c.l.b16 %v130
  %v2900 = vunpack.c.h.b16 %v130
  %v2901 = vunpack.c.l.b16 %v131
  %v2902 = vunpack.c.h.b16 %v131
  %v2903 = vunpack.c.l.b16 %v132
  %v2904 = vunpack.c.h.b16 %v132
  %v2905 = vunpack.c.l.b16 %v133
  %v2906 = vunpack.c.h.b16 %v133
  %v2907 = vunpack.c.l.b16 %v134
  %v2908 = vunpack.c.h.b16 %v134
  %v2909 = vunpack.c.l.b16 %v135
  %v2910 = vunpack.c.h.b16 %v135
  %v2911 = vunpack.c.l.b16 %v136
  %v2912 = vunpack.c.h.b16 %v136
  %v2913 = vunpack.c.l.b16 %v137
  %v2914 = vunpack.c.h.b16 %v137
  %v2915 = vunpack.c.l.b16 %v138
  %v2916 = vunpack.c.h.b16 %v138
  %v2917 = vunpack.c.l.b16 %v139
  %v2918 = vunpack.c.h.b16 %v139
  %v2919 = vunpack.c.l.b16 %v140
  %v2920 = vunpack.c.h.b16 %v140
  %v2921 = vunpack.c.l.b16 %v141
  %v2922 = vunpack.c.h.b16 %v141
  %v2923 = vunpack.c.l.b16 %v142
  %v2924 = vunpack.c.h.b16 %v142
  %v2925 = vunpack.c.l.b16 %v143
  %v2926 = vunpack.c.h.b16 %v143
  %v2927 = vunpack.c.l.b16 %v144
  %v2928 = vunpack.c.h.b16 %v144
  %v2929 = vunpack.c.l.b16 %v145
  %v2930 = vunpack.c.h.b16 %v145
  %v2931 = vunpack.c.l.b16 %v146
  %v2932 = vunpack.c.h.b16 %v146
  %v2933 = vunpack.c.l.b16 %v147
  %v2934 = vunpack.c.h.b16 %v147
  %v2935 = vunpack.c.l.b16 %v148
  %v2936 = vunpack.c.h.b16 %v148
  %v2937 = vunpack.c.l.b16 %v149
  %v2938 = vunpack.c.h.b16 %v149
  %v2939 = vunpack.c.l.b16 %v150
  %v2940 = vunpack.c.h.b16 %v150
  %v2941 = vunpack.c.l.b16 %v151
  %v2942 = vunpack.c.h.b16 %v151
  %v2943 = vunpack.c.l.b16 %v152
  %v2944 = vunpack.c.h.b16 %v152
  %v2945 = vunpack.c.l.b16 %v153
  %v2946 = vunpack.c.h.b16 %v153
  %v2947 = vunpack.c.l.b16 %v154
  %v2948 = vunpack.c.h.b16 %v154
  %v2949 = vunpack.c.l.b16 %v155
  %v2950 = vunpack.c.h.b16 %v155
  %v2951 = vunpack.c.l.b16 %v156
  %v2952 = vunpack.c.h.b16 %v156
  %v2953 = vunpack.c.l.b16 %v157
  %v2954 = vunpack.c.h.b16 %v157
  %v2955 = vunpack.c.l.b16 %v158
  %v2956 = vunpack.c.h.b16 %v158
  %v2957 = vunpack.c.l.b16 %v159
  %v2958 = vunpack.c.h.b16 %v159
  %v2959 = vunpack.c.l.b16 %v160
  %v2960 = vunpack.c.h.b16 %v160
  %v2961 = vunpack.c.l.b16 %v161
  %v2962 = vunpack.c.h.b16 %v161
  %v2963 = vunpack.c.l.b16 %v162
  %v2964 = vunpack.c.h.b16 %v162
  %v2965 = vunpack.c.l.b16 %v163
  %v2966 = vunpack.c.h.b16 %v163
  %v2967 = vunpack.c.l.b16 %v164
  %v2968 = vunpack.c.h.b16 %v164
  %v2969 = vunpack.c.l.b16 %v165
  %v2970 = vunpack.c.h.b16 %v165
  %v2971 = vunpack.c.l.b16 %v166
  %v2972 = vunpack.c.h.b16 %v166
  %v2973 = vunpack.c.l.b16 %v167
  %v2974 = vunpack.c.h.b16 %v167
  %v2975 = vunpack.c.l.b16 %v168
  %v2976 = vunpack.c.h.b16 %v168
  %v2977 = vunpack.c.l.b16 %v169
  %v2978 = vunpack.c.h.b16 %v169
  %v2979 = vunpack.c.l.b16 %v170
  %v2980 = vunpack.c.h.b16 %v170
  %v2981 = vunpack.c.l.b16 %v171
  %v2982 = vunpack.c.h.b16 %v171
  %v2983 = vunpack.c.l.b16 %v172
  %v2984 = vunpack.c.h.b16 %v172
  %v2985 = vunpack.c.l.b16 %v173
  %v2986 = vunpack.c.h.b16 %v173
  %v2987 = vunpack.c.l.b16 %v174
  %v2988 = vunpack.c.h.b16 %v174
  %v2989 = vunpack.c.l.b16 %v175
  %v2990 = vunpack.c.h.b16 %v175
  %v2991 = vunpack.c.l.b16 %v176
  %v2992 = vunpack.c.h.b16 %v176
  %v2993 = vunpack.c.l.b16 %v177
  %v2994 = vunpack.c.h.b16 %v177
  %v2995 = vunpack.c.l.b16 %v178
  %v2996 = vunpack.c.h.b16 %v178
  %v2997 = vunpack.c.l.b16 %v179
  %v2998 = vunpack.c.h.b16 %v179
  %v2999 = vunpack.c.l.b16 %v180
  %v3000 = vunpack.c.h.b16 %v180
  %v3001 = vunpack.c.l.b16 %v181
  %v3002 = vunpack.c.h.b16 %v181
  %v3003 = vunpack.c.l.b16 %v182
  %v3004 = vunpack.c.h.b16 %v182
  %v3005 = vunpack.c.l.b16 %v183
  %v3006 = vunpack.c.h.b16 %v183
  %v3007 = vunpack.c.l.b16 %v184
  %v3008 = vunpack.c.h.b16 %v184
  %v3009 = vunpack.c.l.b16 %v185
  %v3010 = vunpack.c.h.b16 %v185
  %v3011 = vunpack.c.l.b16 %v186
  %v3012 = vunpack.c.h.b16 %v186
  %v3013 = vunpack.c.l.b16 %v187
  %v3014 = vunpack.c.h.b16 %v187
  %v3015 = vunpack.c.l.b16 %v188
  %v3016 = vunpack.c.h.b16 %v188
  %v3017 = vunpack.c.l.b16 %v189
  %v3018 = vunpack.c.h.b16 %v189
  %v3019 = vunpack.c.l.b16 %v190
  %v3020 = vunpack.c.h.b16 %v190
  %v3021 = vunpack.c.l.b16 %v191
  %v3022 = vunpack.c.h.b16 %v191
  %v3023 = vunpack.c.l.b16 %v192
  %v3024 = vunpack.c.h.b16 %v192
  %v3025 = vunpack.c.l.b16 %v193
  %v3026 = vunpack.c.h.b16 %v193
  %v3027 = vunpack.c.l.b16 %v194
  %v3028 = vunpack.c.h.b16 %v194
  %v3029 = vunpack.c.l.b16 %v195
  %v3030 = vunpack.c.h.b16 %v195
  %v3031 = vunpack.c.l.b16 %v196
  %v3032 = vunpack.c.h.b16 %v196
  %v3033 = vunpack.c.l.b16 %v197
  %v3034 = vunpack.c.h.b16 %v197
  %v3035 = vunpack.c.l.b16 %v198
  %v3036 = vunpack.c.h.b16 %v198
  %v3037 = vunpack.c.l.b16 %v199
  %v3038 = vunpack.c.h.b16 %v199
  %v3039 = vunpack.c.l.b16 %v200
  %v3040 = vunpack.c.h.b16 %v200
  %v3041 = vunpack.c.l.b16 %v201
  %v3042 = vunpack.c.h.b16 %v201
  %v3043 = vunpack.c.l.b16 %v202
  %v3044 = vunpack.c.h.b16 %v202
  %v3045 = vunpack.c.l.b16 %v203
  %v3046 = vunpack.c.h.b16 %v203
  %v3047 = vunpack.c.l.b16 %v204
  %v3048 = vunpack.c.h.b16 %v204
  %v3049 = vunpack.c.l.b16 %v205
  %v3050 = vunpack.c.h.b16 %v205
  %v3051 = vunpack.c.l.b16 %v206
  %v3052 = vunpack.c.h.b16 %v206
  %v3053 = vunpack.c.l.b16 %v207
  %v3054 = vunpack.c.h.b16 %v207
  %v3055 = vunpack.c.l.b16 %v208
  %v3056 = vunpack.c.h.b16 %v208
  %v3057 = vunpack.c.l.b16 %v209
  %v3058 = vunpack.c.h.b16 %v209
  %v3059 = vunpack.c.l.b16 %v210
  %v3060 = vunpack.c.h.b16 %v210
  %v3061 = vunpack.c.l.b16 %v211
  %v3062 = vunpack.c.h.b16 %v211
  %v3063 = vunpack.c.l.b16 %v212
  %v3064 = vunpack.c.h.b16 %v212
  %v3065 = vunpack.c.l.b16 %v213
  %v3066 = vunpack.c.h.b16 %v213
  %v3067 = vunpack.c.l.b16 %v214
  %v3068 = vunpack.c.h.b16 %v214
  %v3069 = vunpack.c.l.b16 %v215
  %v3070 = vunpack.c.h.b16 %v215
  %v3071 = vunpack.c.l.b16 %v216
  %v3072 = vunpack.c.h.b16 %v216
  %v3073 = vunpack.c.l.b16 %v217
  %v3074 = vunpack.c.h.b16 %v217
  %v3075 = vunpack.c.l.b16 %v218
  %v3076 = vunpack.c.h.b16 %v218
  %v3077 = vunpack.c.l.b16 %v219
  %v3078 = vunpack.c.h.b16 %v219
  %v3079 = vunpack.c.l.b16 %v220
  %v3080 = vunpack.c.h.b16 %v220
  %v3081 = vunpack.c.l.b16 %v221
  %v3082 = vunpack.c.h.b16 %v221
  %v3083 = vunpack.c.l.b16 %v222
  %v3084 = vunpack.c.h.b16 %v222
  %v3085 = vunpack.c.l.b16 %v223
  %v3086 = vunpack.c.h.b16 %v223
  %v3087 = vunpack.c.l.b16 %v224
  %v3088 = vunpack.c.h.b16 %v224
  %v3089 = vunpack.c.l.b16 %v225
  %v3090 = vunpack.c.h.b16 %v225
  %v3091 = vunpack.c.l.b16 %v226
  %v3092 = vunpack.c.h.b16 %v226
  %v3093 = vunpack.c.l.b16 %v227
  %v3094 = vunpack.c.h.b16 %v227
  %v3095 = vunpack.c.l.b16 %v228
  %v3096 = vunpack.c.h.b16 %v228
  %v3097 = vunpack.c.l.b16 %v229
  %v3098 = vunpack.c.h.b16 %v229
  %v3099 = vunpack.c.l.b16 %v230
  %v3100 = vunpack.c.h.b16 %v230
  %v3101 = vunpack.c.l.b16 %v231
  %v3102 = vunpack.c.h.b16 %v231
  %v3103 = vunpack.c.l.b16 %v232
  %v3104 = vunpack.c.h.b16 %v232
  %v3105 = vunpack.c.l.b16 %v233
  %v3106 = vunpack.c.h.b16 %v233
  %v3107 = vunpack.c.l.b16 %v234
  %v3108 = vunpack.c.h.b16 %v234
  %v3109 = vunpack.c.l.b16 %v235
  %v3110 = vunpack.c.h.b16 %v235
  %v3111 = vunpack.c.l.b16 %v236
  %v3112 = vunpack.c.h.b16 %v236
  %v3113 = vunpack.c.l.b16 %v237
  %v3114 = vunpack.c.h.b16 %v237
  %v3115 = vunpack.c.l.b16 %v238
  %v3116 = vunpack.c.h.b16 %v238
  %v3117 = vunpack.c.l.b16 %v239
  %v3118 = vunpack.c.h.b16 %v239
  %v3119 = vunpack.c.l.b16 %v240
  %v3120 = vunpack.c.h.b16 %v240
  %v3121 = vunpack.c.l.b16 %v241
  %v3122 = vunpack.c.h.b16 %v241
  %v3123 = vunpack.c.l.b16 %v242
  %v3124 = vunpack.c.h.b16 %v242
  %v3125 = vunpack.c.l.b16 %v243
  %v3126 = vunpack.c.h.b16 %v243
  %v3127 = vunpack.c.l.b16 %v244
  %v3128 = vunpack.c.h.b16 %v244
  %v3129 = vunpack.c.l.b16 %v245
  %v3130 = vunpack.c.h.b16 %v245
  %v3131 = vunpack.c.l.b16 %v246
  %v3132 = vunpack.c.h.b16 %v246
  %v3133 = vunpack.c.l.b16 %v247
  %v3134 = vunpack.c.h.b16 %v247
  %v3135 = vunpack.c.l.b16 %v248
  %v3136 = vunpack.c.h.b16 %v248
  %v3137 = vunpack.c.l.b16 %v249
  %v3138 = vunpack.c.h.b16 %v249
  %v3139 = vunpack.c.l.b16 %v250
  %v3140 = vunpack.c.h.b16 %v250
  %v3141 = vunpack.c.l.b16 %v251
  %v3142 = vunpack.c.h.b16 %v251
  %v3143 = vunpack.c.l.b16 %v252
  %v3144 = vunpack.c.h.b16 %v252
  %v3145 = vunpack.c.l.b16 %v253
  %v3146 = vunpack.c.h.b16 %v253
  %v3147 = vunpack.c.l.b16 %v254
  %v3148 = vunpack.c.h.b16 %v254
  %v3149 = vunpack.c.l.b16 %v255
  %v3150 = vunpack.c.h.b16 %v255
  %v3151 = vunpack.c.l.b16 %v256
  %v3152 = vunpack.c.h.b16 %v256
  %v3153 = vunpack.c.l.b16 %v257
  %v3154 = vunpack.c.h.b16 %v257
  %v3155 = vunpack.c.l.b16 %v258
  %v3156 = vunpack.c.h.b16 %v258
  %v3157 = vunpack.c.l.b16 %v259
  %v3158 = vunpack.c.h.b16 %v259
  %v3159 = vunpack.c.l.b16 %v260
  %v3160 = vunpack.c.h.b16 %v260
  %v3161 = vunpack.c.l.b16 %v261
  %v3162 = vunpack.c.h.b16 %v261
  %v3163 = vunpack.c.l.b16 %v262
  %v3164 = vunpack.c.h.b16 %v262
  %v3165 = vunpack.c.l.b16 %v263
  %v3166 = vunpack.c.h.b16 %v263
  %v3167 = vunpack.c.l.b16 %v264
  %v3168 = vunpack.c.h.b16 %v264
  %v3169 = vunpack.c.l.b16 %v265
  %v3170 = vunpack.c.h.b16 %v265
  %v3171 = vunpack.c.l.b16 %v266
  %v3172 = vunpack.c.h.b16 %v266
  %v3173 = vunpack.c.l.b16 %v267
  %v3174 = vunpack.c.h.b16 %v267
  %v3175 = vunpack.c.l.b16 %v268
  %v3176 = vunpack.c.h.b16 %v268
  %v3177 = vunpack.c.l.b16 %v269
  %v3178 = vunpack.c.h.b16 %v269
  %v3179 = vunpack.c.l.b16 %v270
  %v3180 = vunpack.c.h.b16 %v270
  %v3181 = vunpack.c.l.b16 %v271
  %v3182 = vunpack.c.h.b16 %v271
  %v3183 = vunpack.c.l.b16 %v272
  %v3184 = vunpack.c.h.b16 %v272
  %v3185 = vunpack.c.l.b16 %v273
  %v3186 = vunpack.c.h.b16 %v273
  %v3187 = vunpack.c.l.b16 %v274
  %v3188 = vunpack.c.h.b16 %v274
  %v3189 = vunpack.c.l.b16 %v275
  %v3190 = vunpack.c.h.b16 %v275
  %v3191 = vunpack.c.l.b16 %v276
  %v3192 = vunpack.c.h.b16 %v276
  %v3193 = vunpack.c.l.b16 %v277
  %v3194 = vunpack.c.h.b16 %v277
  %v3195 = vunpack.c.l.b16 %v278
  %v3196 = vunpack.c.h.b16 %v278
  %v3197 = vunpack.c.l.b16 %v279
  %v3198 = vunpack.c.h.b16 %v279
  %v3199 = vunpack.c.l.b16 %v280
  %v3200 = vunpack.c.h.b16 %v280
  %v3201 = vunpack.c.l.b16 %v281
  %v3202 = vunpack.c.h.b16 %v281
  %v3203 = vunpack.c.l.b16 %v282
  %v3204 = vunpack.c.h.b16 %v282
  %v3205 = vunpack.c.l.b16 %v283
  %v3206 = vunpack.c.h.b16 %v283
  %v3207 = vunpack.c.l.b16 %v284
  %v3208 = vunpack.c.h.b16 %v284
  %v3209 = vunpack.c.l.b16 %v285
  %v3210 = vunpack.c.h.b16 %v285
  %v3211 = vunpack.c.l.b16 %v286
  %v3212 = vunpack.c.h.b16 %v286
  %v3213 = vunpack.c.l.b16 %v287
  %v3214 = vunpack.c.h.b16 %v287
  %v3215 = vunpack.c.l.b16 %v288
  %v3216 = vunpack.c.h.b16 %v288
  %v3217 = vunpack.c.l.b16 %v289
  %v3218 = vunpack.c.h.b16 %v289
  %v3219 = vunpack.c.l.b16 %v290
  %v3220 = vunpack.c.h.b16 %v290
  %v3221 = vunpack.c.l.b16 %v291
  %v3222 = vunpack.c.h.b16 %v291
  %v3223 = vunpack.c.l.b16 %v292
  %v3224 = vunpack.c.h.b16 %v292
  %v3225 = vunpack.c.l.b16 %v293
  %v3226 = vunpack.c.h.b16 %v293
  %v3227 = vunpack.c.l.b16 %v294
  %v3228 = vunpack.c.h.b16 %v294
  %v3229 = vunpack.c.l.b16 %v295
  %v3230 = vunpack.c.h.b16 %v295
  %v3231 = vunpack.c.l.b16 %v296
  %v3232 = vunpack.c.h.b16 %v296
  %v3233 = vunpack.c.l.b16 %v297
  %v3234 = vunpack.c.h.b16 %v297
  %v3235 = vunpack.c.l.b16 %v298
  %v3236 = vunpack.c.h.b16 %v298
  %v3237 = vunpack.c.l.b16 %v299
  %v3238 = vunpack.c.h.b16 %v299
  %v3239 = vunpack.c.l.b16 %v300
  %v3240 = vunpack.c.h.b16 %v300
  %v3241 = vunpack.c.l.b16 %v301
  %v3242 = vunpack.c.h.b16 %v301
  %v3243 = vunpack.c.l.b16 %v302
  %v3244 = vunpack.c.h.b16 %v302
  %v3245 = vunpack.c.l.b16 %v303
  %v3246 = vunpack.c.h.b16 %v303
  %v3247 = vunpack.c.l.b16 %v304
  %v3248 = vunpack.c.h.b16 %v304
  %v3249 = vunpack.c.l.b16 %v305
  %v3250 = vunpack.c.h.b16 %v305
  %v3251 = vunpack.c.l.b16 %v306
  %v3252 = vunpack.c.h.b16 %v306
  %v3253 = vunpack.c.l.b16 %v307
  %v3254 = vunpack.c.h.b16 %v307
  %v3255 = vunpack.c.l.b16 %v308
  %v3256 = vunpack.c.h.b16 %v308
  %v3257 = vunpack.c.l.b16 %v309
  %v3258 = vunpack.c.h.b16 %v309
  %v3259 = vunpack.c.l.b16 %v310
  %v3260 = vunpack.c.h.b16 %v310
  %v3261 = vunpack.c.l.b16 %v311
  %v3262 = vunpack.c.h.b16 %v311
  %v3263 = vunpack.c.l.b16 %v312
  %v3264 = vunpack.c.h.b16 %v312
  %v3265 = vunpack.c.l.b16 %v313
  %v3266 = vunpack.c.h.b16 %v313
  %v3267 = vunpack.c.l.b16 %v314
  %v3268 = vunpack.c.h.b16 %v314
  %v3269 = vunpack.c.l.b16 %v315
  %v3270 = vunpack.c.h.b16 %v315
  %v3271 = vunpack.c.l.b16 %v316
  %v3272 = vunpack.c.h.b16 %v316
  %v3273 = vunpack.c.l.b16 %v317
  %v3274 = vunpack.c.h.b16 %v317
  %v3275 = vunpack.c.l.b16 %v318
  %v3276 = vunpack.c.h.b16 %v318
  %v3277 = vunpack.c.l.b16 %v319
  %v3278 = vunpack.c.h.b16 %v319
  %v3279 = vunpack.c.l.b16 %v320
  %v3280 = vunpack.c.h.b16 %v320
  %v3281 = vunpack.c.l.b16 %v321
  %v3282 = vunpack.c.h.b16 %v321
  %v3283 = vunpack.c.l.b16 %v322
  %v3284 = vunpack.c.h.b16 %v322
  %v3285 = vunpack.c.l.b16 %v323
  %v3286 = vunpack.c.h.b16 %v323
  %v3287 = vunpack.c.l.b16 %v324
  %v3288 = vunpack.c.h.b16 %v324
  %v3289 = vunpack.c.l.b16 %v325
  %v3290 = vunpack.c.h.b16 %v325
  %v3291 = vunpack.c.l.b16 %v326
  %v3292 = vunpack.c.h.b16 %v326
  %v3293 = vunpack.c.l.b16 %v327
  %v3294 = vunpack.c.h.b16 %v327
  %v3295 = vunpack.c.l.b16 %v328
  %v3296 = vunpack.c.h.b16 %v328
  %v3297 = vunpack.c.l.b16 %v329
  %v3298 = vunpack.c.h.b16 %v329
  %v3299 = vunpack.c.l.b16 %v330
  %v3300 = vunpack.c.h.b16 %v330
  %v3301 = vunpack.c.l.b16 %v331
  %v3302 = vunpack.c.h.b16 %v331
  %v3303 = vunpack.c.l.b16 %v332
  %v3304 = vunpack.c.h.b16 %v332
  %v3305 = vunpack.c.l.b16 %v333
  %v3306 = vunpack.c.h.b16 %v333
  %v3307 = vunpack.c.l.b16 %v334
  %v3308 = vunpack.c.h.b16 %v334
  %v3309 = vunpack.c.l.b16 %v335
  %v3310 = vunpack.c.h.b16 %v335
  %v3311 = vunpack.c.l.b16 %v336
  %v3312 = vunpack.c.h.b16 %v336
  %v3313 = vunpack.c.l.b16 %v337
  %v3314 = vunpack.c.h.b16 %v337
  %v3315 = vunpack.c.l.b16 %v338
  %v3316 = vunpack.c.h.b16 %v338
  %v3317 = vunpack.c.l.b16 %v339
  %v3318 = vunpack.c.h.b16 %v339
  %v3319 = vunpack.c.l.b16 %v340
  %v3320 = vunpack.c.h.b16 %v340
  %v3321 = vunpack.c.l.b16 %v341
  %v3322 = vunpack.c.h.b16 %v341
  %v3323 = vunpack.c.l.b16 %v342
  %v3324 = vunpack.c.h.b16 %v342
  %v3325 = vunpack.c.l.b16 %v343
  %v3326 = vunpack.c.h.b16 %v343
  %v3327 = vunpack.c.l.b16 %v344
  %v3328 = vunpack.c.h.b16 %v344
  %v3329 = vunpack.c.l.b16 %v345
  %v3330 = vunpack.c.h.b16 %v345
  %v3331 = vunpack.c.l.b16 %v346
  %v3332 = vunpack.c.h.b16 %v346
  %v3333 = vunpack.c.l.b16 %v347
  %v3334 = vunpack.c.h.b16 %v347
  %v3335 = vunpack.c.l.b16 %v348
  %v3336 = vunpack.c.h.b16 %v348
  %v3337 = vunpack.c.l.b16 %v349
  %v3338 = vunpack.c.h.b16 %v349
  %v3339 = vunpack.c.l.b16 %v350
  %v3340 = vunpack.c.h.b16 %v350
  %v3341 = vunpack.c.l.b16 %v351
  %v3342 = vunpack.c.h.b16 %v351
  %v3343 = vunpack.c.l.b16 %v352
  %v3344 = vunpack.c.h.b16 %v352
  %v3345 = vunpack.c.l.b16 %v353
  %v3346 = vunpack.c.h.b16 %v353
  %v3347 = vunpack.c.l.b16 %v354
  %v3348 = vunpack.c.h.b16 %v354
  %v3349 = vunpack.c.l.b16 %v355
  %v3350 = vunpack.c.h.b16 %v355
  %v3351 = vunpack.c.l.b16 %v356
  %v3352 = vunpack.c.h.b16 %v356
  %v3353 = vunpack.c.l.b16 %v357
  %v3354 = vunpack.c.h.b16 %v357
  %v3355 = vunpack.c.l.b16 %v358
  %v3356 = vunpack.c.h.b16 %v358
  %v3357 = vunpack.c.l.b16 %v359
  %v3358 = vunpack.c.h.b16 %v359
  %v3359 = vunpack.c.l.b16 %v360
  %v3360 = vunpack.c.h.b16 %v360
  %v3361 = vunpack.c.l.b16 %v361
  %v3362 = vunpack.c.h.b16 %v361
  %v3363 = vunpack.c.l.b16 %v362
  %v3364 = vunpack.c.h.b16 %v362
  %v3365 = vunpack.c.l.b16 %v363
  %v3366 = vunpack.c.h.b16 %v363
  %v3367 = vunpack.c.l.b16 %v364
  %v3368 = vunpack.c.h.b16 %v364
  %v3369 = vunpack.c.l.b16 %v365
  %v3370 = vunpack.c.h.b16 %v365
  %v3371 = vunpack.c.l.b16 %v366
  %v3372 = vunpack.c.h.b16 %v366
  %v3373 = vunpack.c.l.b16 %v367
  %v3374 = vunpack.c.h.b16 %v367
  %v3375 = vunpack.c.l.b16 %v368
  %v3376 = vunpack.c.h.b16 %v368
  %v3377 = vunpack.c.l.b16 %v369
  %v3378 = vunpack.c.h.b16 %v369
  %v3379 = vunpack.c.l.b16 %v370
  %v3380 = vunpack.c.h.b16 %v370
  %v3381 = vunpack.c.l.b16 %v371
  %v3382 = vunpack.c.h.b16 %v371
  %v3383 = vunpack.c.l.b16 %v372
  %v3384 = vunpack.c.h.b16 %v372
  %v3385 = vunpack.c.l.b16 %v373
  %v3386 = vunpack.c.h.b16 %v373
  %v3387 = vunpack.c.l.b16 %v374
  %v3388 = vunpack.c.h.b16 %v374
  %v3389 = vunpack.c.l.b16 %v375
  %v3390 = vunpack.c.h.b16 %v375
  %v3391 = vunpack.c.l.b16 %v376
  %v3392 = vunpack.c.h.b16 %v376
  %v3393 = vunpack.c.l.b16 %v377
  %v3394 = vunpack.c.h.b16 %v377
  %v3395 = vunpack.c.l.b16 %v378
  %v3396 = vunpack.c.h.b16 %v378
  %v3397 = vunpack.c.l.b16 %v379
  %v3398 = vunpack.c.h.b16 %v379
  %v3399 = vunpack.c.l.b16 %v380
  %v3400 = vunpack.c.h.b16 %v380
  %v3401 = vunpack.c.l.b16 %v381
  %v3402 = vunpack.c.h.b16 %v381
  %v3403 = vunpack.c.l.b16 %v382
  %v3404 = vunpack.c.h.b16 %v382
  %v3405 = vunpack.c.l.b16 %v383
  %v3406 = vunpack.c.h.b16 %v383
  %v3407 = vunpack.c.l.b16 %v384
  %v3408 = vunpack.c.h.b16 %v384
  %v3409 = vunpack.c.l.b16 %v385
  %v3410 = vunpack.c.h.b16 %v385
  %v3411 = vunpack.c.l.b16 %v386
  %v3412 = vunpack.c.h.b16 %v386
  %v3413 = vunpack.c.l.b16 %v387
  %v3414 = vunpack.c.h.b16 %v387
  %v3415 = vunpack.c.l.b16 %v388
  %v3416 = vunpack.c.h.b16 %v388
  %v3417 = vunpack.c.l.b16 %v389
  %v3418 = vunpack.c.h.b16 %v389
  %v3419 = vunpack.c.l.b16 %v390
  %v3420 = vunpack.c.h.b16 %v390
  %v3421 = vunpack.c.l.b16 %v391
  %v3422 = vunpack.c.h.b16 %v391
  %v3423 = vunpack.c.l.b16 %v392
  %v3424 = vunpack.c.h.b16 %v392
  %v3425 = vunpack.c.l.b16 %v393
  %v3426 = vunpack.c.h.b16 %v393
  %v3427 = vunpack.c.l.b16 %v394
  %v3428 = vunpack.c.h.b16 %v394
  %v3429 = vunpack.c.l.b16 %v395
  %v3430 = vunpack.c.h.b16 %v395
  %v3431 = vunpack.c.l.b16 %v396
  %v3432 = vunpack.c.h.b16 %v396
  %v3433 = vunpack.c.l.b16 %v397
  %v3434 = vunpack.c.h.b16 %v397
  %v3435 = vunpack.c.l.b16 %v398
  %v3436 = vunpack.c.h.b16 %v398
  %v3437 = vunpack.c.l.b16 %v399
  %v3438 = vunpack.c.h.b16 %v399
  %v3439 = vunpack.c.l.b16 %v400
  %v3440 = vunpack.c.h.b16 %v400
  %v3441 = vunpack.c.l.b16 %v401
  %v3442 = vunpack.c.h.b16 %v401
  %v3443 = vunpack.c.l.b16 %v402
  %v3444 = vunpack.c.h.b16 %v402
  %v3445 = vunpack.c.l.b16 %v403
  %v3446 = vunpack.c.h.b16 %v403
  %v3447 = vunpack.c.l.b16 %v404
  %v3448 = vunpack.c.h.b16 %v404
  %v3449 = vunpack.c.l.b16 %v405
  %v3450 = vunpack.c.h.b16 %v405
  %v3451 = vunpack.c.l.b16 %v406
  %v3452 = vunpack.c.h.b16 %v406
  %v3453 = vunpack.c.l.b16 %v407
  %v3454 = vunpack.c.h.b16 %v407
  %v3455 = vunpack.c.l.b16 %v408
  %v3456 = vunpack.c.h.b16 %v408
  %v3457 = vunpack.c.l.b16 %v409
  %v3458 = vunpack.c.h.b16 %v409
  %v3459 = vunpack.c.l.b16 %v410
  %v3460 = vunpack.c.h.b16 %v410
  %v3461 = vunpack.c.l.b16 %v411
  %v3462 = vunpack.c.h.b16 %v411
  %v3463 = vunpack.c.l.b16 %v412
  %v3464 = vunpack.c.h.b16 %v412
  %v3465 = vunpack.c.l.b16 %v413
  %v3466 = vunpack.c.h.b16 %v413
  %v3467 = vunpack.c.l.b16 %v414
  %v3468 = vunpack.c.h.b16 %v414
  %v3469 = vunpack.c.l.b16 %v415
  %v3470 = vunpack.c.h.b16 %v415
  %v3471 = vunpack.c.l.b16 %v416
  %v3472 = vunpack.c.h.b16 %v416
  %v3473 = vunpack.c.l.b16 %v417
  %v3474 = vunpack.c.h.b16 %v417
  %v3475 = vunpack.c.l.b16 %v418
  %v3476 = vunpack.c.h.b16 %v418
  %v3477 = vunpack.c.l.b16 %v419
  %v3478 = vunpack.c.h.b16 %v419
  %v3479 = vunpack.c.l.b16 %v420
  %v3480 = vunpack.c.h.b16 %v420
  %v3481 = vunpack.c.l.b16 %v421
  %v3482 = vunpack.c.h.b16 %v421
  %v3483 = vunpack.c.l.b16 %v422
  %v3484 = vunpack.c.h.b16 %v422
  %v3485 = vunpack.c.l.b16 %v423
  %v3486 = vunpack.c.h.b16 %v423
  %v3487 = vunpack.c.l.b16 %v424
  %v3488 = vunpack.c.h.b16 %v424
  %v3489 = vunpack.c.l.b16 %v425
  %v3490 = vunpack.c.h.b16 %v425
  %v3491 = vunpack.c.l.b16 %v426
  %v3492 = vunpack.c.h.b16 %v426
  %v3493 = vunpack.c.l.b16 %v427
  %v3494 = vunpack.c.h.b16 %v427
  %v3495 = vunpack.c.l.b16 %v428
  %v3496 = vunpack.c.h.b16 %v428
  %v3497 = vunpack.c.l.b16 %v429
  %v3498 = vunpack.c.h.b16 %v429
  %v3499 = vunpack.c.l.b16 %v430
  %v3500 = vunpack.c.h.b16 %v430
  %v3501 = vunpack.c.l.b16 %v431
  %v3502 = vunpack.c.h.b16 %v431
  %v3503 = vunpack.c.l.b16 %v432
  %v3504 = vunpack.c.h.b16 %v432
  %v3505 = vunpack.c.l.b16 %v433
  %v3506 = vunpack.c.h.b16 %v433
  %v3507 = vunpack.c.l.b16 %v434
  %v3508 = vunpack.c.h.b16 %v434
  %v3509 = vunpack.c.l.b16 %v435
  %v3510 = vunpack.c.h.b16 %v435
  %v3511 = vunpack.c.l.b16 %v436
  %v3512 = vunpack.c.h.b16 %v436
  %v3513 = vunpack.c.l.b16 %v437
  %v3514 = vunpack.c.h.b16 %v437
  %v3515 = vunpack.c.l.b16 %v438
  %v3516 = vunpack.c.h.b16 %v438
  %v3517 = vunpack.c.l.b16 %v439
  %v3518 = vunpack.c.h.b16 %v439
  %v3519 = vunpack.c.l.b16 %v440
  %v3520 = vunpack.c.h.b16 %v440
  %v3521 = vunpack.c.l.b16 %v441
  %v3522 = vunpack.c.h.b16 %v441
  %v3523 = vunpack.c.l.b16 %v442
  %v3524 = vunpack.c.h.b16 %v442
  %v3525 = vunpack.c.l.b16 %v443
  %v3526 = vunpack.c.h.b16 %v443
  %v3527 = vunpack.c.l.b16 %v444
  %v3528 = vunpack.c.h.b16 %v444
  %v3529 = vunpack.c.l.b16 %v445
  %v3530 = vunpack.c.h.b16 %v445
  %v3531 = vunpack.c.l.b16 %v446
  %v3532 = vunpack.c.h.b16 %v446
  %v3533 = vunpack.c.l.b16 %v447
  %v3534 = vunpack.c.h.b16 %v447
  %v3535 = vunpack.c.l.b16 %v448
  %v3536 = vunpack.c.h.b16 %v448
  %v3537 = vunpack.c.l.b16 %v449
  %v3538 = vunpack.c.h.b16 %v449
  %v3539 = vunpack.c.l.b16 %v450
  %v3540 = vunpack.c.h.b16 %v450
  %v3541 = vunpack.c.l.b16 %v451
  %v3542 = vunpack.c.h.b16 %v451
  %v3543 = vunpack.c.l.b16 %v452
  %v3544 = vunpack.c.h.b16 %v452
  %v3545 = vunpack.c.l.b16 %v453
  %v3546 = vunpack.c.h.b16 %v453
  %v3547 = vunpack.c.l.b16 %v454
  %v3548 = vunpack.c.h.b16 %v454
  %v3549 = vunpack.c.l.b16 %v455
  %v3550 = vunpack.c.h.b16 %v455
  %v3551 = vunpack.c.l.b16 %v456
  %v3552 = vunpack.c.h.b16 %v456
  %v3553 = vunpack.c.l.b16 %v457
  %v3554 = vunpack.c.h.b16 %v457
  %v3555 = vunpack.c.l.b16 %v458
  %v3556 = vunpack.c.h.b16 %v458
  %v3557 = vunpack.c.l.b16 %v459
  %v3558 = vunpack.c.h.b16 %v459
  %v3559 = vunpack.c.l.b16 %v460
  %v3560 = vunpack.c.h.b16 %v460
  %v3561 = vunpack.c.l.b16 %v461
  %v3562 = vunpack.c.h.b16 %v461
  %v3563 = vunpack.c.l.b16 %v462
  %v3564 = vunpack.c.h.b16 %v462
  %v3565 = vunpack.c.l.b16 %v463
  %v3566 = vunpack.c.h.b16 %v463
  %v3567 = vunpack.c.l.b16 %v464
  %v3568 = vunpack.c.h.b16 %v464
  %v3569 = vunpack.c.l.b16 %v465
  %v3570 = vunpack.c.h.b16 %v465
  %v3571 = vunpack.c.l.b16 %v466
  %v3572 = vunpack.c.h.b16 %v466
  %v3573 = vunpack.c.l.b16 %v467
  %v3574 = vunpack.c.h.b16 %v467
  %v3575 = vunpack.c.l.b16 %v468
  %v3576 = vunpack.c.h.b16 %v468
  %v3577 = vunpack.c.l.b16 %v469
  %v3578 = vunpack.c.h.b16 %v469
  %v3579 = vunpack.c.l.b16 %v470
  %v3580 = vunpack.c.h.b16 %v470
  %v3581 = vunpack.c.l.b16 %v471
  %v3582 = vunpack.c.h.b16 %v471
  %v3583 = vunpack.c.l.b16 %v472
  %v3584 = vunpack.c.h.b16 %v472
  %v3585 = vunpack.c.l.b16 %v473
  %v3586 = vunpack.c.h.b16 %v473
  %v3587 = vunpack.c.l.b16 %v474
  %v3588 = vunpack.c.h.b16 %v474
  %v3589 = vunpack.c.l.b16 %v475
  %v3590 = vunpack.c.h.b16 %v475
  %v3591 = vunpack.c.l.b16 %v476
  %v3592 = vunpack.c.h.b16 %v476
  %v3593 = vunpack.c.l.b16 %v477
  %v3594 = vunpack.c.h.b16 %v477
  %v3595 = vunpack.c.l.b16 %v478
  %v3596 = vunpack.c.h.b16 %v478
  %v3597 = vunpack.c.l.b16 %v479
  %v3598 = vunpack.c.h.b16 %v479
  %v3599 = vunpack.c.l.b16 %v480
  %v3600 = vunpack.c.h.b16 %v480
  %v3601 = vunpack.c.l.b16 %v481
  %v3602 = vunpack.c.h.b16 %v481
  %v3603 = vunpack.c.l.b16 %v482
  %v3604 = vunpack.c.h.b16 %v482
  %v3605 = vunpack.c.l.b16 %v483
  %v3606 = vunpack.c.h.b16 %v483
  %v3607 = vunpack.c.l.b16 %v484
  %v3608 = vunpack.c.h.b16 %v484
  %v3609 = vunpack.c.l.b16 %v485
  %v3610 = vunpack.c.h.b16 %v485
  %v3611 = vunpack.c.l.b16 %v486
  %v3612 = vunpack.c.h.b16 %v486
  %v3613 = vunpack.c.l.b16 %v487
  %v3614 = vunpack.c.h.b16 %v487
  %v3615 = vunpack.c.l.b16 %v488
  %v3616 = vunpack.c.h.b16 %v488
  %v3617 = vunpack.c.l.b16 %v489
  %v3618 = vunpack.c.h.b16 %v489
  %v3619 = vunpack.c.l.b16 %v490
  %v3620 = vunpack.c.h.b16 %v490
  %v3621 = vunpack.c.l.b16 %v491
  %v3622 = vunpack.c.h.b16 %v491
  %v3623 = vunpack.c.l.b16 %v492
  %v3624 = vunpack.c.h.b16 %v492
  %v3625 = vunpack.c.l.b16 %v493
  %v3626 = vunpack.c.h.b16 %v493
  %v3627 = vunpack.c.l.b16 %v494
  %v3628 = vunpack.c.h.b16 %v494
  %v3629 = vunpack.c.l.b16 %v495
  %v3630 = vunpack.c.h.b16 %v495
  %v3631 = vunpack.c.l.b16 %v496
  %v3632 = vunpack.c.h.b16 %v496
  %v3633 = vunpack.c.l.b16 %v497
  %v3634 = vunpack.c.h.b16 %v497
  %v3635 = vunpack.c.l.b16 %v498
  %v3636 = vunpack.c.h.b16 %v498
  %v3637 = vunpack.c.l.b16 %v499
  %v3638 = vunpack.c.h.b16 %v499
  %v3639 = vunpack.c.l.b16 %v500
  %v3640 = vunpack.c.h.b16 %v500
  %v3641 = vunpack.c.l.b16 %v501
  %v3642 = vunpack.c.h.b16 %v501
  %v3643 = vunpack.c.l.b16 %v502
  %v3644 = vunpack.c.h.b16 %v502
  %v3645 = vunpack.c.l.b16 %v503
  %v3646 = vunpack.c.h.b16 %v503
  %v3647 = vunpack.c.l.b16 %v504
  %v3648 = vunpack.c.h.b16 %v504
  %v3649 = vunpack.c.l.b16 %v505
  %v3650 = vunpack.c.h.b16 %v505
  %v3651 = vunpack.c.l.b16 %v506
  %v3652 = vunpack.c.h.b16 %v506
  %v3653 = vunpack.c.l.b16 %v507
  %v3654 = vunpack.c.h.b16 %v507
  %v3655 = vunpack.c.l.b16 %v508
  %v3656 = vunpack.c.h.b16 %v508
  %v3657 = vunpack.c.l.b16 %v509
  %v3658 = vunpack.c.h.b16 %v509
  %v3659 = vunpack.c.l.b16 %v510
  %v3660 = vunpack.c.h.b16 %v510
  %v3661 = vunpack.c.l.b16 %v511
  %v3662 = vunpack.c.h.b16 %v511
  %v3663 = vunpack.c.l.b16 %v512
  %v3664 = vunpack.c.h.b16 %v512
  %v3665 = vunpack.c.l.b16 %v513
  %v3666 = vunpack.c.h.b16 %v513
  %v3667 = vunpack.c.l.b16 %v514
  %v3668 = vunpack.c.h.b16 %v514
  %v3669 = vunpack.c.l.b16 %v515
  %v3670 = vunpack.c.h.b16 %v515
  %v3671 = vunpack.c.l.b16 %v516
  %v3672 = vunpack.c.h.b16 %v516
  %v3673 = vunpack.c.l.b16 %v517
  %v3674 = vunpack.c.h.b16 %v517
  %v3675 = vunpack.c.l.b16 %v518
  %v3676 = vunpack.c.h.b16 %v518
  %v3677 = vunpack.c.l.b16 %v519
  %v3678 = vunpack.c.h.b16 %v519
  %v3679 = vunpack.c.l.b16 %v520
  %v3680 = vunpack.c.h.b16 %v520
  %v3681 = vunpack.c.l.b16 %v521
  %v3682 = vunpack.c.h.b16 %v521
  %v3683 = vunpack.c.l.b16 %v522
  %v3684 = vunpack.c.h.b16 %v522
  %v3685 = vunpack.c.l.b16 %v523
  %v3686 = vunpack.c.h.b16 %v523
  %v3687 = vunpack.c.l.b16 %v524
  %v3688 = vunpack.c.h.b16 %v524
  %v3689 = vunpack.c.l.b16 %v525
  %v3690 = vunpack.c.h.b16 %v525
  %v3691 = vunpack.c.l.b16 %v526
  %v3692 = vunpack.c.h.b16 %v526
  %v3693 = vunpack.c.l.b16 %v527
  %v3694 = vunpack.c.h.b16 %v527
  %v3695 = vunpack.c.l.b16 %v528
  %v3696 = vunpack.c.h.b16 %v528
  %v3697 = vunpack.c.l.b16 %v529
  %v3698 = vunpack.c.h.b16 %v529
  %v3699 = vunpack.c.l.b16 %v530
  %v3700 = vunpack.c.h.b16 %v530
  %v3701 = vunpack.c.l.b16 %v531
  %v3702 = vunpack.c.h.b16 %v531
  %v3703 = vunpack.c.l.b16 %v532
  %v3704 = vunpack.c.h.b16 %v532
  %v3705 = vunpack.c.l.b16 %v533
  %v3706 = vunpack.c.h.b16 %v533
  %v3707 = vunpack.c.l.b16 %v534
  %v3708 = vunpack.c.h.b16 %v534
  %v3709 = vunpack.c.l.b16 %v535
  %v3710 = vunpack.c.h.b16 %v535
  %v3711 = vunpack.c.l.b16 %v536
  %v3712 = vunpack.c.h.b16 %v536
  %v3713 = vunpack.c.l.b16 %v537
  %v3714 = vunpack.c.h.b16 %v537
  %v3715 = vunpack.c.l.b16 %v538
  %v3716 = vunpack.c.h.b16 %v538
  %v3717 = vunpack.c.l.b16 %v539
  %v3718 = vunpack.c.h.b16 %v539
  %v3719 = vunpack.c.l.b16 %v540
  %v3720 = vunpack.c.h.b16 %v540
  %v3721 = vunpack.c.l.b16 %v541
  %v3722 = vunpack.c.h.b16 %v541
  %v3723 = vunpack.c.l.b16 %v542
  %v3724 = vunpack.c.h.b16 %v542
  %v3725 = vunpack.c.l.b16 %v543
  %v3726 = vunpack.c.h.b16 %v543
  %v3727 = vunpack.c.l.b16 %v544
  %v3728 = vunpack.c.h.b16 %v544
  %v3729 = vunpack.c.l.b16 %v545
  %v3730 = vunpack.c.h.b16 %v545
  %v3731 = vunpack.c.l.b16 %v546
  %v3732 = vunpack.c.h.b16 %v546
  %v3733 = vunpack.c.l.b16 %v547
  %v3734 = vunpack.c.h.b16 %v547
  %v3735 = vunpack.c.l.b16 %v548
  %v3736 = vunpack.c.h.b16 %v548
  %v3737 = vunpack.c.l.b16 %v549
  %v3738 = vunpack.c.h.b16 %v549
  %v3739 = vunpack.c.l.b16 %v550
  %v3740 = vunpack.c.h.b16 %v550
  %v3741 = vunpack.c.l.b16 %v551
  %v3742 = vunpack.c.h.b16 %v551
  %v3743 = vunpack.c.l.b16 %v552
  %v3744 = vunpack.c.h.b16 %v552
  %v3745 = vunpack.c.l.b16 %v553
  %v3746 = vunpack.c.h.b16 %v553
  %v3747 = vunpack.c.l.b16 %v554
  %v3748 = vunpack.c.h.b16 %v554
  %v3749 = vunpack.c.l.b16 %v555
  %v3750 = vunpack.c.h.b16 %v555
  %v3751 = vunpack.c.l.b16 %v556
  %v3752 = vunpack.c.h.b16 %v556
  %v3753 = vunpack.c.l.b16 %v557
  %v3754 = vunpack.c.h.b16 %v557
  %v3755 = vunpack.c.l.b16 %v558
  %v3756 = vunpack.c.h.b16 %v558
  %v3757 = vunpack.c.l.b16 %v559
  %v3758 = vunpack.c.h.b16 %v559
  %v3759 = vunpack.c.l.b16 %v560
  %v3760 = vunpack.c.h.b16 %v560
  %v3761 = vunpack.c.l.b16 %v561
  %v3762 = vunpack.c.h.b16 %v561
  %v3763 = vunpack.c.l.b16 %v562
  %v3764 = vunpack.c.h.b16 %v562
  %v3765 = vunpack.c.l.b16 %v563
  %v3766 = vunpack.c.h.b16 %v563
  %v3767 = vunpack.c.l.b16 %v564
  %v3768 = vunpack.c.h.b16 %v564
  %v3769 = vunpack.c.l.b16 %v565
  %v3770 = vunpack.c.h.b16 %v565
  %v3771 = vunpack.c.l.b16 %v566
  %v3772 = vunpack.c.h.b16 %v566
  %v3773 = vunpack.c.l.b16 %v567
  %v3774 = vunpack.c.h.b16 %v567
  %v3775 = vunpack.c.l.b16 %v568
  %v3776 = vunpack.c.h.b16 %v568
  %v3777 = vunpack.c.l.b16 %v569
  %v3778 = vunpack.c.h.b16 %v569
  %v3779 = vunpack.c.l.b16 %v570
  %v3780 = vunpack.c.h.b16 %v570
  %v3781 = vunpack.c.l.b16 %v571
  %v3782 = vunpack.c.h.b16 %v571
  %v3783 = vunpack.c.l.b16 %v572
  %v3784 = vunpack.c.h.b16 %v572
  %v3785 = vunpack.c.l.b16 %v573
  %v3786 = vunpack.c.h.b16 %v573
  %v3787 = vunpack.c.l.b16 %v574
  %v3788 = vunpack.c.h.b16 %v574
  %v3789 = vunpack.c.l.b16 %v575
  %v3790 = vunpack.c.h.b16 %v575
  %v3791 = vunpack.c.l.b16 %v576
  %v3792 = vunpack.c.h.b16 %v576
  %v3793 = vunpack.c.l.b16 %v577
  %v3794 = vunpack.c.h.b16 %v577
  %v3795 = vunpack.c.l.b16 %v578
  %v3796 = vunpack.c.h.b16 %v578
  %v3797 = vunpack.c.l.b16 %v579
  %v3798 = vunpack.c.h.b16 %v579
  %v3799 = vunpack.c.l.b16 %v580
  %v3800 = vunpack.c.h.b16 %v580
  %v3801 = vunpack.c.l.b16 %v581
  %v3802 = vunpack.c.h.b16 %v581
  %v3803 = vunpack.c.l.b16 %v582
  %v3804 = vunpack.c.h.b16 %v582
  %v3805 = vunpack.c.l.b16 %v583
  %v3806 = vunpack.c.h.b16 %v583
  %v3807 = vunpack.c.l.b16 %v584
  %v3808 = vunpack.c.h.b16 %v584
  %v3809 = vunpack.c.l.b16 %v585
  %v3810 = vunpack.c.h.b16 %v585
  %v3811 = vunpack.c.l.b16 %v586
  %v3812 = vunpack.c.h.b16 %v586
  %v3813 = vunpack.c.l.b16 %v587
  %v3814 = vunpack.c.h.b16 %v587
  %v3815 = vunpack.c.l.b16 %v588
  %v3816 = vunpack.c.h.b16 %v588
  %v3817 = vunpack.c.l.b16 %v589
  %v3818 = vunpack.c.h.b16 %v589
  %v3819 = vunpack.c.l.b16 %v590
  %v3820 = vunpack.c.h.b16 %v590
  %v3821 = vunpack.c.l.b16 %v591
  %v3822 = vunpack.c.h.b16 %v591
  %v3823 = vunpack.c.l.b16 %v592
  %v3824 = vunpack.c.h.b16 %v592
  %v3825 = vunpack.c.l.b16 %v593
  %v3826 = vunpack.c.h.b16 %v593
  %v3827 = vunpack.c.l.b16 %v594
  %v3828 = vunpack.c.h.b16 %v594
  %v3829 = vunpack.c.l.b16 %v595
  %v3830 = vunpack.c.h.b16 %v595
  %v3831 = vunpack.c.l.b16 %v596
  %v3832 = vunpack.c.h.b16 %v596
  %v3833 = vunpack.c.l.b16 %v597
  %v3834 = vunpack.c.h.b16 %v597
  %v3835 = vunpack.c.l.b16 %v598
  %v3836 = vunpack.c.h.b16 %v598
  %v3837 = vunpack.c.l.b16 %v599
  %v3838 = vunpack.c.h.b16 %v599
  %v3839 = vunpack.c.l.b16 %v600
  %v3840 = vunpack.c.h.b16 %v600
  %v3841 = vunpack.c.l.b16 %v601
  %v3842 = vunpack.c.h.b16 %v601
  %v3843 = vunpack.c.l.b16 %v602
  %v3844 = vunpack.c.h.b16 %v602
  %v3845 = vunpack.c.l.b16 %v603
  %v3846 = vunpack.c.h.b16 %v603
  %v3847 = vunpack.c.l.b16 %v604
  %v3848 = vunpack.c.h.b16 %v604
  %v3849 = vunpack.c.l.b16 %v605
  %v3850 = vunpack.c.h.b16 %v605
  %v3851 = vunpack.c.l.b16 %v606
  %v3852 = vunpack.c.h.b16 %v606
  %v3853 = vunpack.c.l.b16 %v607
  %v3854 = vunpack.c.h.b16 %v607
  %v3855 = vunpack.c.l.b16 %v608
  %v3856 = vunpack.c.h.b16 %v608
  %v3857 = vunpack.c.l.b16 %v609
  %v3858 = vunpack.c.h.b16 %v609
  %v3859 = vunpack.c.l.b16 %v610
  %v3860 = vunpack.c.h.b16 %v610
  %v3861 = vunpack.c.l.b16 %v611
  %v3862 = vunpack.c.h.b16 %v611
  %v3863 = vunpack.c.l.b16 %v612
  %v3864 = vunpack.c.h.b16 %v612
  %v3865 = vunpack.c.l.b16 %v613
  %v3866 = vunpack.c.h.b16 %v613
  %v3867 = vunpack.c.l.b16 %v614
  %v3868 = vunpack.c.h.b16 %v614
  %v3869 = vunpack.c.l.b16 %v615
  %v3870 = vunpack.c.h.b16 %v615
  %v3871 = vunpack.c.l.b16 %v616
  %v3872 = vunpack.c.h.b16 %v616
  %v3873 = vunpack.c.l.b16 %v617
  %v3874 = vunpack.c.h.b16 %v617
  %v3875 = vunpack.c.l.b16 %v618
  %v3876 = vunpack.c.h.b16 %v618
  %v3877 = vunpack.c.l.b16 %v619
  %v3878 = vunpack.c.h.b16 %v619
  %v3879 = vunpack.c.l.b16 %v620
  %v3880 = vunpack.c.h.b16 %v620
  %v3881 = vunpack.c.l.b16 %v621
  %v3882 = vunpack.c.h.b16 %v621
  %v3883 = vunpack.c.l.b16 %v622
  %v3884 = vunpack.c.h.b16 %v622
  %v3885 = vunpack.c.l.b16 %v623
  %v3886 = vunpack.c.h.b16 %v623
  %v3887 = vunpack.c.l.b16 %v624
  %v3888 = vunpack.c.h.b16 %v624
  %v3889 = vunpack.c.l.b16 %v625
  %v3890 = vunpack.c.h.b16 %v625
  %v3891 = vunpack.c.l.b16 %v626
  %v3892 = vunpack.c.h.b16 %v626
  %v3893 = vunpack.c.l.b16 %v627
  %v3894 = vunpack.c.h.b16 %v627
  %v3895 = vunpack.c.l.b16 %v628
  %v3896 = vunpack.c.h.b16 %v628
  %v3897 = vunpack.c.l.b16 %v629
  %v3898 = vunpack.c.h.b16 %v629
  %v3899 = vunpack.c.l.b16 %v630
  %v3900 = vunpack.c.h.b16 %v630
  %v3901 = vunpack.c.l.b16 %v631
  %v3902 = vunpack.c.h.b16 %v631
  %v3903 = vunpack.c.l.b16 %v632
  %v3904 = vunpack.c.h.b16 %v632
  %v3905 = vunpack.c.l.b16 %v633
  %v3906 = vunpack.c.h.b16 %v633
  %v3907 = vunpack.c.l.b16 %v634
  %v3908 = vunpack.c.h.b16 %v634
  %v3909 = vunpack.c.l.b16 %v635
  %v3910 = vunpack.c.h.b16 %v635
  %v3911 = vunpack.c.l.b16 %v636
  %v3912 = vunpack.c.h.b16 %v636
  %v3913 = vunpack.c.l.b16 %v637
  %v3914 = vunpack.c.h.b16 %v637
  %v3915 = vunpack.c.l.b16 %v638
  %v3916 = vunpack.c.h.b16 %v638
  %v3917 = vunpack.c.l.b16 %v639
  %v3918 = vunpack.c.h.b16 %v639
  %v3919 = vunpack.c.l.b16 %v640
  %v3920 = vunpack.c.h.b16 %v640
  %v3921 = vunpack.c.l.b16 %v641
  %v3922 = vunpack.c.h.b16 %v641
  %v3923 = vunpack.c.l.b16 %v642
  %v3924 = vunpack.c.h.b16 %v642
  %v3925 = vunpack.c.l.b16 %v643
  %v3926 = vunpack.c.h.b16 %v643
  %v3927 = vunpack.c.l.b16 %v644
  %v3928 = vunpack.c.h.b16 %v644
  %v3929 = vunpack.c.l.b16 %v645
  %v3930 = vunpack.c.h.b16 %v645
  %v3931 = vunpack.c.l.b16 %v646
  %v3932 = vunpack.c.h.b16 %v646
  %v3933 = vunpack.c.l.b16 %v647
  %v3934 = vunpack.c.h.b16 %v647
  %v3935 = vunpack.c.l.b16 %v648
  %v3936 = vunpack.c.h.b16 %v648
  %v3937 = vunpack.c.l.b16 %v649
  %v3938 = vunpack.c.h.b16 %v649
  %v3939 = vunpack.c.l.b16 %v650
  %v3940 = vunpack.c.h.b16 %v650
  %v3941 = vunpack.c.l.b16 %v651
  %v3942 = vunpack.c.h.b16 %v651
  %v3943 = vunpack.c.l.b16 %v652
  %v3944 = vunpack.c.h.b16 %v652
  %v3945 = vunpack.c.l.b16 %v653
  %v3946 = vunpack.c.h.b16 %v653
  %v3947 = vunpack.c.l.b16 %v654
  %v3948 = vunpack.c.h.b16 %v654
  %v3949 = vunpack.c.l.b16 %v655
  %v3950 = vunpack.c.h.b16 %v655
  %v3951 = vunpack.c.l.b16 %v656
  %v3952 = vunpack.c.h.b16 %v656
  %v3953 = vunpack.c.l.b16 %v657
  %v3954 = vunpack.c.h.b16 %v657
  %v3955 = vunpack.c.l.b16 %v658
  %v3956 = vunpack.c.h.b16 %v658
  %v3957 = vunpack.c.l.b16 %v659
  %v3958 = vunpack.c.h.b16 %v659
  %v3959 = vunpack.c.l.b16 %v660
  %v3960 = vunpack.c.h.b16 %v660
  %v3961 = vunpack.c.l.b16 %v661
  %v3962 = vunpack.c.h.b16 %v661
  %v3963 = vunpack.c.l.b16 %v662
  %v3964 = vunpack.c.h.b16 %v662
  %v3965 = vunpack.c.l.b16 %v663
  %v3966 = vunpack.c.h.b16 %v663
  %v3967 = vunpack.c.l.b16 %v664
  %v3968 = vunpack.c.h.b16 %v664
  %v3969 = vunpack.c.l.b16 %v665
  %v3970 = vunpack.c.h.b16 %v665
  %v3971 = vunpack.c.l.b16 %v666
  %v3972 = vunpack.c.h.b16 %v666
  %v3973 = vunpack.c.l.b16 %v667
  %v3974 = vunpack.c.h.b16 %v667
  %v3975 = vunpack.c.l.b16 %v668
  %v3976 = vunpack.c.h.b16 %v668
  %v3977 = vunpack.c.l.b16 %v669
  %v3978 = vunpack.c.h.b16 %v669
  %v3979 = vunpack.c.l.b16 %v670
  %v3980 = vunpack.c.h.b16 %v670
  %v3981 = vunpack.c.l.b16 %v671
  %v3982 = vunpack.c.h.b16 %v671
  %v3983 = vunpack.c.l.b16 %v672
  %v3984 = vunpack.c.h.b16 %v672
  %v3985 = vunpack.c.l.b16 %v673
  %v3986 = vunpack.c.h.b16 %v673
  %v3987 = vunpack.c.l.b16 %v674
  %v3988 = vunpack.c.h.b16 %v674
  %v3989 = vunpack.c.l.b16 %v675
  %v3990 = vunpack.c.h.b16 %v675
  %v3991 = vunpack.c.l.b16 %v676
  %v3992 = vunpack.c.h.b16 %v676
  %v3993 = vunpack.c.l.b16 %v677
  %v3994 = vunpack.c.h.b16 %v677
  %v3995 = vunpack.c.l.b16 %v678
  %v3996 = vunpack.c.h.b16 %v678
  %v3997 = vunpack.c.l.b16 %v679
  %v3998 = vunpack.c.h.b16 %v679
  %v3999 = vunpack.c.l.b16 %v680
  %v4000 = vunpack.c.h.b16 %v680
  %v4001 = vunpack.c.l.b16 %v681
  %v4002 = vunpack.c.h.b16 %v681
  %v4003 = vunpack.c.l.b16 %v682
  %v4004 = vunpack.c.h.b16 %v682
  %v4005 = vunpack.c.l.b16 %v683
  %v4006 = vunpack.c.h.b16 %v683
  %v4007 = vunpack.c.l.b16 %v684
  %v4008 = vunpack.c.h.b16 %v684
  %v4009 = vunpack.c.l.b16 %v685
  %v4010 = vunpack.c.h.b16 %v685
  %v4011 = vunpack.c.l.b16 %v686
  %v4012 = vunpack.c.h.b16 %v686
  %v4013 = vunpack.c.l.b16 %v687
  %v4014 = vunpack.c.h.b16 %v687
  %v4015 = vunpack.c.l.b16 %v688
  %v4016 = vunpack.c.h.b16 %v688
  %v4017 = vunpack.c.l.b16 %v689
  %v4018 = vunpack.c.h.b16 %v689
  %v4019 = vunpack.c.l.b16 %v690
  %v4020 = vunpack.c.h.b16 %v690
  %v4021 = vunpack.c.l.b16 %v691
  %v4022 = vunpack.c.h.b16 %v691
  %v4023 = vunpack.c.l.b16 %v692
  %v4024 = vunpack.c.h.b16 %v692
  %v4025 = vunpack.c.l.b16 %v693
  %v4026 = vunpack.c.h.b16 %v693
  %v4027 = vunpack.c.l.b16 %v694
  %v4028 = vunpack.c.h.b16 %v694
  %v4029 = vunpack.c.l.b16 %v695
  %v4030 = vunpack.c.h.b16 %v695
  %v4031 = vunpack.c.l.b16 %v696
  %v4032 = vunpack.c.h.b16 %v696
  %v4033 = vunpack.c.l.b16 %v697
  %v4034 = vunpack.c.h.b16 %v697
  %v4035 = vunpack.c.l.b16 %v698
  %v4036 = vunpack.c.h.b16 %v698
  %v4037 = vunpack.c.l.b16 %v699
  %v4038 = vunpack.c.h.b16 %v699
  %v4039 = vunpack.c.l.b16 %v700
  %v4040 = vunpack.c.h.b16 %v700
  %v4041 = vunpack.c.l.b16 %v701
  %v4042 = vunpack.c.h.b16 %v701
  %v4043 = vunpack.c.l.b16 %v702
  %v4044 = vunpack.c.h.b16 %v702
  %v4045 = vunpack.c.l.b16 %v703
  %v4046 = vunpack.c.h.b16 %v703
  %v4047 = vunpack.c.l.b16 %v704
  %v4048 = vunpack.c.h.b16 %v704
  %v4049 = vunpack.c.l.b16 %v705
  %v4050 = vunpack.c.h.b16 %v705
  %v4051 = vunpack.c.l.b16 %v706
  %v4052 = vunpack.c.h.b16 %v706
  %v4053 = vunpack.c.l.b16 %v707
  %v4054 = vunpack.c.h.b16 %v707
  %v4055 = vunpack.c.l.b16 %v708
  %v4056 = vunpack.c.h.b16 %v708
  %v4057 = vunpack.c.l.b16 %v709
  %v4058 = vunpack.c.h.b16 %v709
  %v4059 = vunpack.c.l.b16 %v710
  %v4060 = vunpack.c.h.b16 %v710
  %v4061 = vunpack.c.l.b16 %v711
  %v4062 = vunpack.c.h.b16 %v711
  %v4063 = vunpack.c.l.b16 %v712
  %v4064 = vunpack.c.h.b16 %v712
  %v4065 = vunpack.c.l.b16 %v713
  %v4066 = vunpack.c.h.b16 %v713
  %v4067 = vunpack.c.l.b16 %v714
  %v4068 = vunpack.c.h.b16 %v714
  %v4069 = vunpack.c.l.b16 %v715
  %v4070 = vunpack.c.h.b16 %v715
  %v4071 = vunpack.c.l.b16 %v716
  %v4072 = vunpack.c.h.b16 %v716
  %v4073 = vunpack.c.l.b16 %v717
  %v4074 = vunpack.c.h.b16 %v717
  %v4075 = vunpack.c.l.b16 %v718
  %v4076 = vunpack.c.h.b16 %v718
  %v4077 = vunpack.c.l.b16 %v719
  %v4078 = vunpack.c.h.b16 %v719
  %v4079 = vunpack.c.l.b16 %v720
  %v4080 = vunpack.c.h.b16 %v720
  %v4081 = vunpack.c.l.b16 %v721
  %v4082 = vunpack.c.h.b16 %v721
  %v4083 = vunpack.c.l.b16 %v722
  %v4084 = vunpack.c.h.b16 %v722
  %v4085 = vunpack.c.l.b16 %v723
  %v4086 = vunpack.c.h.b16 %v723
  %v4087 = vunpack.c.l.b16 %v724
  %v4088 = vunpack.c.h.b16 %v724
  %v4089 = vunpack.c.l.b16 %v725
  %v4090 = vunpack.c.h.b16 %v725
  %v4091 = vunpack.c.l.b16 %v726
  %v4092 = vunpack.c.h.b16 %v726
  %v4093 = vunpack.c.l.b16 %v727
  %v4094 = vunpack.c.h.b16 %v727
  %v4095 = vunpack.c.l.b16 %v728
  %v4096 = vunpack.c.h.b16 %v728
  %v4097 = vunpack.c.l.b16 %v729
  %v4098 = vunpack.c.h.b16 %v729
  %v4099 = vunpack.c.l.b16 %v730
  %v4100 = vunpack.c.h.b16 %v730
  %v4101 = vunpack.c.l.b16 %v731
  %v4102 = vunpack.c.h.b16 %v731
  %v4103 = vunpack.c.l.b16 %v732
  %v4104 = vunpack.c.h.b16 %v732
  %v4105 = vunpack.c.l.b16 %v733
  %v4106 = vunpack.c.h.b16 %v733
  %v4107 = vunpack.c.l.b16 %v734
  %v4108 = vunpack.c.h.b16 %v734
  %v4109 = vunpack.c.l.b16 %v735
  %v4110 = vunpack.c.h.b16 %v735
  %v4111 = vunpack.c.l.b16 %v736
  %v4112 = vunpack.c.h.b16 %v736
  %v4113 = vunpack.c.l.b16 %v737
  %v4114 = vunpack.c.h.b16 %v737
  %v4115 = vunpack.c.l.b16 %v738
  %v4116 = vunpack.c.h.b16 %v738
  %v4117 = vunpack.c.l.b16 %v739
  %v4118 = vunpack.c.h.b16 %v739
  %v4119 = vunpack.c.l.b16 %v740
  %v4120 = vunpack.c.h.b16 %v740
  %v4121 = vunpack.c.l.b16 %v741
  %v4122 = vunpack.c.h.b16 %v741
  %v4123 = vunpack.c.l.b16 %v742
  %v4124 = vunpack.c.h.b16 %v742
  %v4125 = vunpack.c.l.b16 %v743
  %v4126 = vunpack.c.h.b16 %v743
  %v4127 = vunpack.c.l.b16 %v744
  %v4128 = vunpack.c.h.b16 %v744
  %v4129 = vunpack.c.l.b16 %v745
  %v4130 = vunpack.c.h.b16 %v745
  %v4131 = vunpack.c.l.b16 %v746
  %v4132 = vunpack.c.h.b16 %v746
  %v4133 = vunpack.c.l.b16 %v747
  %v4134 = vunpack.c.h.b16 %v747
  %v4135 = vunpack.c.l.b16 %v748
  %v4136 = vunpack.c.h.b16 %v748
  %v4137 = vunpack.c.l.b16 %v749
  %v4138 = vunpack.c.h.b16 %v749
  %v4139 = vunpack.c.l.b16 %v750
  %v4140 = vunpack.c.h.b16 %v750
  %v4141 = vunpack.c.l.b16 %v751
  %v4142 = vunpack.c.h.b16 %v751
  %v4143 = vunpack.c.l.b16 %v752
  %v4144 = vunpack.c.h.b16 %v752
  %v4145 = vunpack.c.l.b16 %v753
  %v4146 = vunpack.c.h.b16 %v753
  %v4147 = vunpack.c.l.b16 %v754
  %v4148 = vunpack.c.h.b16 %v754
  %v4149 = vunpack.c.l.b16 %v755
  %v4150 = vunpack.c.h.b16 %v755
  %v4151 = vunpack.c.l.b16 %v756
  %v4152 = vunpack.c.h.b16 %v756
  %v4153 = vunpack.c.l.b16 %v757
  %v4154 = vunpack.c.h.b16 %v757
  %v4155 = vunpack.c.l.b16 %v758
  %v4156 = vunpack.c.h.b16 %v758
  %v4157 = vunpack.c.l.b16 %v759
  %v4158 = vunpack.c.h.b16 %v759
  %v4159 = vunpack.c.l.b16 %v760
  %v4160 = vunpack.c.h.b16 %v760
  %v4161 = vunpack.c.l.b16 %v761
  %v4162 = vunpack.c.h.b16 %v761
  %v4163 = vunpack.c.l.b16 %v762
  %v4164 = vunpack.c.h.b16 %v762
  %v4165 = vunpack.c.l.b16 %v763
  %v4166 = vunpack.c.h.b16 %v763
  %v4167 = vunpack.c.l.b16 %v764
  %v4168 = vunpack.c.h.b16 %v764
  %v4169 = vunpack.c.l.b16 %v765
  %v4170 = vunpack.c.h.b16 %v765
  %v4171 = vunpack.c.l.b16 %v766
  %v4172 = vunpack.c.h.b16 %v766
  %v4173 = vunpack.c.l.b16 %v767
  %v4174 = vunpack.c.h.b16 %v767
  %v4175 = vunpack.c.l.b16 %v768
  %v4176 = vunpack.c.h.b16 %v768
  %v4177 = vunpack.c.l.b16 %v769
  %v4178 = vunpack.c.h.b16 %v769
  %v4179 = vunpack.c.l.b16 %v770
  %v4180 = vunpack.c.h.b16 %v770
  %v4181 = vunpack.c.l.b16 %v771
  %v4182 = vunpack.c.h.b16 %v771
  %v4183 = vunpack.c.l.b16 %v772
  %v4184 = vunpack.c.h.b16 %v772
  %v4185 = vunpack.c.l.b16 %v773
  %v4186 = vunpack.c.h.b16 %v773
  %v4187 = vunpack.c.l.b16 %v774
  %v4188 = vunpack.c.h.b16 %v774
  %v4189 = vunpack.c.l.b16 %v775
  %v4190 = vunpack.c.h.b16 %v775
  %v4191 = vunpack.c.l.b16 %v776
  %v4192 = vunpack.c.h.b16 %v776
  %v4193 = vunpack.c.l.b16 %v777
  %v4194 = vunpack.c.h.b16 %v777
  %v4195 = vunpack.c.l.b16 %v778
  %v4196 = vunpack.c.h.b16 %v778
  %v4197 = vunpack.c.l.b16 %v779
  %v4198 = vunpack.c.h.b16 %v779
  %v4199 = vunpack.c.l.b16 %v780
  %v4200 = vunpack.c.h.b16 %v780
  %v4201 = vunpack.c.l.b16 %v781
  %v4202 = vunpack.c.h.b16 %v781
  %v4203 = vunpack.c.l.b16 %v782
  %v4204 = vunpack.c.h.b16 %v782
  %v4205 = vunpack.c.l.b16 %v783
  %v4206 = vunpack.c.h.b16 %v783
  %v4207 = vunpack.c.l.b16 %v784
  %v4208 = vunpack.c.h.b16 %v784
  %v4209 = vunpack.c.l.b16 %v785
  %v4210 = vunpack.c.h.b16 %v785
  %v4211 = vunpack.c.l.b16 %v786
  %v4212 = vunpack.c.h.b16 %v786
  %v4213 = vunpack.c.l.b16 %v787
  %v4214 = vunpack.c.h.b16 %v787
  %v4215 = vunpack.c.l.b16 %v788
  %v4216 = vunpack.c.h.b16 %v788
  %v4217 = vunpack.c.l.b16 %v789
  %v4218 = vunpack.c.h.b16 %v789
  %v4219 = vunpack.c.l.b16 %v790
  %v4220 = vunpack.c.h.b16 %v790
  %v4221 = vunpack.c.l.b16 %v791
  %v4222 = vunpack.c.h.b16 %v791
  %v4223 = vunpack.c.l.b16 %v792
  %v4224 = vunpack.c.h.b16 %v792
  %v4225 = vunpack.c.l.b16 %v793
  %v4226 = vunpack.c.h.b16 %v793
  %v4227 = vunpack.c.l.b16 %v794
  %v4228 = vunpack.c.h.b16 %v794
  %v4229 = vunpack.c.l.b16 %v795
  %v4230 = vunpack.c.h.b16 %v795
  %v4231 = vunpack.c.l.b16 %v796
  %v4232 = vunpack.c.h.b16 %v796
  %v4233 = vunpack.c.l.b16 %v797
  %v4234 = vunpack.c.h.b16 %v797
  %v4235 = vunpack.c.l.b16 %v798
  %v4236 = vunpack.c.h.b16 %v798
  %v4237 = vunpack.c.l.b16 %v799
  %v4238 = vunpack.c.h.b16 %v799
  %v4239 = vunpack.c.l.b16 %v800
  %v4240 = vunpack.c.h.b16 %v800
  %v4241 = vunpack.c.l.b16 %v801
  %v4242 = vunpack.c.h.b16 %v801
  %v4243 = vunpack.c.l.b16 %v802
  %v4244 = vunpack.c.h.b16 %v802
  %v4245 = vunpack.c.l.b16 %v803
  %v4246 = vunpack.c.h.b16 %v803
  %v4247 = vunpack.c.l.b16 %v804
  %v4248 = vunpack.c.h.b16 %v804
  %v4249 = vunpack.c.l.b16 %v805
  %v4250 = vunpack.c.h.b16 %v805
  %v4251 = vunpack.c.l.b16 %v806
  %v4252 = vunpack.c.h.b16 %v806
  %v4253 = vunpack.c.l.b16 %v807
  %v4254 = vunpack.c.h.b16 %v807
  %v4255 = vunpack.c.l.b16 %v808
  %v4256 = vunpack.c.h.b16 %v808
  %v4257 = vunpack.c.l.b16 %v809
  %v4258 = vunpack.c.h.b16 %v809
  %v4259 = vunpack.c.l.b16 %v810
  %v4260 = vunpack.c.h.b16 %v810
  %v4261 = vunpack.c.l.b16 %v811
  %v4262 = vunpack.c.h.b16 %v811
  %v4263 = vunpack.c.l.b16 %v812
  %v4264 = vunpack.c.h.b16 %v812
  %v4265 = vunpack.c.l.b16 %v813
  %v4266 = vunpack.c.h.b16 %v813
  %v4267 = vunpack.c.l.b16 %v814
  %v4268 = vunpack.c.h.b16 %v814
  %v4269 = vunpack.c.l.b16 %v815
  %v4270 = vunpack.c.h.b16 %v815
  %v4271 = vunpack.c.l.b16 %v816
  %v4272 = vunpack.c.h.b16 %v816
  %v4273 = vunpack.c.l.b16 %v817
  %v4274 = vunpack.c.h.b16 %v817
  %v4275 = vunpack.c.l.b16 %v818
  %v4276 = vunpack.c.h.b16 %v818
  %v4277 = vunpack.c.l.b16 %v819
  %v4278 = vunpack.c.h.b16 %v819
  %v4279 = vunpack.c.l.b16 %v820
  %v4280 = vunpack.c.h.b16 %v820
  %v4281 = vunpack.c.l.b16 %v821
  %v4282 = vunpack.c.h.b16 %v821
  %v4283 = vunpack.c.l.b16 %v822
  %v4284 = vunpack.c.h.b16 %v822
  %v4285 = vunpack.c.l.b16 %v823
  %v4286 = vunpack.c.h.b16 %v823
  %v4287 = vunpack.c.l.b16 %v824
  %v4288 = vunpack.c.h.b16 %v824
  %v4289 = vunpack.c.l.b16 %v825
  %v4290 = vunpack.c.h.b16 %v825
  %v4291 = vunpack.c.l.b16 %v826
  %v4292 = vunpack.c.h.b16 %v826
  %v4293 = vunpack.c.l.b16 %v827
  %v4294 = vunpack.c.h.b16 %v827
  %v4295 = vunpack.c.l.b16 %v828
  %v4296 = vunpack.c.h.b16 %v828
  %v4297 = vunpack.c.l.b16 %v829
  %v4298 = vunpack.c.h.b16 %v829
  %v4299 = vunpack.c.l.b16 %v830
  %v4300 = vunpack.c.h.b16 %v830
  %v4301 = vunpack.c.l.b16 %v831
  %v4302 = vunpack.c.h.b16 %v831
  %v4303 = vunpack.c.l.b16 %v832
  %v4304 = vunpack.c.h.b16 %v832
  %v4305 = vunpack.c.l.b16 %v833
  %v4306 = vunpack.c.h.b16 %v833
  %v4307 = vunpack.c.l.b16 %v834
  %v4308 = vunpack.c.h.b16 %v834
  %v4309 = vunpack.c.l.b16 %v835
  %v4310 = vunpack.c.h.b16 %v835
  %v4311 = vunpack.c.l.b16 %v836
  %v4312 = vunpack.c.h.b16 %v836
  %v4313 = vunpack.c.l.b16 %v837
  %v4314 = vunpack.c.h.b16 %v837
  %v4315 = vunpack.c.l.b16 %v838
  %v4316 = vunpack.c.h.b16 %v838
  %v4317 = vunpack.c.l.b16 %v839
  %v4318 = vunpack.c.h.b16 %v839
  %v4319 = vunpack.c.l.b16 %v840
  %v4320 = vunpack.c.h.b16 %v840
  %v4321 = vunpack.c.l.b16 %v841
  %v4322 = vunpack.c.h.b16 %v841
  %v4323 = vunpack.c.l.b16 %v842
  %v4324 = vunpack.c.h.b16 %v842
  %v4325 = vunpack.c.l.b16 %v843
  %v4326 = vunpack.c.h.b16 %v843
  %v4327 = vunpack.c.l.b16 %v844
  %v4328 = vunpack.c.h.b16 %v844
  %v4329 = vunpack.c.l.b16 %v845
  %v4330 = vunpack.c.h.b16 %v845
  %v4331 = vunpack.c.l.b16 %v846
  %v4332 = vunpack.c.h.b16 %v846
  %v4333 = vunpack.c.l.b16 %v847
  %v4334 = vunpack.c.h.b16 %v847
  %v4335 = vunpack.c.l.b16 %v848
  %v4336 = vunpack.c.h.b16 %v848
  %v4337 = vunpack.c.l.b16 %v849
  %v4338 = vunpack.c.h.b16 %v849
  %v4339 = vunpack.c.l.b16 %v850
  %v4340 = vunpack.c.h.b16 %v850
  %v4341 = vunpack.c.l.b16 %v851
  %v4342 = vunpack.c.h.b16 %v851
  %v4343 = vunpack.c.l.b16 %v852
  %v4344 = vunpack.c.h.b16 %v852
  %v4345 = vunpack.c.l.b16 %v853
  %v4346 = vunpack.c.h.b16 %v853
  %v4347 = vunpack.c.l.b16 %v854
  %v4348 = vunpack.c.h.b16 %v854
  %v4349 = vunpack.c.l.b16 %v855
  %v4350 = vunpack.c.h.b16 %v855
  %v4351 = vunpack.c.l.b16 %v856
  %v4352 = vunpack.c.h.b16 %v856
  %v4353 = vunpack.c.l.b16 %v857
  %v4354 = vunpack.c.h.b16 %v857
  %v4355 = vunpack.c.l.b16 %v858
  %v4356 = vunpack.c.h.b16 %v858
  %v4357 = vunpack.c.l.b16 %v859
  %v4358 = vunpack.c.h.b16 %v859
  %v4359 = vunpack.c.l.b16 %v860
  %v4360 = vunpack.c.h.b16 %v860
  %v4361 = vunpack.c.l.b16 %v861
  %v4362 = vunpack.c.h.b16 %v861
  %v4363 = vunpack.c.l.b16 %v862
  %v4364 = vunpack.c.h.b16 %v862
  %v4365 = vunpack.c.l.b16 %v863
  %v4366 = vunpack.c.h.b16 %v863
  %v4367 = vunpack.c.l.b16 %v864
  %v4368 = vunpack.c.h.b16 %v864
  %v4369 = vunpack.c.l.b16 %v865
  %v4370 = vunpack.c.h.b16 %v865
  %v4371 = vunpack.c.l.b16 %v866
  %v4372 = vunpack.c.h.b16 %v866
  %v4373 = vunpack.c.l.b16 %v867
  %v4374 = vunpack.c.h.b16 %v867
  %v4375 = vunpack.c.l.b16 %v868
  %v4376 = vunpack.c.h.b16 %v868
  %v4377 = vunpack.c.l.b16 %v869
  %v4378 = vunpack.c.h.b16 %v869
  %v4379 = vunpack.c.l.b16 %v870
  %v4380 = vunpack.c.h.b16 %v870
  %v4381 = vunpack.c.l.b16 %v871
  %v4382 = vunpack.c.h.b16 %v871
  %v4383 = vunpack.c.l.b16 %v872
  %v4384 = vunpack.c.h.b16 %v872
  %v4385 = vunpack.c.l.b16 %v873
  %v4386 = vunpack.c.h.b16 %v873
  %v4387 = vunpack.c.l.b16 %v874
  %v4388 = vunpack.c.h.b16 %v874
  %v4389 = vunpack.c.l.b16 %v875
  %v4390 = vunpack.c.h.b16 %v875
  %v4391 = vunpack.c.l.b16 %v876
  %v4392 = vunpack.c.h.b16 %v876
  %v4393 = vunpack.c.l.b16 %v877
  %v4394 = vunpack.c.h.b16 %v877
  %v4395 = vunpack.c.l.b16 %v878
  %v4396 = vunpack.c.h.b16 %v878
  %v4397 = vunpack.c.l.b16 %v879
  %v4398 = vunpack.c.h.b16 %v879
  %v4399 = vunpack.c.l.b16 %v880
  %v4400 = vunpack.c.h.b16 %v880
  %v4401 = vunpack.c.l.b16 %v881
  %v4402 = vunpack.c.h.b16 %v881
  %v4403 = vunpack.c.l.b16 %v882
  %v4404 = vunpack.c.h.b16 %v882
  %v4405 = vunpack.c.l.b16 %v883
  %v4406 = vunpack.c.h.b16 %v883
  %v4407 = vunpack.c.l.b16 %v884
  %v4408 = vunpack.c.h.b16 %v884
  %v4409 = vunpack.c.l.b16 %v885
  %v4410 = vunpack.c.h.b16 %v885
  %v4411 = vunpack.c.l.b16 %v886
  %v4412 = vunpack.c.h.b16 %v886
  %v4413 = vunpack.c.l.b16 %v887
  %v4414 = vunpack.c.h.b16 %v887
  %v4415 = vunpack.c.l.b16 %v888
  %v4416 = vunpack.c.h.b16 %v888
  %v4417 = vunpack.c.l.b16 %v889
  %v4418 = vunpack.c.h.b16 %v889
  %v4419 = vunpack.c.l.b16 %v890
  %v4420 = vunpack.c.h.b16 %v890
  %v4421 = vunpack.c.l.b16 %v891
  %v4422 = vunpack.c.h.b16 %v891
  %v4423 = vunpack.c.l.b16 %v892
  %v4424 = vunpack.c.h.b16 %v892
  %v4425 = vunpack.c.l.b16 %v893
  %v4426 = vunpack.c.h.b16 %v893
  %v4427 = vunpack.c.l.b16 %v894
  %v4428 = vunpack.c.h.b16 %v894
  %v4429 = vunpack.c.l.b16 %v895
  %v4430 = vunpack.c.h.b16 %v895
  %v4431 = vunpack.c.l.b16 %v896
  %v4432 = vunpack.c.h.b16 %v896
  %v4433 = vunpack.c.l.b16 %v897
  %v4434 = vunpack.c.h.b16 %v897
  %v4435 = vunpack.c.l.b16 %v898
  %v4436 = vunpack.c.h.b16 %v898
  %v4437 = vunpack.c.l.b16 %v899
  %v4438 = vunpack.c.h.b16 %v899
  %v4439 = vunpack.c.l.b16 %v900
  %v4440 = vunpack.c.h.b16 %v900
  %v4441 = vunpack.c.l.b16 %v901
  %v4442 = vunpack.c.h.b16 %v901
  %v4443 = vunpack.c.l.b16 %v902
  %v4444 = vunpack.c.h.b16 %v902
  %v4445 = vunpack.c.l.b16 %v903
  %v4446 = vunpack.c.h.b16 %v903
  %v4447 = vunpack.c.l.b16 %v904
  %v4448 = vunpack.c.h.b16 %v904
  %v4449 = vunpack.c.l.b16 %v905
  %v4450 = vunpack.c.h.b16 %v905
  %v4451 = vunpack.c.l.b16 %v906
  %v4452 = vunpack.c.h.b16 %v906
  %v4453 = vunpack.c.l.b16 %v907
  %v4454 = vunpack.c.h.b16 %v907
  %v4455 = vunpack.c.l.b16 %v908
  %v4456 = vunpack.c.h.b16 %v908
  %v4457 = vunpack.c.l.b16 %v909
  %v4458 = vunpack.c.h.b16 %v909
  %v4459 = vunpack.c.l.b16 %v910
  %v4460 = vunpack.c.h.b16 %v910
  %v4461 = vunpack.c.l.b16 %v911
  %v4462 = vunpack.c.h.b16 %v911
  %v4463 = vunpack.c.l.b16 %v912
  %v4464 = vunpack.c.h.b16 %v912
  %v4465 = vunpack.c.l.b16 %v913
  %v4466 = vunpack.c.h.b16 %v913
  %v4467 = vunpack.c.l.b16 %v914
  %v4468 = vunpack.c.h.b16 %v914
  %v4469 = vunpack.c.l.b16 %v915
  %v4470 = vunpack.c.h.b16 %v915
  %v4471 = vunpack.c.l.b16 %v916
  %v4472 = vunpack.c.h.b16 %v916
  %v4473 = vunpack.c.l.b16 %v917
  %v4474 = vunpack.c.h.b16 %v917
  %v4475 = vunpack.c.l.b16 %v918
  %v4476 = vunpack.c.h.b16 %v918
  %v4477 = vunpack.c.l.b16 %v919
  %v4478 = vunpack.c.h.b16 %v919
  %v4479 = vunpack.c.l.b16 %v920
  %v4480 = vunpack.c.h.b16 %v920
  %v4481 = vunpack.c.l.b16 %v921
  %v4482 = vunpack.c.h.b16 %v921
  %v4483 = vunpack.c.l.b16 %v922
  %v4484 = vunpack.c.h.b16 %v922
  %v4485 = vunpack.c.l.b16 %v923
  %v4486 = vunpack.c.h.b16 %v923
  %v4487 = vunpack.c.l.b16 %v924
  %v4488 = vunpack.c.h.b16 %v924
  %v4489 = vunpack.c.l.b16 %v925
  %v4490 = vunpack.c.h.b16 %v925
  %v4491 = vunpack.c.l.b16 %v926
  %v4492 = vunpack.c.h.b16 %v926
  %v4493 = vunpack.c.l.b16 %v927
  %v4494 = vunpack.c.h.b16 %v927
  %v4495 = vunpack.c.l.b16 %v928
  %v4496 = vunpack.c.h.b16 %v928
  %v4497 = vunpack.c.l.b16 %v929
  %v4498 = vunpack.c.h.b16 %v929
  %v4499 = vunpack.c.l.b16 %v930
  %v4500 = vunpack.c.h.b16 %v930
  %v4501 = vunpack.c.l.b16 %v931
  %v4502 = vunpack.c.h.b16 %v931
  %v4503 = vunpack.c.l.b16 %v932
  %v4504 = vunpack.c.h.b16 %v932
  %v4505 = vunpack.c.l.b16 %v933
  %v4506 = vunpack.c.h.b16 %v933
  %v4507 = vunpack.c.l.b16 %v934
  %v4508 = vunpack.c.h.b16 %v934
  %v4509 = vunpack.c.l.b16 %v935
  %v4510 = vunpack.c.h.b16 %v935
  %v4511 = vunpack.c.l.b16 %v936
  %v4512 = vunpack.c.h.b16 %v936
  %v4513 = vunpack.c.l.b16 %v937
  %v4514 = vunpack.c.h.b16 %v937
  %v4515 = vunpack.c.l.b16 %v938
  %v4516 = vunpack.c.h.b16 %v938
  %v4517 = vunpack.c.l.b16 %v939
  %v4518 = vunpack.c.h.b16 %v939
  %v4519 = vunpack.c.l.b16 %v940
  %v4520 = vunpack.c.h.b16 %v940
  %v4521 = vunpack.c.l.b16 %v941
  %v4522 = vunpack.c.h.b16 %v941
  %v4523 = vunpack.c.l.b16 %v942
  %v4524 = vunpack.c.h.b16 %v942
  %v4525 = vunpack.c.l.b16 %v943
  %v4526 = vunpack.c.h.b16 %v943
  %v4527 = vunpack.c.l.b16 %v944
  %v4528 = vunpack.c.h.b16 %v944
  %v4529 = vunpack.c.l.b16 %v945
  %v4530 = vunpack.c.h.b16 %v945
  %v4531 = vunpack.c.l.b16 %v946
  %v4532 = vunpack.c.h.b16 %v946
  %v4533 = vunpack.c.l.b16 %v947
  %v4534 = vunpack.c.h.b16 %v947
  %v4535 = vunpack.c.l.b16 %v948
  %v4536 = vunpack.c.h.b16 %v948
  %v4537 = vunpack.c.l.b16 %v949
  %v4538 = vunpack.c.h.b16 %v949
  %v4539 = vunpack.c.l.b16 %v950
  %v4540 = vunpack.c.h.b16 %v950
  %v4541 = vunpack.c.l.b16 %v951
  %v4542 = vunpack.c.h.b16 %v951
  %v4543 = vunpack.c.l.b16 %v952
  %v4544 = vunpack.c.h.b16 %v952
  %v4545 = vunpack.c.l.b16 %v953
  %v4546 = vunpack.c.h.b16 %v953
  %v4547 = vunpack.c.l.b16 %v954
  %v4548 = vunpack.c.h.b16 %v954
  %v4549 = vunpack.c.l.b16 %v955
  %v4550 = vunpack.c.h.b16 %v955
  %v4551 = vunpack.c.l.b16 %v956
  %v4552 = vunpack.c.h.b16 %v956
  %v4553 = vunpack.c.l.b16 %v957
  %v4554 = vunpack.c.h.b16 %v957
  %v4555 = vunpack.c.l.b16 %v958
  %v4556 = vunpack.c.h.b16 %v958
  %v4557 = vunpack.c.l.b16 %v959
  %v4558 = vunpack.c.h.b16 %v959
  %v4559 = vunpack.c.l.b16 %v960
  %v4560 = vunpack.c.h.b16 %v960
  %v4561 = vunpack.c.l.b16 %v961
  %v4562 = vunpack.c.h.b16 %v961
  %v4563 = vunpack.c.l.b16 %v962
  %v4564 = vunpack.c.h.b16 %v962
  %v4565 = vunpack.c.l.b16 %v963
  %v4566 = vunpack.c.h.b16 %v963
  %v4567 = vunpack.c.l.b16 %v964
  %v4568 = vunpack.c.h.b16 %v964
  %v4569 = vunpack.c.l.b16 %v965
  %v4570 = vunpack.c.h.b16 %v965
  %v4571 = vunpack.c.l.b16 %v966
  %v4572 = vunpack.c.h.b16 %v966
  %v4573 = vunpack.c.l.b16 %v967
  %v4574 = vunpack.c.h.b16 %v967
  %v4575 = vunpack.c.l.b16 %v968
  %v4576 = vunpack.c.h.b16 %v968
  %v4577 = vunpack.c.l.b16 %v969
  %v4578 = vunpack.c.h.b16 %v969
  %v4579 = vunpack.c.l.b16 %v970
  %v4580 = vunpack.c.h.b16 %v970
  %v4581 = vunpack.c.l.b16 %v971
  %v4582 = vunpack.c.h.b16 %v971
  %v4583 = vunpack.c.l.b16 %v972
  %v4584 = vunpack.c.h.b16 %v972
  %v4585 = vunpack.c.l.b16 %v973
  %v4586 = vunpack.c.h.b16 %v973
  %v4587 = vunpack.c.l.b16 %v974
  %v4588 = vunpack.c.h.b16 %v974
  %v4589 = vunpack.c.l.b16 %v975
  %v4590 = vunpack.c.h.b16 %v975
  %v4591 = vunpack.c.l.b16 %v976
  %v4592 = vunpack.c.h.b16 %v976
  %v4593 = vunpack.c.l.b16 %v977
  %v4594 = vunpack.c.h.b16 %v977
  %v4595 = vunpack.c.l.b16 %v978
  %v4596 = vunpack.c.h.b16 %v978
  %v4597 = vunpack.c.l.b16 %v979
  %v4598 = vunpack.c.h.b16 %v979
  %v4599 = vunpack.c.l.b16 %v980
  %v4600 = vunpack.c.h.b16 %v980
  %v4601 = vunpack.c.l.b16 %v981
  %v4602 = vunpack.c.h.b16 %v981
  %v4603 = vunpack.c.l.b16 %v982
  %v4604 = vunpack.c.h.b16 %v982
  %v4605 = vunpack.c.l.b16 %v983
  %v4606 = vunpack.c.h.b16 %v983
  %v4607 = vunpack.c.l.b16 %v984
  %v4608 = vunpack.c.h.b16 %v984
  %v4609 = vunpack.c.l.b16 %v985
  %v4610 = vunpack.c.h.b16 %v985
  %v4611 = vunpack.c.l.b16 %v986
  %v4612 = vunpack.c.h.b16 %v986
  %v4613 = vunpack.c.l.b16 %v987
  %v4614 = vunpack.c.h.b16 %v987
  %v4615 = vunpack.c.l.b16 %v988
  %v4616 = vunpack.c.h.b16 %v988
  %v4617 = vunpack.c.l.b16 %v989
  %v4618 = vunpack.c.h.b16 %v989
  %v4619 = vunpack.c.l.b16 %v990
  %v4620 = vunpack.c.h.b16 %v990
  %v4621 = vunpack.c.l.b16 %v991
  %v4622 = vunpack.c.h.b16 %v991
  %v4623 = vunpack.c.l.b16 %v992
  %v4624 = vunpack.c.h.b16 %v992
  %v4625 = vunpack.c.l.b16 %v993
  %v4626 = vunpack.c.h.b16 %v993
  %v4627 = vunpack.c.l.b16 %v994
  %v4628 = vunpack.c.h.b16 %v994
  %v4629 = vunpack.c.l.b16 %v995
  %v4630 = vunpack.c.h.b16 %v995
  %v4631 = vunpack.c.l.b16 %v996
  %v4632 = vunpack.c.h.b16 %v996
  %v4633 = vunpack.c.l.b16 %v997
  %v4634 = vunpack.c.h.b16 %v997
  %v4635 = vunpack.c.l.b16 %v998
  %v4636 = vunpack.c.h.b16 %v998
  %v4637 = vunpack.c.l.b16 %v999
  %v4638 = vunpack.c.h.b16 %v999
  %v4639 = vunpack.c.l.b16 %v1000
  %v4640 = vunpack.c.h.b16 %v1000
  %v4641 = vunpack.c.l.b16 %v1001
  %v4642 = vunpack.c.h.b16 %v1001
  %v4643 = vunpack.c.l.b16 %v1002
  %v4644 = vunpack.c.h.b16 %v1002
  %v4645 = vunpack.c.l.b16 %v1003
  %v4646 = vunpack.c.h.b16 %v1003
  %v4647 = vunpack.c.l.b16 %v1004
  %v4648 = vunpack.c.h.b16 %v1004
  %v4649 = vunpack.c.l.b16 %v1005
  %v4650 = vunpack.c.h.b16 %v1005
  %v4651 = vunpack.c.l.b16 %v1006
  %v4652 = vunpack.c.h.b16 %v1006
  %v4653 = vunpack.c.l.b16 %v1007
  %v4654 = vunpack.c.h.b16 %v1007
  %v4655 = vunpack.c.l.b16 %v1008
  %v4656 = vunpack.c.h.b16 %v1008
  %v4657 = vunpack.c.l.b16 %v1009
  %v4658 = vunpack.c.h.b16 %v1009
  %v4659 = vunpack.c.l.b16 %v1010
  %v4660 = vunpack.c.h.b16 %v1010
  %v4661 = vunpack.c.l.b16 %v1011
  %v4662 = vunpack.c.h.b16 %v1011
  %v4663 = vunpack.c.l.b16 %v1012
  %v4664 = vunpack.c.h.b16 %v1012
  %v4665 = vunpack.c.l.b16 %v1013
  %v4666 = vunpack.c.h.b16 %v1013
  %v4667 = vunpack.c.l.b16 %v1014
  %v4668 = vunpack.c.h.b16 %v1014
  %v4669 = vunpack.c.l.b16 %v1015
  %v4670 = vunpack.c.h.b16 %v1015
  %v4671 = vunpack.c.l.b16 %v1016
  %v4672 = vunpack.c.h.b16 %v1016
  %v4673 = vunpack.c.l.b16 %v1017
  %v4674 = vunpack.c.h.b16 %v1017
  %v4675 = vunpack.c.l.b16 %v1018
  %v4676 = vunpack.c.h.b16 %v1018
  %v4677 = vunpack.c.l.b16 %v1019
  %v4678 = vunpack.c.h.b16 %v1019
  %v4679 = vunpack.c.l.b16 %v1020
  %v4680 = vunpack.c.h.b16 %v1020
  %v4681 = vunpack.c.l.b16 %v1021
  %v4682 = vunpack.c.h.b16 %v1021
  %v4683 = vunpack.c.l.b16 %v1022
  %v4684 = vunpack.c.h.b16 %v1022
  %v4685 = vunpack.c.l.b16 %v1023
  %v4686 = vunpack.c.h.b16 %v1023
  %v4687 = vunpack.c.l.b16 %v1024
  %v4688 = vunpack.c.h.b16 %v1024
  %v4689 = vunpack.c.l.b16 %v1025
  %v4690 = vunpack.c.h.b16 %v1025
  %v4691 = vunpack.c.l.b16 %v1026
  %v4692 = vunpack.c.h.b16 %v1026
  %v4693 = vunpack.c.l.b16 %v1027
  %v4694 = vunpack.c.h.b16 %v1027
  %v4695 = vunpack.c.l.b16 %v1028
  %v4696 = vunpack.c.h.b16 %v1028
  %v4697 = vunpack.c.l.b16 %v1029
  %v4698 = vunpack.c.h.b16 %v1029
  %v4699 = vunpack.c.l.b16 %v1030
  %v4700 = vunpack.c.h.b16 %v1030
  %v4701 = vunpack.c.l.b16 %v1031
  %v4702 = vunpack.c.h.b16 %v1031
  %v4703 = vunpack.c.l.b16 %v1032
  %v4704 = vunpack.c.h.b16 %v1032
  %v4705 = vunpack.c.l.b16 %v1033
  %v4706 = vunpack.c.h.b16 %v1033
  %v4707 = vunpack.c.l.b16 %v1034
  %v4708 = vunpack.c.h.b16 %v1034
  %v4709 = vunpack.c.l.b16 %v1035
  %v4710 = vunpack.c.h.b16 %v1035
  %v4711 = vunpack.c.l.b16 %v1036
  %v4712 = vunpack.c.h.b16 %v1036
  %v4713 = vunpack.c.l.b16 %v1037
  %v4714 = vunpack.c.h.b16 %v1037
  %v4715 = vunpack.c.l.b16 %v1038
  %v4716 = vunpack.c.h.b16 %v1038
  %v4717 = vunpack.c.l.b16 %v1039
  %v4718 = vunpack.c.h.b16 %v1039
  %v4719 = vunpack.c.l.b16 %v1040
  %v4720 = vunpack.c.h.b16 %v1040
  %v4721 = vunpack.c.l.b16 %v1041
  %v4722 = vunpack.c.h.b16 %v1041
  %v4723 = vunpack.c.l.b16 %v1042
  %v4724 = vunpack.c.h.b16 %v1042
  %v4725 = vunpack.c.l.b16 %v1043
  %v4726 = vunpack.c.h.b16 %v1043
  %v4727 = vunpack.c.l.b16 %v1044
  %v4728 = vunpack.c.h.b16 %v1044
  %v4729 = vunpack.c.l.b16 %v1045
  %v4730 = vunpack.c.h.b16 %v1045
  %v4731 = vunpack.c.l.b16 %v1046
  %v4732 = vunpack.c.h.b16 %v1046
  %v4733 = vunpack.c.l.b16 %v1047
  %v4734 = vunpack.c.h.b16 %v1047
  %v4735 = vunpack.c.l.b16 %v1048
  %v4736 = vunpack.c.h.b16 %v1048
  %v4737 = vunpack.c.l.b16 %v1049
  %v4738 = vunpack.c.h.b16 %v1049
  %v4739 = vunpack.c.l.b16 %v1050
  %v4740 = vunpack.c.h.b16 %v1050
  %v4741 = vunpack.c.l.b16 %v1051
  %v4742 = vunpack.c.h.b16 %v1051
  %v4743 = vunpack.c.l.b16 %v1052
  %v4744 = vunpack.c.h.b16 %v1052
  %v4745 = vunpack.c.l.b16 %v1053
  %v4746 = vunpack.c.h.b16 %v1053
  %v4747 = vunpack.c.l.b16 %v1054
  %v4748 = vunpack.c.h.b16 %v1054
  %v4749 = vunpack.c.l.b16 %v1055
  %v4750 = vunpack.c.h.b16 %v1055
  %v4751 = vunpack.c.l.b16 %v1056
  %v4752 = vunpack.c.h.b16 %v1056
  %v4753 = vunpack.c.l.b16 %v1057
  %v4754 = vunpack.c.h.b16 %v1057
  %v4755 = vunpack.c.l.b16 %v1058
  %v4756 = vunpack.c.h.b16 %v1058
  %v4757 = vunpack.c.l.b16 %v1059
  %v4758 = vunpack.c.h.b16 %v1059
  %v4759 = vunpack.c.l.b16 %v1060
  %v4760 = vunpack.c.h.b16 %v1060
  %v4761 = vunpack.c.l.b16 %v1061
  %v4762 = vunpack.c.h.b16 %v1061
  %v4763 = vunpack.c.l.b16 %v1062
  %v4764 = vunpack.c.h.b16 %v1062
  %v4765 = vunpack.c.l.b16 %v1063
  %v4766 = vunpack.c.h.b16 %v1063
  %v4767 = vunpack.c.l.b16 %v1064
  %v4768 = vunpack.c.h.b16 %v1064
  %v4769 = vunpack.c.l.b16 %v1065
  %v4770 = vunpack.c.h.b16 %v1065
  %v4771 = vunpack.c.l.b16 %v1066
  %v4772 = vunpack.c.h.b16 %v1066
  %v4773 = vunpack.c.l.b16 %v1067
  %v4774 = vunpack.c.h.b16 %v1067
  %v4775 = vunpack.c.l.b16 %v1068
  %v4776 = vunpack.c.h.b16 %v1068
  %v4777 = vunpack.c.l.b16 %v1069
  %v4778 = vunpack.c.h.b16 %v1069
  %v4779 = vunpack.c.l.b16 %v1070
  %v4780 = vunpack.c.h.b16 %v1070
  %v4781 = vunpack.c.l.b16 %v1071
  %v4782 = vunpack.c.h.b16 %v1071
  %v4783 = vunpack.c.l.b16 %v1072
  %v4784 = vunpack.c.h.b16 %v1072
  %v4785 = vunpack.c.l.b16 %v1073
  %v4786 = vunpack.c.h.b16 %v1073
  %v4787 = vunpack.c.l.b16 %v1074
  %v4788 = vunpack.c.h.b16 %v1074
  %v4789 = vunpack.c.l.b16 %v1075
  %v4790 = vunpack.c.h.b16 %v1075
  %v4791 = vunpack.c.l.b16 %v1076
  %v4792 = vunpack.c.h.b16 %v1076
  %v4793 = vunpack.c.l.b16 %v1077
  %v4794 = vunpack.c.h.b16 %v1077
  %v4795 = vunpack.c.l.b16 %v1078
  %v4796 = vunpack.c.h.b16 %v1078
  %v4797 = vunpack.c.l.b16 %v1079
  %v4798 = vunpack.c.h.b16 %v1079
  %v4799 = vunpack.c.l.b16 %v1080
  %v4800 = vunpack.c.h.b16 %v1080
  %v4801 = vunpack.c.l.b16 %v1081
  %v4802 = vunpack.c.h.b16 %v1081
  %v4803 = vunpack.c.l.b16 %v1082
  %v4804 = vunpack.c.h.b16 %v1082
  %v4805 = vunpack.c.l.b16 %v1083
  %v4806 = vunpack.c.h.b16 %v1083
  %v4807 = vunpack.c.l.b16 %v1084
  %v4808 = vunpack.c.h.b16 %v1084
  %v4809 = vunpack.c.l.b16 %v1085
  %v4810 = vunpack.c.h.b16 %v1085
  %v4811 = vunpack.c.l.b16 %v1086
  %v4812 = vunpack.c.h.b16 %v1086
  %v4813 = vunpack.c.l.b16 %v1087
  %v4814 = vunpack.c.h.b16 %v1087
  %v4815 = vunpack.c.l.b16 %v1088
  %v4816 = vunpack.c.h.b16 %v1088
  %v4817 = vunpack.c.l.b16 %v1089
  %v4818 = vunpack.c.h.b16 %v1089
  %v4819 = vunpack.c.l.b16 %v1090
  %v4820 = vunpack.c.h.b16 %v1090
  %v4821 = vunpack.c.l.b16 %v1091
  %v4822 = vunpack.c.h.b16 %v1091
  %v4823 = vunpack.c.l.b16 %v1092
  %v4824 = vunpack.c.h.b16 %v1092
  %v4825 = vunpack.c.l.b16 %v1093
  %v4826 = vunpack.c.h.b16 %v1093
  %v4827 = vunpack.c.l.b16 %v1094
  %v4828 = vunpack.c.h.b16 %v1094
  %v4829 = vunpack.c.l.b16 %v1095
  %v4830 = vunpack.c.h.b16 %v1095
  %v4831 = vunpack.c.l.b16 %v1096
  %v4832 = vunpack.c.h.b16 %v1096
  %v4833 = vunpack.c.l.b16 %v1097
  %v4834 = vunpack.c.h.b16 %v1097
  %v4835 = vunpack.c.l.b16 %v1098
  %v4836 = vunpack.c.h.b16 %v1098
  %v4837 = vunpack.c.l.b16 %v1099
  %v4838 = vunpack.c.h.b16 %v1099
  %v4839 = vunpack.c.l.b16 %v1100
  %v4840 = vunpack.c.h.b16 %v1100
  %v4841 = vunpack.c.l.b16 %v1101
  %v4842 = vunpack.c.h.b16 %v1101
  %v4843 = vunpack.c.l.b16 %v1102
  %v4844 = vunpack.c.h.b16 %v1102
  %v4845 = vunpack.c.l.b16 %v1103
  %v4846 = vunpack.c.h.b16 %v1103
  %v4847 = vunpack.c.l.b16 %v1104
  %v4848 = vunpack.c.h.b16 %v1104
  %v4849 = vunpack.c.l.b16 %v1105
  %v4850 = vunpack.c.h.b16 %v1105
  %v4851 = vunpack.c.l.b16 %v1106
  %v4852 = vunpack.c.h.b16 %v1106
  %v4853 = vunpack.c.l.b16 %v1107
  %v4854 = vunpack.c.h.b16 %v1107
  %v4855 = vunpack.c.l.b16 %v1108
  %v4856 = vunpack.c.h.b16 %v1108
  %v4857 = vunpack.c.l.b16 %v1109
  %v4858 = vunpack.c.h.b16 %v1109
  %v4859 = vunpack.c.l.b16 %v1110
  %v4860 = vunpack.c.h.b16 %v1110
  %v4861 = vunpack.c.l.b16 %v1111
  %v4862 = vunpack.c.h.b16 %v1111
  %v4863 = vunpack.c.l.b16 %v1112
  %v4864 = vunpack.c.h.b16 %v1112
  %v4865 = vunpack.c.l.b16 %v1113
  %v4866 = vunpack.c.h.b16 %v1113
  %v4867 = vunpack.c.l.b16 %v1114
  %v4868 = vunpack.c.h.b16 %v1114
  %v4869 = vunpack.c.l.b16 %v1115
  %v4870 = vunpack.c.h.b16 %v1115
  %v4871 = vunpack.c.l.b16 %v1116
  %v4872 = vunpack.c.h.b16 %v1116
  %v4873 = vunpack.c.l.b16 %v1117
  %v4874 = vunpack.c.h.b16 %v1117
  %v4875 = vunpack.c.l.b16 %v1118
  %v4876 = vunpack.c.h.b16 %v1118
  %v4877 = vunpack.c.l.b16 %v1119
  %v4878 = vunpack.c.h.b16 %v1119
  %v4879 = vunpack.c.l.b16 %v1120
  %v4880 = vunpack.c.h.b16 %v1120
  %v4881 = vunpack.c.l.b16 %v1121
  %v4882 = vunpack.c.h.b16 %v1121
  %v4883 = vunpack.c.l.b16 %v1122
  %v4884 = vunpack.c.h.b16 %v1122
  %v4885 = vunpack.c.l.b16 %v1123
  %v4886 = vunpack.c.h.b16 %v1123
  %v4887 = vunpack.c.l.b16 %v1124
  %v4888 = vunpack.c.h.b16 %v1124
  %v4889 = vunpack.c.l.b16 %v1125
  %v4890 = vunpack.c.h.b16 %v1125
  %v4891 = vunpack.c.l.b16 %v1126
  %v4892 = vunpack.c.h.b16 %v1126
  %v4893 = vunpack.c.l.b16 %v1127
  %v4894 = vunpack.c.h.b16 %v1127
  %v4895 = vunpack.c.l.b16 %v1128
  %v4896 = vunpack.c.h.b16 %v1128
  %v4897 = vunpack.c.l.b16 %v1129
  %v4898 = vunpack.c.h.b16 %v1129
  %v4899 = vunpack.c.l.b16 %v1130
  %v4900 = vunpack.c.h.b16 %v1130
  %v4901 = vunpack.c.l.b16 %v1131
  %v4902 = vunpack.c.h.b16 %v1131
  %v4903 = vunpack.c.l.b16 %v1132
  %v4904 = vunpack.c.h.b16 %v1132
  %v4905 = vunpack.c.l.b16 %v1133
  %v4906 = vunpack.c.h.b16 %v1133
  %v4907 = vunpack.c.l.b16 %v1134
  %v4908 = vunpack.c.h.b16 %v1134
  %v4909 = vunpack.c.l.b16 %v1135
  %v4910 = vunpack.c.h.b16 %v1135
  %v4911 = vunpack.c.l.b16 %v1136
  %v4912 = vunpack.c.h.b16 %v1136
  %v4913 = vunpack.c.l.b16 %v1137
  %v4914 = vunpack.c.h.b16 %v1137
  %v4915 = vunpack.c.l.b16 %v1138
  %v4916 = vunpack.c.h.b16 %v1138
  %v4917 = vunpack.c.l.b16 %v1139
  %v4918 = vunpack.c.h.b16 %v1139
  %v4919 = vunpack.c.l.b16 %v1140
  %v4920 = vunpack.c.h.b16 %v1140
  %v4921 = vunpack.c.l.b16 %v1141
  %v4922 = vunpack.c.h.b16 %v1141
  %v4923 = vunpack.c.l.b16 %v1142
  %v4924 = vunpack.c.h.b16 %v1142
  %v4925 = vunpack.c.l.b16 %v1143
  %v4926 = vunpack.c.h.b16 %v1143
  %v4927 = vunpack.c.l.b16 %v1144
  %v4928 = vunpack.c.h.b16 %v1144
  %v4929 = vunpack.c.l.b16 %v1145
  %v4930 = vunpack.c.h.b16 %v1145
  %v4931 = vunpack.c.l.b16 %v1146
  %v4932 = vunpack.c.h.b16 %v1146
  %v4933 = vunpack.c.l.b16 %v1147
  %v4934 = vunpack.c.h.b16 %v1147
  %v4935 = vunpack.c.l.b16 %v1148
  %v4936 = vunpack.c.h.b16 %v1148
  %v4937 = vunpack.c.l.b16 %v1149
  %v4938 = vunpack.c.h.b16 %v1149
  %v4939 = vunpack.c.l.b16 %v1150
  %v4940 = vunpack.c.h.b16 %v1150
  %v4941 = vunpack.c.l.b16 %v1151
  %v4942 = vunpack.c.h.b16 %v1151
  %v4943 = vunpack.c.l.b16 %v1152
  %v4944 = vunpack.c.h.b16 %v1152
  %v4945 = vunpack.c.l.b16 %v1153
  %v4946 = vunpack.c.h.b16 %v1153
  %v4947 = vunpack.c.l.b16 %v1154
  %v4948 = vunpack.c.h.b16 %v1154
  %v4949 = vunpack.c.l.b16 %v1155
  %v4950 = vunpack.c.h.b16 %v1155
  %v4951 = vunpack.c.l.b16 %v1156
  %v4952 = vunpack.c.h.b16 %v1156
  %v4953 = vunpack.c.l.b16 %v1157
  %v4954 = vunpack.c.h.b16 %v1157
  %v4955 = vunpack.c.l.b16 %v1158
  %v4956 = vunpack.c.h.b16 %v1158
  %v4957 = vunpack.c.l.b16 %v1159
  %v4958 = vunpack.c.h.b16 %v1159
  %v4959 = vunpack.c.l.b16 %v1160
  %v4960 = vunpack.c.h.b16 %v1160
  %v4961 = vunpack.c.l.b16 %v1161
  %v4962 = vunpack.c.h.b16 %v1161
  %v4963 = vunpack.c.l.b16 %v1162
  %v4964 = vunpack.c.h.b16 %v1162
  %v4965 = vunpack.c.l.b16 %v1163
  %v4966 = vunpack.c.h.b16 %v1163
  %v4967 = vunpack.c.l.b16 %v1164
  %v4968 = vunpack.c.h.b16 %v1164
  %v4969 = vunpack.c.l.b16 %v1165
  %v4970 = vunpack.c.h.b16 %v1165
  %v4971 = vunpack.c.l.b16 %v1166
  %v4972 = vunpack.c.h.b16 %v1166
  %v4973 = vunpack.c.l.b16 %v1167
  %v4974 = vunpack.c.h.b16 %v1167
  %v4975 = vunpack.c.l.b16 %v1168
  %v4976 = vunpack.c.h.b16 %v1168
  %v4977 = vunpack.c.l.b16 %v1169
  %v4978 = vunpack.c.h.b16 %v1169
  %v4979 = vunpack.c.l.b16 %v1170
  %v4980 = vunpack.c.h.b16 %v1170
  %v4981 = vunpack.c.l.b16 %v1171
  %v4982 = vunpack.c.h.b16 %v1171
  %v4983 = vunpack.c.l.b16 %v1172
  %v4984 = vunpack.c.h.b16 %v1172
  %v4985 = vunpack.c.l.b16 %v1173
  %v4986 = vunpack.c.h.b16 %v1173
  %v4987 = vunpack.c.l.b16 %v1174
  %v4988 = vunpack.c.h.b16 %v1174
  %v4989 = vunpack.c.l.b16 %v1175
  %v4990 = vunpack.c.h.b16 %v1175
  %v4991 = vunpack.c.l.b16 %v1176
  %v4992 = vunpack.c.h.b16 %v1176
  %v4993 = vunpack.c.l.b16 %v1177
  %v4994 = vunpack.c.h.b16 %v1177
  %v4995 = vunpack.c.l.b16 %v1178
  %v4996 = vunpack.c.h.b16 %v1178
  %v4997 = vunpack.c.l.b16 %v1179
  %v4998 = vunpack.c.h.b16 %v1179
  %v4999 = vunpack.c.l.b16 %v1180
  %v5000 = vunpack.c.h.b16 %v1180
  %v5001 = vunpack.c.l.b16 %v1181
  %v5002 = vunpack.c.h.b16 %v1181
  %v5003 = vunpack.c.l.b16 %v1182
  %v5004 = vunpack.c.h.b16 %v1182
  %v5005 = vunpack.c.l.b16 %v1183
  %v5006 = vunpack.c.h.b16 %v1183
  %v5007 = vunpack.c.l.b16 %v1184
  %v5008 = vunpack.c.h.b16 %v1184
  %v5009 = vunpack.c.l.b16 %v1185
  %v5010 = vunpack.c.h.b16 %v1185
  %v5011 = vunpack.c.l.b16 %v1186
  %v5012 = vunpack.c.h.b16 %v1186
  %v5013 = vunpack.c.l.b16 %v1187
  %v5014 = vunpack.c.h.b16 %v1187
  %v5015 = vunpack.c.l.b16 %v1188
  %v5016 = vunpack.c.h.b16 %v1188
  %v5017 = vunpack.c.l.b16 %v1189
  %v5018 = vunpack.c.h.b16 %v1189
  %v5019 = vunpack.c.l.b16 %v1190
  %v5020 = vunpack.c.h.b16 %v1190
  %v5021 = vunpack.c.l.b16 %v1191
  %v5022 = vunpack.c.h.b16 %v1191
  %v5023 = vunpack.c.l.b16 %v1192
  %v5024 = vunpack.c.h.b16 %v1192
  %v5025 = vunpack.c.l.b16 %v1193
  %v5026 = vunpack.c.h.b16 %v1193
  %v5027 = vunpack.c.l.b16 %v1194
  %v5028 = vunpack.c.h.b16 %v1194
  %v5029 = vunpack.c.l.b16 %v1195
  %v5030 = vunpack.c.h.b16 %v1195
  %v5031 = vunpack.c.l.b16 %v1196
  %v5032 = vunpack.c.h.b16 %v1196
  %v5033 = vunpack.c.l.b16 %v1197
  %v5034 = vunpack.c.h.b16 %v1197
  %v5035 = vunpack.c.l.b16 %v1198
  %v5036 = vunpack.c.h.b16 %v1198
  %v5037 = vunpack.c.l.b16 %v1199
  %v5038 = vunpack.c.h.b16 %v1199
  %v5039 = vunpack.c.l.b16 %v1200
  %v5040 = vunpack.c.h.b16 %v1200
  %v5041 = vunpack.c.l.b16 %v1201
  %v5042 = vunpack.c.h.b16 %v1201
  %v5043 = vunpack.c.l.b16 %v1202
  %v5044 = vunpack.c.h.b16 %v1202
  %v5045 = vunpack.c.l.b16 %v1203
  %v5046 = vunpack.c.h.b16 %v1203
  %v5047 = vunpack.c.l.b16 %v1204
  %v5048 = vunpack.c.h.b16 %v1204
  %v5049 = vunpack.c.l.b16 %v1205
  %v5050 = vunpack.c.h.b16 %v1205
  %v5051 = vunpack.c.l.b16 %v1206
  %v5052 = vunpack.c.h.b16 %v1206
  %v5053 = vunpack.c.l.b16 %v1207
  %v5054 = vunpack.c.h.b16 %v1207
  %v5055 = vunpack.c.l.b16 %v1208
  %v5056 = vunpack.c.h.b16 %v1208
  %v5057 = vunpack.c.l.b16 %v1209
  %v5058 = vunpack.c.h.b16 %v1209
  %v5059 = vunpack.c.l.b16 %v1210
  %v5060 = vunpack.c.h.b16 %v1210
  %v5061 = vunpack.c.l.b16 %v1211
  %v5062 = vunpack.c.h.b16 %v1211
  %v5063 = vunpack.c.l.b16 %v1212
  %v5064 = vunpack.c.h.b16 %v1212
  %v5065 = vunpack.c.l.b16 %v1213
  %v5066 = vunpack.c.h.b16 %v1213
  %v5067 = vunpack.c.l.b16 %v1214
  %v5068 = vunpack.c.h.b16 %v1214
  %v5069 = vunpack.c.l.b16 %v1215
  %v5070 = vunpack.c.h.b16 %v1215
  %v5071 = vunpack.c.l.b16 %v1216
  %v5072 = vunpack.c.h.b16 %v1216
  %v5073 = vunpack.c.l.b16 %v1217
  %v5074 = vunpack.c.h.b16 %v1217
  %v5075 = vunpack.c.l.b16 %v1218
  %v5076 = vunpack.c.h.b16 %v1218
  %v5077 = vunpack.c.l.b16 %v1219
  %v5078 = vunpack.c.h.b16 %v1219
  %v5079 = vunpack.c.l.b16 %v1220
  %v5080 = vunpack.c.h.b16 %v1220
  %v5081 = vunpack.c.l.b16 %v1221
  %v5082 = vunpack.c.h.b16 %v1221
  %v5083 = vunpack.c.l.b16 %v1222
  %v5084 = vunpack.c.h.b16 %v1222
  %v5085 = vunpack.c.l.b16 %v1223
  %v5086 = vunpack.c.h.b16 %v1223
  %v5087 = vunpack.c.l.b16 %v1224
  %v5088 = vunpack.c.h.b16 %v1224
  %v5089 = vunpack.c.l.b16 %v1225
  %v5090 = vunpack.c.h.b16 %v1225
  %v5091 = vunpack.c.l.b16 %v1226
  %v5092 = vunpack.c.h.b16 %v1226
  %v5093 = vunpack.c.l.b16 %v1227
  %v5094 = vunpack.c.h.b16 %v1227
  %v5095 = vunpack.c.l.b16 %v1228
  %v5096 = vunpack.c.h.b16 %v1228
  %v5097 = vunpack.c.l.b16 %v1229
  %v5098 = vunpack.c.h.b16 %v1229
  %v5099 = vunpack.c.l.b16 %v1230
  %v5100 = vunpack.c.h.b16 %v1230
  %v5101 = vunpack.c.l.b16 %v1231
  %v5102 = vunpack.c.h.b16 %v1231
  %v5103 = vunpack.c.l.b16 %v1232
  %v5104 = vunpack.c.h.b16 %v1232
  %v5105 = vunpack.c.l.b16 %v1233
  %v5106 = vunpack.c.h.b16 %v1233
  %v5107 = vunpack.c.l.b16 %v1234
  %v5108 = vunpack.c.h.b16 %v1234
  %v5109 = vunpack.c.l.b16 %v1235
  %v5110 = vunpack.c.h.b16 %v1235
  %v5111 = vunpack.c.l.b16 %v1236
  %v5112 = vunpack.c.h.b16 %v1236
  %v5113 = vunpack.c.l.b16 %v1237
  %v5114 = vunpack.c.h.b16 %v1237
  %v5115 = vunpack.c.l.b16 %v1238
  %v5116 = vunpack.c.h.b16 %v1238
  %v5117 = vunpack.c.l.b16 %v1239
  %v5118 = vunpack.c.h.b16 %v1239
  %v5119 = vunpack.c.l.b16 %v1240
  %v5120 = vunpack.c.h.b16 %v1240
  %v5121 = vunpack.c.l.b16 %v1241
  %v5122 = vunpack.c.h.b16 %v1241
  %v5123 = vunpack.c.l.b16 %v1242
  %v5124 = vunpack.c.h.b16 %v1242
  %v5125 = vunpack.c.l.b16 %v1243
  %v5126 = vunpack.c.h.b16 %v1243
  %v5127 = vunpack.c.l.b16 %v1244
  %v5128 = vunpack.c.h.b16 %v1244
  %v5129 = vunpack.c.l.b16 %v1245
  %v5130 = vunpack.c.h.b16 %v1245
  %v5131 = vunpack.c.l.b16 %v1246
  %v5132 = vunpack.c.h.b16 %v1246
  %v5133 = vunpack.c.l.b16 %v1247
  %v5134 = vunpack.c.h.b16 %v1247
  %v5135 = vunpack.c.l.b16 %v1248
  %v5136 = vunpack.c.h.b16 %v1248
  %v5137 = vunpack.c.l.b16 %v1249
  %v5138 = vunpack.c.h.b16 %v1249
  %v5139 = vunpack.c.l.b16 %v1250
  %v5140 = vunpack.c.h.b16 %v1250
  %v5141 = vunpack.c.l.b16 %v1251
  %v5142 = vunpack.c.h.b16 %v1251
  %v5143 = vunpack.c.l.b16 %v1252
  %v5144 = vunpack.c.h.b16 %v1252
  %v5145 = vunpack.c.l.b16 %v1253
  %v5146 = vunpack.c.h.b16 %v1253
  %v5147 = vunpack.c.l.b16 %v1254
  %v5148 = vunpack.c.h.b16 %v1254
  %v5149 = vunpack.c.l.b16 %v1255
  %v5150 = vunpack.c.h.b16 %v1255
  %v5151 = vunpack.c.l.b16 %v1256
  %v5152 = vunpack.c.h.b16 %v1256
  %v5153 = vunpack.c.l.b16 %v1257
  %v5154 = vunpack.c.h.b16 %v1257
  %v5155 = vunpack.c.l.b16 %v1258
  %v5156 = vunpack.c.h.b16 %v1258
  %v5157 = vunpack.c.l.b16 %v1259
  %v5158 = vunpack.c.h.b16 %v1259
  %v5159 = vunpack.c.l.b16 %v1260
  %v5160 = vunpack.c.h.b16 %v1260
  %v5161 = vunpack.c.l.b16 %v1261
  %v5162 = vunpack.c.h.b16 %v1261
  %v5163 = vunpack.c.l.b16 %v1262
  %v5164 = vunpack.c.h.b16 %v1262
  %v5165 = vunpack.c.l.b16 %v1263
  %v5166 = vunpack.c.h.b16 %v1263
  %v5167 = vunpack.c.l.b16 %v1264
  %v5168 = vunpack.c.h.b16 %v1264
  %v5169 = vunpack.c.l.b16 %v1265
  %v5170 = vunpack.c.h.b16 %v1265
  %v5171 = vunpack.c.l.b16 %v1266
  %v5172 = vunpack.c.h.b16 %v1266
  %v5173 = vunpack.c.l.b16 %v1267
  %v5174 = vunpack.c.h.b16 %v1267
  %v5175 = vunpack.c.l.b16 %v1268
  %v5176 = vunpack.c.h.b16 %v1268
  %v5177 = vunpack.c.l.b16 %v1269
  %v5178 = vunpack.c.h.b16 %v1269
  %v5179 = vunpack.c.l.b16 %v1270
  %v5180 = vunpack.c.h.b16 %v1270
  %v5181 = vunpack.c.l.b16 %v1271
  %v5182 = vunpack.c.h.b16 %v1271
  %v5183 = vunpack.c.l.b16 %v1272
  %v5184 = vunpack.c.h.b16 %v1272
  %v5185 = vunpack.c.l.b16 %v1273
  %v5186 = vunpack.c.h.b16 %v1273
  %v5187 = vunpack.c.l.b16 %v1274
  %v5188 = vunpack.c.h.b16 %v1274
  %v5189 = vunpack.c.l.b16 %v1275
  %v5190 = vunpack.c.h.b16 %v1275
  %v5191 = vunpack.c.l.b16 %v1276
  %v5192 = vunpack.c.h.b16 %v1276
  %v5193 = vunpack.c.l.b16 %v1277
  %v5194 = vunpack.c.h.b16 %v1277
  %v5195 = vunpack.c.l.b16 %v1278
  %v5196 = vunpack.c.h.b16 %v1278
  %v5197 = vunpack.c.l.b16 %v1279
  %v5198 = vunpack.c.h.b16 %v1279
  %v5199 = vunpack.c.l.b16 %v1280
  %v5200 = vunpack.c.h.b16 %v1280
  %v5201 = vunpack.c.l.b16 %v1281
  %v5202 = vunpack.c.h.b16 %v1281
  %v5203 = vunpack.c.l.b16 %v1282
  %v5204 = vunpack.c.h.b16 %v1282
  %v5205 = vunpack.c.l.b16 %v1283
  %v5206 = vunpack.c.h.b16 %v1283
  %v5207 = vunpack.c.l.b16 %v1284
  %v5208 = vunpack.c.h.b16 %v1284
  %v5209 = vunpack.c.l.b16 %v1285
  %v5210 = vunpack.c.h.b16 %v1285
  %v5211 = vunpack.c.l.b16 %v1286
  %v5212 = vunpack.c.h.b16 %v1286
  %v5213 = vunpack.c.l.b16 %v1287
  %v5214 = vunpack.c.h.b16 %v1287
  %v5215 = vunpack.c.l.b16 %v1288
  %v5216 = vunpack.c.h.b16 %v1288
  %v5217 = vunpack.c.l.b16 %v1289
  %v5218 = vunpack.c.h.b16 %v1289
  %v5219 = vunpack.c.l.b16 %v1290
  %v5220 = vunpack.c.h.b16 %v1290
  %v5221 = vunpack.c.l.b16 %v1291
  %v5222 = vunpack.c.h.b16 %v1291
  %v5223 = vunpack.c.l.b16 %v1292
  %v5224 = vunpack.c.h.b16 %v1292
  %v5225 = vunpack.c.l.b16 %v1293
  %v5226 = vunpack.c.h.b16 %v1293
  %v5227 = vunpack.c.l.b16 %v1294
  %v5228 = vunpack.c.h.b16 %v1294
  %v5229 = vunpack.c.l.b16 %v1295
  %v5230 = vunpack.c.h.b16 %v1295
  %v5231 = vunpack.c.l.b16 %v1296
  %v5232 = vunpack.c.h.b16 %v1296
  %v5233 = vunpack.c.l.b16 %v1297
  %v5234 = vunpack.c.h.b16 %v1297
  %v5235 = vunpack.c.l.b16 %v1298
  %v5236 = vunpack.c.h.b16 %v1298
  %v5237 = vunpack.c.l.b16 %v1299
  %v5238 = vunpack.c.h.b16 %v1299
  %v5239 = vunpack.c.l.b16 %v1300
  %v5240 = vunpack.c.h.b16 %v1300
  %v5241 = vunpack.c.l.b16 %v1301
  %v5242 = vunpack.c.h.b16 %v1301
  %v5243 = vunpack.c.l.b16 %v1302
  %v5244 = vunpack.c.h.b16 %v1302
  %v5245 = vunpack.c.l.b16 %v1303
  %v5246 = vunpack.c.h.b16 %v1303
  %v5247 = vunpack.c.l.b16 %v1304
  %v5248 = vunpack.c.h.b16 %v1304
  %v5249 = vunpack.c.l.b16 %v1305
  %v5250 = vunpack.c.h.b16 %v1305
  %v5251 = vunpack.c.l.b16 %v1306
  %v5252 = vunpack.c.h.b16 %v1306
  %v5253 = vunpack.c.l.b16 %v1307
  %v5254 = vunpack.c.h.b16 %v1307
  %v5255 = vunpack.c.l.b16 %v1308
  %v5256 = vunpack.c.h.b16 %v1308
  %v5257 = vunpack.c.l.b16 %v1309
  %v5258 = vunpack.c.h.b16 %v1309
  %v5259 = vunpack.c.l.b16 %v1310
  %v5260 = vunpack.c.h.b16 %v1310
  %v5261 = vunpack.c.l.b16 %v1311
  %v5262 = vunpack.c.h.b16 %v1311
  %v5263 = vunpack.c.l.b16 %v1312
  %v5264 = vunpack.c.h.b16 %v1312
  %v5265 = vunpack.c.l.b16 %v1313
  %v5266 = vunpack.c.h.b16 %v1313
  %v5267 = vunpack.c.l.b16 %v1314
  %v5268 = vunpack.c.h.b16 %v1314
  %v5269 = vunpack.c.l.b16 %v1315
  %v5270 = vunpack.c.h.b16 %v1315
  %v5271 = vunpack.c.l.b16 %v1316
  %v5272 = vunpack.c.h.b16 %v1316
  %v5273 = vunpack.c.l.b16 %v1317
  %v5274 = vunpack.c.h.b16 %v1317
  %v5275 = vunpack.c.l.b16 %v1318
  %v5276 = vunpack.c.h.b16 %v1318
  %v5277 = vunpack.c.l.b16 %v1319
  %v5278 = vunpack.c.h.b16 %v1319
  %v5279 = vunpack.c.l.b16 %v1320
  %v5280 = vunpack.c.h.b16 %v1320
  %v5281 = vunpack.c.l.b16 %v1321
  %v5282 = vunpack.c.h.b16 %v1321
  %v5283 = vunpack.c.l.b16 %v1322
  %v5284 = vunpack.c.h.b16 %v1322
  %v5285 = vunpack.c.l.b16 %v1323
  %v5286 = vunpack.c.h.b16 %v1323
  %v5287 = vunpack.c.l.b16 %v1324
  %v5288 = vunpack.c.h.b16 %v1324
  %v5289 = vunpack.c.l.b16 %v1325
  %v5290 = vunpack.c.h.b16 %v1325
  %v5291 = vunpack.c.l.b16 %v1326
  %v5292 = vunpack.c.h.b16 %v1326
  %v5293 = vunpack.c.l.b16 %v1327
  %v5294 = vunpack.c.h.b16 %v1327
  %v5295 = vunpack.c.l.b16 %v1328
  %v5296 = vunpack.c.h.b16 %v1328
  %v5297 = vunpack.c.l.b16 %v1329
  %v5298 = vunpack.c.h.b16 %v1329
  %v5299 = vunpack.c.l.b16 %v1330
  %v5300 = vunpack.c.h.b16 %v1330
  %v5301 = vunpack.c.l.b16 %v1331
  %v5302 = vunpack.c.h.b16 %v1331
  %v5303 = vunpack.c.l.b16 %v1332
  %v5304 = vunpack.c.h.b16 %v1332
  %v5305 = vunpack.c.l.b16 %v1333
  %v5306 = vunpack.c.h.b16 %v1333
  %v5307 = vunpack.c.l.b16 %v1334
  %v5308 = vunpack.c.h.b16 %v1334
  %v5309 = vunpack.c.l.b16 %v1335
  %v5310 = vunpack.c.h.b16 %v1335
  %v5311 = vunpack.c.l.b16 %v1336
  %v5312 = vunpack.c.h.b16 %v1336
  %v5313 = vunpack.c.l.b16 %v1337
  %v5314 = vunpack.c.h.b16 %v1337
  %v5315 = vunpack.c.l.b16 %v1338
  %v5316 = vunpack.c.h.b16 %v1338
  %v5317 = vunpack.c.l.b16 %v1339
  %v5318 = vunpack.c.h.b16 %v1339
  %v5319 = vunpack.c.l.b16 %v1340
  %v5320 = vunpack.c.h.b16 %v1340
  %v5321 = vunpack.c.l.b16 %v1341
  %v5322 = vunpack.c.h.b16 %v1341
  %v5323 = vunpack.c.l.b16 %v1342
  %v5324 = vunpack.c.h.b16 %v1342
  %v5325 = vunpack.c.l.b16 %v1343
  %v5326 = vunpack.c.h.b16 %v1343
  %v5327 = vunpack.c.l.b16 %v1344
  %v5328 = vunpack.c.h.b16 %v1344
  %v5329 = vunpack.c.l.b16 %v1345
  %v5330 = vunpack.c.h.b16 %v1345
  %v5331 = vunpack.c.l.b16 %v1346
  %v5332 = vunpack.c.h.b16 %v1346
  %v5333 = vunpack.c.l.b16 %v1347
  %v5334 = vunpack.c.h.b16 %v1347
  %v5335 = vunpack.c.l.b16 %v1348
  %v5336 = vunpack.c.h.b16 %v1348
  %v5337 = vunpack.c.l.b16 %v1349
  %v5338 = vunpack.c.h.b16 %v1349
  %v5339 = vunpack.c.l.b16 %v1350
  %v5340 = vunpack.c.h.b16 %v1350
  %v5341 = vunpack.c.l.b16 %v1351
  %v5342 = vunpack.c.h.b16 %v1351
  %v5343 = vunpack.c.l.b16 %v1352
  %v5344 = vunpack.c.h.b16 %v1352
  %v5345 = vunpack.c.l.b16 %v1353
  %v5346 = vunpack.c.h.b16 %v1353
  %v5347 = vunpack.c.l.b16 %v1354
  %v5348 = vunpack.c.h.b16 %v1354
  %v5349 = vunpack.c.l.b16 %v1355
  %v5350 = vunpack.c.h.b16 %v1355
  %v5351 = vunpack.c.l.b16 %v1356
  %v5352 = vunpack.c.h.b16 %v1356
  %v5353 = vunpack.c.l.b16 %v1357
  %v5354 = vunpack.c.h.b16 %v1357
  %v5355 = vunpack.c.l.b16 %v1358
  %v5356 = vunpack.c.h.b16 %v1358
  %v5357 = vunpack.c.l.b16 %v1359
  %v5358 = vunpack.c.h.b16 %v1359
  %v5359 = vunpack.c.l.b16 %v1360
  %v5360 = vunpack.c.h.b16 %v1360
  %v5361 = vunpack.c.l.b16 %v1361
  %v5362 = vunpack.c.h.b16 %v1361
  %v5363 = vunpack.c.l.b16 %v1362
  %v5364 = vunpack.c.h.b16 %v1362
  %v5365 = vunpack.c.l.b16 %v1363
  %v5366 = vunpack.c.h.b16 %v1363
  %v5367 = vunpack.c.l.b16 %v1364
  %v5368 = vunpack.c.h.b16 %v1364
  %v5369 = vunpack.c.l.b16 %v1365
  %v5370 = vunpack.c.h.b16 %v1365
  %v5371 = vunpack.c.l.b16 %v1366
  %v5372 = vunpack.c.h.b16 %v1366
  %v5373 = vunpack.c.l.b16 %v1367
  %v5374 = vunpack.c.h.b16 %v1367
  %v5375 = vunpack.c.l.b16 %v1368
  %v5376 = vunpack.c.h.b16 %v1368
  %v5377 = vunpack.c.l.b16 %v1369
  %v5378 = vunpack.c.h.b16 %v1369
  %v5379 = vunpack.c.l.b16 %v1370
  %v5380 = vunpack.c.h.b16 %v1370
  %v5381 = vunpack.c.l.b16 %v1371
  %v5382 = vunpack.c.h.b16 %v1371
  %v5383 = vunpack.c.l.b16 %v1372
  %v5384 = vunpack.c.h.b16 %v1372
  %v5385 = vunpack.c.l.b16 %v1373
  %v5386 = vunpack.c.h.b16 %v1373
  %v5387 = vunpack.c.l.b16 %v1374
  %v5388 = vunpack.c.h.b16 %v1374
  %v5389 = vunpack.c.l.b16 %v1375
  %v5390 = vunpack.c.h.b16 %v1375
  %v5391 = vunpack.c.l.b16 %v1376
  %v5392 = vunpack.c.h.b16 %v1376
  %v5393 = vunpack.c.l.b16 %v1377
  %v5394 = vunpack.c.h.b16 %v1377
  %v5395 = vunpack.c.l.b16 %v1378
  %v5396 = vunpack.c.h.b16 %v1378
  %v5397 = vunpack.c.l.b16 %v1379
  %v5398 = vunpack.c.h.b16 %v1379
  %v5399 = vunpack.c.l.b16 %v1380
  %v5400 = vunpack.c.h.b16 %v1380
  %v5401 = vunpack.c.l.b16 %v1381
  %v5402 = vunpack.c.h.b16 %v1381
  %v5403 = vunpack.c.l.b16 %v1382
  %v5404 = vunpack.c.h.b16 %v1382
  %v5405 = vunpack.c.l.b16 %v1383
  %v5406 = vunpack.c.h.b16 %v1383
  %v5407 = vunpack.c.l.b16 %v1384
  %v5408 = vunpack.c.h.b16 %v1384
  %v5409 = vunpack.c.l.b16 %v1385
  %v5410 = vunpack.c.h.b16 %v1385
  %v5411 = vunpack.c.l.b16 %v1386
  %v5412 = vunpack.c.h.b16 %v1386
  %v5413 = vunpack.c.l.b16 %v1387
  %v5414 = vunpack.c.h.b16 %v1387
  %v5415 = vunpack.c.l.b16 %v1388
  %v5416 = vunpack.c.h.b16 %v1388
  %v5417 = vunpack.c.l.b16 %v1389
  %v5418 = vunpack.c.h.b16 %v1389
  %v5419 = vunpack.c.l.b16 %v1390
  %v5420 = vunpack.c.h.b16 %v1390
  %v5421 = vunpack.c.l.b16 %v1391
  %v5422 = vunpack.c.h.b16 %v1391
  %v5423 = vunpack.c.l.b16 %v1392
  %v5424 = vunpack.c.h.b16 %v1392
  %v5425 = vpack.c.b16 %v2753, %v2737
  %v5426 = vpack.c.b16 %v2754, %v2738
  %v5427 = vpack.c.b16 %v2755, %v2739
  %v5428 = vpack.c.b16 %v2756, %v2740
  %v5429 = vpack.c.b16 %v2757, %v2741
  %v5430 = vpack.c.b16 %v2758, %v2742
  %v5431 = vpack.c.b16 %v2759, %v2743
  %v5432 = vpack.c.b16 %v2760, %v2744
  %v5433 = vpack.c.b16 %v2761, %v2745
  %v5434 = vpack.c.b16 %v2762, %v2746
  %v5435 = vpack.c.b16 %v2763, %v2747
  %v5436 = vpack.c.b16 %v2764, %v2748
  %v5437 = vpack.c.b16 %v2765, %v2749
  %v5438 = vpack.c.b16 %v2766, %v2750
  %v5439 = vpack.c.b16 %v2767, %v2751
  %v5440 = vpack.c.b16 %v2768, %v2752
  %v5441 = vpack.c.b16 %v2785, %v2769
  %v5442 = vpack.c.b16 %v2786, %v2770
  %v5443 = vpack.c.b16 %v2787, %v2771
  %v5444 = vpack.c.b16 %v2788, %v2772
  %v5445 = vpack.c.b16 %v2789, %v2773
  %v5446 = vpack.c.b16 %v2790, %v2774
  %v5447 = vpack.c.b16 %v2791, %v2775
  %v5448 = vpack.c.b16 %v2792, %v2776
  %v5449 = vpack.c.b16 %v2793, %v2777
  %v5450 = vpack.c.b16 %v2794, %v2778
  %v5451 = vpack.c.b16 %v2795, %v2779
  %v5452 = vpack.c.b16 %v2796, %v2780
  %v5453 = vpack.c.b16 %v2797, %v2781
  %v5454 = vpack.c.b16 %v2798, %v2782
  %v5455 = vpack.c.b16 %v2799, %v2783
  %v5456 = vpack.c.b16 %v2800, %v2784
  %v5457 = vpack.c.b16 %v2817, %v2801
  %v5458 = vpack.c.b16 %v2818, %v2802
  %v5459 = vpack.c.b16 %v2819, %v2803
  %v5460 = vpack.c.b16 %v2820, %v2804
  %v5461 = vpack.c.b16 %v2821, %v2805
  %v5462 = vpack.c.b16 %v2822, %v2806
  %v5463 = vpack.c.b16 %v2823, %v2807
  %v5464 = vpack.c.b16 %v2824, %v2808
  %v5465 = vpack.c.b16 %v2825, %v2809
  %v5466 = vpack.c.b16 %v2826, %v2810
  %v5467 = vpack.c.b16 %v2827, %v2811
  %v5468 = vpack.c.b16 %v2828, %v2812
  %v5469 = vpack.c.b16 %v2829, %v2813
  %v5470 = vpack.c.b16 %v2830, %v2814
  %v5471 = vpack.c.b16 %v2831, %v2815
  %v5472 = vpack.c.b16 %v2832, %v2816
  %v5473 = vpack.c.b16 %v2849, %v2833
  %v5474 = vpack.c.b16 %v2850, %v2834
  %v5475 = vpack.c.b16 %v2851, %v2835
  %v5476 = vpack.c.b16 %v2852, %v2836
  %v5477 = vpack.c.b16 %v2853, %v2837
  %v5478 = vpack.c.b16 %v2854, %v2838
  %v5479 = vpack.c.b16 %v2855, %v2839
  %v5480 = vpack.c.b16 %v2856, %v2840
  %v5481 = vpack.c.b16 %v2857, %v2841
  %v5482 = vpack.c.b16 %v2858, %v2842
  %v5483 = vpack.c.b16 %v2859, %v2843
  %v5484 = vpack.c.b16 %v2860, %v2844
  %v5485 = vpack.c.b16 %v2861, %v2845
  %v5486 = vpack.c.b16 %v2862, %v2846
  %v5487 = vpack.c.b16 %v2863, %v2847
  %v5488 = vpack.c.b16 %v2864, %v2848
  %v5489 = vpack.c.b16 %v2881, %v2865
  %v5490 = vpack.c.b16 %v2882, %v2866
  %v5491 = vpack.c.b16 %v2883, %v2867
  %v5492 = vpack.c.b16 %v2884, %v2868
  %v5493 = vpack.c.b16 %v2885, %v2869
  %v5494 = vpack.c.b16 %v2886, %v2870
  %v5495 = vpack.c.b16 %v2887, %v2871
  %v5496 = vpack.c.b16 %v2888, %v2872
  %v5497 = vpack.c.b16 %v2889, %v2873
  %v5498 = vpack.c.b16 %v2890, %v2874
  %v5499 = vpack.c.b16 %v2891, %v2875
  %v5500 = vpack.c.b16 %v2892, %v2876
  %v5501 = vpack.c.b16 %v2893, %v2877
  %v5502 = vpack.c.b16 %v2894, %v2878
  %v5503 = vpack.c.b16 %v2895, %v2879
  %v5504 = vpack.c.b16 %v2896, %v2880
  %v5505 = vpack.c.b16 %v2913, %v2897
  %v5506 = vpack.c.b16 %v2914, %v2898
  %v5507 = vpack.c.b16 %v2915, %v2899
  %v5508 = vpack.c.b16 %v2916, %v2900
  %v5509 = vpack.c.b16 %v2917, %v2901
  %v5510 = vpack.c.b16 %v2918, %v2902
  %v5511 = vpack.c.b16 %v2919, %v2903
  %v5512 = vpack.c.b16 %v2920, %v2904
  %v5513 = vpack.c.b16 %v2921, %v2905
  %v5514 = vpack.c.b16 %v2922, %v2906
  %v5515 = vpack.c.b16 %v2923, %v2907
  %v5516 = vpack.c.b16 %v2924, %v2908
  %v5517 = vpack.c.b16 %v2925, %v2909
  %v5518 = vpack.c.b16 %v2926, %v2910
  %v5519 = vpack.c.b16 %v2927, %v2911
  %v5520 = vpack.c.b16 %v2928, %v2912
  %v5521 = vpack.c.b16 %v2945, %v2929
  %v5522 = vpack.c.b16 %v2946, %v2930
  %v5523 = vpack.c.b16 %v2947, %v2931
  %v5524 = vpack.c.b16 %v2948, %v2932
  %v5525 = vpack.c.b16 %v2949, %v2933
  %v5526 = vpack.c.b16 %v2950, %v2934
  %v5527 = vpack.c.b16 %v2951, %v2935
  %v5528 = vpack.c.b16 %v2952, %v2936
  %v5529 = vpack.c.b16 %v2953, %v2937
  %v5530 = vpack.c.b16 %v2954, %v2938
  %v5531 = vpack.c.b16 %v2955, %v2939
  %v5532 = vpack.c.b16 %v2956, %v2940
  %v5533 = vpack.c.b16 %v2957, %v2941
  %v5534 = vpack.c.b16 %v2958, %v2942
  %v5535 = vpack.c.b16 %v2959, %v2943
  %v5536 = vpack.c.b16 %v2960, %v2944
  %v5537 = vpack.c.b16 %v2977, %v2961
  %v5538 = vpack.c.b16 %v2978, %v2962
  %v5539 = vpack.c.b16 %v2979, %v2963
  %v5540 = vpack.c.b16 %v2980, %v2964
  %v5541 = vpack.c.b16 %v2981, %v2965
  %v5542 = vpack.c.b16 %v2982, %v2966
  %v5543 = vpack.c.b16 %v2983, %v2967
  %v5544 = vpack.c.b16 %v2984, %v2968
  %v5545 = vpack.c.b16 %v2985, %v2969
  %v5546 = vpack.c.b16 %v2986, %v2970
  %v5547 = vpack.c.b16 %v2987, %v2971
  %v5548 = vpack.c.b16 %v2988, %v2972
  %v5549 = vpack.c.b16 %v2989, %v2973
  %v5550 = vpack.c.b16 %v2990, %v2974
  %v5551 = vpack.c.b16 %v2991, %v2975
  %v5552 = vpack.c.b16 %v2992, %v2976
  %v5553 = vpack.c.b16 %v3009, %v2993
  %v5554 = vpack.c.b16 %v3010, %v2994
  %v5555 = vpack.c.b16 %v3011, %v2995
  %v5556 = vpack.c.b16 %v3012, %v2996
  %v5557 = vpack.c.b16 %v3013, %v2997
  %v5558 = vpack.c.b16 %v3014, %v2998
  %v5559 = vpack.c.b16 %v3015, %v2999
  %v5560 = vpack.c.b16 %v3016, %v3000
  %v5561 = vpack.c.b16 %v3017, %v3001
  %v5562 = vpack.c.b16 %v3018, %v3002
  %v5563 = vpack.c.b16 %v3019, %v3003
  %v5564 = vpack.c.b16 %v3020, %v3004
  %v5565 = vpack.c.b16 %v3021, %v3005
  %v5566 = vpack.c.b16 %v3022, %v3006
  %v5567 = vpack.c.b16 %v3023, %v3007
  %v5568 = vpack.c.b16 %v3024, %v3008
  %v5569 = vpack.c.b16 %v3041, %v3025
  %v5570 = vpack.c.b16 %v3042, %v3026
  %v5571 = vpack.c.b16 %v3043, %v3027
  %v5572 = vpack.c.b16 %v3044, %v3028
  %v5573 = vpack.c.b16 %v3045, %v3029
  %v5574 = vpack.c.b16 %v3046, %v3030
  %v5575 = vpack.c.b16 %v3047, %v3031
  %v5576 = vpack.c.b16 %v3048, %v3032
  %v5577 = vpack.c.b16 %v3049, %v3033
  %v5578 = vpack.c.b16 %v3050, %v3034
  %v5579 = vpack.c.b16 %v3051, %v3035
  %v5580 = vpack.c.b16 %v3052, %v3036
  %v5581 = vpack.c.b16 %v3053, %v3037
  %v5582 = vpack.c.b16 %v3054, %v3038
  %v5583 = vpack.c.b16 %v3055, %v3039
  %v5584 = vpack.c.b16 %v3056, %v3040
  %v5585 = vpack.c.b16 %v3073, %v3057
  %v5586 = vpack.c.b16 %v3074, %v3058
  %v5587 = vpack.c.b16 %v3075, %v3059
  %v5588 = vpack.c.b16 %v3076, %v3060
  %v5589 = vpack.c.b16 %v3077, %v3061
  %v5590 = vpack.c.b16 %v3078, %v3062
  %v5591 = vpack.c.b16 %v3079, %v3063
  %v5592 = vpack.c.b16 %v3080, %v3064
  %v5593 = vpack.c.b16 %v3081, %v3065
  %v5594 = vpack.c.b16 %v3082, %v3066
  %v5595 = vpack.c.b16 %v3083, %v3067
  %v5596 = vpack.c.b16 %v3084, %v3068
  %v5597 = vpack.c.b16 %v3085, %v3069
  %v5598 = vpack.c.b16 %v3086, %v3070
  %v5599 = vpack.c.b16 %v3087, %v3071
  %v5600 = vpack.c.b16 %v3088, %v3072
  %v5601 = vpack.c.b16 %v3105, %v3089
  %v5602 = vpack.c.b16 %v3106, %v3090
  %v5603 = vpack.c.b16 %v3107, %v3091
  %v5604 = vpack.c.b16 %v3108, %v3092
  %v5605 = vpack.c.b16 %v3109, %v3093
  %v5606 = vpack.c.b16 %v3110, %v3094
  %v5607 = vpack.c.b16 %v3111, %v3095
  %v5608 = vpack.c.b16 %v3112, %v3096
  %v5609 = vpack.c.b16 %v3113, %v3097
  %v5610 = vpack.c.b16 %v3114, %v3098
  %v5611 = vpack.c.b16 %v3115, %v3099
  %v5612 = vpack.c.b16 %v3116, %v3100
  %v5613 = vpack.c.b16 %v3117, %v3101
  %v5614 = vpack.c.b16 %v3118, %v3102
  %v5615 = vpack.c.b16 %v3119, %v3103
  %v5616 = vpack.c.b16 %v3120, %v3104
  %v5617 = vpack.c.b16 %v3137, %v3121
  %v5618 = vpack.c.b16 %v3138, %v3122
  %v5619 = vpack.c.b16 %v3139, %v3123
  %v5620 = vpack.c.b16 %v3140, %v3124
  %v5621 = vpack.c.b16 %v3141, %v3125
  %v5622 = vpack.c.b16 %v3142, %v3126
  %v5623 = vpack.c.b16 %v3143, %v3127
  %v5624 = vpack.c.b16 %v3144, %v3128
  %v5625 = vpack.c.b16 %v3145, %v3129
  %v5626 = vpack.c.b16 %v3146, %v3130
  %v5627 = vpack.c.b16 %v3147, %v3131
  %v5628 = vpack.c.b16 %v3148, %v3132
  %v5629 = vpack.c.b16 %v3149, %v3133
  %v5630 = vpack.c.b16 %v3150, %v3134
  %v5631 = vpack.c.b16 %v3151, %v3135
  %v5632 = vpack.c.b16 %v3152, %v3136
  %v5633 = vpack.c.b16 %v3169, %v3153
  %v5634 = vpack.c.b16 %v3170, %v3154
  %v5635 = vpack.c.b16 %v3171, %v3155
  %v5636 = vpack.c.b16 %v3172, %v3156
  %v5637 = vpack.c.b16 %v3173, %v3157
  %v5638 = vpack.c.b16 %v3174, %v3158
  %v5639 = vpack.c.b16 %v3175, %v3159
  %v5640 = vpack.c.b16 %v3176, %v3160
  %v5641 = vpack.c.b16 %v3177, %v3161
  %v5642 = vpack.c.b16 %v3178, %v3162
  %v5643 = vpack.c.b16 %v3179, %v3163
  %v5644 = vpack.c.b16 %v3180, %v3164
  %v5645 = vpack.c.b16 %v3181, %v3165
  %v5646 = vpack.c.b16 %v3182, %v3166
  %v5647 = vpack.c.b16 %v3183, %v3167
  %v5648 = vpack.c.b16 %v3184, %v3168
  %v5649 = vpack.c.b16 %v3201, %v3185
  %v5650 = vpack.c.b16 %v3202, %v3186
  %v5651 = vpack.c.b16 %v3203, %v3187
  %v5652 = vpack.c.b16 %v3204, %v3188
  %v5653 = vpack.c.b16 %v3205, %v3189
  %v5654 = vpack.c.b16 %v3206, %v3190
  %v5655 = vpack.c.b16 %v3207, %v3191
  %v5656 = vpack.c.b16 %v3208, %v3192
  %v5657 = vpack.c.b16 %v3209, %v3193
  %v5658 = vpack.c.b16 %v3210, %v3194
  %v5659 = vpack.c.b16 %v3211, %v3195
  %v5660 = vpack.c.b16 %v3212, %v3196
  %v5661 = vpack.c.b16 %v3213, %v3197
  %v5662 = vpack.c.b16 %v3214, %v3198
  %v5663 = vpack.c.b16 %v3215, %v3199
  %v5664 = vpack.c.b16 %v3216, %v3200
  %v5665 = vpack.c.b16 %v3233, %v3217
  %v5666 = vpack.c.b16 %v3234, %v3218
  %v5667 = vpack.c.b16 %v3235, %v3219
  %v5668 = vpack.c.b16 %v3236, %v3220
  %v5669 = vpack.c.b16 %v3237, %v3221
  %v5670 = vpack.c.b16 %v3238, %v3222
  %v5671 = vpack.c.b16 %v3239, %v3223
  %v5672 = vpack.c.b16 %v3240, %v3224
  %v5673 = vpack.c.b16 %v3241, %v3225
  %v5674 = vpack.c.b16 %v3242, %v3226
  %v5675 = vpack.c.b16 %v3243, %v3227
  %v5676 = vpack.c.b16 %v3244, %v3228
  %v5677 = vpack.c.b16 %v3245, %v3229
  %v5678 = vpack.c.b16 %v3246, %v3230
  %v5679 = vpack.c.b16 %v3247, %v3231
  %v5680 = vpack.c.b16 %v3248, %v3232
  %v5681 = vpack.c.b16 %v3265, %v3249
  %v5682 = vpack.c.b16 %v3266, %v3250
  %v5683 = vpack.c.b16 %v3267, %v3251
  %v5684 = vpack.c.b16 %v3268, %v3252
  %v5685 = vpack.c.b16 %v3269, %v3253
  %v5686 = vpack.c.b16 %v3270, %v3254
  %v5687 = vpack.c.b16 %v3271, %v3255
  %v5688 = vpack.c.b16 %v3272, %v3256
  %v5689 = vpack.c.b16 %v3273, %v3257
  %v5690 = vpack.c.b16 %v3274, %v3258
  %v5691 = vpack.c.b16 %v3275, %v3259
  %v5692 = vpack.c.b16 %v3276, %v3260
  %v5693 = vpack.c.b16 %v3277, %v3261
  %v5694 = vpack.c.b16 %v3278, %v3262
  %v5695 = vpack.c.b16 %v3279, %v3263
  %v5696 = vpack.c.b16 %v3280, %v3264
  %v5697 = vpack.c.b16 %v3297, %v3281
  %v5698 = vpack.c.b16 %v3298, %v3282
  %v5699 = vpack.c.b16 %v3299, %v3283
  %v5700 = vpack.c.b16 %v3300, %v3284
  %v5701 = vpack.c.b16 %v3301, %v3285
  %v5702 = vpack.c.b16 %v3302, %v3286
  %v5703 = vpack.c.b16 %v3303, %v3287
  %v5704 = vpack.c.b16 %v3304, %v3288
  %v5705 = vpack.c.b16 %v3305, %v3289
  %v5706 = vpack.c.b16 %v3306, %v3290
  %v5707 = vpack.c.b16 %v3307, %v3291
  %v5708 = vpack.c.b16 %v3308, %v3292
  %v5709 = vpack.c.b16 %v3309, %v3293
  %v5710 = vpack.c.b16 %v3310, %v3294
  %v5711 = vpack.c.b16 %v3311, %v3295
  %v5712 = vpack.c.b16 %v3312, %v3296
  %v5713 = vpack.c.b16 %v3329, %v3313
  %v5714 = vpack.c.b16 %v3330, %v3314
  %v5715 = vpack.c.b16 %v3331, %v3315
  %v5716 = vpack.c.b16 %v3332, %v3316
  %v5717 = vpack.c.b16 %v3333, %v3317
  %v5718 = vpack.c.b16 %v3334, %v3318
  %v5719 = vpack.c.b16 %v3335, %v3319
  %v5720 = vpack.c.b16 %v3336, %v3320
  %v5721 = vpack.c.b16 %v3337, %v3321
  %v5722 = vpack.c.b16 %v3338, %v3322
  %v5723 = vpack.c.b16 %v3339, %v3323
  %v5724 = vpack.c.b16 %v3340, %v3324
  %v5725 = vpack.c.b16 %v3341, %v3325
  %v5726 = vpack.c.b16 %v3342, %v3326
  %v5727 = vpack.c.b16 %v3343, %v3327
  %v5728 = vpack.c.b16 %v3344, %v3328
  %v5729 = vpack.c.b16 %v3361, %v3345
  %v5730 = vpack.c.b16 %v3362, %v3346
  %v5731 = vpack.c.b16 %v3363, %v3347
  %v5732 = vpack.c.b16 %v3364, %v3348
  %v5733 = vpack.c.b16 %v3365, %v3349
  %v5734 = vpack.c.b16 %v3366, %v3350
  %v5735 = vpack.c.b16 %v3367, %v3351
  %v5736 = vpack.c.b16 %v3368, %v3352
  %v5737 = vpack.c.b16 %v3369, %v3353
  %v5738 = vpack.c.b16 %v3370, %v3354
  %v5739 = vpack.c.b16 %v3371, %v3355
  %v5740 = vpack.c.b16 %v3372, %v3356
  %v5741 = vpack.c.b16 %v3373, %v3357
  %v5742 = vpack.c.b16 %v3374, %v3358
  %v5743 = vpack.c.b16 %v3375, %v3359
  %v5744 = vpack.c.b16 %v3376, %v3360
  %v5745 = vpack.c.b16 %v3393, %v3377
  %v5746 = vpack.c.b16 %v3394, %v3378
  %v5747 = vpack.c.b16 %v3395, %v3379
  %v5748 = vpack.c.b16 %v3396, %v3380
  %v5749 = vpack.c.b16 %v3397, %v3381
  %v5750 = vpack.c.b16 %v3398, %v3382
  %v5751 = vpack.c.b16 %v3399, %v3383
  %v5752 = vpack.c.b16 %v3400, %v3384
  %v5753 = vpack.c.b16 %v3401, %v3385
  %v5754 = vpack.c.b16 %v3402, %v3386
  %v5755 = vpack.c.b16 %v3403, %v3387
  %v5756 = vpack.c.b16 %v3404, %v3388
  %v5757 = vpack.c.b16 %v3405, %v3389
  %v5758 = vpack.c.b16 %v3406, %v3390
  %v5759 = vpack.c.b16 %v3407, %v3391
  %v5760 = vpack.c.b16 %v3408, %v3392
  %v5761 = vpack.c.b16 %v3425, %v3409
  %v5762 = vpack.c.b16 %v3426, %v3410
  %v5763 = vpack.c.b16 %v3427, %v3411
  %v5764 = vpack.c.b16 %v3428, %v3412
  %v5765 = vpack.c.b16 %v3429, %v3413
  %v5766 = vpack.c.b16 %v3430, %v3414
  %v5767 = vpack.c.b16 %v3431, %v3415
  %v5768 = vpack.c.b16 %v3432, %v3416
  %v5769 = vpack.c.b16 %v3433, %v3417
  %v5770 = vpack.c.b16 %v3434, %v3418
  %v5771 = vpack.c.b16 %v3435, %v3419
  %v5772 = vpack.c.b16 %v3436, %v3420
  %v5773 = vpack.c.b16 %v3437, %v3421
  %v5774 = vpack.c.b16 %v3438, %v3422
  %v5775 = vpack.c.b16 %v3439, %v3423
  %v5776 = vpack.c.b16 %v3440, %v3424
  %v5777 = vpack.c.b16 %v3457, %v3441
  %v5778 = vpack.c.b16 %v3458, %v3442
  %v5779 = vpack.c.b16 %v3459, %v3443
  %v5780 = vpack.c.b16 %v3460, %v3444
  %v5781 = vpack.c.b16 %v3461, %v3445
  %v5782 = vpack.c.b16 %v3462, %v3446
  %v5783 = vpack.c.b16 %v3463, %v3447
  %v5784 = vpack.c.b16 %v3464, %v3448
  %v5785 = vpack.c.b16 %v3465, %v3449
  %v5786 = vpack.c.b16 %v3466, %v3450
  %v5787 = vpack.c.b16 %v3467, %v3451
  %v5788 = vpack.c.b16 %v3468, %v3452
  %v5789 = vpack.c.b16 %v3469, %v3453
  %v5790 = vpack.c.b16 %v3470, %v3454
  %v5791 = vpack.c.b16 %v3471, %v3455
  %v5792 = vpack.c.b16 %v3472, %v3456
  %v5793 = vpack.c.b16 %v3489, %v3473
  %v5794 = vpack.c.b16 %v3490, %v3474
  %v5795 = vpack.c.b16 %v3491, %v3475
  %v5796 = vpack.c.b16 %v3492, %v3476
  %v5797 = vpack.c.b16 %v3493, %v3477
  %v5798 = vpack.c.b16 %v3494, %v3478
  %v5799 = vpack.c.b16 %v3495, %v3479
  %v5800 = vpack.c.b16 %v3496, %v3480
  %v5801 = vpack.c.b16 %v3497, %v3481
  %v5802 = vpack.c.b16 %v3498, %v3482
  %v5803 = vpack.c.b16 %v3499, %v3483
  %v5804 = vpack.c.b16 %v3500, %v3484
  %v5805 = vpack.c.b16 %v3501, %v3485
  %v5806 = vpack.c.b16 %v3502, %v3486
  %v5807 = vpack.c.b16 %v3503, %v3487
  %v5808 = vpack.c.b16 %v3504, %v3488
  %v5809 = vpack.c.b16 %v3521, %v3505
  %v5810 = vpack.c.b16 %v3522, %v3506
  %v5811 = vpack.c.b16 %v3523, %v3507
  %v5812 = vpack.c.b16 %v3524, %v3508
  %v5813 = vpack.c.b16 %v3525, %v3509
  %v5814 = vpack.c.b16 %v3526, %v3510
  %v5815 = vpack.c.b16 %v3527, %v3511
  %v5816 = vpack.c.b16 %v3528, %v3512
  %v5817 = vpack.c.b16 %v3529, %v3513
  %v5818 = vpack.c.b16 %v3530, %v3514
  %v5819 = vpack.c.b16 %v3531, %v3515
  %v5820 = vpack.c.b16 %v3532, %v3516
  %v5821 = vpack.c.b16 %v3533, %v3517
  %v5822 = vpack.c.b16 %v3534, %v3518
  %v5823 = vpack.c.b16 %v3535, %v3519
  %v5824 = vpack.c.b16 %v3536, %v3520
  %v5825 = vpack.c.b16 %v3553, %v3537
  %v5826 = vpack.c.b16 %v3554, %v3538
  %v5827 = vpack.c.b16 %v3555, %v3539
  %v5828 = vpack.c.b16 %v3556, %v3540
  %v5829 = vpack.c.b16 %v3557, %v3541
  %v5830 = vpack.c.b16 %v3558, %v3542
  %v5831 = vpack.c.b16 %v3559, %v3543
  %v5832 = vpack.c.b16 %v3560, %v3544
  %v5833 = vpack.c.b16 %v3561, %v3545
  %v5834 = vpack.c.b16 %v3562, %v3546
  %v5835 = vpack.c.b16 %v3563, %v3547
  %v5836 = vpack.c.b16 %v3564, %v3548
  %v5837 = vpack.c.b16 %v3565, %v3549
  %v5838 = vpack.c.b16 %v3566, %v3550
  %v5839 = vpack.c.b16 %v3567, %v3551
  %v5840 = vpack.c.b16 %v3568, %v3552
  %v5841 = vpack.c.b16 %v3585, %v3569
  %v5842 = vpack.c.b16 %v3586, %v3570
  %v5843 = vpack.c.b16 %v3587, %v3571
  %v5844 = vpack.c.b16 %v3588, %v3572
  %v5845 = vpack.c.b16 %v3589, %v3573
  %v5846 = vpack.c.b16 %v3590, %v3574
  %v5847 = vpack.c.b16 %v3591, %v3575
  %v5848 = vpack.c.b16 %v3592, %v3576
  %v5849 = vpack.c.b16 %v3593, %v3577
  %v5850 = vpack.c.b16 %v3594, %v3578
  %v5851 = vpack.c.b16 %v3595, %v3579
  %v5852 = vpack.c.b16 %v3596, %v3580
  %v5853 = vpack.c.b16 %v3597, %v3581
  %v5854 = vpack.c.b16 %v3598, %v3582
  %v5855 = vpack.c.b16 %v3599, %v3583
  %v5856 = vpack.c.b16 %v3600, %v3584
  %v5857 = vpack.c.b16 %v3617, %v3601
  %v5858 = vpack.c.b16 %v3618, %v3602
  %v5859 = vpack.c.b16 %v3619, %v3603
  %v5860 = vpack.c.b16 %v3620, %v3604
  %v5861 = vpack.c.b16 %v3621, %v3605
  %v5862 = vpack.c.b16 %v3622, %v3606
  %v5863 = vpack.c.b16 %v3623, %v3607
  %v5864 = vpack.c.b16 %v3624, %v3608
  %v5865 = vpack.c.b16 %v3625, %v3609
  %v5866 = vpack.c.b16 %v3626, %v3610
  %v5867 = vpack.c.b16 %v3627, %v3611
  %v5868 = vpack.c.b16 %v3628, %v3612
  %v5869 = vpack.c.b16 %v3629, %v3613
  %v5870 = vpack.c.b16 %v3630, %v3614
  %v5871 = vpack.c.b16 %v3631, %v3615
  %v5872 = vpack.c.b16 %v3632, %v3616
  %v5873 = vpack.c.b16 %v3649, %v3633
  %v5874 = vpack.c.b16 %v3650, %v3634
  %v5875 = vpack.c.b16 %v3651, %v3635
  %v5876 = vpack.c.b16 %v3652, %v3636
  %v5877 = vpack.c.b16 %v3653, %v3637
  %v5878 = vpack.c.b16 %v3654, %v3638
  %v5879 = vpack.c.b16 %v3655, %v3639
  %v5880 = vpack.c.b16 %v3656, %v3640
  %v5881 = vpack.c.b16 %v3657, %v3641
  %v5882 = vpack.c.b16 %v3658, %v3642
  %v5883 = vpack.c.b16 %v3659, %v3643
  %v5884 = vpack.c.b16 %v3660, %v3644
  %v5885 = vpack.c.b16 %v3661, %v3645
  %v5886 = vpack.c.b16 %v3662, %v3646
  %v5887 = vpack.c.b16 %v3663, %v3647
  %v5888 = vpack.c.b16 %v3664, %v3648
  %v5889 = vpack.c.b16 %v3681, %v3665
  %v5890 = vpack.c.b16 %v3682, %v3666
  %v5891 = vpack.c.b16 %v3683, %v3667
  %v5892 = vpack.c.b16 %v3684, %v3668
  %v5893 = vpack.c.b16 %v3685, %v3669
  %v5894 = vpack.c.b16 %v3686, %v3670
  %v5895 = vpack.c.b16 %v3687, %v3671
  %v5896 = vpack.c.b16 %v3688, %v3672
  %v5897 = vpack.c.b16 %v3689, %v3673
  %v5898 = vpack.c.b16 %v3690, %v3674
  %v5899 = vpack.c.b16 %v3691, %v3675
  %v5900 = vpack.c.b16 %v3692, %v3676
  %v5901 = vpack.c.b16 %v3693, %v3677
  %v5902 = vpack.c.b16 %v3694, %v3678
  %v5903 = vpack.c.b16 %v3695, %v3679
  %v5904 = vpack.c.b16 %v3696, %v3680
  %v5905 = vpack.c.b16 %v3713, %v3697
  %v5906 = vpack.c.b16 %v3714, %v3698
  %v5907 = vpack.c.b16 %v3715, %v3699
  %v5908 = vpack.c.b16 %v3716, %v3700
  %v5909 = vpack.c.b16 %v3717, %v3701
  %v5910 = vpack.c.b16 %v3718, %v3702
  %v5911 = vpack.c.b16 %v3719, %v3703
  %v5912 = vpack.c.b16 %v3720, %v3704
  %v5913 = vpack.c.b16 %v3721, %v3705
  %v5914 = vpack.c.b16 %v3722, %v3706
  %v5915 = vpack.c.b16 %v3723, %v3707
  %v5916 = vpack.c.b16 %v3724, %v3708
  %v5917 = vpack.c.b16 %v3725, %v3709
  %v5918 = vpack.c.b16 %v3726, %v3710
  %v5919 = vpack.c.b16 %v3727, %v3711
  %v5920 = vpack.c.b16 %v3728, %v3712
  %v5921 = vpack.c.b16 %v3745, %v3729
  %v5922 = vpack.c.b16 %v3746, %v3730
  %v5923 = vpack.c.b16 %v3747, %v3731
  %v5924 = vpack.c.b16 %v3748, %v3732
  %v5925 = vpack.c.b16 %v3749, %v3733
  %v5926 = vpack.c.b16 %v3750, %v3734
  %v5927 = vpack.c.b16 %v3751, %v3735
  %v5928 = vpack.c.b16 %v3752, %v3736
  %v5929 = vpack.c.b16 %v3753, %v3737
  %v5930 = vpack.c.b16 %v3754, %v3738
  %v5931 = vpack.c.b16 %v3755, %v3739
  %v5932 = vpack.c.b16 %v3756, %v3740
  %v5933 = vpack.c.b16 %v3757, %v3741
  %v5934 = vpack.c.b16 %v3758, %v3742
  %v5935 = vpack.c.b16 %v3759, %v3743
  %v5936 = vpack.c.b16 %v3760, %v3744
  %v5937 = vpack.c.b16 %v3777, %v3761
  %v5938 = vpack.c.b16 %v3778, %v3762
  %v5939 = vpack.c.b16 %v3779, %v3763
  %v5940 = vpack.c.b16 %v3780, %v3764
  %v5941 = vpack.c.b16 %v3781, %v3765
  %v5942 = vpack.c.b16 %v3782, %v3766
  %v5943 = vpack.c.b16 %v3783, %v3767
  %v5944 = vpack.c.b16 %v3784, %v3768
  %v5945 = vpack.c.b16 %v3785, %v3769
  %v5946 = vpack.c.b16 %v3786, %v3770
  %v5947 = vpack.c.b16 %v3787, %v3771
  %v5948 = vpack.c.b16 %v3788, %v3772
  %v5949 = vpack.c.b16 %v3789, %v3773
  %v5950 = vpack.c.b16 %v3790, %v3774
  %v5951 = vpack.c.b16 %v3791, %v3775
  %v5952 = vpack.c.b16 %v3792, %v3776
  %v5953 = vpack.c.b16 %v3809, %v3793
  %v5954 = vpack.c.b16 %v3810, %v3794
  %v5955 = vpack.c.b16 %v3811, %v3795
  %v5956 = vpack.c.b16 %v3812, %v3796
  %v5957 = vpack.c.b16 %v3813, %v3797
  %v5958 = vpack.c.b16 %v3814, %v3798
  %v5959 = vpack.c.b16 %v3815, %v3799
  %v5960 = vpack.c.b16 %v3816, %v3800
  %v5961 = vpack.c.b16 %v3817, %v3801
  %v5962 = vpack.c.b16 %v3818, %v3802
  %v5963 = vpack.c.b16 %v3819, %v3803
  %v5964 = vpack.c.b16 %v3820, %v3804
  %v5965 = vpack.c.b16 %v3821, %v3805
  %v5966 = vpack.c.b16 %v3822, %v3806
  %v5967 = vpack.c.b16 %v3823, %v3807
  %v5968 = vpack.c.b16 %v3824, %v3808
  %v5969 = vpack.c.b16 %v3841, %v3825
  %v5970 = vpack.c.b16 %v3842, %v3826
  %v5971 = vpack.c.b16 %v3843, %v3827
  %v5972 = vpack.c.b16 %v3844, %v3828
  %v5973 = vpack.c.b16 %v3845, %v3829
  %v5974 = vpack.c.b16 %v3846, %v3830
  %v5975 = vpack.c.b16 %v3847, %v3831
  %v5976 = vpack.c.b16 %v3848, %v3832
  %v5977 = vpack.c.b16 %v3849, %v3833
  %v5978 = vpack.c.b16 %v3850, %v3834
  %v5979 = vpack.c.b16 %v3851, %v3835
  %v5980 = vpack.c.b16 %v3852, %v3836
  %v5981 = vpack.c.b16 %v3853, %v3837
  %v5982 = vpack.c.b16 %v3854, %v3838
  %v5983 = vpack.c.b16 %v3855, %v3839
  %v5984 = vpack.c.b16 %v3856, %v3840
  %v5985 = vpack.c.b16 %v3873, %v3857
  %v5986 = vpack.c.b16 %v3874, %v3858
  %v5987 = vpack.c.b16 %v3875, %v3859
  %v5988 = vpack.c.b16 %v3876, %v3860
  %v5989 = vpack.c.b16 %v3877, %v3861
  %v5990 = vpack.c.b16 %v3878, %v3862
  %v5991 = vpack.c.b16 %v3879, %v3863
  %v5992 = vpack.c.b16 %v3880, %v3864
  %v5993 = vpack.c.b16 %v3881, %v3865
  %v5994 = vpack.c.b16 %v3882, %v3866
  %v5995 = vpack.c.b16 %v3883, %v3867
  %v5996 = vpack.c.b16 %v3884, %v3868
  %v5997 = vpack.c.b16 %v3885, %v3869
  %v5998 = vpack.c.b16 %v3886, %v3870
  %v5999 = vpack.c.b16 %v3887, %v3871
  %v6000 = vpack.c.b16 %v3888, %v3872
  %v6001 = vpack.c.b16 %v3905, %v3889
  %v6002 = vpack.c.b16 %v3906, %v3890
  %v6003 = vpack.c.b16 %v3907, %v3891
  %v6004 = vpack.c.b16 %v3908, %v3892
  %v6005 = vpack.c.b16 %v3909, %v3893
  %v6006 = vpack.c.b16 %v3910, %v3894
  %v6007 = vpack.c.b16 %v3911, %v3895
  %v6008 = vpack.c.b16 %v3912, %v3896
  %v6009 = vpack.c.b16 %v3913, %v3897
  %v6010 = vpack.c.b16 %v3914, %v3898
  %v6011 = vpack.c.b16 %v3915, %v3899
  %v6012 = vpack.c.b16 %v3916, %v3900
  %v6013 = vpack.c.b16 %v3917, %v3901
  %v6014 = vpack.c.b16 %v3918, %v3902
  %v6015 = vpack.c.b16 %v3919, %v3903
  %v6016 = vpack.c.b16 %v3920, %v3904
  %v6017 = vpack.c.b16 %v3937, %v3921
  %v6018 = vpack.c.b16 %v3938, %v3922
  %v6019 = vpack.c.b16 %v3939, %v3923
  %v6020 = vpack.c.b16 %v3940, %v3924
  %v6021 = vpack.c.b16 %v3941, %v3925
  %v6022 = vpack.c.b16 %v3942, %v3926
  %v6023 = vpack.c.b16 %v3943, %v3927
  %v6024 = vpack.c.b16 %v3944, %v3928
  %v6025 = vpack.c.b16 %v3945, %v3929
  %v6026 = vpack.c.b16 %v3946, %v3930
  %v6027 = vpack.c.b16 %v3947, %v3931
  %v6028 = vpack.c.b16 %v3948, %v3932
  %v6029 = vpack.c.b16 %v3949, %v3933
  %v6030 = vpack.c.b16 %v3950, %v3934
  %v6031 = vpack.c.b16 %v3951, %v3935
  %v6032 = vpack.c.b16 %v3952, %v3936
  %v6033 = vpack.c.b16 %v3969, %v3953
  %v6034 = vpack.c.b16 %v3970, %v3954
  %v6035 = vpack.c.b16 %v3971, %v3955
  %v6036 = vpack.c.b16 %v3972, %v3956
  %v6037 = vpack.c.b16 %v3973, %v3957
  %v6038 = vpack.c.b16 %v3974, %v3958
  %v6039 = vpack.c.b16 %v3975, %v3959
  %v6040 = vpack.c.b16 %v3976, %v3960
  %v6041 = vpack.c.b16 %v3977, %v3961
  %v6042 = vpack.c.b16 %v3978, %v3962
  %v6043 = vpack.c.b16 %v3979, %v3963
  %v6044 = vpack.c.b16 %v3980, %v3964
  %v6045 = vpack.c.b16 %v3981, %v3965
  %v6046 = vpack.c.b16 %v3982, %v3966
  %v6047 = vpack.c.b16 %v3983, %v3967
  %v6048 = vpack.c.b16 %v3984, %v3968
  %v6049 = vpack.c.b16 %v4001, %v3985
  %v6050 = vpack.c.b16 %v4002, %v3986
  %v6051 = vpack.c.b16 %v4003, %v3987
  %v6052 = vpack.c.b16 %v4004, %v3988
  %v6053 = vpack.c.b16 %v4005, %v3989
  %v6054 = vpack.c.b16 %v4006, %v3990
  %v6055 = vpack.c.b16 %v4007, %v3991
  %v6056 = vpack.c.b16 %v4008, %v3992
  %v6057 = vpack.c.b16 %v4009, %v3993
  %v6058 = vpack.c.b16 %v4010, %v3994
  %v6059 = vpack.c.b16 %v4011, %v3995
  %v6060 = vpack.c.b16 %v4012, %v3996
  %v6061 = vpack.c.b16 %v4013, %v3997
  %v6062 = vpack.c.b16 %v4014, %v3998
  %v6063 = vpack.c.b16 %v4015, %v3999
  %v6064 = vpack.c.b16 %v4016, %v4000
  %v6065 = vpack.c.b16 %v4033, %v4017
  %v6066 = vpack.c.b16 %v4034, %v4018
  %v6067 = vpack.c.b16 %v4035, %v4019
  %v6068 = vpack.c.b16 %v4036, %v4020
  %v6069 = vpack.c.b16 %v4037, %v4021
  %v6070 = vpack.c.b16 %v4038, %v4022
  %v6071 = vpack.c.b16 %v4039, %v4023
  %v6072 = vpack.c.b16 %v4040, %v4024
  %v6073 = vpack.c.b16 %v4041, %v4025
  %v6074 = vpack.c.b16 %v4042, %v4026
  %v6075 = vpack.c.b16 %v4043, %v4027
  %v6076 = vpack.c.b16 %v4044, %v4028
  %v6077 = vpack.c.b16 %v4045, %v4029
  %v6078 = vpack.c.b16 %v4046, %v4030
  %v6079 = vpack.c.b16 %v4047, %v4031
  %v6080 = vpack.c.b16 %v4048, %v4032
  %v6081 = vpack.c.b16 %v4065, %v4049
  %v6082 = vpack.c.b16 %v4066, %v4050
  %v6083 = vpack.c.b16 %v4067, %v4051
  %v6084 = vpack.c.b16 %v4068, %v4052
  %v6085 = vpack.c.b16 %v4069, %v4053
  %v6086 = vpack.c.b16 %v4070, %v4054
  %v6087 = vpack.c.b16 %v4071, %v4055
  %v6088 = vpack.c.b16 %v4072, %v4056
  %v6089 = vpack.c.b16 %v4073, %v4057
  %v6090 = vpack.c.b16 %v4074, %v4058
  %v6091 = vpack.c.b16 %v4075, %v4059
  %v6092 = vpack.c.b16 %v4076, %v4060
  %v6093 = vpack.c.b16 %v4077, %v4061
  %v6094 = vpack.c.b16 %v4078, %v4062
  %v6095 = vpack.c.b16 %v4079, %v4063
  %v6096 = vpack.c.b16 %v4080, %v4064
  %v6097 = vpack.c.b16 %v4097, %v4081
  %v6098 = vpack.c.b16 %v4098, %v4082
  %v6099 = vpack.c.b16 %v4099, %v4083
  %v6100 = vpack.c.b16 %v4100, %v4084
  %v6101 = vpack.c.b16 %v4101, %v4085
  %v6102 = vpack.c.b16 %v4102, %v4086
  %v6103 = vpack.c.b16 %v4103, %v4087
  %v6104 = vpack.c.b16 %v4104, %v4088
  %v6105 = vpack.c.b16 %v4105, %v4089
  %v6106 = vpack.c.b16 %v4106, %v4090
  %v6107 = vpack.c.b16 %v4107, %v4091
  %v6108 = vpack.c.b16 %v4108, %v4092
  %v6109 = vpack.c.b16 %v4109, %v4093
  %v6110 = vpack.c.b16 %v4110, %v4094
  %v6111 = vpack.c.b16 %v4111, %v4095
  %v6112 = vpack.c.b16 %v4112, %v4096
  %v6113 = vpack.c.b16 %v4129, %v4113
  %v6114 = vpack.c.b16 %v4130, %v4114
  %v6115 = vpack.c.b16 %v4131, %v4115
  %v6116 = vpack.c.b16 %v4132, %v4116
  %v6117 = vpack.c.b16 %v4133, %v4117
  %v6118 = vpack.c.b16 %v4134, %v4118
  %v6119 = vpack.c.b16 %v4135, %v4119
  %v6120 = vpack.c.b16 %v4136, %v4120
  %v6121 = vpack.c.b16 %v4137, %v4121
  %v6122 = vpack.c.b16 %v4138, %v4122
  %v6123 = vpack.c.b16 %v4139, %v4123
  %v6124 = vpack.c.b16 %v4140, %v4124
  %v6125 = vpack.c.b16 %v4141, %v4125
  %v6126 = vpack.c.b16 %v4142, %v4126
  %v6127 = vpack.c.b16 %v4143, %v4127
  %v6128 = vpack.c.b16 %v4144, %v4128
  %v6129 = vpack.c.b16 %v4161, %v4145
  %v6130 = vpack.c.b16 %v4162, %v4146
  %v6131 = vpack.c.b16 %v4163, %v4147
  %v6132 = vpack.c.b16 %v4164, %v4148
  %v6133 = vpack.c.b16 %v4165, %v4149
  %v6134 = vpack.c.b16 %v4166, %v4150
  %v6135 = vpack.c.b16 %v4167, %v4151
  %v6136 = vpack.c.b16 %v4168, %v4152
  %v6137 = vpack.c.b16 %v4169, %v4153
  %v6138 = vpack.c.b16 %v4170, %v4154
  %v6139 = vpack.c.b16 %v4171, %v4155
  %v6140 = vpack.c.b16 %v4172, %v4156
  %v6141 = vpack.c.b16 %v4173, %v4157
  %v6142 = vpack.c.b16 %v4174, %v4158
  %v6143 = vpack.c.b16 %v4175, %v4159
  %v6144 = vpack.c.b16 %v4176, %v4160
  %v6145 = vpack.c.b16 %v4193, %v4177
  %v6146 = vpack.c.b16 %v4194, %v4178
  %v6147 = vpack.c.b16 %v4195, %v4179
  %v6148 = vpack.c.b16 %v4196, %v4180
  %v6149 = vpack.c.b16 %v4197, %v4181
  %v6150 = vpack.c.b16 %v4198, %v4182
  %v6151 = vpack.c.b16 %v4199, %v4183
  %v6152 = vpack.c.b16 %v4200, %v4184
  %v6153 = vpack.c.b16 %v4201, %v4185
  %v6154 = vpack.c.b16 %v4202, %v4186
  %v6155 = vpack.c.b16 %v4203, %v4187
  %v6156 = vpack.c.b16 %v4204, %v4188
  %v6157 = vpack.c.b16 %v4205, %v4189
  %v6158 = vpack.c.b16 %v4206, %v4190
  %v6159 = vpack.c.b16 %v4207, %v4191
  %v6160 = vpack.c.b16 %v4208, %v4192
  %v6161 = vpack.c.b16 %v4225, %v4209
  %v6162 = vpack.c.b16 %v4226, %v4210
  %v6163 = vpack.c.b16 %v4227, %v4211
  %v6164 = vpack.c.b16 %v4228, %v4212
  %v6165 = vpack.c.b16 %v4229, %v4213
  %v6166 = vpack.c.b16 %v4230, %v4214
  %v6167 = vpack.c.b16 %v4231, %v4215
  %v6168 = vpack.c.b16 %v4232, %v4216
  %v6169 = vpack.c.b16 %v4233, %v4217
  %v6170 = vpack.c.b16 %v4234, %v4218
  %v6171 = vpack.c.b16 %v4235, %v4219
  %v6172 = vpack.c.b16 %v4236, %v4220
  %v6173 = vpack.c.b16 %v4237, %v4221
  %v6174 = vpack.c.b16 %v4238, %v4222
  %v6175 = vpack.c.b16 %v4239, %v4223
  %v6176 = vpack.c.b16 %v4240, %v4224
  %v6177 = vpack.c.b16 %v4257, %v4241
  %v6178 = vpack.c.b16 %v4258, %v4242
  %v6179 = vpack.c.b16 %v4259, %v4243
  %v6180 = vpack.c.b16 %v4260, %v4244
  %v6181 = vpack.c.b16 %v4261, %v4245
  %v6182 = vpack.c.b16 %v4262, %v4246
  %v6183 = vpack.c.b16 %v4263, %v4247
  %v6184 = vpack.c.b16 %v4264, %v4248
  %v6185 = vpack.c.b16 %v4265, %v4249
  %v6186 = vpack.c.b16 %v4266, %v4250
  %v6187 = vpack.c.b16 %v4267, %v4251
  %v6188 = vpack.c.b16 %v4268, %v4252
  %v6189 = vpack.c.b16 %v4269, %v4253
  %v6190 = vpack.c.b16 %v4270, %v4254
  %v6191 = vpack.c.b16 %v4271, %v4255
  %v6192 = vpack.c.b16 %v4272, %v4256
  %v6193 = vpack.c.b16 %v4289, %v4273
  %v6194 = vpack.c.b16 %v4290, %v4274
  %v6195 = vpack.c.b16 %v4291, %v4275
  %v6196 = vpack.c.b16 %v4292, %v4276
  %v6197 = vpack.c.b16 %v4293, %v4277
  %v6198 = vpack.c.b16 %v4294, %v4278
  %v6199 = vpack.c.b16 %v4295, %v4279
  %v6200 = vpack.c.b16 %v4296, %v4280
  %v6201 = vpack.c.b16 %v4297, %v4281
  %v6202 = vpack.c.b16 %v4298, %v4282
  %v6203 = vpack.c.b16 %v4299, %v4283
  %v6204 = vpack.c.b16 %v4300, %v4284
  %v6205 = vpack.c.b16 %v4301, %v4285
  %v6206 = vpack.c.b16 %v4302, %v4286
  %v6207 = vpack.c.b16 %v4303, %v4287
  %v6208 = vpack.c.b16 %v4304, %v4288
  %v6209 = vpack.c.b16 %v4321, %v4305
  %v6210 = vpack.c.b16 %v4322, %v4306
  %v6211 = vpack.c.b16 %v4323, %v4307
  %v6212 = vpack.c.b16 %v4324, %v4308
  %v6213 = vpack.c.b16 %v4325, %v4309
  %v6214 = vpack.c.b16 %v4326, %v4310
  %v6215 = vpack.c.b16 %v4327, %v4311
  %v6216 = vpack.c.b16 %v4328, %v4312
  %v6217 = vpack.c.b16 %v4329, %v4313
  %v6218 = vpack.c.b16 %v4330, %v4314
  %v6219 = vpack.c.b16 %v4331, %v4315
  %v6220 = vpack.c.b16 %v4332, %v4316
  %v6221 = vpack.c.b16 %v4333, %v4317
  %v6222 = vpack.c.b16 %v4334, %v4318
  %v6223 = vpack.c.b16 %v4335, %v4319
  %v6224 = vpack.c.b16 %v4336, %v4320
  %v6225 = vpack.c.b16 %v4353, %v4337
  %v6226 = vpack.c.b16 %v4354, %v4338
  %v6227 = vpack.c.b16 %v4355, %v4339
  %v6228 = vpack.c.b16 %v4356, %v4340
  %v6229 = vpack.c.b16 %v4357, %v4341
  %v6230 = vpack.c.b16 %v4358, %v4342
  %v6231 = vpack.c.b16 %v4359, %v4343
  %v6232 = vpack.c.b16 %v4360, %v4344
  %v6233 = vpack.c.b16 %v4361, %v4345
  %v6234 = vpack.c.b16 %v4362, %v4346
  %v6235 = vpack.c.b16 %v4363, %v4347
  %v6236 = vpack.c.b16 %v4364, %v4348
  %v6237 = vpack.c.b16 %v4365, %v4349
  %v6238 = vpack.c.b16 %v4366, %v4350
  %v6239 = vpack.c.b16 %v4367, %v4351
  %v6240 = vpack.c.b16 %v4368, %v4352
  %v6241 = vpack.c.b16 %v4385, %v4369
  %v6242 = vpack.c.b16 %v4386, %v4370
  %v6243 = vpack.c.b16 %v4387, %v4371
  %v6244 = vpack.c.b16 %v4388, %v4372
  %v6245 = vpack.c.b16 %v4389, %v4373
  %v6246 = vpack.c.b16 %v4390, %v4374
  %v6247 = vpack.c.b16 %v4391, %v4375
  %v6248 = vpack.c.b16 %v4392, %v4376
  %v6249 = vpack.c.b16 %v4393, %v4377
  %v6250 = vpack.c.b16 %v4394, %v4378
  %v6251 = vpack.c.b16 %v4395, %v4379
  %v6252 = vpack.c.b16 %v4396, %v4380
  %v6253 = vpack.c.b16 %v4397, %v4381
  %v6254 = vpack.c.b16 %v4398, %v4382
  %v6255 = vpack.c.b16 %v4399, %v4383
  %v6256 = vpack.c.b16 %v4400, %v4384
  %v6257 = vpack.c.b16 %v4417, %v4401
  %v6258 = vpack.c.b16 %v4418, %v4402
  %v6259 = vpack.c.b16 %v4419, %v4403
  %v6260 = vpack.c.b16 %v4420, %v4404
  %v6261 = vpack.c.b16 %v4421, %v4405
  %v6262 = vpack.c.b16 %v4422, %v4406
  %v6263 = vpack.c.b16 %v4423, %v4407
  %v6264 = vpack.c.b16 %v4424, %v4408
  %v6265 = vpack.c.b16 %v4425, %v4409
  %v6266 = vpack.c.b16 %v4426, %v4410
  %v6267 = vpack.c.b16 %v4427, %v4411
  %v6268 = vpack.c.b16 %v4428, %v4412
  %v6269 = vpack.c.b16 %v4429, %v4413
  %v6270 = vpack.c.b16 %v4430, %v4414
  %v6271 = vpack.c.b16 %v4431, %v4415
  %v6272 = vpack.c.b16 %v4432, %v4416
  %v6273 = vpack.c.b16 %v4449, %v4433
  %v6274 = vpack.c.b16 %v4450, %v4434
  %v6275 = vpack.c.b16 %v4451, %v4435
  %v6276 = vpack.c.b16 %v4452, %v4436
  %v6277 = vpack.c.b16 %v4453, %v4437
  %v6278 = vpack.c.b16 %v4454, %v4438
  %v6279 = vpack.c.b16 %v4455, %v4439
  %v6280 = vpack.c.b16 %v4456, %v4440
  %v6281 = vpack.c.b16 %v4457, %v4441
  %v6282 = vpack.c.b16 %v4458, %v4442
  %v6283 = vpack.c.b16 %v4459, %v4443
  %v6284 = vpack.c.b16 %v4460, %v4444
  %v6285 = vpack.c.b16 %v4461, %v4445
  %v6286 = vpack.c.b16 %v4462, %v4446
  %v6287 = vpack.c.b16 %v4463, %v4447
  %v6288 = vpack.c.b16 %v4464, %v4448
  %v6289 = vpack.c.b16 %v4481, %v4465
  %v6290 = vpack.c.b16 %v4482, %v4466
  %v6291 = vpack.c.b16 %v4483, %v4467
  %v6292 = vpack.c.b16 %v4484, %v4468
  %v6293 = vpack.c.b16 %v4485, %v4469
  %v6294 = vpack.c.b16 %v4486, %v4470
  %v6295 = vpack.c.b16 %v4487, %v4471
  %v6296 = vpack.c.b16 %v4488, %v4472
  %v6297 = vpack.c.b16 %v4489, %v4473
  %v6298 = vpack.c.b16 %v4490, %v4474
  %v6299 = vpack.c.b16 %v4491, %v4475
  %v6300 = vpack.c.b16 %v4492, %v4476
  %v6301 = vpack.c.b16 %v4493, %v4477
  %v6302 = vpack.c.b16 %v4494, %v4478
  %v6303 = vpack.c.b16 %v4495, %v4479
  %v6304 = vpack.c.b16 %v4496, %v4480
  %v6305 = vpack.c.b16 %v4513, %v4497
  %v6306 = vpack.c.b16 %v4514, %v4498
  %v6307 = vpack.c.b16 %v4515, %v4499
  %v6308 = vpack.c.b16 %v4516, %v4500
  %v6309 = vpack.c.b16 %v4517, %v4501
  %v6310 = vpack.c.b16 %v4518, %v4502
  %v6311 = vpack.c.b16 %v4519, %v4503
  %v6312 = vpack.c.b16 %v4520, %v4504
  %v6313 = vpack.c.b16 %v4521, %v4505
  %v6314 = vpack.c.b16 %v4522, %v4506
  %v6315 = vpack.c.b16 %v4523, %v4507
  %v6316 = vpack.c.b16 %v4524, %v4508
  %v6317 = vpack.c.b16 %v4525, %v4509
  %v6318 = vpack.c.b16 %v4526, %v4510
  %v6319 = vpack.c.b16 %v4527, %v4511
  %v6320 = vpack.c.b16 %v4528, %v4512
  %v6321 = vpack.c.b16 %v4545, %v4529
  %v6322 = vpack.c.b16 %v4546, %v4530
  %v6323 = vpack.c.b16 %v4547, %v4531
  %v6324 = vpack.c.b16 %v4548, %v4532
  %v6325 = vpack.c.b16 %v4549, %v4533
  %v6326 = vpack.c.b16 %v4550, %v4534
  %v6327 = vpack.c.b16 %v4551, %v4535
  %v6328 = vpack.c.b16 %v4552, %v4536
  %v6329 = vpack.c.b16 %v4553, %v4537
  %v6330 = vpack.c.b16 %v4554, %v4538
  %v6331 = vpack.c.b16 %v4555, %v4539
  %v6332 = vpack.c.b16 %v4556, %v4540
  %v6333 = vpack.c.b16 %v4557, %v4541
  %v6334 = vpack.c.b16 %v4558, %v4542
  %v6335 = vpack.c.b16 %v4559, %v4543
  %v6336 = vpack.c.b16 %v4560, %v4544
  %v6337 = vpack.c.b16 %v4577, %v4561
  %v6338 = vpack.c.b16 %v4578, %v4562
  %v6339 = vpack.c.b16 %v4579, %v4563
  %v6340 = vpack.c.b16 %v4580, %v4564
  %v6341 = vpack.c.b16 %v4581, %v4565
  %v6342 = vpack.c.b16 %v4582, %v4566
  %v6343 = vpack.c.b16 %v4583, %v4567
  %v6344 = vpack.c.b16 %v4584, %v4568
  %v6345 = vpack.c.b16 %v4585, %v4569
  %v6346 = vpack.c.b16 %v4586, %v4570
  %v6347 = vpack.c.b16 %v4587, %v4571
  %v6348 = vpack.c.b16 %v4588, %v4572
  %v6349 = vpack.c.b16 %v4589, %v4573
  %v6350 = vpack.c.b16 %v4590, %v4574
  %v6351 = vpack.c.b16 %v4591, %v4575
  %v6352 = vpack.c.b16 %v4592, %v4576
  %v6353 = vpack.c.b16 %v4609, %v4593
  %v6354 = vpack.c.b16 %v4610, %v4594
  %v6355 = vpack.c.b16 %v4611, %v4595
  %v6356 = vpack.c.b16 %v4612, %v4596
  %v6357 = vpack.c.b16 %v4613, %v4597
  %v6358 = vpack.c.b16 %v4614, %v4598
  %v6359 = vpack.c.b16 %v4615, %v4599
  %v6360 = vpack.c.b16 %v4616, %v4600
  %v6361 = vpack.c.b16 %v4617, %v4601
  %v6362 = vpack.c.b16 %v4618, %v4602
  %v6363 = vpack.c.b16 %v4619, %v4603
  %v6364 = vpack.c.b16 %v4620, %v4604
  %v6365 = vpack.c.b16 %v4621, %v4605
  %v6366 = vpack.c.b16 %v4622, %v4606
  %v6367 = vpack.c.b16 %v4623, %v4607
  %v6368 = vpack.c.b16 %v4624, %v4608
  %v6369 = vpack.c.b16 %v4641, %v4625
  %v6370 = vpack.c.b16 %v4642, %v4626
  %v6371 = vpack.c.b16 %v4643, %v4627
  %v6372 = vpack.c.b16 %v4644, %v4628
  %v6373 = vpack.c.b16 %v4645, %v4629
  %v6374 = vpack.c.b16 %v4646, %v4630
  %v6375 = vpack.c.b16 %v4647, %v4631
  %v6376 = vpack.c.b16 %v4648, %v4632
  %v6377 = vpack.c.b16 %v4649, %v4633
  %v6378 = vpack.c.b16 %v4650, %v4634
  %v6379 = vpack.c.b16 %v4651, %v4635
  %v6380 = vpack.c.b16 %v4652, %v4636
  %v6381 = vpack.c.b16 %v4653, %v4637
  %v6382 = vpack.c.b16 %v4654, %v4638
  %v6383 = vpack.c.b16 %v4655, %v4639
  %v6384 = vpack.c.b16 %v4656, %v4640
  %v6385 = vpack.c.b16 %v4673, %v4657
  %v6386 = vpack.c.b16 %v4674, %v4658
  %v6387 = vpack.c.b16 %v4675, %v4659
  %v6388 = vpack.c.b16 %v4676, %v4660
  %v6389 = vpack.c.b16 %v4677, %v4661
  %v6390 = vpack.c.b16 %v4678, %v4662
  %v6391 = vpack.c.b16 %v4679, %v4663
  %v6392 = vpack.c.b16 %v4680, %v4664
  %v6393 = vpack.c.b16 %v4681, %v4665
  %v6394 = vpack.c.b16 %v4682, %v4666
  %v6395 = vpack.c.b16 %v4683, %v4667
  %v6396 = vpack.c.b16 %v4684, %v4668
  %v6397 = vpack.c.b16 %v4685, %v4669
  %v6398 = vpack.c.b16 %v4686, %v4670
  %v6399 = vpack.c.b16 %v4687, %v4671
  %v6400 = vpack.c.b16 %v4688, %v4672
  %v6401 = vpack.c.b16 %v4705, %v4689
  %v6402 = vpack.c.b16 %v4706, %v4690
  %v6403 = vpack.c.b16 %v4707, %v4691
  %v6404 = vpack.c.b16 %v4708, %v4692
  %v6405 = vpack.c.b16 %v4709, %v4693
  %v6406 = vpack.c.b16 %v4710, %v4694
  %v6407 = vpack.c.b16 %v4711, %v4695
  %v6408 = vpack.c.b16 %v4712, %v4696
  %v6409 = vpack.c.b16 %v4713, %v4697
  %v6410 = vpack.c.b16 %v4714, %v4698
  %v6411 = vpack.c.b16 %v4715, %v4699
  %v6412 = vpack.c.b16 %v4716, %v4700
  %v6413 = vpack.c.b16 %v4717, %v4701
  %v6414 = vpack.c.b16 %v4718, %v4702
  %v6415 = vpack.c.b16 %v4719, %v4703
  %v6416 = vpack.c.b16 %v4720, %v4704
  %v6417 = vpack.c.b16 %v4737, %v4721
  %v6418 = vpack.c.b16 %v4738, %v4722
  %v6419 = vpack.c.b16 %v4739, %v4723
  %v6420 = vpack.c.b16 %v4740, %v4724
  %v6421 = vpack.c.b16 %v4741, %v4725
  %v6422 = vpack.c.b16 %v4742, %v4726
  %v6423 = vpack.c.b16 %v4743, %v4727
  %v6424 = vpack.c.b16 %v4744, %v4728
  %v6425 = vpack.c.b16 %v4745, %v4729
  %v6426 = vpack.c.b16 %v4746, %v4730
  %v6427 = vpack.c.b16 %v4747, %v4731
  %v6428 = vpack.c.b16 %v4748, %v4732
  %v6429 = vpack.c.b16 %v4749, %v4733
  %v6430 = vpack.c.b16 %v4750, %v4734
  %v6431 = vpack.c.b16 %v4751, %v4735
  %v6432 = vpack.c.b16 %v4752, %v4736
  %v6433 = vpack.c.b16 %v4769, %v4753
  %v6434 = vpack.c.b16 %v4770, %v4754
  %v6435 = vpack.c.b16 %v4771, %v4755
  %v6436 = vpack.c.b16 %v4772, %v4756
  %v6437 = vpack.c.b16 %v4773, %v4757
  %v6438 = vpack.c.b16 %v4774, %v4758
  %v6439 = vpack.c.b16 %v4775, %v4759
  %v6440 = vpack.c.b16 %v4776, %v4760
  %v6441 = vpack.c.b16 %v4777, %v4761
  %v6442 = vpack.c.b16 %v4778, %v4762
  %v6443 = vpack.c.b16 %v4779, %v4763
  %v6444 = vpack.c.b16 %v4780, %v4764
  %v6445 = vpack.c.b16 %v4781, %v4765
  %v6446 = vpack.c.b16 %v4782, %v4766
  %v6447 = vpack.c.b16 %v4783, %v4767
  %v6448 = vpack.c.b16 %v4784, %v4768
  %v6449 = vpack.c.b16 %v4801, %v4785
  %v6450 = vpack.c.b16 %v4802, %v4786
  %v6451 = vpack.c.b16 %v4803, %v4787
  %v6452 = vpack.c.b16 %v4804, %v4788
  %v6453 = vpack.c.b16 %v4805, %v4789
  %v6454 = vpack.c.b16 %v4806, %v4790
  %v6455 = vpack.c.b16 %v4807, %v4791
  %v6456 = vpack.c.b16 %v4808, %v4792
  %v6457 = vpack.c.b16 %v4809, %v4793
  %v6458 = vpack.c.b16 %v4810, %v4794
  %v6459 = vpack.c.b16 %v4811, %v4795
  %v6460 = vpack.c.b16 %v4812, %v4796
  %v6461 = vpack.c.b16 %v4813, %v4797
  %v6462 = vpack.c.b16 %v4814, %v4798
  %v6463 = vpack.c.b16 %v4815, %v4799
  %v6464 = vpack.c.b16 %v4816, %v4800
  %v6465 = vpack.c.b16 %v4833, %v4817
  %v6466 = vpack.c.b16 %v4834, %v4818
  %v6467 = vpack.c.b16 %v4835, %v4819
  %v6468 = vpack.c.b16 %v4836, %v4820
  %v6469 = vpack.c.b16 %v4837, %v4821
  %v6470 = vpack.c.b16 %v4838, %v4822
  %v6471 = vpack.c.b16 %v4839, %v4823
  %v6472 = vpack.c.b16 %v4840, %v4824
  %v6473 = vpack.c.b16 %v4841, %v4825
  %v6474 = vpack.c.b16 %v4842, %v4826
  %v6475 = vpack.c.b16 %v4843, %v4827
  %v6476 = vpack.c.b16 %v4844, %v4828
  %v6477 = vpack.c.b16 %v4845, %v4829
  %v6478 = vpack.c.b16 %v4846, %v4830
  %v6479 = vpack.c.b16 %v4847, %v4831
  %v6480 = vpack.c.b16 %v4848, %v4832
  %v6481 = vpack.c.b16 %v4865, %v4849
  %v6482 = vpack.c.b16 %v4866, %v4850
  %v6483 = vpack.c.b16 %v4867, %v4851
  %v6484 = vpack.c.b16 %v4868, %v4852
  %v6485 = vpack.c.b16 %v4869, %v4853
  %v6486 = vpack.c.b16 %v4870, %v4854
  %v6487 = vpack.c.b16 %v4871, %v4855
  %v6488 = vpack.c.b16 %v4872, %v4856
  %v6489 = vpack.c.b16 %v4873, %v4857
  %v6490 = vpack.c.b16 %v4874, %v4858
  %v6491 = vpack.c.b16 %v4875, %v4859
  %v6492 = vpack.c.b16 %v4876, %v4860
  %v6493 = vpack.c.b16 %v4877, %v4861
  %v6494 = vpack.c.b16 %v4878, %v4862
  %v6495 = vpack.c.b16 %v4879, %v4863
  %v6496 = vpack.c.b16 %v4880, %v4864
  %v6497 = vpack.c.b16 %v4897, %v4881
  %v6498 = vpack.c.b16 %v4898, %v4882
  %v6499 = vpack.c.b16 %v4899, %v4883
  %v6500 = vpack.c.b16 %v4900, %v4884
  %v6501 = vpack.c.b16 %v4901, %v4885
  %v6502 = vpack.c.b16 %v4902, %v4886
  %v6503 = vpack.c.b16 %v4903, %v4887
  %v6504 = vpack.c.b16 %v4904, %v4888
  %v6505 = vpack.c.b16 %v4905, %v4889
  %v6506 = vpack.c.b16 %v4906, %v4890
  %v6507 = vpack.c.b16 %v4907, %v4891
  %v6508 = vpack.c.b16 %v4908, %v4892
  %v6509 = vpack.c.b16 %v4909, %v4893
  %v6510 = vpack.c.b16 %v4910, %v4894
  %v6511 = vpack.c.b16 %v4911, %v4895
  %v6512 = vpack.c.b16 %v4912, %v4896
  %v6513 = vpack.c.b16 %v4929, %v4913
  %v6514 = vpack.c.b16 %v4930, %v4914
  %v6515 = vpack.c.b16 %v4931, %v4915
  %v6516 = vpack.c.b16 %v4932, %v4916
  %v6517 = vpack.c.b16 %v4933, %v4917
  %v6518 = vpack.c.b16 %v4934, %v4918
  %v6519 = vpack.c.b16 %v4935, %v4919
  %v6520 = vpack.c.b16 %v4936, %v4920
  %v6521 = vpack.c.b16 %v4937, %v4921
  %v6522 = vpack.c.b16 %v4938, %v4922
  %v6523 = vpack.c.b16 %v4939, %v4923
  %v6524 = vpack.c.b16 %v4940, %v4924
  %v6525 = vpack.c.b16 %v4941, %v4925
  %v6526 = vpack.c.b16 %v4942, %v4926
  %v6527 = vpack.c.b16 %v4943, %v4927
  %v6528 = vpack.c.b16 %v4944, %v4928
  %v6529 = vpack.c.b16 %v4961, %v4945
  %v6530 = vpack.c.b16 %v4962, %v4946
  %v6531 = vpack.c.b16 %v4963, %v4947
  %v6532 = vpack.c.b16 %v4964, %v4948
  %v6533 = vpack.c.b16 %v4965, %v4949
  %v6534 = vpack.c.b16 %v4966, %v4950
  %v6535 = vpack.c.b16 %v4967, %v4951
  %v6536 = vpack.c.b16 %v4968, %v4952
  %v6537 = vpack.c.b16 %v4969, %v4953
  %v6538 = vpack.c.b16 %v4970, %v4954
  %v6539 = vpack.c.b16 %v4971, %v4955
  %v6540 = vpack.c.b16 %v4972, %v4956
  %v6541 = vpack.c.b16 %v4973, %v4957
  %v6542 = vpack.c.b16 %v4974, %v4958
  %v6543 = vpack.c.b16 %v4975, %v4959
  %v6544 = vpack.c.b16 %v4976, %v4960
  %v6545 = vpack.c.b16 %v4993, %v4977
  %v6546 = vpack.c.b16 %v4994, %v4978
  %v6547 = vpack.c.b16 %v4995, %v4979
  %v6548 = vpack.c.b16 %v4996, %v4980
  %v6549 = vpack.c.b16 %v4997, %v4981
  %v6550 = vpack.c.b16 %v4998, %v4982
  %v6551 = vpack.c.b16 %v4999, %v4983
  %v6552 = vpack.c.b16 %v5000, %v4984
  %v6553 = vpack.c.b16 %v5001, %v4985
  %v6554 = vpack.c.b16 %v5002, %v4986
  %v6555 = vpack.c.b16 %v5003, %v4987
  %v6556 = vpack.c.b16 %v5004, %v4988
  %v6557 = vpack.c.b16 %v5005, %v4989
  %v6558 = vpack.c.b16 %v5006, %v4990
  %v6559 = vpack.c.b16 %v5007, %v4991
  %v6560 = vpack.c.b16 %v5008, %v4992
  %v6561 = vpack.c.b16 %v5025, %v5009
  %v6562 = vpack.c.b16 %v5026, %v5010
  %v6563 = vpack.c.b16 %v5027, %v5011
  %v6564 = vpack.c.b16 %v5028, %v5012
  %v6565 = vpack.c.b16 %v5029, %v5013
  %v6566 = vpack.c.b16 %v5030, %v5014
  %v6567 = vpack.c.b16 %v5031, %v5015
  %v6568 = vpack.c.b16 %v5032, %v5016
  %v6569 = vpack.c.b16 %v5033, %v5017
  %v6570 = vpack.c.b16 %v5034, %v5018
  %v6571 = vpack.c.b16 %v5035, %v5019
  %v6572 = vpack.c.b16 %v5036, %v5020
  %v6573 = vpack.c.b16 %v5037, %v5021
  %v6574 = vpack.c.b16 %v5038, %v5022
  %v6575 = vpack.c.b16 %v5039, %v5023
  %v6576 = vpack.c.b16 %v5040, %v5024
  %v6577 = vpack.c.b16 %v5057, %v5041
  %v6578 = vpack.c.b16 %v5058, %v5042
  %v6579 = vpack.c.b16 %v5059, %v5043
  %v6580 = vpack.c.b16 %v5060, %v5044
  %v6581 = vpack.c.b16 %v5061, %v5045
  %v6582 = vpack.c.b16 %v5062, %v5046
  %v6583 = vpack.c.b16 %v5063, %v5047
  %v6584 = vpack.c.b16 %v5064, %v5048
  %v6585 = vpack.c.b16 %v5065, %v5049
  %v6586 = vpack.c.b16 %v5066, %v5050
  %v6587 = vpack.c.b16 %v5067, %v5051
  %v6588 = vpack.c.b16 %v5068, %v5052
  %v6589 = vpack.c.b16 %v5069, %v5053
  %v6590 = vpack.c.b16 %v5070, %v5054
  %v6591 = vpack.c.b16 %v5071, %v5055
  %v6592 = vpack.c.b16 %v5072, %v5056
  %v6593 = vpack.c.b16 %v5089, %v5073
  %v6594 = vpack.c.b16 %v5090, %v5074
  %v6595 = vpack.c.b16 %v5091, %v5075
  %v6596 = vpack.c.b16 %v5092, %v5076
  %v6597 = vpack.c.b16 %v5093, %v5077
  %v6598 = vpack.c.b16 %v5094, %v5078
  %v6599 = vpack.c.b16 %v5095, %v5079
  %v6600 = vpack.c.b16 %v5096, %v5080
  %v6601 = vpack.c.b16 %v5097, %v5081
  %v6602 = vpack.c.b16 %v5098, %v5082
  %v6603 = vpack.c.b16 %v5099, %v5083
  %v6604 = vpack.c.b16 %v5100, %v5084
  %v6605 = vpack.c.b16 %v5101, %v5085
  %v6606 = vpack.c.b16 %v5102, %v5086
  %v6607 = vpack.c.b16 %v5103, %v5087
  %v6608 = vpack.c.b16 %v5104, %v5088
  %v6609 = vpack.c.b16 %v5121, %v5105
  %v6610 = vpack.c.b16 %v5122, %v5106
  %v6611 = vpack.c.b16 %v5123, %v5107
  %v6612 = vpack.c.b16 %v5124, %v5108
  %v6613 = vpack.c.b16 %v5125, %v5109
  %v6614 = vpack.c.b16 %v5126, %v5110
  %v6615 = vpack.c.b16 %v5127, %v5111
  %v6616 = vpack.c.b16 %v5128, %v5112
  %v6617 = vpack.c.b16 %v5129, %v5113
  %v6618 = vpack.c.b16 %v5130, %v5114
  %v6619 = vpack.c.b16 %v5131, %v5115
  %v6620 = vpack.c.b16 %v5132, %v5116
  %v6621 = vpack.c.b16 %v5133, %v5117
  %v6622 = vpack.c.b16 %v5134, %v5118
  %v6623 = vpack.c.b16 %v5135, %v5119
  %v6624 = vpack.c.b16 %v5136, %v5120
  %v6625 = vpack.c.b16 %v5153, %v5137
  %v6626 = vpack.c.b16 %v5154, %v5138
  %v6627 = vpack.c.b16 %v5155, %v5139
  %v6628 = vpack.c.b16 %v5156, %v5140
  %v6629 = vpack.c.b16 %v5157, %v5141
  %v6630 = vpack.c.b16 %v5158, %v5142
  %v6631 = vpack.c.b16 %v5159, %v5143
  %v6632 = vpack.c.b16 %v5160, %v5144
  %v6633 = vpack.c.b16 %v5161, %v5145
  %v6634 = vpack.c.b16 %v5162, %v5146
  %v6635 = vpack.c.b16 %v5163, %v5147
  %v6636 = vpack.c.b16 %v5164, %v5148
  %v6637 = vpack.c.b16 %v5165, %v5149
  %v6638 = vpack.c.b16 %v5166, %v5150
  %v6639 = vpack.c.b16 %v5167, %v5151
  %v6640 = vpack.c.b16 %v5168, %v5152
  %v6641 = vpack.c.b16 %v5185, %v5169
  %v6642 = vpack.c.b16 %v5186, %v5170
  %v6643 = vpack.c.b16 %v5187, %v5171
  %v6644 = vpack.c.b16 %v5188, %v5172
  %v6645 = vpack.c.b16 %v5189, %v5173
  %v6646 = vpack.c.b16 %v5190, %v5174
  %v6647 = vpack.c.b16 %v5191, %v5175
  %v6648 = vpack.c.b16 %v5192, %v5176
  %v6649 = vpack.c.b16 %v5193, %v5177
  %v6650 = vpack.c.b16 %v5194, %v5178
  %v6651 = vpack.c.b16 %v5195, %v5179
  %v6652 = vpack.c.b16 %v5196, %v5180
  %v6653 = vpack.c.b16 %v5197, %v5181
  %v6654 = vpack.c.b16 %v5198, %v5182
  %v6655 = vpack.c.b16 %v5199, %v5183
  %v6656 = vpack.c.b16 %v5200, %v5184
  %v6657 = vpack.c.b16 %v5217, %v5201
  %v6658 = vpack.c.b16 %v5218, %v5202
  %v6659 = vpack.c.b16 %v5219, %v5203
  %v6660 = vpack.c.b16 %v5220, %v5204
  %v6661 = vpack.c.b16 %v5221, %v5205
  %v6662 = vpack.c.b16 %v5222, %v5206
  %v6663 = vpack.c.b16 %v5223, %v5207
  %v6664 = vpack.c.b16 %v5224, %v5208
  %v6665 = vpack.c.b16 %v5225, %v5209
  %v6666 = vpack.c.b16 %v5226, %v5210
  %v6667 = vpack.c.b16 %v5227, %v5211
  %v6668 = vpack.c.b16 %v5228, %v5212
  %v6669 = vpack.c.b16 %v5229, %v5213
  %v6670 = vpack.c.b16 %v5230, %v5214
  %v6671 = vpack.c.b16 %v5231, %v5215
  %v6672 = vpack.c.b16 %v5232, %v5216
  %v6673 = vpack.c.b16 %v5249, %v5233
  %v6674 = vpack.c.b16 %v5250, %v5234
  %v6675 = vpack.c.b16 %v5251, %v5235
  %v6676 = vpack.c.b16 %v5252, %v5236
  %v6677 = vpack.c.b16 %v5253, %v5237
  %v6678 = vpack.c.b16 %v5254, %v5238
  %v6679 = vpack.c.b16 %v5255, %v5239
  %v6680 = vpack.c.b16 %v5256, %v5240
  %v6681 = vpack.c.b16 %v5257, %v5241
  %v6682 = vpack.c.b16 %v5258, %v5242
  %v6683 = vpack.c.b16 %v5259, %v5243
  %v6684 = vpack.c.b16 %v5260, %v5244
  %v6685 = vpack.c.b16 %v5261, %v5245
  %v6686 = vpack.c.b16 %v5262, %v5246
  %v6687 = vpack.c.b16 %v5263, %v5247
  %v6688 = vpack.c.b16 %v5264, %v5248
  %v6689 = vpack.c.b16 %v5281, %v5265
  %v6690 = vpack.c.b16 %v5282, %v5266
  %v6691 = vpack.c.b16 %v5283, %v5267
  %v6692 = vpack.c.b16 %v5284, %v5268
  %v6693 = vpack.c.b16 %v5285, %v5269
  %v6694 = vpack.c.b16 %v5286, %v5270
  %v6695 = vpack.c.b16 %v5287, %v5271
  %v6696 = vpack.c.b16 %v5288, %v5272
  %v6697 = vpack.c.b16 %v5289, %v5273
  %v6698 = vpack.c.b16 %v5290, %v5274
  %v6699 = vpack.c.b16 %v5291, %v5275
  %v6700 = vpack.c.b16 %v5292, %v5276
  %v6701 = vpack.c.b16 %v5293, %v5277
  %v6702 = vpack.c.b16 %v5294, %v5278
  %v6703 = vpack.c.b16 %v5295, %v5279
  %v6704 = vpack.c.b16 %v5296, %v5280
  %v6705 = vpack.c.b16 %v5313, %v5297
  %v6706 = vpack.c.b16 %v5314, %v5298
  %v6707 = vpack.c.b16 %v5315, %v5299
  %v6708 = vpack.c.b16 %v5316, %v5300
  %v6709 = vpack.c.b16 %v5317, %v5301
  %v6710 = vpack.c.b16 %v5318, %v5302
  %v6711 = vpack.c.b16 %v5319, %v5303
  %v6712 = vpack.c.b16 %v5320, %v5304
  %v6713 = vpack.c.b16 %v5321, %v5305
  %v6714 = vpack.c.b16 %v5322, %v5306
  %v6715 = vpack.c.b16 %v5323, %v5307
  %v6716 = vpack.c.b16 %v5324, %v5308
  %v6717 = vpack.c.b16 %v5325, %v5309
  %v6718 = vpack.c.b16 %v5326, %v5310
  %v6719 = vpack.c.b16 %v5327, %v5311
  %v6720 = vpack.c.b16 %v5328, %v5312
  %v6721 = vpack.c.b16 %v5345, %v5329
  %v6722 = vpack.c.b16 %v5346, %v5330
  %v6723 = vpack.c.b16 %v5347, %v5331
  %v6724 = vpack.c.b16 %v5348, %v5332
  %v6725 = vpack.c.b16 %v5349, %v5333
  %v6726 = vpack.c.b16 %v5350, %v5334
  %v6727 = vpack.c.b16 %v5351, %v5335
  %v6728 = vpack.c.b16 %v5352, %v5336
  %v6729 = vpack.c.b16 %v5353, %v5337
  %v6730 = vpack.c.b16 %v5354, %v5338
  %v6731 = vpack.c.b16 %v5355, %v5339
  %v6732 = vpack.c.b16 %v5356, %v5340
  %v6733 = vpack.c.b16 %v5357, %v5341
  %v6734 = vpack.c.b16 %v5358, %v5342
  %v6735 = vpack.c.b16 %v5359, %v5343
  %v6736 = vpack.c.b16 %v5360, %v5344
  %v6737 = vpack.c.b16 %v5377, %v5361
  %v6738 = vpack.c.b16 %v5378, %v5362
  %v6739 = vpack.c.b16 %v5379, %v5363
  %v6740 = vpack.c.b16 %v5380, %v5364
  %v6741 = vpack.c.b16 %v5381, %v5365
  %v6742 = vpack.c.b16 %v5382, %v5366
  %v6743 = vpack.c.b16 %v5383, %v5367
  %v6744 = vpack.c.b16 %v5384, %v5368
  %v6745 = vpack.c.b16 %v5385, %v5369
  %v6746 = vpack.c.b16 %v5386, %v5370
  %v6747 = vpack.c.b16 %v5387, %v5371
  %v6748 = vpack.c.b16 %v5388, %v5372
  %v6749 = vpack.c.b16 %v5389, %v5373
  %v6750 = vpack.c.b16 %v5390, %v5374
  %v6751 = vpack.c.b16 %v5391, %v5375
  %v6752 = vpack.c.b16 %v5392, %v5376
  %v6753 = vpack.c.b16 %v5409, %v5393
  %v6754 = vpack.c.b16 %v5410, %v5394
  %v6755 = vpack.c.b16 %v5411, %v5395
  %v6756 = vpack.c.b16 %v5412, %v5396
  %v6757 = vpack.c.b16 %v5413, %v5397
  %v6758 = vpack.c.b16 %v5414, %v5398
  %v6759 = vpack.c.b16 %v5415, %v5399
  %v6760 = vpack.c.b16 %v5416, %v5400
  %v6761 = vpack.c.b16 %v5417, %v5401
  %v6762 = vpack.c.b16 %v5418, %v5402
  %v6763 = vpack.c.b16 %v5419, %v5403
  %v6764 = vpack.c.b16 %v5420, %v5404
  %v6765 = vpack.c.b16 %v5421, %v5405
  %v6766 = vpack.c.b16 %v5422, %v5406
  %v6767 = vpack.c.b16 %v5423, %v5407
  %v6768 = vpack.c.b16 %v5424, %v5408
  %vm8113 = vcmask 523264
  %v8115 = vsel %vm8113, %v48, 0
  %8117 = vmatprep.subr.bf16.mxu0 %v5426
  %8118 = vmatpush1.bf16.msra.mxu0 %v5425
  %8119 = vmatprep.subr.bf16.mxu0 %v5442
  %8120 = vmatpush1.bf16.msra.mxu0 %v5441
  %8121 = vmatprep.subr.bf16.mxu0 %v5458
  %8122 = vmatpush1.bf16.msra.mxu0 %v5457
  %8123 = vmatprep.subr.bf16.mxu0 %v5474
  %8124 = vmatpush1.bf16.msra.mxu0 %v5473
  %8125 = vmatprep.subr.bf16.mxu0 %v5490
  %8126 = vmatpush1.bf16.msra.mxu0 %v5489
  %8127 = vmatprep.subr.bf16.mxu0 %v5506
  %8128 = vmatpush1.bf16.msra.mxu0 %v5505
  %8129 = vmatprep.subr.bf16.mxu0 %v5522
  %8130 = vmatpush1.bf16.msra.mxu0 %v5521
  %8131 = vmatprep.subr.bf16.mxu0 %v5538
  %8132 = vmatpush1.bf16.msra.mxu0 %v5537
  %8133 = vmatprep.subr.bf16.mxu0 %v5554
  %8134 = vmatpush1.bf16.msra.mxu0 %v5553
  %8135 = vmatprep.subr.bf16.mxu0 %v5570
  %8136 = vmatpush1.bf16.msra.mxu0 %v5569
  %8137 = vmatprep.subr.bf16.mxu0 %v5586
  %8138 = vmatpush1.bf16.msra.mxu0 %v5585
  %8139 = vmatprep.subr.bf16.mxu0 %v5602
  %8140 = vmatpush1.bf16.msra.mxu0 %v5601
  %8141 = vmatprep.subr.bf16.mxu0 %v5618
  %8142 = vmatpush1.bf16.msra.mxu0 %v5617
  %8143 = vmatprep.subr.bf16.mxu0 %v5634
  %8144 = vmatpush1.bf16.msra.mxu0 %v5633
  %8145 = vmatprep.subr.bf16.mxu0 %v5650
  %8146 = vmatpush1.bf16.msra.mxu0 %v5649
  %8147 = vmatprep.subr.bf16.mxu0 %v5666
  %8148 = vmatpush1.bf16.msra.mxu0 %v5665
  %8149 = vmatprep.mubr.bf16.mxu0 %v39
  %8150 = vmatmul.mubr.bf16.gmra.mrb[0].mxu0 %v38
  %v8151 = vpop.f32.mrb[0].mxu0
  %v8152 = vadd.f32 0.0, %v8151
  %v8153 = vpop.f32.mrb[0].mxu0
  %v8154 = vadd.f32 0.0, %v8153
  %v8155 = vpop.f32.mrb[0].mxu0
  %v8156 = vpop.f32.mrb[0].mxu0
  %8157 = vdwg.mxu0
  %8158 = vmatprep.subr.bf16.mxu0 %v5682
  %8159 = vmatpush1.bf16.msra.mxu0 %v5681
  %8160 = vmatprep.subr.bf16.mxu0 %v5698
  %8161 = vmatpush1.bf16.msra.mxu0 %v5697
  %8162 = vmatprep.subr.bf16.mxu0 %v5714
  %8163 = vmatpush1.bf16.msra.mxu0 %v5713
  %8164 = vmatprep.subr.bf16.mxu0 %v5730
  %8165 = vmatpush1.bf16.msra.mxu0 %v5729
  %8166 = vmatprep.subr.bf16.mxu0 %v5746
  %8167 = vmatpush1.bf16.msra.mxu0 %v5745
  %8168 = vmatprep.subr.bf16.mxu0 %v5762
  %8169 = vmatpush1.bf16.msra.mxu0 %v5761
  %8170 = vmatprep.subr.bf16.mxu0 %v5778
  %8171 = vmatpush1.bf16.msra.mxu0 %v5777
  %8172 = vmatprep.subr.bf16.mxu0 %v5794
  %8173 = vmatpush1.bf16.msra.mxu0 %v5793
  %8174 = vmatprep.subr.bf16.mxu0 %v5810
  %8175 = vmatpush1.bf16.msra.mxu0 %v5809
  %8176 = vmatprep.subr.bf16.mxu0 %v5826
  %8177 = vmatpush1.bf16.msra.mxu0 %v5825
  %8178 = vmatprep.subr.bf16.mxu0 %v5842
  %8179 = vmatpush1.bf16.msra.mxu0 %v5841
  %8180 = vmatprep.subr.bf16.mxu0 %v5858
  %8181 = vmatpush1.bf16.msra.mxu0 %v5857
  %8182 = vmatprep.subr.bf16.mxu0 %v5874
  %8183 = vmatpush1.bf16.msra.mxu0 %v5873
  %8184 = vmatprep.subr.bf16.mxu0 %v5890
  %8185 = vmatpush1.bf16.msra.mxu0 %v5889
  %8186 = vmatprep.subr.bf16.mxu0 %v5906
  %8187 = vmatpush1.bf16.msra.mxu0 %v5905
  %8188 = vmatprep.subr.bf16.mxu0 %v5922
  %8189 = vmatpush1.bf16.msra.mxu0 %v5921
  %8190 = vmatprep.mubr.bf16.mxu0 %v41
  %8191 = vmatmul.mubr.bf16.gmra.mrb[0].mxu0 %v40
  %v8192 = vpop.f32.mrb[0].mxu0
  %v8193 = vadd.f32 %v8152, %v8192
  %v8194 = vpop.f32.mrb[0].mxu0
  %v8195 = vadd.f32 %v8154, %v8194
  %v8196 = vpop.f32.mrb[0].mxu0
  %v8197 = vpop.f32.mrb[0].mxu0
  %8198 = vdwg.mxu0
  %8199 = vmatprep.subr.bf16.mxu0 %v5938
  %8200 = vmatpush1.bf16.msra.mxu0 %v5937
  %8201 = vmatprep.subr.bf16.mxu0 %v5954
  %8202 = vmatpush1.bf16.msra.mxu0 %v5953
  %8203 = vmatprep.subr.bf16.mxu0 %v5970
  %8204 = vmatpush1.bf16.msra.mxu0 %v5969
  %8205 = vmatprep.subr.bf16.mxu0 %v5986
  %8206 = vmatpush1.bf16.msra.mxu0 %v5985
  %8207 = vmatprep.subr.bf16.mxu0 %v6002
  %8208 = vmatpush1.bf16.msra.mxu0 %v6001
  %8209 = vmatprep.subr.bf16.mxu0 %v6018
  %8210 = vmatpush1.bf16.msra.mxu0 %v6017
  %8211 = vmatprep.subr.bf16.mxu0 %v6034
  %8212 = vmatpush1.bf16.msra.mxu0 %v6033
  %8213 = vmatprep.subr.bf16.mxu0 %v6050
  %8214 = vmatpush1.bf16.msra.mxu0 %v6049
  %8215 = vmatprep.subr.bf16.mxu0 %v6066
  %8216 = vmatpush1.bf16.msra.mxu0 %v6065
  %8217 = vmatprep.subr.bf16.mxu0 %v6082
  %8218 = vmatpush1.bf16.msra.mxu0 %v6081
  %8219 = vmatprep.subr.bf16.mxu0 %v6098
  %8220 = vmatpush1.bf16.msra.mxu0 %v6097
  %8221 = vmatprep.subr.bf16.mxu0 %v6114
  %8222 = vmatpush1.bf16.msra.mxu0 %v6113
  %8223 = vmatprep.subr.bf16.mxu0 %v6130
  %8224 = vmatpush1.bf16.msra.mxu0 %v6129
  %8225 = vmatprep.subr.bf16.mxu0 %v6146
  %8226 = vmatpush1.bf16.msra.mxu0 %v6145
  %8227 = vmatprep.subr.bf16.mxu0 %v6162
  %8228 = vmatpush1.bf16.msra.mxu0 %v6161
  %8229 = vmatprep.subr.bf16.mxu0 %v6178
  %8230 = vmatpush1.bf16.msra.mxu0 %v6177
  %8231 = vmatprep.mubr.bf16.mxu0 %v43
  %8232 = vmatmul.mubr.bf16.gmra.mrb[0].mxu0 %v42
  %v8233 = vpop.f32.mrb[0].mxu0
  %v8234 = vadd.f32 %v8193, %v8233
  %v8235 = vpop.f32.mrb[0].mxu0
  %v8236 = vadd.f32 %v8195, %v8235
  %v8237 = vpop.f32.mrb[0].mxu0
  %v8238 = vpop.f32.mrb[0].mxu0
  %8239 = vdwg.mxu0
  %8240 = vmatprep.subr.bf16.mxu0 %v6194
  %8241 = vmatpush1.bf16.msra.mxu0 %v6193
  %8242 = vmatprep.subr.bf16.mxu0 %v6210
  %8243 = vmatpush1.bf16.msra.mxu0 %v6209
  %8244 = vmatprep.subr.bf16.mxu0 %v6226
  %8245 = vmatpush1.bf16.msra.mxu0 %v6225
  %8246 = vmatprep.subr.bf16.mxu0 %v6242
  %8247 = vmatpush1.bf16.msra.mxu0 %v6241
  %8248 = vmatprep.subr.bf16.mxu0 %v6258
  %8249 = vmatpush1.bf16.msra.mxu0 %v6257
  %8250 = vmatprep.subr.bf16.mxu0 %v6274
  %8251 = vmatpush1.bf16.msra.mxu0 %v6273
  %8252 = vmatprep.subr.bf16.mxu0 %v6290
  %8253 = vmatpush1.bf16.msra.mxu0 %v6289
  %8254 = vmatprep.subr.bf16.mxu0 %v6306
  %8255 = vmatpush1.bf16.msra.mxu0 %v6305
  %8256 = vmatprep.subr.bf16.mxu0 %v6322
  %8257 = vmatpush1.bf16.msra.mxu0 %v6321
  %8258 = vmatprep.subr.bf16.mxu0 %v6338
  %8259 = vmatpush1.bf16.msra.mxu0 %v6337
  %8260 = vmatprep.subr.bf16.mxu0 %v6354
  %8261 = vmatpush1.bf16.msra.mxu0 %v6353
  %8262 = vmatprep.subr.bf16.mxu0 %v6370
  %8263 = vmatpush1.bf16.msra.mxu0 %v6369
  %8264 = vmatprep.subr.bf16.mxu0 %v6386
  %8265 = vmatpush1.bf16.msra.mxu0 %v6385
  %8266 = vmatprep.subr.bf16.mxu0 %v6402
  %8267 = vmatpush1.bf16.msra.mxu0 %v6401
  %8268 = vmatprep.subr.bf16.mxu0 %v6418
  %8269 = vmatpush1.bf16.msra.mxu0 %v6417
  %8270 = vmatprep.subr.bf16.mxu0 %v6434
  %8271 = vmatpush1.bf16.msra.mxu0 %v6433
  %8272 = vmatprep.mubr.bf16.mxu0 %v45
  %8273 = vmatmul.mubr.bf16.gmra.mrb[0].mxu0 %v44
  %v8274 = vpop.f32.mrb[0].mxu0
  %v8275 = vadd.f32 %v8234, %v8274
  %v8276 = vpop.f32.mrb[0].mxu0
  %v8277 = vadd.f32 %v8236, %v8276
  %v8278 = vpop.f32.mrb[0].mxu0
  %v8279 = vpop.f32.mrb[0].mxu0
  %8280 = vdwg.mxu0
  %8281 = vmatprep.subr.bf16.mxu0 %v6450
  %8282 = vmatpush1.bf16.msra.mxu0 %v6449
  %8283 = vmatprep.subr.bf16.mxu0 %v6466
  %8284 = vmatpush1.bf16.msra.mxu0 %v6465
  %8285 = vmatprep.subr.bf16.mxu0 %v6482
  %8286 = vmatpush1.bf16.msra.mxu0 %v6481
  %8287 = vmatprep.subr.bf16.mxu0 %v6498
  %8288 = vmatpush1.bf16.msra.mxu0 %v6497
  %8289 = vmatprep.subr.bf16.mxu0 %v6514
  %8290 = vmatpush1.bf16.msra.mxu0 %v6513
  %8291 = vmatprep.subr.bf16.mxu0 %v6530
  %8292 = vmatpush1.bf16.msra.mxu0 %v6529
  %8293 = vmatprep.subr.bf16.mxu0 %v6546
  %8294 = vmatpush1.bf16.msra.mxu0 %v6545
  %8295 = vmatprep.subr.bf16.mxu0 %v6562
  %8296 = vmatpush1.bf16.msra.mxu0 %v6561
  %8297 = vmatprep.subr.bf16.mxu0 %v6578
  %8298 = vmatpush1.bf16.msra.mxu0 %v6577
  %8299 = vmatprep.subr.bf16.mxu0 %v6594
  %8300 = vmatpush1.bf16.msra.mxu0 %v6593
  %8301 = vmatprep.subr.bf16.mxu0 %v6610
  %8302 = vmatpush1.bf16.msra.mxu0 %v6609
  %8303 = vmatprep.subr.bf16.mxu0 %v6626
  %8304 = vmatpush1.bf16.msra.mxu0 %v6625
  %8305 = vmatprep.subr.bf16.mxu0 %v6642
  %8306 = vmatpush1.bf16.msra.mxu0 %v6641
  %8307 = vmatprep.subr.bf16.mxu0 %v6658
  %8308 = vmatpush1.bf16.msra.mxu0 %v6657
  %8309 = vmatprep.subr.bf16.mxu0 %v6674
  %8310 = vmatpush1.bf16.msra.mxu0 %v6673
  %8311 = vmatprep.subr.bf16.mxu0 %v6690
  %8312 = vmatpush1.bf16.msra.mxu0 %v6689
  %8313 = vmatprep.mubr.bf16.mxu0 %v47
  %8314 = vmatmul.mubr.bf16.gmra.mrb[0].mxu0 %v46
  %v8315 = vpop.f32.mrb[0].mxu0
  %v8316 = vadd.f32 %v8275, %v8315
  %v8317 = vpop.f32.mrb[0].mxu0
  %v8318 = vadd.f32 %v8277, %v8317
  %v8319 = vpop.f32.mrb[0].mxu0
  %v8320 = vpop.f32.mrb[0].mxu0
  %8321 = vdwg.mxu0
  %8322 = vmatprep.subr.bf16.mxu0 %v6706
  %8323 = vmatpush1.bf16.msra.mxu0 %v6705
  %8324 = vmatprep.subr.bf16.mxu0 %v6722
  %8325 = vmatpush1.bf16.msra.mxu0 %v6721
  %8326 = vmatprep.subr.bf16.mxu0 %v6738
  %8327 = vmatpush1.bf16.msra.mxu0 %v6737
  %8328 = vmatprep.subr.bf16.mxu0 %v6754
  %8329 = vmatpush1.bf16.msra.mxu0 %v6753
  %8330 = vmatprep.subr.bf16.mxu0 0
  %8331 = vmatpush1.bf16.msra.mxu0 0
  %8332 = vmatprep.subr.bf16.mxu0 0
  %8333 = vmatpush1.bf16.msra.mxu0 0
  %8334 = vmatprep.subr.bf16.mxu0 0
  %8335 = vmatpush1.bf16.msra.mxu0 0
  %8336 = vmatprep.subr.bf16.mxu0 0
  %8337 = vmatpush1.bf16.msra.mxu0 0
  %8338 = vmatprep.subr.bf16.mxu0 0
  %8339 = vmatpush1.bf16.msra.mxu0 0
  %8340 = vmatprep.subr.bf16.mxu0 0
  %8341 = vmatpush1.bf16.msra.mxu0 0
  %8342 = vmatprep.subr.bf16.mxu0 0
  %8343 = vmatpush1.bf16.msra.mxu0 0
  %8344 = vmatprep.subr.bf16.mxu0 0
  %8345 = vmatpush1.bf16.msra.mxu0 0
  %8346 = vmatprep.subr.bf16.mxu0 0
  %8347 = vmatpush1.bf16.msra.mxu0 0
  %8348 = vmatprep.subr.bf16.mxu0 0
  %8349 = vmatpush1.bf16.msra.mxu0 0
  %8350 = vmatprep.subr.bf16.mxu0 0
  %8351 = vmatpush1.bf16.msra.mxu0 0
  %8352 = vmatprep.subr.bf16.mxu0 0
  %8353 = vmatpush1.bf16.msra.mxu0 0
  %8354 = vmatprep.mubr.bf16.mxu0 0
  %8355 = vmatmul.mubr.bf16.gmra.mrb[0].mxu0 %v8115
  %v8356 = vpop.f32.mrb[0].mxu0
  %v8357 = vadd.f32 %v8316, %v8356
  %v8358 = vpop.f32.mrb[0].mxu0
  %v8359 = vadd.f32 %v8318, %v8358
  %v8360 = vpop.f32.mrb[0].mxu0
  %v8361 = vpop.f32.mrb[0].mxu0
  %8362 = vdwg.mxu0
  %8363 = vmatprep.subr.bf16.mxu0 %v5428
  %8364 = vmatpush1.bf16.msra.mxu0 %v5427
  %8365 = vmatprep.subr.bf16.mxu0 %v5444
  %8366 = vmatpush1.bf16.msra.mxu0 %v5443
  %8367 = vmatprep.subr.bf16.mxu0 %v5460
  %8368 = vmatpush1.bf16.msra.mxu0 %v5459
  %8369 = vmatprep.subr.bf16.mxu0 %v5476
  %8370 = vmatpush1.bf16.msra.mxu0 %v5475
  %8371 = vmatprep.subr.bf16.mxu0 %v5492
  %8372 = vmatpush1.bf16.msra.mxu0 %v5491
  %8373 = vmatprep.subr.bf16.mxu0 %v5508
  %8374 = vmatpush1.bf16.msra.mxu0 %v5507
  %8375 = vmatprep.subr.bf16.mxu0 %v5524
  %8376 = vmatpush1.bf16.msra.mxu0 %v5523
  %8377 = vmatprep.subr.bf16.mxu0 %v5540
  %8378 = vmatpush1.bf16.msra.mxu0 %v5539
  %8379 = vmatprep.subr.bf16.mxu0 %v5556
  %8380 = vmatpush1.bf16.msra.mxu0 %v5555
  %8381 = vmatprep.subr.bf16.mxu0 %v5572
  %8382 = vmatpush1.bf16.msra.mxu0 %v5571
  %8383 = vmatprep.subr.bf16.mxu0 %v5588
  %8384 = vmatpush1.bf16.msra.mxu0 %v5587
  %8385 = vmatprep.subr.bf16.mxu0 %v5604
  %8386 = vmatpush1.bf16.msra.mxu0 %v5603
  %8387 = vmatprep.subr.bf16.mxu0 %v5620
  %8388 = vmatpush1.bf16.msra.mxu0 %v5619
  %8389 = vmatprep.subr.bf16.mxu0 %v5636
  %8390 = vmatpush1.bf16.msra.mxu0 %v5635
  %8391 = vmatprep.subr.bf16.mxu0 %v5652
  %8392 = vmatpush1.bf16.msra.mxu0 %v5651
  %8393 = vmatprep.subr.bf16.mxu0 %v5668
  %8394 = vmatpush1.bf16.msra.mxu0 %v5667
  %8395 = vmatprep.mubr.bf16.mxu0 %v39
  %8396 = vmatmul.mubr.bf16.gmra.mrb[0].mxu0 %v38
  %v8397 = vpop.f32.mrb[0].mxu0
  %v8398 = vadd.f32 0.0, %v8397
  %v8399 = vpop.f32.mrb[0].mxu0
  %v8400 = vadd.f32 0.0, %v8399
  %v8401 = vpop.f32.mrb[0].mxu0
  %v8402 = vpop.f32.mrb[0].mxu0
  %8403 = vdwg.mxu0
  %8404 = vmatprep.subr.bf16.mxu0 %v5684
  %8405 = vmatpush1.bf16.msra.mxu0 %v5683
  %8406 = vmatprep.subr.bf16.mxu0 %v5700
  %8407 = vmatpush1.bf16.msra.mxu0 %v5699
  %8408 = vmatprep.subr.bf16.mxu0 %v5716
  %8409 = vmatpush1.bf16.msra.mxu0 %v5715
  %8410 = vmatprep.subr.bf16.mxu0 %v5732
  %8411 = vmatpush1.bf16.msra.mxu0 %v5731
  %8412 = vmatprep.subr.bf16.mxu0 %v5748
  %8413 = vmatpush1.bf16.msra.mxu0 %v5747
  %8414 = vmatprep.subr.bf16.mxu0 %v5764
  %8415 = vmatpush1.bf16.msra.mxu0 %v5763
  %8416 = vmatprep.subr.bf16.mxu0 %v5780
  %8417 = vmatpush1.bf16.msra.mxu0 %v5779
  %8418 = vmatprep.subr.bf16.mxu0 %v5796
  %8419 = vmatpush1.bf16.msra.mxu0 %v5795
  %8420 = vmatprep.subr.bf16.mxu0 %v5812
  %8421 = vmatpush1.bf16.msra.mxu0 %v5811
  %8422 = vmatprep.subr.bf16.mxu0 %v5828
  %8423 = vmatpush1.bf16.msra.mxu0 %v5827
  %8424 = vmatprep.subr.bf16.mxu0 %v5844
  %8425 = vmatpush1.bf16.msra.mxu0 %v5843
  %8426 = vmatprep.subr.bf16.mxu0 %v5860
  %8427 = vmatpush1.bf16.msra.mxu0 %v5859
  %8428 = vmatprep.subr.bf16.mxu0 %v5876
  %8429 = vmatpush1.bf16.msra.mxu0 %v5875
  %8430 = vmatprep.subr.bf16.mxu0 %v5892
  %8431 = vmatpush1.bf16.msra.mxu0 %v5891
  %8432 = vmatprep.subr.bf16.mxu0 %v5908
  %8433 = vmatpush1.bf16.msra.mxu0 %v5907
  %8434 = vmatprep.subr.bf16.mxu0 %v5924
  %8435 = vmatpush1.bf16.msra.mxu0 %v5923
  %8436 = vmatprep.mubr.bf16.mxu0 %v41
  %8437 = vmatmul.mubr.bf16.gmra.mrb[0].mxu0 %v40
  %v8438 = vpop.f32.mrb[0].mxu0
  %v8439 = vadd.f32 %v8398, %v8438
  %v8440 = vpop.f32.mrb[0].mxu0
  %v8441 = vadd.f32 %v8400, %v8440
  %v8442 = vpop.f32.mrb[0].mxu0
  %v8443 = vpop.f32.mrb[0].mxu0
  %8444 = vdwg.mxu0
  %8445 = vmatprep.subr.bf16.mxu0 %v5940
  %8446 = vmatpush1.bf16.msra.mxu0 %v5939
  %8447 = vmatprep.subr.bf16.mxu0 %v5956
  %8448 = vmatpush1.bf16.msra.mxu0 %v5955
  %8449 = vmatprep.subr.bf16.mxu0 %v5972
  %8450 = vmatpush1.bf16.msra.mxu0 %v5971
  %8451 = vmatprep.subr.bf16.mxu0 %v5988
  %8452 = vmatpush1.bf16.msra.mxu0 %v5987
  %8453 = vmatprep.subr.bf16.mxu0 %v6004
  %8454 = vmatpush1.bf16.msra.mxu0 %v6003
  %8455 = vmatprep.subr.bf16.mxu0 %v6020
  %8456 = vmatpush1.bf16.msra.mxu0 %v6019
  %8457 = vmatprep.subr.bf16.mxu0 %v6036
  %8458 = vmatpush1.bf16.msra.mxu0 %v6035
  %8459 = vmatprep.subr.bf16.mxu0 %v6052
  %8460 = vmatpush1.bf16.msra.mxu0 %v6051
  %8461 = vmatprep.subr.bf16.mxu0 %v6068
  %8462 = vmatpush1.bf16.msra.mxu0 %v6067
  %8463 = vmatprep.subr.bf16.mxu0 %v6084
  %8464 = vmatpush1.bf16.msra.mxu0 %v6083
  %8465 = vmatprep.subr.bf16.mxu0 %v6100
  %8466 = vmatpush1.bf16.msra.mxu0 %v6099
  %8467 = vmatprep.subr.bf16.mxu0 %v6116
  %8468 = vmatpush1.bf16.msra.mxu0 %v6115
  %8469 = vmatprep.subr.bf16.mxu0 %v6132
  %8470 = vmatpush1.bf16.msra.mxu0 %v6131
  %8471 = vmatprep.subr.bf16.mxu0 %v6148
  %8472 = vmatpush1.bf16.msra.mxu0 %v6147
  %8473 = vmatprep.subr.bf16.mxu0 %v6164
  %8474 = vmatpush1.bf16.msra.mxu0 %v6163
  %8475 = vmatprep.subr.bf16.mxu0 %v6180
  %8476 = vmatpush1.bf16.msra.mxu0 %v6179
  %8477 = vmatprep.mubr.bf16.mxu0 %v43
  %8478 = vmatmul.mubr.bf16.gmra.mrb[0].mxu0 %v42
  %v8479 = vpop.f32.mrb[0].mxu0
  %v8480 = vadd.f32 %v8439, %v8479
  %v8481 = vpop.f32.mrb[0].mxu0
  %v8482 = vadd.f32 %v8441, %v8481
  %v8483 = vpop.f32.mrb[0].mxu0
  %v8484 = vpop.f32.mrb[0].mxu0
  %8485 = vdwg.mxu0
  %8486 = vmatprep.subr.bf16.mxu0 %v6196
  %8487 = vmatpush1.bf16.msra.mxu0 %v6195
  %8488 = vmatprep.subr.bf16.mxu0 %v6212
  %8489 = vmatpush1.bf16.msra.mxu0 %v6211
  %8490 = vmatprep.subr.bf16.mxu0 %v6228
  %8491 = vmatpush1.bf16.msra.mxu0 %v6227
  %8492 = vmatprep.subr.bf16.mxu0 %v6244
  %8493 = vmatpush1.bf16.msra.mxu0 %v6243
  %8494 = vmatprep.subr.bf16.mxu0 %v6260
  %8495 = vmatpush1.bf16.msra.mxu0 %v6259
  %8496 = vmatprep.subr.bf16.mxu0 %v6276
  %8497 = vmatpush1.bf16.msra.mxu0 %v6275
  %8498 = vmatprep.subr.bf16.mxu0 %v6292
  %8499 = vmatpush1.bf16.msra.mxu0 %v6291
  %8500 = vmatprep.subr.bf16.mxu0 %v6308
  %8501 = vmatpush1.bf16.msra.mxu0 %v6307
  %8502 = vmatprep.subr.bf16.mxu0 %v6324
  %8503 = vmatpush1.bf16.msra.mxu0 %v6323
  %8504 = vmatprep.subr.bf16.mxu0 %v6340
  %8505 = vmatpush1.bf16.msra.mxu0 %v6339
  %8506 = vmatprep.subr.bf16.mxu0 %v6356
  %8507 = vmatpush1.bf16.msra.mxu0 %v6355
  %8508 = vmatprep.subr.bf16.mxu0 %v6372
  %8509 = vmatpush1.bf16.msra.mxu0 %v6371
  %8510 = vmatprep.subr.bf16.mxu0 %v6388
  %8511 = vmatpush1.bf16.msra.mxu0 %v6387
  %8512 = vmatprep.subr.bf16.mxu0 %v6404
  %8513 = vmatpush1.bf16.msra.mxu0 %v6403
  %8514 = vmatprep.subr.bf16.mxu0 %v6420
  %8515 = vmatpush1.bf16.msra.mxu0 %v6419
  %8516 = vmatprep.subr.bf16.mxu0 %v6436
  %8517 = vmatpush1.bf16.msra.mxu0 %v6435
  %8518 = vmatprep.mubr.bf16.mxu0 %v45
  %8519 = vmatmul.mubr.bf16.gmra.mrb[0].mxu0 %v44
  %v8520 = vpop.f32.mrb[0].mxu0
  %v8521 = vadd.f32 %v8480, %v8520
  %v8522 = vpop.f32.mrb[0].mxu0
  %v8523 = vadd.f32 %v8482, %v8522
  %v8524 = vpop.f32.mrb[0].mxu0
  %v8525 = vpop.f32.mrb[0].mxu0
  %8526 = vdwg.mxu0
  %8527 = vmatprep.subr.bf16.mxu0 %v6452
  %8528 = vmatpush1.bf16.msra.mxu0 %v6451
  %8529 = vmatprep.subr.bf16.mxu0 %v6468
  %8530 = vmatpush1.bf16.msra.mxu0 %v6467
  %8531 = vmatprep.subr.bf16.mxu0 %v6484
  %8532 = vmatpush1.bf16.msra.mxu0 %v6483
  %8533 = vmatprep.subr.bf16.mxu0 %v6500
  %8534 = vmatpush1.bf16.msra.mxu0 %v6499
  %8535 = vmatprep.subr.bf16.mxu0 %v6516
  %8536 = vmatpush1.bf16.msra.mxu0 %v6515
  %8537 = vmatprep.subr.bf16.mxu0 %v6532
  %8538 = vmatpush1.bf16.msra.mxu0 %v6531
  %8539 = vmatprep.subr.bf16.mxu0 %v6548
  %8540 = vmatpush1.bf16.msra.mxu0 %v6547
  %8541 = vmatprep.subr.bf16.mxu0 %v6564
  %8542 = vmatpush1.bf16.msra.mxu0 %v6563
  %8543 = vmatprep.subr.bf16.mxu0 %v6580
  %8544 = vmatpush1.bf16.msra.mxu0 %v6579
  %8545 = vmatprep.subr.bf16.mxu0 %v6596
  %8546 = vmatpush1.bf16.msra.mxu0 %v6595
  %8547 = vmatprep.subr.bf16.mxu0 %v6612
  %8548 = vmatpush1.bf16.msra.mxu0 %v6611
  %8549 = vmatprep.subr.bf16.mxu0 %v6628
  %8550 = vmatpush1.bf16.msra.mxu0 %v6627
  %8551 = vmatprep.subr.bf16.mxu0 %v6644
  %8552 = vmatpush1.bf16.msra.mxu0 %v6643
  %8553 = vmatprep.subr.bf16.mxu0 %v6660
  %8554 = vmatpush1.bf16.msra.mxu0 %v6659
  %8555 = vmatprep.subr.bf16.mxu0 %v6676
  %8556 = vmatpush1.bf16.msra.mxu0 %v6675
  %8557 = vmatprep.subr.bf16.mxu0 %v6692
  %8558 = vmatpush1.bf16.msra.mxu0 %v6691
  %8559 = vmatprep.mubr.bf16.mxu0 %v47
  %8560 = vmatmul.mubr.bf16.gmra.mrb[0].mxu0 %v46
  %v8561 = vpop.f32.mrb[0].mxu0
  %v8562 = vadd.f32 %v8521, %v8561
  %v8563 = vpop.f32.mrb[0].mxu0
  %v8564 = vadd.f32 %v8523, %v8563
  %v8565 = vpop.f32.mrb[0].mxu0
  %v8566 = vpop.f32.mrb[0].mxu0
  %8567 = vdwg.mxu0
  %8568 = vmatprep.subr.bf16.mxu0 %v6708
  %8569 = vmatpush1.bf16.msra.mxu0 %v6707
  %8570 = vmatprep.subr.bf16.mxu0 %v6724
  %8571 = vmatpush1.bf16.msra.mxu0 %v6723
  %8572 = vmatprep.subr.bf16.mxu0 %v6740
  %8573 = vmatpush1.bf16.msra.mxu0 %v6739
  %8574 = vmatprep.subr.bf16.mxu0 %v6756
  %8575 = vmatpush1.bf16.msra.mxu0 %v6755
  %8576 = vmatprep.subr.bf16.mxu0 0
  %8577 = vmatpush1.bf16.msra.mxu0 0
  %8578 = vmatprep.subr.bf16.mxu0 0
  %8579 = vmatpush1.bf16.msra.mxu0 0
  %8580 = vmatprep.subr.bf16.mxu0 0
  %8581 = vmatpush1.bf16.msra.mxu0 0
  %8582 = vmatprep.subr.bf16.mxu0 0
  %8583 = vmatpush1.bf16.msra.mxu0 0
  %8584 = vmatprep.subr.bf16.mxu0 0
  %8585 = vmatpush1.bf16.msra.mxu0 0
  %8586 = vmatprep.subr.bf16.mxu0 0
  %8587 = vmatpush1.bf16.msra.mxu0 0
  %8588 = vmatprep.subr.bf16.mxu0 0
  %8589 = vmatpush1.bf16.msra.mxu0 0
  %8590 = vmatprep.subr.bf16.mxu0 0
  %8591 = vmatpush1.bf16.msra.mxu0 0
  %8592 = vmatprep.subr.bf16.mxu0 0
  %8593 = vmatpush1.bf16.msra.mxu0 0
  %8594 = vmatprep.subr.bf16.mxu0 0
  %8595 = vmatpush1.bf16.msra.mxu0 0
  %8596 = vmatprep.subr.bf16.mxu0 0
  %8597 = vmatpush1.bf16.msra.mxu0 0
  %8598 = vmatprep.subr.bf16.mxu0 0
  %8599 = vmatpush1.bf16.msra.mxu0 0
  %8600 = vmatprep.mubr.bf16.mxu0 0
  %8601 = vmatmul.mubr.bf16.gmra.mrb[0].mxu0 %v8115
  %v8602 = vpop.f32.mrb[0].mxu0
  %v8603 = vadd.f32 %v8562, %v8602
  %v8604 = vpop.f32.mrb[0].mxu0
  %v8605 = vadd.f32 %v8564, %v8604
  %v8606 = vpop.f32.mrb[0].mxu0
  %v8607 = vpop.f32.mrb[0].mxu0
  %8608 = vdwg.mxu0
  %8609 = vmatprep.subr.bf16.mxu0 %v5430
  %8610 = vmatpush1.bf16.msra.mxu0 %v5429
  %8611 = vmatprep.subr.bf16.mxu0 %v5446
  %8612 = vmatpush1.bf16.msra.mxu0 %v5445
  %8613 = vmatprep.subr.bf16.mxu0 %v5462
  %8614 = vmatpush1.bf16.msra.mxu0 %v5461
  %8615 = vmatprep.subr.bf16.mxu0 %v5478
  %8616 = vmatpush1.bf16.msra.mxu0 %v5477
  %8617 = vmatprep.subr.bf16.mxu0 %v5494
  %8618 = vmatpush1.bf16.msra.mxu0 %v5493
  %8619 = vmatprep.subr.bf16.mxu0 %v5510
  %8620 = vmatpush1.bf16.msra.mxu0 %v5509
  %8621 = vmatprep.subr.bf16.mxu0 %v5526
  %8622 = vmatpush1.bf16.msra.mxu0 %v5525
  %8623 = vmatprep.subr.bf16.mxu0 %v5542
  %8624 = vmatpush1.bf16.msra.mxu0 %v5541
  %8625 = vmatprep.subr.bf16.mxu0 %v5558
  %8626 = vmatpush1.bf16.msra.mxu0 %v5557
  %8627 = vmatprep.subr.bf16.mxu0 %v5574
  %8628 = vmatpush1.bf16.msra.mxu0 %v5573
  %8629 = vmatprep.subr.bf16.mxu0 %v5590
  %8630 = vmatpush1.bf16.msra.mxu0 %v5589
  %8631 = vmatprep.subr.bf16.mxu0 %v5606
  %8632 = vmatpush1.bf16.msra.mxu0 %v5605
  %8633 = vmatprep.subr.bf16.mxu0 %v5622
  %8634 = vmatpush1.bf16.msra.mxu0 %v5621
  %8635 = vmatprep.subr.bf16.mxu0 %v5638
  %8636 = vmatpush1.bf16.msra.mxu0 %v5637
  %8637 = vmatprep.subr.bf16.mxu0 %v5654
  %8638 = vmatpush1.bf16.msra.mxu0 %v5653
  %8639 = vmatprep.subr.bf16.mxu0 %v5670
  %8640 = vmatpush1.bf16.msra.mxu0 %v5669
  %8641 = vmatprep.mubr.bf16.mxu0 %v39
  %8642 = vmatmul.mubr.bf16.gmra.mrb[0].mxu0 %v38
  %v8643 = vpop.f32.mrb[0].mxu0
  %v8644 = vadd.f32 0.0, %v8643
  %v8645 = vpop.f32.mrb[0].mxu0
  %v8646 = vadd.f32 0.0, %v8645
  %v8647 = vpop.f32.mrb[0].mxu0
  %v8648 = vpop.f32.mrb[0].mxu0
  %8649 = vdwg.mxu0
  %8650 = vmatprep.subr.bf16.mxu0 %v5686
  %8651 = vmatpush1.bf16.msra.mxu0 %v5685
  %8652 = vmatprep.subr.bf16.mxu0 %v5702
  %8653 = vmatpush1.bf16.msra.mxu0 %v5701
  %8654 = vmatprep.subr.bf16.mxu0 %v5718
  %8655 = vmatpush1.bf16.msra.mxu0 %v5717
  %8656 = vmatprep.subr.bf16.mxu0 %v5734
  %8657 = vmatpush1.bf16.msra.mxu0 %v5733
  %8658 = vmatprep.subr.bf16.mxu0 %v5750
  %8659 = vmatpush1.bf16.msra.mxu0 %v5749
  %8660 = vmatprep.subr.bf16.mxu0 %v5766
  %8661 = vmatpush1.bf16.msra.mxu0 %v5765
  %8662 = vmatprep.subr.bf16.mxu0 %v5782
  %8663 = vmatpush1.bf16.msra.mxu0 %v5781
  %8664 = vmatprep.subr.bf16.mxu0 %v5798
  %8665 = vmatpush1.bf16.msra.mxu0 %v5797
  %8666 = vmatprep.subr.bf16.mxu0 %v5814
  %8667 = vmatpush1.bf16.msra.mxu0 %v5813
  %8668 = vmatprep.subr.bf16.mxu0 %v5830
  %8669 = vmatpush1.bf16.msra.mxu0 %v5829
  %8670 = vmatprep.subr.bf16.mxu0 %v5846
  %8671 = vmatpush1.bf16.msra.mxu0 %v5845
  %8672 = vmatprep.subr.bf16.mxu0 %v5862
  %8673 = vmatpush1.bf16.msra.mxu0 %v5861
  %8674 = vmatprep.subr.bf16.mxu0 %v5878
  %8675 = vmatpush1.bf16.msra.mxu0 %v5877
  %8676 = vmatprep.subr.bf16.mxu0 %v5894
  %8677 = vmatpush1.bf16.msra.mxu0 %v5893
  %8678 = vmatprep.subr.bf16.mxu0 %v5910
  %8679 = vmatpush1.bf16.msra.mxu0 %v5909
  %8680 = vmatprep.subr.bf16.mxu0 %v5926
  %8681 = vmatpush1.bf16.msra.mxu0 %v5925
  %8682 = vmatprep.mubr.bf16.mxu0 %v41
  %8683 = vmatmul.mubr.bf16.gmra.mrb[0].mxu0 %v40
  %v8684 = vpop.f32.mrb[0].mxu0
  %v8685 = vadd.f32 %v8644, %v8684
  %v8686 = vpop.f32.mrb[0].mxu0
  %v8687 = vadd.f32 %v8646, %v8686
  %v8688 = vpop.f32.mrb[0].mxu0
  %v8689 = vpop.f32.mrb[0].mxu0
  %8690 = vdwg.mxu0
  %8691 = vmatprep.subr.bf16.mxu0 %v5942
  %8692 = vmatpush1.bf16.msra.mxu0 %v5941
  %8693 = vmatprep.subr.bf16.mxu0 %v5958
  %8694 = vmatpush1.bf16.msra.mxu0 %v5957
  %8695 = vmatprep.subr.bf16.mxu0 %v5974
  %8696 = vmatpush1.bf16.msra.mxu0 %v5973
  %8697 = vmatprep.subr.bf16.mxu0 %v5990
  %8698 = vmatpush1.bf16.msra.mxu0 %v5989
  %8699 = vmatprep.subr.bf16.mxu0 %v6006
  %8700 = vmatpush1.bf16.msra.mxu0 %v6005
  %8701 = vmatprep.subr.bf16.mxu0 %v6022
  %8702 = vmatpush1.bf16.msra.mxu0 %v6021
  %8703 = vmatprep.subr.bf16.mxu0 %v6038
  %8704 = vmatpush1.bf16.msra.mxu0 %v6037
  %8705 = vmatprep.subr.bf16.mxu0 %v6054
  %8706 = vmatpush1.bf16.msra.mxu0 %v6053
  %8707 = vmatprep.subr.bf16.mxu0 %v6070
  %8708 = vmatpush1.bf16.msra.mxu0 %v6069
  %8709 = vmatprep.subr.bf16.mxu0 %v6086
  %8710 = vmatpush1.bf16.msra.mxu0 %v6085
  %8711 = vmatprep.subr.bf16.mxu0 %v6102
  %8712 = vmatpush1.bf16.msra.mxu0 %v6101
  %8713 = vmatprep.subr.bf16.mxu0 %v6118
  %8714 = vmatpush1.bf16.msra.mxu0 %v6117
  %8715 = vmatprep.subr.bf16.mxu0 %v6134
  %8716 = vmatpush1.bf16.msra.mxu0 %v6133
  %8717 = vmatprep.subr.bf16.mxu0 %v6150
  %8718 = vmatpush1.bf16.msra.mxu0 %v6149
  %8719 = vmatprep.subr.bf16.mxu0 %v6166
  %8720 = vmatpush1.bf16.msra.mxu0 %v6165
  %8721 = vmatprep.subr.bf16.mxu0 %v6182
  %8722 = vmatpush1.bf16.msra.mxu0 %v6181
  %8723 = vmatprep.mubr.bf16.mxu0 %v43
  %8724 = vmatmul.mubr.bf16.gmra.mrb[0].mxu0 %v42
  %v8725 = vpop.f32.mrb[0].mxu0
  %v8726 = vadd.f32 %v8685, %v8725
  %v8727 = vpop.f32.mrb[0].mxu0
  %v8728 = vadd.f32 %v8687, %v8727
  %v8729 = vpop.f32.mrb[0].mxu0
  %v8730 = vpop.f32.mrb[0].mxu0
  %8731 = vdwg.mxu0
  %8732 = vmatprep.subr.bf16.mxu0 %v6198
  %8733 = vmatpush1.bf16.msra.mxu0 %v6197
  %8734 = vmatprep.subr.bf16.mxu0 %v6214
  %8735 = vmatpush1.bf16.msra.mxu0 %v6213
  %8736 = vmatprep.subr.bf16.mxu0 %v6230
  %8737 = vmatpush1.bf16.msra.mxu0 %v6229
  %8738 = vmatprep.subr.bf16.mxu0 %v6246
  %8739 = vmatpush1.bf16.msra.mxu0 %v6245
  %8740 = vmatprep.subr.bf16.mxu0 %v6262
  %8741 = vmatpush1.bf16.msra.mxu0 %v6261
  %8742 = vmatprep.subr.bf16.mxu0 %v6278
  %8743 = vmatpush1.bf16.msra.mxu0 %v6277
  %8744 = vmatprep.subr.bf16.mxu0 %v6294
  %8745 = vmatpush1.bf16.msra.mxu0 %v6293
  %8746 = vmatprep.subr.bf16.mxu0 %v6310
  %8747 = vmatpush1.bf16.msra.mxu0 %v6309
  %8748 = vmatprep.subr.bf16.mxu0 %v6326
  %8749 = vmatpush1.bf16.msra.mxu0 %v6325
  %8750 = vmatprep.subr.bf16.mxu0 %v6342
  %8751 = vmatpush1.bf16.msra.mxu0 %v6341
  %8752 = vmatprep.subr.bf16.mxu0 %v6358
  %8753 = vmatpush1.bf16.msra.mxu0 %v6357
  %8754 = vmatprep.subr.bf16.mxu0 %v6374
  %8755 = vmatpush1.bf16.msra.mxu0 %v6373
  %8756 = vmatprep.subr.bf16.mxu0 %v6390
  %8757 = vmatpush1.bf16.msra.mxu0 %v6389
  %8758 = vmatprep.subr.bf16.mxu0 %v6406
  %8759 = vmatpush1.bf16.msra.mxu0 %v6405
  %8760 = vmatprep.subr.bf16.mxu0 %v6422
  %8761 = vmatpush1.bf16.msra.mxu0 %v6421
  %8762 = vmatprep.subr.bf16.mxu0 %v6438
  %8763 = vmatpush1.bf16.msra.mxu0 %v6437
  %8764 = vmatprep.mubr.bf16.mxu0 %v45
  %8765 = vmatmul.mubr.bf16.gmra.mrb[0].mxu0 %v44
  %v8766 = vpop.f32.mrb[0].mxu0
  %v8767 = vadd.f32 %v8726, %v8766
  %v8768 = vpop.f32.mrb[0].mxu0
  %v8769 = vadd.f32 %v8728, %v8768
  %v8770 = vpop.f32.mrb[0].mxu0
  %v8771 = vpop.f32.mrb[0].mxu0
  %8772 = vdwg.mxu0
  %8773 = vmatprep.subr.bf16.mxu0 %v6454
  %8774 = vmatpush1.bf16.msra.mxu0 %v6453
  %8775 = vmatprep.subr.bf16.mxu0 %v6470
  %8776 = vmatpush1.bf16.msra.mxu0 %v6469
  %8777 = vmatprep.subr.bf16.mxu0 %v6486
  %8778 = vmatpush1.bf16.msra.mxu0 %v6485
  %8779 = vmatprep.subr.bf16.mxu0 %v6502
  %8780 = vmatpush1.bf16.msra.mxu0 %v6501
  %8781 = vmatprep.subr.bf16.mxu0 %v6518
  %8782 = vmatpush1.bf16.msra.mxu0 %v6517
  %8783 = vmatprep.subr.bf16.mxu0 %v6534
  %8784 = vmatpush1.bf16.msra.mxu0 %v6533
  %8785 = vmatprep.subr.bf16.mxu0 %v6550
  %8786 = vmatpush1.bf16.msra.mxu0 %v6549
  %8787 = vmatprep.subr.bf16.mxu0 %v6566
  %8788 = vmatpush1.bf16.msra.mxu0 %v6565
  %8789 = vmatprep.subr.bf16.mxu0 %v6582
  %8790 = vmatpush1.bf16.msra.mxu0 %v6581
  %8791 = vmatprep.subr.bf16.mxu0 %v6598
  %8792 = vmatpush1.bf16.msra.mxu0 %v6597
  %8793 = vmatprep.subr.bf16.mxu0 %v6614
  %8794 = vmatpush1.bf16.msra.mxu0 %v6613
  %8795 = vmatprep.subr.bf16.mxu0 %v6630
  %8796 = vmatpush1.bf16.msra.mxu0 %v6629
  %8797 = vmatprep.subr.bf16.mxu0 %v6646
  %8798 = vmatpush1.bf16.msra.mxu0 %v6645
  %8799 = vmatprep.subr.bf16.mxu0 %v6662
  %8800 = vmatpush1.bf16.msra.mxu0 %v6661
  %8801 = vmatprep.subr.bf16.mxu0 %v6678
  %8802 = vmatpush1.bf16.msra.mxu0 %v6677
  %8803 = vmatprep.subr.bf16.mxu0 %v6694
  %8804 = vmatpush1.bf16.msra.mxu0 %v6693
  %8805 = vmatprep.mubr.bf16.mxu0 %v47
  %8806 = vmatmul.mubr.bf16.gmra.mrb[0].mxu0 %v46
  %v8807 = vpop.f32.mrb[0].mxu0
  %v8808 = vadd.f32 %v8767, %v8807
  %v8809 = vpop.f32.mrb[0].mxu0
  %v8810 = vadd.f32 %v8769, %v8809
  %v8811 = vpop.f32.mrb[0].mxu0
  %v8812 = vpop.f32.mrb[0].mxu0
  %8813 = vdwg.mxu0
  %8814 = vmatprep.subr.bf16.mxu0 %v6710
  %8815 = vmatpush1.bf16.msra.mxu0 %v6709
  %8816 = vmatprep.subr.bf16.mxu0 %v6726
  %8817 = vmatpush1.bf16.msra.mxu0 %v6725
  %8818 = vmatprep.subr.bf16.mxu0 %v6742
  %8819 = vmatpush1.bf16.msra.mxu0 %v6741
  %8820 = vmatprep.subr.bf16.mxu0 %v6758
  %8821 = vmatpush1.bf16.msra.mxu0 %v6757
  %8822 = vmatprep.subr.bf16.mxu0 0
  %8823 = vmatpush1.bf16.msra.mxu0 0
  %8824 = vmatprep.subr.bf16.mxu0 0
  %8825 = vmatpush1.bf16.msra.mxu0 0
  %8826 = vmatprep.subr.bf16.mxu0 0
  %8827 = vmatpush1.bf16.msra.mxu0 0
  %8828 = vmatprep.subr.bf16.mxu0 0
  %8829 = vmatpush1.bf16.msra.mxu0 0
  %8830 = vmatprep.subr.bf16.mxu0 0
  %8831 = vmatpush1.bf16.msra.mxu0 0
  %8832 = vmatprep.subr.bf16.mxu0 0
  %8833 = vmatpush1.bf16.msra.mxu0 0
  %8834 = vmatprep.subr.bf16.mxu0 0
  %8835 = vmatpush1.bf16.msra.mxu0 0
  %8836 = vmatprep.subr.bf16.mxu0 0
  %8837 = vmatpush1.bf16.msra.mxu0 0
  %8838 = vmatprep.subr.bf16.mxu0 0
  %8839 = vmatpush1.bf16.msra.mxu0 0
  %8840 = vmatprep.subr.bf16.mxu0 0
  %8841 = vmatpush1.bf16.msra.mxu0 0
  %8842 = vmatprep.subr.bf16.mxu0 0
  %8843 = vmatpush1.bf16.msra.mxu0 0
  %8844 = vmatprep.subr.bf16.mxu0 0
  %8845 = vmatpush1.bf16.msra.mxu0 0
  %8846 = vmatprep.mubr.bf16.mxu0 0
  %8847 = vmatmul.mubr.bf16.gmra.mrb[0].mxu0 %v8115
  %v8848 = vpop.f32.mrb[0].mxu0
  %v8849 = vadd.f32 %v8808, %v8848
  %v8850 = vpop.f32.mrb[0].mxu0
  %v8851 = vadd.f32 %v8810, %v8850
  %v8852 = vpop.f32.mrb[0].mxu0
  %v8853 = vpop.f32.mrb[0].mxu0
  %8854 = vdwg.mxu0
  %8855 = vmatprep.subr.bf16.mxu0 %v5432
  %8856 = vmatpush1.bf16.msra.mxu0 %v5431
  %8857 = vmatprep.subr.bf16.mxu0 %v5448
  %8858 = vmatpush1.bf16.msra.mxu0 %v5447
  %8859 = vmatprep.subr.bf16.mxu0 %v5464
  %8860 = vmatpush1.bf16.msra.mxu0 %v5463
  %8861 = vmatprep.subr.bf16.mxu0 %v5480
  %8862 = vmatpush1.bf16.msra.mxu0 %v5479
  %8863 = vmatprep.subr.bf16.mxu0 %v5496
  %8864 = vmatpush1.bf16.msra.mxu0 %v5495
  %8865 = vmatprep.subr.bf16.mxu0 %v5512
  %8866 = vmatpush1.bf16.msra.mxu0 %v5511
  %8867 = vmatprep.subr.bf16.mxu0 %v5528
  %8868 = vmatpush1.bf16.msra.mxu0 %v5527
  %8869 = vmatprep.subr.bf16.mxu0 %v5544
  %8870 = vmatpush1.bf16.msra.mxu0 %v5543
  %8871 = vmatprep.subr.bf16.mxu0 %v5560
  %8872 = vmatpush1.bf16.msra.mxu0 %v5559
  %8873 = vmatprep.subr.bf16.mxu0 %v5576
  %8874 = vmatpush1.bf16.msra.mxu0 %v5575
  %8875 = vmatprep.subr.bf16.mxu0 %v5592
  %8876 = vmatpush1.bf16.msra.mxu0 %v5591
  %8877 = vmatprep.subr.bf16.mxu0 %v5608
  %8878 = vmatpush1.bf16.msra.mxu0 %v5607
  %8879 = vmatprep.subr.bf16.mxu0 %v5624
  %8880 = vmatpush1.bf16.msra.mxu0 %v5623
  %8881 = vmatprep.subr.bf16.mxu0 %v5640
  %8882 = vmatpush1.bf16.msra.mxu0 %v5639
  %8883 = vmatprep.subr.bf16.mxu0 %v5656
  %8884 = vmatpush1.bf16.msra.mxu0 %v5655
  %8885 = vmatprep.subr.bf16.mxu0 %v5672
  %8886 = vmatpush1.bf16.msra.mxu0 %v5671
  %8887 = vmatprep.mubr.bf16.mxu0 %v39
  %8888 = vmatmul.mubr.bf16.gmra.mrb[0].mxu0 %v38
  %v8889 = vpop.f32.mrb[0].mxu0
  %v8890 = vadd.f32 0.0, %v8889
  %v8891 = vpop.f32.mrb[0].mxu0
  %v8892 = vadd.f32 0.0, %v8891
  %v8893 = vpop.f32.mrb[0].mxu0
  %v8894 = vpop.f32.mrb[0].mxu0
  %8895 = vdwg.mxu0
  %8896 = vmatprep.subr.bf16.mxu0 %v5688
  %8897 = vmatpush1.bf16.msra.mxu0 %v5687
  %8898 = vmatprep.subr.bf16.mxu0 %v5704
  %8899 = vmatpush1.bf16.msra.mxu0 %v5703
  %8900 = vmatprep.subr.bf16.mxu0 %v5720
  %8901 = vmatpush1.bf16.msra.mxu0 %v5719
  %8902 = vmatprep.subr.bf16.mxu0 %v5736
  %8903 = vmatpush1.bf16.msra.mxu0 %v5735
  %8904 = vmatprep.subr.bf16.mxu0 %v5752
  %8905 = vmatpush1.bf16.msra.mxu0 %v5751
  %8906 = vmatprep.subr.bf16.mxu0 %v5768
  %8907 = vmatpush1.bf16.msra.mxu0 %v5767
  %8908 = vmatprep.subr.bf16.mxu0 %v5784
  %8909 = vmatpush1.bf16.msra.mxu0 %v5783
  %8910 = vmatprep.subr.bf16.mxu0 %v5800
  %8911 = vmatpush1.bf16.msra.mxu0 %v5799
  %8912 = vmatprep.subr.bf16.mxu0 %v5816
  %8913 = vmatpush1.bf16.msra.mxu0 %v5815
  %8914 = vmatprep.subr.bf16.mxu0 %v5832
  %8915 = vmatpush1.bf16.msra.mxu0 %v5831
  %8916 = vmatprep.subr.bf16.mxu0 %v5848
  %8917 = vmatpush1.bf16.msra.mxu0 %v5847
  %8918 = vmatprep.subr.bf16.mxu0 %v5864
  %8919 = vmatpush1.bf16.msra.mxu0 %v5863
  %8920 = vmatprep.subr.bf16.mxu0 %v5880
  %8921 = vmatpush1.bf16.msra.mxu0 %v5879
  %8922 = vmatprep.subr.bf16.mxu0 %v5896
  %8923 = vmatpush1.bf16.msra.mxu0 %v5895
  %8924 = vmatprep.subr.bf16.mxu0 %v5912
  %8925 = vmatpush1.bf16.msra.mxu0 %v5911
  %8926 = vmatprep.subr.bf16.mxu0 %v5928
  %8927 = vmatpush1.bf16.msra.mxu0 %v5927
  %8928 = vmatprep.mubr.bf16.mxu0 %v41
  %8929 = vmatmul.mubr.bf16.gmra.mrb[0].mxu0 %v40
  %v8930 = vpop.f32.mrb[0].mxu0
  %v8931 = vadd.f32 %v8890, %v8930
  %v8932 = vpop.f32.mrb[0].mxu0
  %v8933 = vadd.f32 %v8892, %v8932
  %v8934 = vpop.f32.mrb[0].mxu0
  %v8935 = vpop.f32.mrb[0].mxu0
  %8936 = vdwg.mxu0
  %8937 = vmatprep.subr.bf16.mxu0 %v5944
  %8938 = vmatpush1.bf16.msra.mxu0 %v5943
  %8939 = vmatprep.subr.bf16.mxu0 %v5960
  %8940 = vmatpush1.bf16.msra.mxu0 %v5959
  %8941 = vmatprep.subr.bf16.mxu0 %v5976
  %8942 = vmatpush1.bf16.msra.mxu0 %v5975
  %8943 = vmatprep.subr.bf16.mxu0 %v5992
  %8944 = vmatpush1.bf16.msra.mxu0 %v5991
  %8945 = vmatprep.subr.bf16.mxu0 %v6008
  %8946 = vmatpush1.bf16.msra.mxu0 %v6007
  %8947 = vmatprep.subr.bf16.mxu0 %v6024
  %8948 = vmatpush1.bf16.msra.mxu0 %v6023
  %8949 = vmatprep.subr.bf16.mxu0 %v6040
  %8950 = vmatpush1.bf16.msra.mxu0 %v6039
  %8951 = vmatprep.subr.bf16.mxu0 %v6056
  %8952 = vmatpush1.bf16.msra.mxu0 %v6055
  %8953 = vmatprep.subr.bf16.mxu0 %v6072
  %8954 = vmatpush1.bf16.msra.mxu0 %v6071
  %8955 = vmatprep.subr.bf16.mxu0 %v6088
  %8956 = vmatpush1.bf16.msra.mxu0 %v6087
  %8957 = vmatprep.subr.bf16.mxu0 %v6104
  %8958 = vmatpush1.bf16.msra.mxu0 %v6103
  %8959 = vmatprep.subr.bf16.mxu0 %v6120
  %8960 = vmatpush1.bf16.msra.mxu0 %v6119
  %8961 = vmatprep.subr.bf16.mxu0 %v6136
  %8962 = vmatpush1.bf16.msra.mxu0 %v6135
  %8963 = vmatprep.subr.bf16.mxu0 %v6152
  %8964 = vmatpush1.bf16.msra.mxu0 %v6151
  %8965 = vmatprep.subr.bf16.mxu0 %v6168
  %8966 = vmatpush1.bf16.msra.mxu0 %v6167
  %8967 = vmatprep.subr.bf16.mxu0 %v6184
  %8968 = vmatpush1.bf16.msra.mxu0 %v6183
  %8969 = vmatprep.mubr.bf16.mxu0 %v43
  %8970 = vmatmul.mubr.bf16.gmra.mrb[0].mxu0 %v42
  %v8971 = vpop.f32.mrb[0].mxu0
  %v8972 = vadd.f32 %v8931, %v8971
  %v8973 = vpop.f32.mrb[0].mxu0
  %v8974 = vadd.f32 %v8933, %v8973
  %v8975 = vpop.f32.mrb[0].mxu0
  %v8976 = vpop.f32.mrb[0].mxu0
  %8977 = vdwg.mxu0
  %8978 = vmatprep.subr.bf16.mxu0 %v6200
  %8979 = vmatpush1.bf16.msra.mxu0 %v6199
  %8980 = vmatprep.subr.bf16.mxu0 %v6216
  %8981 = vmatpush1.bf16.msra.mxu0 %v6215
  %8982 = vmatprep.subr.bf16.mxu0 %v6232
  %8983 = vmatpush1.bf16.msra.mxu0 %v6231
  %8984 = vmatprep.subr.bf16.mxu0 %v6248
  %8985 = vmatpush1.bf16.msra.mxu0 %v6247
  %8986 = vmatprep.subr.bf16.mxu0 %v6264
  %8987 = vmatpush1.bf16.msra.mxu0 %v6263
  %8988 = vmatprep.subr.bf16.mxu0 %v6280
  %8989 = vmatpush1.bf16.msra.mxu0 %v6279
  %8990 = vmatprep.subr.bf16.mxu0 %v6296
  %8991 = vmatpush1.bf16.msra.mxu0 %v6295
  %8992 = vmatprep.subr.bf16.mxu0 %v6312
  %8993 = vmatpush1.bf16.msra.mxu0 %v6311
  %8994 = vmatprep.subr.bf16.mxu0 %v6328
  %8995 = vmatpush1.bf16.msra.mxu0 %v6327
  %8996 = vmatprep.subr.bf16.mxu0 %v6344
  %8997 = vmatpush1.bf16.msra.mxu0 %v6343
  %8998 = vmatprep.subr.bf16.mxu0 %v6360
  %8999 = vmatpush1.bf16.msra.mxu0 %v6359
  %9000 = vmatprep.subr.bf16.mxu0 %v6376
  %9001 = vmatpush1.bf16.msra.mxu0 %v6375
  %9002 = vmatprep.subr.bf16.mxu0 %v6392
  %9003 = vmatpush1.bf16.msra.mxu0 %v6391
  %9004 = vmatprep.subr.bf16.mxu0 %v6408
  %9005 = vmatpush1.bf16.msra.mxu0 %v6407
  %9006 = vmatprep.subr.bf16.mxu0 %v6424
  %9007 = vmatpush1.bf16.msra.mxu0 %v6423
  %9008 = vmatprep.subr.bf16.mxu0 %v6440
  %9009 = vmatpush1.bf16.msra.mxu0 %v6439
  %9010 = vmatprep.mubr.bf16.mxu0 %v45
  %9011 = vmatmul.mubr.bf16.gmra.mrb[0].mxu0 %v44
  %v9012 = vpop.f32.mrb[0].mxu0
  %v9013 = vadd.f32 %v8972, %v9012
  %v9014 = vpop.f32.mrb[0].mxu0
  %v9015 = vadd.f32 %v8974, %v9014
  %v9016 = vpop.f32.mrb[0].mxu0
  %v9017 = vpop.f32.mrb[0].mxu0
  %9018 = vdwg.mxu0
  %9019 = vmatprep.subr.bf16.mxu0 %v6456
  %9020 = vmatpush1.bf16.msra.mxu0 %v6455
  %9021 = vmatprep.subr.bf16.mxu0 %v6472
  %9022 = vmatpush1.bf16.msra.mxu0 %v6471
  %9023 = vmatprep.subr.bf16.mxu0 %v6488
  %9024 = vmatpush1.bf16.msra.mxu0 %v6487
  %9025 = vmatprep.subr.bf16.mxu0 %v6504
  %9026 = vmatpush1.bf16.msra.mxu0 %v6503
  %9027 = vmatprep.subr.bf16.mxu0 %v6520
  %9028 = vmatpush1.bf16.msra.mxu0 %v6519
  %9029 = vmatprep.subr.bf16.mxu0 %v6536
  %9030 = vmatpush1.bf16.msra.mxu0 %v6535
  %9031 = vmatprep.subr.bf16.mxu0 %v6552
  %9032 = vmatpush1.bf16.msra.mxu0 %v6551
  %9033 = vmatprep.subr.bf16.mxu0 %v6568
  %9034 = vmatpush1.bf16.msra.mxu0 %v6567
  %9035 = vmatprep.subr.bf16.mxu0 %v6584
  %9036 = vmatpush1.bf16.msra.mxu0 %v6583
  %9037 = vmatprep.subr.bf16.mxu0 %v6600
  %9038 = vmatpush1.bf16.msra.mxu0 %v6599
  %9039 = vmatprep.subr.bf16.mxu0 %v6616
  %9040 = vmatpush1.bf16.msra.mxu0 %v6615
  %9041 = vmatprep.subr.bf16.mxu0 %v6632
  %9042 = vmatpush1.bf16.msra.mxu0 %v6631
  %9043 = vmatprep.subr.bf16.mxu0 %v6648
  %9044 = vmatpush1.bf16.msra.mxu0 %v6647
  %9045 = vmatprep.subr.bf16.mxu0 %v6664
  %9046 = vmatpush1.bf16.msra.mxu0 %v6663
  %9047 = vmatprep.subr.bf16.mxu0 %v6680
  %9048 = vmatpush1.bf16.msra.mxu0 %v6679
  %9049 = vmatprep.subr.bf16.mxu0 %v6696
  %9050 = vmatpush1.bf16.msra.mxu0 %v6695
  %9051 = vmatprep.mubr.bf16.mxu0 %v47
  %9052 = vmatmul.mubr.bf16.gmra.mrb[0].mxu0 %v46
  %v9053 = vpop.f32.mrb[0].mxu0
  %v9054 = vadd.f32 %v9013, %v9053
  %v9055 = vpop.f32.mrb[0].mxu0
  %v9056 = vadd.f32 %v9015, %v9055
  %v9057 = vpop.f32.mrb[0].mxu0
  %v9058 = vpop.f32.mrb[0].mxu0
  %9059 = vdwg.mxu0
  %9060 = vmatprep.subr.bf16.mxu0 %v6712
  %9061 = vmatpush1.bf16.msra.mxu0 %v6711
  %9062 = vmatprep.subr.bf16.mxu0 %v6728
  %9063 = vmatpush1.bf16.msra.mxu0 %v6727
  %9064 = vmatprep.subr.bf16.mxu0 %v6744
  %9065 = vmatpush1.bf16.msra.mxu0 %v6743
  %9066 = vmatprep.subr.bf16.mxu0 %v6760
  %9067 = vmatpush1.bf16.msra.mxu0 %v6759
  %9068 = vmatprep.subr.bf16.mxu0 0
  %9069 = vmatpush1.bf16.msra.mxu0 0
  %9070 = vmatprep.subr.bf16.mxu0 0
  %9071 = vmatpush1.bf16.msra.mxu0 0
  %9072 = vmatprep.subr.bf16.mxu0 0
  %9073 = vmatpush1.bf16.msra.mxu0 0
  %9074 = vmatprep.subr.bf16.mxu0 0
  %9075 = vmatpush1.bf16.msra.mxu0 0
  %9076 = vmatprep.subr.bf16.mxu0 0
  %9077 = vmatpush1.bf16.msra.mxu0 0
  %9078 = vmatprep.subr.bf16.mxu0 0
  %9079 = vmatpush1.bf16.msra.mxu0 0
  %9080 = vmatprep.subr.bf16.mxu0 0
  %9081 = vmatpush1.bf16.msra.mxu0 0
  %9082 = vmatprep.subr.bf16.mxu0 0
  %9083 = vmatpush1.bf16.msra.mxu0 0
  %9084 = vmatprep.subr.bf16.mxu0 0
  %9085 = vmatpush1.bf16.msra.mxu0 0
  %9086 = vmatprep.subr.bf16.mxu0 0
  %9087 = vmatpush1.bf16.msra.mxu0 0
  %9088 = vmatprep.subr.bf16.mxu0 0
  %9089 = vmatpush1.bf16.msra.mxu0 0
  %9090 = vmatprep.subr.bf16.mxu0 0
  %9091 = vmatpush1.bf16.msra.mxu0 0
  %9092 = vmatprep.mubr.bf16.mxu0 0
  %9093 = vmatmul.mubr.bf16.gmra.mrb[0].mxu0 %v8115
  %v9094 = vpop.f32.mrb[0].mxu0
  %v9095 = vadd.f32 %v9054, %v9094
  %v9096 = vpop.f32.mrb[0].mxu0
  %v9097 = vadd.f32 %v9056, %v9096
  %v9098 = vpop.f32.mrb[0].mxu0
  %v9099 = vpop.f32.mrb[0].mxu0
  %9100 = vdwg.mxu0
  %9101 = vmatprep.subr.bf16.mxu0 %v5434
  %9102 = vmatpush1.bf16.msra.mxu0 %v5433
  %9103 = vmatprep.subr.bf16.mxu0 %v5450
  %9104 = vmatpush1.bf16.msra.mxu0 %v5449
  %9105 = vmatprep.subr.bf16.mxu0 %v5466
  %9106 = vmatpush1.bf16.msra.mxu0 %v5465
  %9107 = vmatprep.subr.bf16.mxu0 %v5482
  %9108 = vmatpush1.bf16.msra.mxu0 %v5481
  %9109 = vmatprep.subr.bf16.mxu0 %v5498
  %9110 = vmatpush1.bf16.msra.mxu0 %v5497
  %9111 = vmatprep.subr.bf16.mxu0 %v5514
  %9112 = vmatpush1.bf16.msra.mxu0 %v5513
  %9113 = vmatprep.subr.bf16.mxu0 %v5530
  %9114 = vmatpush1.bf16.msra.mxu0 %v5529
  %9115 = vmatprep.subr.bf16.mxu0 %v5546
  %9116 = vmatpush1.bf16.msra.mxu0 %v5545
  %9117 = vmatprep.subr.bf16.mxu0 %v5562
  %9118 = vmatpush1.bf16.msra.mxu0 %v5561
  %9119 = vmatprep.subr.bf16.mxu0 %v5578
  %9120 = vmatpush1.bf16.msra.mxu0 %v5577
  %9121 = vmatprep.subr.bf16.mxu0 %v5594
  %9122 = vmatpush1.bf16.msra.mxu0 %v5593
  %9123 = vmatprep.subr.bf16.mxu0 %v5610
  %9124 = vmatpush1.bf16.msra.mxu0 %v5609
  %9125 = vmatprep.subr.bf16.mxu0 %v5626
  %9126 = vmatpush1.bf16.msra.mxu0 %v5625
  %9127 = vmatprep.subr.bf16.mxu0 %v5642
  %9128 = vmatpush1.bf16.msra.mxu0 %v5641
  %9129 = vmatprep.subr.bf16.mxu0 %v5658
  %9130 = vmatpush1.bf16.msra.mxu0 %v5657
  %9131 = vmatprep.subr.bf16.mxu0 %v5674
  %9132 = vmatpush1.bf16.msra.mxu0 %v5673
  %9133 = vmatprep.mubr.bf16.mxu0 %v39
  %9134 = vmatmul.mubr.bf16.gmra.mrb[0].mxu0 %v38
  %v9135 = vpop.f32.mrb[0].mxu0
  %v9136 = vadd.f32 0.0, %v9135
  %v9137 = vpop.f32.mrb[0].mxu0
  %v9138 = vadd.f32 0.0, %v9137
  %v9139 = vpop.f32.mrb[0].mxu0
  %v9140 = vpop.f32.mrb[0].mxu0
  %9141 = vdwg.mxu0
  %9142 = vmatprep.subr.bf16.mxu0 %v5690
  %9143 = vmatpush1.bf16.msra.mxu0 %v5689
  %9144 = vmatprep.subr.bf16.mxu0 %v5706
  %9145 = vmatpush1.bf16.msra.mxu0 %v5705
  %9146 = vmatprep.subr.bf16.mxu0 %v5722
  %9147 = vmatpush1.bf16.msra.mxu0 %v5721
  %9148 = vmatprep.subr.bf16.mxu0 %v5738
  %9149 = vmatpush1.bf16.msra.mxu0 %v5737
  %9150 = vmatprep.subr.bf16.mxu0 %v5754
  %9151 = vmatpush1.bf16.msra.mxu0 %v5753
  %9152 = vmatprep.subr.bf16.mxu0 %v5770
  %9153 = vmatpush1.bf16.msra.mxu0 %v5769
  %9154 = vmatprep.subr.bf16.mxu0 %v5786
  %9155 = vmatpush1.bf16.msra.mxu0 %v5785
  %9156 = vmatprep.subr.bf16.mxu0 %v5802
  %9157 = vmatpush1.bf16.msra.mxu0 %v5801
  %9158 = vmatprep.subr.bf16.mxu0 %v5818
  %9159 = vmatpush1.bf16.msra.mxu0 %v5817
  %9160 = vmatprep.subr.bf16.mxu0 %v5834
  %9161 = vmatpush1.bf16.msra.mxu0 %v5833
  %9162 = vmatprep.subr.bf16.mxu0 %v5850
  %9163 = vmatpush1.bf16.msra.mxu0 %v5849
  %9164 = vmatprep.subr.bf16.mxu0 %v5866
  %9165 = vmatpush1.bf16.msra.mxu0 %v5865
  %9166 = vmatprep.subr.bf16.mxu0 %v5882
  %9167 = vmatpush1.bf16.msra.mxu0 %v5881
  %9168 = vmatprep.subr.bf16.mxu0 %v5898
  %9169 = vmatpush1.bf16.msra.mxu0 %v5897
  %9170 = vmatprep.subr.bf16.mxu0 %v5914
  %9171 = vmatpush1.bf16.msra.mxu0 %v5913
  %9172 = vmatprep.subr.bf16.mxu0 %v5930
  %9173 = vmatpush1.bf16.msra.mxu0 %v5929
  %9174 = vmatprep.mubr.bf16.mxu0 %v41
  %9175 = vmatmul.mubr.bf16.gmra.mrb[0].mxu0 %v40
  %v9176 = vpop.f32.mrb[0].mxu0
  %v9177 = vadd.f32 %v9136, %v9176
  %v9178 = vpop.f32.mrb[0].mxu0
  %v9179 = vadd.f32 %v9138, %v9178
  %v9180 = vpop.f32.mrb[0].mxu0
  %v9181 = vpop.f32.mrb[0].mxu0
  %9182 = vdwg.mxu0
  %9183 = vmatprep.subr.bf16.mxu0 %v5946
  %9184 = vmatpush1.bf16.msra.mxu0 %v5945
  %9185 = vmatprep.subr.bf16.mxu0 %v5962
  %9186 = vmatpush1.bf16.msra.mxu0 %v5961
  %9187 = vmatprep.subr.bf16.mxu0 %v5978
  %9188 = vmatpush1.bf16.msra.mxu0 %v5977
  %9189 = vmatprep.subr.bf16.mxu0 %v5994
  %9190 = vmatpush1.bf16.msra.mxu0 %v5993
  %9191 = vmatprep.subr.bf16.mxu0 %v6010
  %9192 = vmatpush1.bf16.msra.mxu0 %v6009
  %9193 = vmatprep.subr.bf16.mxu0 %v6026
  %9194 = vmatpush1.bf16.msra.mxu0 %v6025
  %9195 = vmatprep.subr.bf16.mxu0 %v6042
  %9196 = vmatpush1.bf16.msra.mxu0 %v6041
  %9197 = vmatprep.subr.bf16.mxu0 %v6058
  %9198 = vmatpush1.bf16.msra.mxu0 %v6057
  %9199 = vmatprep.subr.bf16.mxu0 %v6074
  %9200 = vmatpush1.bf16.msra.mxu0 %v6073
  %9201 = vmatprep.subr.bf16.mxu0 %v6090
  %9202 = vmatpush1.bf16.msra.mxu0 %v6089
  %9203 = vmatprep.subr.bf16.mxu0 %v6106
  %9204 = vmatpush1.bf16.msra.mxu0 %v6105
  %9205 = vmatprep.subr.bf16.mxu0 %v6122
  %9206 = vmatpush1.bf16.msra.mxu0 %v6121
  %9207 = vmatprep.subr.bf16.mxu0 %v6138
  %9208 = vmatpush1.bf16.msra.mxu0 %v6137
  %9209 = vmatprep.subr.bf16.mxu0 %v6154
  %9210 = vmatpush1.bf16.msra.mxu0 %v6153
  %9211 = vmatprep.subr.bf16.mxu0 %v6170
  %9212 = vmatpush1.bf16.msra.mxu0 %v6169
  %9213 = vmatprep.subr.bf16.mxu0 %v6186
  %9214 = vmatpush1.bf16.msra.mxu0 %v6185
  %9215 = vmatprep.mubr.bf16.mxu0 %v43
  %9216 = vmatmul.mubr.bf16.gmra.mrb[0].mxu0 %v42
  %v9217 = vpop.f32.mrb[0].mxu0
  %v9218 = vadd.f32 %v9177, %v9217
  %v9219 = vpop.f32.mrb[0].mxu0
  %v9220 = vadd.f32 %v9179, %v9219
  %v9221 = vpop.f32.mrb[0].mxu0
  %v9222 = vpop.f32.mrb[0].mxu0
  %9223 = vdwg.mxu0
  %9224 = vmatprep.subr.bf16.mxu0 %v6202
  %9225 = vmatpush1.bf16.msra.mxu0 %v6201
  %9226 = vmatprep.subr.bf16.mxu0 %v6218
  %9227 = vmatpush1.bf16.msra.mxu0 %v6217
  %9228 = vmatprep.subr.bf16.mxu0 %v6234
  %9229 = vmatpush1.bf16.msra.mxu0 %v6233
  %9230 = vmatprep.subr.bf16.mxu0 %v6250
  %9231 = vmatpush1.bf16.msra.mxu0 %v6249
  %9232 = vmatprep.subr.bf16.mxu0 %v6266
  %9233 = vmatpush1.bf16.msra.mxu0 %v6265
  %9234 = vmatprep.subr.bf16.mxu0 %v6282
  %9235 = vmatpush1.bf16.msra.mxu0 %v6281
  %9236 = vmatprep.subr.bf16.mxu0 %v6298
  %9237 = vmatpush1.bf16.msra.mxu0 %v6297
  %9238 = vmatprep.subr.bf16.mxu0 %v6314
  %9239 = vmatpush1.bf16.msra.mxu0 %v6313
  %9240 = vmatprep.subr.bf16.mxu0 %v6330
  %9241 = vmatpush1.bf16.msra.mxu0 %v6329
  %9242 = vmatprep.subr.bf16.mxu0 %v6346
  %9243 = vmatpush1.bf16.msra.mxu0 %v6345
  %9244 = vmatprep.subr.bf16.mxu0 %v6362
  %9245 = vmatpush1.bf16.msra.mxu0 %v6361
  %9246 = vmatprep.subr.bf16.mxu0 %v6378
  %9247 = vmatpush1.bf16.msra.mxu0 %v6377
  %9248 = vmatprep.subr.bf16.mxu0 %v6394
  %9249 = vmatpush1.bf16.msra.mxu0 %v6393
  %9250 = vmatprep.subr.bf16.mxu0 %v6410
  %9251 = vmatpush1.bf16.msra.mxu0 %v6409
  %9252 = vmatprep.subr.bf16.mxu0 %v6426
  %9253 = vmatpush1.bf16.msra.mxu0 %v6425
  %9254 = vmatprep.subr.bf16.mxu0 %v6442
  %9255 = vmatpush1.bf16.msra.mxu0 %v6441
  %9256 = vmatprep.mubr.bf16.mxu0 %v45
  %9257 = vmatmul.mubr.bf16.gmra.mrb[0].mxu0 %v44
  %v9258 = vpop.f32.mrb[0].mxu0
  %v9259 = vadd.f32 %v9218, %v9258
  %v9260 = vpop.f32.mrb[0].mxu0
  %v9261 = vadd.f32 %v9220, %v9260
  %v9262 = vpop.f32.mrb[0].mxu0
  %v9263 = vpop.f32.mrb[0].mxu0
  %9264 = vdwg.mxu0
  %9265 = vmatprep.subr.bf16.mxu0 %v6458
  %9266 = vmatpush1.bf16.msra.mxu0 %v6457
  %9267 = vmatprep.subr.bf16.mxu0 %v6474
  %9268 = vmatpush1.bf16.msra.mxu0 %v6473
  %9269 = vmatprep.subr.bf16.mxu0 %v6490
  %9270 = vmatpush1.bf16.msra.mxu0 %v6489
  %9271 = vmatprep.subr.bf16.mxu0 %v6506
  %9272 = vmatpush1.bf16.msra.mxu0 %v6505
  %9273 = vmatprep.subr.bf16.mxu0 %v6522
  %9274 = vmatpush1.bf16.msra.mxu0 %v6521
  %9275 = vmatprep.subr.bf16.mxu0 %v6538
  %9276 = vmatpush1.bf16.msra.mxu0 %v6537
  %9277 = vmatprep.subr.bf16.mxu0 %v6554
  %9278 = vmatpush1.bf16.msra.mxu0 %v6553
  %9279 = vmatprep.subr.bf16.mxu0 %v6570
  %9280 = vmatpush1.bf16.msra.mxu0 %v6569
  %9281 = vmatprep.subr.bf16.mxu0 %v6586
  %9282 = vmatpush1.bf16.msra.mxu0 %v6585
  %9283 = vmatprep.subr.bf16.mxu0 %v6602
  %9284 = vmatpush1.bf16.msra.mxu0 %v6601
  %9285 = vmatprep.subr.bf16.mxu0 %v6618
  %9286 = vmatpush1.bf16.msra.mxu0 %v6617
  %9287 = vmatprep.subr.bf16.mxu0 %v6634
  %9288 = vmatpush1.bf16.msra.mxu0 %v6633
  %9289 = vmatprep.subr.bf16.mxu0 %v6650
  %9290 = vmatpush1.bf16.msra.mxu0 %v6649
  %9291 = vmatprep.subr.bf16.mxu0 %v6666
  %9292 = vmatpush1.bf16.msra.mxu0 %v6665
  %9293 = vmatprep.subr.bf16.mxu0 %v6682
  %9294 = vmatpush1.bf16.msra.mxu0 %v6681
  %9295 = vmatprep.subr.bf16.mxu0 %v6698
  %9296 = vmatpush1.bf16.msra.mxu0 %v6697
  %9297 = vmatprep.mubr.bf16.mxu0 %v47
  %9298 = vmatmul.mubr.bf16.gmra.mrb[0].mxu0 %v46
  %v9299 = vpop.f32.mrb[0].mxu0
  %v9300 = vadd.f32 %v9259, %v9299
  %v9301 = vpop.f32.mrb[0].mxu0
  %v9302 = vadd.f32 %v9261, %v9301
  %v9303 = vpop.f32.mrb[0].mxu0
  %v9304 = vpop.f32.mrb[0].mxu0
  %9305 = vdwg.mxu0
  %9306 = vmatprep.subr.bf16.mxu0 %v6714
  %9307 = vmatpush1.bf16.msra.mxu0 %v6713
  %9308 = vmatprep.subr.bf16.mxu0 %v6730
  %9309 = vmatpush1.bf16.msra.mxu0 %v6729
  %9310 = vmatprep.subr.bf16.mxu0 %v6746
  %9311 = vmatpush1.bf16.msra.mxu0 %v6745
  %9312 = vmatprep.subr.bf16.mxu0 %v6762
  %9313 = vmatpush1.bf16.msra.mxu0 %v6761
  %9314 = vmatprep.subr.bf16.mxu0 0
  %9315 = vmatpush1.bf16.msra.mxu0 0
  %9316 = vmatprep.subr.bf16.mxu0 0
  %9317 = vmatpush1.bf16.msra.mxu0 0
  %9318 = vmatprep.subr.bf16.mxu0 0
  %9319 = vmatpush1.bf16.msra.mxu0 0
  %9320 = vmatprep.subr.bf16.mxu0 0
  %9321 = vmatpush1.bf16.msra.mxu0 0
  %9322 = vmatprep.subr.bf16.mxu0 0
  %9323 = vmatpush1.bf16.msra.mxu0 0
  %9324 = vmatprep.subr.bf16.mxu0 0
  %9325 = vmatpush1.bf16.msra.mxu0 0
  %9326 = vmatprep.subr.bf16.mxu0 0
  %9327 = vmatpush1.bf16.msra.mxu0 0
  %9328 = vmatprep.subr.bf16.mxu0 0
  %9329 = vmatpush1.bf16.msra.mxu0 0
  %9330 = vmatprep.subr.bf16.mxu0 0
  %9331 = vmatpush1.bf16.msra.mxu0 0
  %9332 = vmatprep.subr.bf16.mxu0 0
  %9333 = vmatpush1.bf16.msra.mxu0 0
  %9334 = vmatprep.subr.bf16.mxu0 0
  %9335 = vmatpush1.bf16.msra.mxu0 0
  %9336 = vmatprep.subr.bf16.mxu0 0
  %9337 = vmatpush1.bf16.msra.mxu0 0
  %9338 = vmatprep.mubr.bf16.mxu0 0
  %9339 = vmatmul.mubr.bf16.gmra.mrb[0].mxu0 %v8115
  %v9340 = vpop.f32.mrb[0].mxu0
  %v9341 = vadd.f32 %v9300, %v9340
  %v9342 = vpop.f32.mrb[0].mxu0
  %v9343 = vadd.f32 %v9302, %v9342
  %v9344 = vpop.f32.mrb[0].mxu0
  %v9345 = vpop.f32.mrb[0].mxu0
  %9346 = vdwg.mxu0
  %9347 = vmatprep.subr.bf16.mxu0 %v5436
  %9348 = vmatpush1.bf16.msra.mxu0 %v5435
  %9349 = vmatprep.subr.bf16.mxu0 %v5452
  %9350 = vmatpush1.bf16.msra.mxu0 %v5451
  %9351 = vmatprep.subr.bf16.mxu0 %v5468
  %9352 = vmatpush1.bf16.msra.mxu0 %v5467
  %9353 = vmatprep.subr.bf16.mxu0 %v5484
  %9354 = vmatpush1.bf16.msra.mxu0 %v5483
  %9355 = vmatprep.subr.bf16.mxu0 %v5500
  %9356 = vmatpush1.bf16.msra.mxu0 %v5499
  %9357 = vmatprep.subr.bf16.mxu0 %v5516
  %9358 = vmatpush1.bf16.msra.mxu0 %v5515
  %9359 = vmatprep.subr.bf16.mxu0 %v5532
  %9360 = vmatpush1.bf16.msra.mxu0 %v5531
  %9361 = vmatprep.subr.bf16.mxu0 %v5548
  %9362 = vmatpush1.bf16.msra.mxu0 %v5547
  %9363 = vmatprep.subr.bf16.mxu0 %v5564
  %9364 = vmatpush1.bf16.msra.mxu0 %v5563
  %9365 = vmatprep.subr.bf16.mxu0 %v5580
  %9366 = vmatpush1.bf16.msra.mxu0 %v5579
  %9367 = vmatprep.subr.bf16.mxu0 %v5596
  %9368 = vmatpush1.bf16.msra.mxu0 %v5595
  %9369 = vmatprep.subr.bf16.mxu0 %v5612
  %9370 = vmatpush1.bf16.msra.mxu0 %v5611
  %9371 = vmatprep.subr.bf16.mxu0 %v5628
  %9372 = vmatpush1.bf16.msra.mxu0 %v5627
  %9373 = vmatprep.subr.bf16.mxu0 %v5644
  %9374 = vmatpush1.bf16.msra.mxu0 %v5643
  %9375 = vmatprep.subr.bf16.mxu0 %v5660
  %9376 = vmatpush1.bf16.msra.mxu0 %v5659
  %9377 = vmatprep.subr.bf16.mxu0 %v5676
  %9378 = vmatpush1.bf16.msra.mxu0 %v5675
  %9379 = vmatprep.mubr.bf16.mxu0 %v39
  %9380 = vmatmul.mubr.bf16.gmra.mrb[0].mxu0 %v38
  %v9381 = vpop.f32.mrb[0].mxu0
  %v9382 = vadd.f32 0.0, %v9381
  %v9383 = vpop.f32.mrb[0].mxu0
  %v9384 = vadd.f32 0.0, %v9383
  %v9385 = vpop.f32.mrb[0].mxu0
  %v9386 = vpop.f32.mrb[0].mxu0
  %9387 = vdwg.mxu0
  %9388 = vmatprep.subr.bf16.mxu0 %v5692
  %9389 = vmatpush1.bf16.msra.mxu0 %v5691
  %9390 = vmatprep.subr.bf16.mxu0 %v5708
  %9391 = vmatpush1.bf16.msra.mxu0 %v5707
  %9392 = vmatprep.subr.bf16.mxu0 %v5724
  %9393 = vmatpush1.bf16.msra.mxu0 %v5723
  %9394 = vmatprep.subr.bf16.mxu0 %v5740
  %9395 = vmatpush1.bf16.msra.mxu0 %v5739
  %9396 = vmatprep.subr.bf16.mxu0 %v5756
  %9397 = vmatpush1.bf16.msra.mxu0 %v5755
  %9398 = vmatprep.subr.bf16.mxu0 %v5772
  %9399 = vmatpush1.bf16.msra.mxu0 %v5771
  %9400 = vmatprep.subr.bf16.mxu0 %v5788
  %9401 = vmatpush1.bf16.msra.mxu0 %v5787
  %9402 = vmatprep.subr.bf16.mxu0 %v5804
  %9403 = vmatpush1.bf16.msra.mxu0 %v5803
  %9404 = vmatprep.subr.bf16.mxu0 %v5820
  %9405 = vmatpush1.bf16.msra.mxu0 %v5819
  %9406 = vmatprep.subr.bf16.mxu0 %v5836
  %9407 = vmatpush1.bf16.msra.mxu0 %v5835
  %9408 = vmatprep.subr.bf16.mxu0 %v5852
  %9409 = vmatpush1.bf16.msra.mxu0 %v5851
  %9410 = vmatprep.subr.bf16.mxu0 %v5868
  %9411 = vmatpush1.bf16.msra.mxu0 %v5867
  %9412 = vmatprep.subr.bf16.mxu0 %v5884
  %9413 = vmatpush1.bf16.msra.mxu0 %v5883
  %9414 = vmatprep.subr.bf16.mxu0 %v5900
  %9415 = vmatpush1.bf16.msra.mxu0 %v5899
  %9416 = vmatprep.subr.bf16.mxu0 %v5916
  %9417 = vmatpush1.bf16.msra.mxu0 %v5915
  %9418 = vmatprep.subr.bf16.mxu0 %v5932
  %9419 = vmatpush1.bf16.msra.mxu0 %v5931
  %9420 = vmatprep.mubr.bf16.mxu0 %v41
  %9421 = vmatmul.mubr.bf16.gmra.mrb[0].mxu0 %v40
  %v9422 = vpop.f32.mrb[0].mxu0
  %v9423 = vadd.f32 %v9382, %v9422
  %v9424 = vpop.f32.mrb[0].mxu0
  %v9425 = vadd.f32 %v9384, %v9424
  %v9426 = vpop.f32.mrb[0].mxu0
  %v9427 = vpop.f32.mrb[0].mxu0
  %9428 = vdwg.mxu0
  %9429 = vmatprep.subr.bf16.mxu0 %v5948
  %9430 = vmatpush1.bf16.msra.mxu0 %v5947
  %9431 = vmatprep.subr.bf16.mxu0 %v5964
  %9432 = vmatpush1.bf16.msra.mxu0 %v5963
  %9433 = vmatprep.subr.bf16.mxu0 %v5980
  %9434 = vmatpush1.bf16.msra.mxu0 %v5979
  %9435 = vmatprep.subr.bf16.mxu0 %v5996
  %9436 = vmatpush1.bf16.msra.mxu0 %v5995
  %9437 = vmatprep.subr.bf16.mxu0 %v6012
  %9438 = vmatpush1.bf16.msra.mxu0 %v6011
  %9439 = vmatprep.subr.bf16.mxu0 %v6028
  %9440 = vmatpush1.bf16.msra.mxu0 %v6027
  %9441 = vmatprep.subr.bf16.mxu0 %v6044
  %9442 = vmatpush1.bf16.msra.mxu0 %v6043
  %9443 = vmatprep.subr.bf16.mxu0 %v6060
  %9444 = vmatpush1.bf16.msra.mxu0 %v6059
  %9445 = vmatprep.subr.bf16.mxu0 %v6076
  %9446 = vmatpush1.bf16.msra.mxu0 %v6075
  %9447 = vmatprep.subr.bf16.mxu0 %v6092
  %9448 = vmatpush1.bf16.msra.mxu0 %v6091
  %9449 = vmatprep.subr.bf16.mxu0 %v6108
  %9450 = vmatpush1.bf16.msra.mxu0 %v6107
  %9451 = vmatprep.subr.bf16.mxu0 %v6124
  %9452 = vmatpush1.bf16.msra.mxu0 %v6123
  %9453 = vmatprep.subr.bf16.mxu0 %v6140
  %9454 = vmatpush1.bf16.msra.mxu0 %v6139
  %9455 = vmatprep.subr.bf16.mxu0 %v6156
  %9456 = vmatpush1.bf16.msra.mxu0 %v6155
  %9457 = vmatprep.subr.bf16.mxu0 %v6172
  %9458 = vmatpush1.bf16.msra.mxu0 %v6171
  %9459 = vmatprep.subr.bf16.mxu0 %v6188
  %9460 = vmatpush1.bf16.msra.mxu0 %v6187
  %9461 = vmatprep.mubr.bf16.mxu0 %v43
  %9462 = vmatmul.mubr.bf16.gmra.mrb[0].mxu0 %v42
  %v9463 = vpop.f32.mrb[0].mxu0
  %v9464 = vadd.f32 %v9423, %v9463
  %v9465 = vpop.f32.mrb[0].mxu0
  %v9466 = vadd.f32 %v9425, %v9465
  %v9467 = vpop.f32.mrb[0].mxu0
  %v9468 = vpop.f32.mrb[0].mxu0
  %9469 = vdwg.mxu0
  %9470 = vmatprep.subr.bf16.mxu0 %v6204
  %9471 = vmatpush1.bf16.msra.mxu0 %v6203
  %9472 = vmatprep.subr.bf16.mxu0 %v6220
  %9473 = vmatpush1.bf16.msra.mxu0 %v6219
  %9474 = vmatprep.subr.bf16.mxu0 %v6236
  %9475 = vmatpush1.bf16.msra.mxu0 %v6235
  %9476 = vmatprep.subr.bf16.mxu0 %v6252
  %9477 = vmatpush1.bf16.msra.mxu0 %v6251
  %9478 = vmatprep.subr.bf16.mxu0 %v6268
  %9479 = vmatpush1.bf16.msra.mxu0 %v6267
  %9480 = vmatprep.subr.bf16.mxu0 %v6284
  %9481 = vmatpush1.bf16.msra.mxu0 %v6283
  %9482 = vmatprep.subr.bf16.mxu0 %v6300
  %9483 = vmatpush1.bf16.msra.mxu0 %v6299
  %9484 = vmatprep.subr.bf16.mxu0 %v6316
  %9485 = vmatpush1.bf16.msra.mxu0 %v6315
  %9486 = vmatprep.subr.bf16.mxu0 %v6332
  %9487 = vmatpush1.bf16.msra.mxu0 %v6331
  %9488 = vmatprep.subr.bf16.mxu0 %v6348
  %9489 = vmatpush1.bf16.msra.mxu0 %v6347
  %9490 = vmatprep.subr.bf16.mxu0 %v6364
  %9491 = vmatpush1.bf16.msra.mxu0 %v6363
  %9492 = vmatprep.subr.bf16.mxu0 %v6380
  %9493 = vmatpush1.bf16.msra.mxu0 %v6379
  %9494 = vmatprep.subr.bf16.mxu0 %v6396
  %9495 = vmatpush1.bf16.msra.mxu0 %v6395
  %9496 = vmatprep.subr.bf16.mxu0 %v6412
  %9497 = vmatpush1.bf16.msra.mxu0 %v6411
  %9498 = vmatprep.subr.bf16.mxu0 %v6428
  %9499 = vmatpush1.bf16.msra.mxu0 %v6427
  %9500 = vmatprep.subr.bf16.mxu0 %v6444
  %9501 = vmatpush1.bf16.msra.mxu0 %v6443
  %9502 = vmatprep.mubr.bf16.mxu0 %v45
  %9503 = vmatmul.mubr.bf16.gmra.mrb[0].mxu0 %v44
  %v9504 = vpop.f32.mrb[0].mxu0
  %v9505 = vadd.f32 %v9464, %v9504
  %v9506 = vpop.f32.mrb[0].mxu0
  %v9507 = vadd.f32 %v9466, %v9506
  %v9508 = vpop.f32.mrb[0].mxu0
  %v9509 = vpop.f32.mrb[0].mxu0
  %9510 = vdwg.mxu0
  %9511 = vmatprep.subr.bf16.mxu0 %v6460
  %9512 = vmatpush1.bf16.msra.mxu0 %v6459
  %9513 = vmatprep.subr.bf16.mxu0 %v6476
  %9514 = vmatpush1.bf16.msra.mxu0 %v6475
  %9515 = vmatprep.subr.bf16.mxu0 %v6492
  %9516 = vmatpush1.bf16.msra.mxu0 %v6491
  %9517 = vmatprep.subr.bf16.mxu0 %v6508
  %9518 = vmatpush1.bf16.msra.mxu0 %v6507
  %9519 = vmatprep.subr.bf16.mxu0 %v6524
  %9520 = vmatpush1.bf16.msra.mxu0 %v6523
  %9521 = vmatprep.subr.bf16.mxu0 %v6540
  %9522 = vmatpush1.bf16.msra.mxu0 %v6539
  %9523 = vmatprep.subr.bf16.mxu0 %v6556
  %9524 = vmatpush1.bf16.msra.mxu0 %v6555
  %9525 = vmatprep.subr.bf16.mxu0 %v6572
  %9526 = vmatpush1.bf16.msra.mxu0 %v6571
  %9527 = vmatprep.subr.bf16.mxu0 %v6588
  %9528 = vmatpush1.bf16.msra.mxu0 %v6587
  %9529 = vmatprep.subr.bf16.mxu0 %v6604
  %9530 = vmatpush1.bf16.msra.mxu0 %v6603
  %9531 = vmatprep.subr.bf16.mxu0 %v6620
  %9532 = vmatpush1.bf16.msra.mxu0 %v6619
  %9533 = vmatprep.subr.bf16.mxu0 %v6636
  %9534 = vmatpush1.bf16.msra.mxu0 %v6635
  %9535 = vmatprep.subr.bf16.mxu0 %v6652
  %9536 = vmatpush1.bf16.msra.mxu0 %v6651
  %9537 = vmatprep.subr.bf16.mxu0 %v6668
  %9538 = vmatpush1.bf16.msra.mxu0 %v6667
  %9539 = vmatprep.subr.bf16.mxu0 %v6684
  %9540 = vmatpush1.bf16.msra.mxu0 %v6683
  %9541 = vmatprep.subr.bf16.mxu0 %v6700
  %9542 = vmatpush1.bf16.msra.mxu0 %v6699
  %9543 = vmatprep.mubr.bf16.mxu0 %v47
  %9544 = vmatmul.mubr.bf16.gmra.mrb[0].mxu0 %v46
  %v9545 = vpop.f32.mrb[0].mxu0
  %v9546 = vadd.f32 %v9505, %v9545
  %v9547 = vpop.f32.mrb[0].mxu0
  %v9548 = vadd.f32 %v9507, %v9547
  %v9549 = vpop.f32.mrb[0].mxu0
  %v9550 = vpop.f32.mrb[0].mxu0
  %9551 = vdwg.mxu0
  %9552 = vmatprep.subr.bf16.mxu0 %v6716
  %9553 = vmatpush1.bf16.msra.mxu0 %v6715
  %9554 = vmatprep.subr.bf16.mxu0 %v6732
  %9555 = vmatpush1.bf16.msra.mxu0 %v6731
  %9556 = vmatprep.subr.bf16.mxu0 %v6748
  %9557 = vmatpush1.bf16.msra.mxu0 %v6747
  %9558 = vmatprep.subr.bf16.mxu0 %v6764
  %9559 = vmatpush1.bf16.msra.mxu0 %v6763
  %9560 = vmatprep.subr.bf16.mxu0 0
  %9561 = vmatpush1.bf16.msra.mxu0 0
  %9562 = vmatprep.subr.bf16.mxu0 0
  %9563 = vmatpush1.bf16.msra.mxu0 0
  %9564 = vmatprep.subr.bf16.mxu0 0
  %9565 = vmatpush1.bf16.msra.mxu0 0
  %9566 = vmatprep.subr.bf16.mxu0 0
  %9567 = vmatpush1.bf16.msra.mxu0 0
  %9568 = vmatprep.subr.bf16.mxu0 0
  %9569 = vmatpush1.bf16.msra.mxu0 0
  %9570 = vmatprep.subr.bf16.mxu0 0
  %9571 = vmatpush1.bf16.msra.mxu0 0
  %9572 = vmatprep.subr.bf16.mxu0 0
  %9573 = vmatpush1.bf16.msra.mxu0 0
  %9574 = vmatprep.subr.bf16.mxu0 0
  %9575 = vmatpush1.bf16.msra.mxu0 0
  %9576 = vmatprep.subr.bf16.mxu0 0
  %9577 = vmatpush1.bf16.msra.mxu0 0
  %9578 = vmatprep.subr.bf16.mxu0 0
  %9579 = vmatpush1.bf16.msra.mxu0 0
  %9580 = vmatprep.subr.bf16.mxu0 0
  %9581 = vmatpush1.bf16.msra.mxu0 0
  %9582 = vmatprep.subr.bf16.mxu0 0
  %9583 = vmatpush1.bf16.msra.mxu0 0
  %9584 = vmatprep.mubr.bf16.mxu0 0
  %9585 = vmatmul.mubr.bf16.gmra.mrb[0].mxu0 %v8115
  %v9586 = vpop.f32.mrb[0].mxu0
  %v9587 = vadd.f32 %v9546, %v9586
  %v9588 = vpop.f32.mrb[0].mxu0
  %v9589 = vadd.f32 %v9548, %v9588
  %v9590 = vpop.f32.mrb[0].mxu0
  %v9591 = vpop.f32.mrb[0].mxu0
  %9592 = vdwg.mxu0
  %9593 = vmatprep.subr.bf16.mxu0 %v5438
  %9594 = vmatpush1.bf16.msra.mxu0 %v5437
  %9595 = vmatprep.subr.bf16.mxu0 %v5454
  %9596 = vmatpush1.bf16.msra.mxu0 %v5453
  %9597 = vmatprep.subr.bf16.mxu0 %v5470
  %9598 = vmatpush1.bf16.msra.mxu0 %v5469
  %9599 = vmatprep.subr.bf16.mxu0 %v5486
  %9600 = vmatpush1.bf16.msra.mxu0 %v5485
  %9601 = vmatprep.subr.bf16.mxu0 %v5502
  %9602 = vmatpush1.bf16.msra.mxu0 %v5501
  %9603 = vmatprep.subr.bf16.mxu0 %v5518
  %9604 = vmatpush1.bf16.msra.mxu0 %v5517
  %9605 = vmatprep.subr.bf16.mxu0 %v5534
  %9606 = vmatpush1.bf16.msra.mxu0 %v5533
  %9607 = vmatprep.subr.bf16.mxu0 %v5550
  %9608 = vmatpush1.bf16.msra.mxu0 %v5549
  %9609 = vmatprep.subr.bf16.mxu0 %v5566
  %9610 = vmatpush1.bf16.msra.mxu0 %v5565
  %9611 = vmatprep.subr.bf16.mxu0 %v5582
  %9612 = vmatpush1.bf16.msra.mxu0 %v5581
  %9613 = vmatprep.subr.bf16.mxu0 %v5598
  %9614 = vmatpush1.bf16.msra.mxu0 %v5597
  %9615 = vmatprep.subr.bf16.mxu0 %v5614
  %9616 = vmatpush1.bf16.msra.mxu0 %v5613
  %9617 = vmatprep.subr.bf16.mxu0 %v5630
  %9618 = vmatpush1.bf16.msra.mxu0 %v5629
  %9619 = vmatprep.subr.bf16.mxu0 %v5646
  %9620 = vmatpush1.bf16.msra.mxu0 %v5645
  %9621 = vmatprep.subr.bf16.mxu0 %v5662
  %9622 = vmatpush1.bf16.msra.mxu0 %v5661
  %9623 = vmatprep.subr.bf16.mxu0 %v5678
  %9624 = vmatpush1.bf16.msra.mxu0 %v5677
  %9625 = vmatprep.mubr.bf16.mxu0 %v39
  %9626 = vmatmul.mubr.bf16.gmra.mrb[0].mxu0 %v38
  %v9627 = vpop.f32.mrb[0].mxu0
  %v9628 = vadd.f32 0.0, %v9627
  %v9629 = vpop.f32.mrb[0].mxu0
  %v9630 = vadd.f32 0.0, %v9629
  %v9631 = vpop.f32.mrb[0].mxu0
  %v9632 = vpop.f32.mrb[0].mxu0
  %9633 = vdwg.mxu0
  %9634 = vmatprep.subr.bf16.mxu0 %v5694
  %9635 = vmatpush1.bf16.msra.mxu0 %v5693
  %9636 = vmatprep.subr.bf16.mxu0 %v5710
  %9637 = vmatpush1.bf16.msra.mxu0 %v5709
  %9638 = vmatprep.subr.bf16.mxu0 %v5726
  %9639 = vmatpush1.bf16.msra.mxu0 %v5725
  %9640 = vmatprep.subr.bf16.mxu0 %v5742
  %9641 = vmatpush1.bf16.msra.mxu0 %v5741
  %9642 = vmatprep.subr.bf16.mxu0 %v5758
  %9643 = vmatpush1.bf16.msra.mxu0 %v5757
  %9644 = vmatprep.subr.bf16.mxu0 %v5774
  %9645 = vmatpush1.bf16.msra.mxu0 %v5773
  %9646 = vmatprep.subr.bf16.mxu0 %v5790
  %9647 = vmatpush1.bf16.msra.mxu0 %v5789
  %9648 = vmatprep.subr.bf16.mxu0 %v5806
  %9649 = vmatpush1.bf16.msra.mxu0 %v5805
  %9650 = vmatprep.subr.bf16.mxu0 %v5822
  %9651 = vmatpush1.bf16.msra.mxu0 %v5821
  %9652 = vmatprep.subr.bf16.mxu0 %v5838
  %9653 = vmatpush1.bf16.msra.mxu0 %v5837
  %9654 = vmatprep.subr.bf16.mxu0 %v5854
  %9655 = vmatpush1.bf16.msra.mxu0 %v5853
  %9656 = vmatprep.subr.bf16.mxu0 %v5870
  %9657 = vmatpush1.bf16.msra.mxu0 %v5869
  %9658 = vmatprep.subr.bf16.mxu0 %v5886
  %9659 = vmatpush1.bf16.msra.mxu0 %v5885
  %9660 = vmatprep.subr.bf16.mxu0 %v5902
  %9661 = vmatpush1.bf16.msra.mxu0 %v5901
  %9662 = vmatprep.subr.bf16.mxu0 %v5918
  %9663 = vmatpush1.bf16.msra.mxu0 %v5917
  %9664 = vmatprep.subr.bf16.mxu0 %v5934
  %9665 = vmatpush1.bf16.msra.mxu0 %v5933
  %9666 = vmatprep.mubr.bf16.mxu0 %v41
  %9667 = vmatmul.mubr.bf16.gmra.mrb[0].mxu0 %v40
  %v9668 = vpop.f32.mrb[0].mxu0
  %v9669 = vadd.f32 %v9628, %v9668
  %v9670 = vpop.f32.mrb[0].mxu0
  %v9671 = vadd.f32 %v9630, %v9670
  %v9672 = vpop.f32.mrb[0].mxu0
  %v9673 = vpop.f32.mrb[0].mxu0
  %9674 = vdwg.mxu0
  %9675 = vmatprep.subr.bf16.mxu0 %v5950
  %9676 = vmatpush1.bf16.msra.mxu0 %v5949
  %9677 = vmatprep.subr.bf16.mxu0 %v5966
  %9678 = vmatpush1.bf16.msra.mxu0 %v5965
  %9679 = vmatprep.subr.bf16.mxu0 %v5982
  %9680 = vmatpush1.bf16.msra.mxu0 %v5981
  %9681 = vmatprep.subr.bf16.mxu0 %v5998
  %9682 = vmatpush1.bf16.msra.mxu0 %v5997
  %9683 = vmatprep.subr.bf16.mxu0 %v6014
  %9684 = vmatpush1.bf16.msra.mxu0 %v6013
  %9685 = vmatprep.subr.bf16.mxu0 %v6030
  %9686 = vmatpush1.bf16.msra.mxu0 %v6029
  %9687 = vmatprep.subr.bf16.mxu0 %v6046
  %9688 = vmatpush1.bf16.msra.mxu0 %v6045
  %9689 = vmatprep.subr.bf16.mxu0 %v6062
  %9690 = vmatpush1.bf16.msra.mxu0 %v6061
  %9691 = vmatprep.subr.bf16.mxu0 %v6078
  %9692 = vmatpush1.bf16.msra.mxu0 %v6077
  %9693 = vmatprep.subr.bf16.mxu0 %v6094
  %9694 = vmatpush1.bf16.msra.mxu0 %v6093
  %9695 = vmatprep.subr.bf16.mxu0 %v6110
  %9696 = vmatpush1.bf16.msra.mxu0 %v6109
  %9697 = vmatprep.subr.bf16.mxu0 %v6126
  %9698 = vmatpush1.bf16.msra.mxu0 %v6125
  %9699 = vmatprep.subr.bf16.mxu0 %v6142
  %9700 = vmatpush1.bf16.msra.mxu0 %v6141
  %9701 = vmatprep.subr.bf16.mxu0 %v6158
  %9702 = vmatpush1.bf16.msra.mxu0 %v6157
  %9703 = vmatprep.subr.bf16.mxu0 %v6174
  %9704 = vmatpush1.bf16.msra.mxu0 %v6173
  %9705 = vmatprep.subr.bf16.mxu0 %v6190
  %9706 = vmatpush1.bf16.msra.mxu0 %v6189
  %9707 = vmatprep.mubr.bf16.mxu0 %v43
  %9708 = vmatmul.mubr.bf16.gmra.mrb[0].mxu0 %v42
  %v9709 = vpop.f32.mrb[0].mxu0
  %v9710 = vadd.f32 %v9669, %v9709
  %v9711 = vpop.f32.mrb[0].mxu0
  %v9712 = vadd.f32 %v9671, %v9711
  %v9713 = vpop.f32.mrb[0].mxu0
  %v9714 = vpop.f32.mrb[0].mxu0
  %9715 = vdwg.mxu0
  %9716 = vmatprep.subr.bf16.mxu0 %v6206
  %9717 = vmatpush1.bf16.msra.mxu0 %v6205
  %9718 = vmatprep.subr.bf16.mxu0 %v6222
  %9719 = vmatpush1.bf16.msra.mxu0 %v6221
  %9720 = vmatprep.subr.bf16.mxu0 %v6238
  %9721 = vmatpush1.bf16.msra.mxu0 %v6237
  %9722 = vmatprep.subr.bf16.mxu0 %v6254
  %9723 = vmatpush1.bf16.msra.mxu0 %v6253
  %9724 = vmatprep.subr.bf16.mxu0 %v6270
  %9725 = vmatpush1.bf16.msra.mxu0 %v6269
  %9726 = vmatprep.subr.bf16.mxu0 %v6286
  %9727 = vmatpush1.bf16.msra.mxu0 %v6285
  %9728 = vmatprep.subr.bf16.mxu0 %v6302
  %9729 = vmatpush1.bf16.msra.mxu0 %v6301
  %9730 = vmatprep.subr.bf16.mxu0 %v6318
  %9731 = vmatpush1.bf16.msra.mxu0 %v6317
  %9732 = vmatprep.subr.bf16.mxu0 %v6334
  %9733 = vmatpush1.bf16.msra.mxu0 %v6333
  %9734 = vmatprep.subr.bf16.mxu0 %v6350
  %9735 = vmatpush1.bf16.msra.mxu0 %v6349
  %9736 = vmatprep.subr.bf16.mxu0 %v6366
  %9737 = vmatpush1.bf16.msra.mxu0 %v6365
  %9738 = vmatprep.subr.bf16.mxu0 %v6382
  %9739 = vmatpush1.bf16.msra.mxu0 %v6381
  %9740 = vmatprep.subr.bf16.mxu0 %v6398
  %9741 = vmatpush1.bf16.msra.mxu0 %v6397
  %9742 = vmatprep.subr.bf16.mxu0 %v6414
  %9743 = vmatpush1.bf16.msra.mxu0 %v6413
  %9744 = vmatprep.subr.bf16.mxu0 %v6430
  %9745 = vmatpush1.bf16.msra.mxu0 %v6429
  %9746 = vmatprep.subr.bf16.mxu0 %v6446
  %9747 = vmatpush1.bf16.msra.mxu0 %v6445
  %9748 = vmatprep.mubr.bf16.mxu0 %v45
  %9749 = vmatmul.mubr.bf16.gmra.mrb[0].mxu0 %v44
  %v9750 = vpop.f32.mrb[0].mxu0
  %v9751 = vadd.f32 %v9710, %v9750
  %v9752 = vpop.f32.mrb[0].mxu0
  %v9753 = vadd.f32 %v9712, %v9752
  %v9754 = vpop.f32.mrb[0].mxu0
  %v9755 = vpop.f32.mrb[0].mxu0
  %9756 = vdwg.mxu0
  %9757 = vmatprep.subr.bf16.mxu0 %v6462
  %9758 = vmatpush1.bf16.msra.mxu0 %v6461
  %9759 = vmatprep.subr.bf16.mxu0 %v6478
  %9760 = vmatpush1.bf16.msra.mxu0 %v6477
  %9761 = vmatprep.subr.bf16.mxu0 %v6494
  %9762 = vmatpush1.bf16.msra.mxu0 %v6493
  %9763 = vmatprep.subr.bf16.mxu0 %v6510
  %9764 = vmatpush1.bf16.msra.mxu0 %v6509
  %9765 = vmatprep.subr.bf16.mxu0 %v6526
  %9766 = vmatpush1.bf16.msra.mxu0 %v6525
  %9767 = vmatprep.subr.bf16.mxu0 %v6542
  %9768 = vmatpush1.bf16.msra.mxu0 %v6541
  %9769 = vmatprep.subr.bf16.mxu0 %v6558
  %9770 = vmatpush1.bf16.msra.mxu0 %v6557
  %9771 = vmatprep.subr.bf16.mxu0 %v6574
  %9772 = vmatpush1.bf16.msra.mxu0 %v6573
  %9773 = vmatprep.subr.bf16.mxu0 %v6590
  %9774 = vmatpush1.bf16.msra.mxu0 %v6589
  %9775 = vmatprep.subr.bf16.mxu0 %v6606
  %9776 = vmatpush1.bf16.msra.mxu0 %v6605
  %9777 = vmatprep.subr.bf16.mxu0 %v6622
  %9778 = vmatpush1.bf16.msra.mxu0 %v6621
  %9779 = vmatprep.subr.bf16.mxu0 %v6638
  %9780 = vmatpush1.bf16.msra.mxu0 %v6637
  %9781 = vmatprep.subr.bf16.mxu0 %v6654
  %9782 = vmatpush1.bf16.msra.mxu0 %v6653
  %9783 = vmatprep.subr.bf16.mxu0 %v6670
  %9784 = vmatpush1.bf16.msra.mxu0 %v6669
  %9785 = vmatprep.subr.bf16.mxu0 %v6686
  %9786 = vmatpush1.bf16.msra.mxu0 %v6685
  %9787 = vmatprep.subr.bf16.mxu0 %v6702
  %9788 = vmatpush1.bf16.msra.mxu0 %v6701
  %9789 = vmatprep.mubr.bf16.mxu0 %v47
  %9790 = vmatmul.mubr.bf16.gmra.mrb[0].mxu0 %v46
  %v9791 = vpop.f32.mrb[0].mxu0
  %v9792 = vadd.f32 %v9751, %v9791
  %v9793 = vpop.f32.mrb[0].mxu0
  %v9794 = vadd.f32 %v9753, %v9793
  %v9795 = vpop.f32.mrb[0].mxu0
  %v9796 = vpop.f32.mrb[0].mxu0
  %9797 = vdwg.mxu0
  %9798 = vmatprep.subr.bf16.mxu0 %v6718
  %9799 = vmatpush1.bf16.msra.mxu0 %v6717
  %9800 = vmatprep.subr.bf16.mxu0 %v6734
  %9801 = vmatpush1.bf16.msra.mxu0 %v6733
  %9802 = vmatprep.subr.bf16.mxu0 %v6750
  %9803 = vmatpush1.bf16.msra.mxu0 %v6749
  %9804 = vmatprep.subr.bf16.mxu0 %v6766
  %9805 = vmatpush1.bf16.msra.mxu0 %v6765
  %9806 = vmatprep.subr.bf16.mxu0 0
  %9807 = vmatpush1.bf16.msra.mxu0 0
  %9808 = vmatprep.subr.bf16.mxu0 0
  %9809 = vmatpush1.bf16.msra.mxu0 0
  %9810 = vmatprep.subr.bf16.mxu0 0
  %9811 = vmatpush1.bf16.msra.mxu0 0
  %9812 = vmatprep.subr.bf16.mxu0 0
  %9813 = vmatpush1.bf16.msra.mxu0 0
  %9814 = vmatprep.subr.bf16.mxu0 0
  %9815 = vmatpush1.bf16.msra.mxu0 0
  %9816 = vmatprep.subr.bf16.mxu0 0
  %9817 = vmatpush1.bf16.msra.mxu0 0
  %9818 = vmatprep.subr.bf16.mxu0 0
  %9819 = vmatpush1.bf16.msra.mxu0 0
  %9820 = vmatprep.subr.bf16.mxu0 0
  %9821 = vmatpush1.bf16.msra.mxu0 0
  %9822 = vmatprep.subr.bf16.mxu0 0
  %9823 = vmatpush1.bf16.msra.mxu0 0
  %9824 = vmatprep.subr.bf16.mxu0 0
  %9825 = vmatpush1.bf16.msra.mxu0 0
  %9826 = vmatprep.subr.bf16.mxu0 0
  %9827 = vmatpush1.bf16.msra.mxu0 0
  %9828 = vmatprep.subr.bf16.mxu0 0
  %9829 = vmatpush1.bf16.msra.mxu0 0
  %9830 = vmatprep.mubr.bf16.mxu0 0
  %9831 = vmatmul.mubr.bf16.gmra.mrb[0].mxu0 %v8115
  %v9832 = vpop.f32.mrb[0].mxu0
  %v9833 = vadd.f32 %v9792, %v9832
  %v9834 = vpop.f32.mrb[0].mxu0
  %v9835 = vadd.f32 %v9794, %v9834
  %v9836 = vpop.f32.mrb[0].mxu0
  %v9837 = vpop.f32.mrb[0].mxu0
  %9838 = vdwg.mxu0
  %9839 = vmatprep.subr.bf16.mxu0 %v5440
  %9840 = vmatpush1.bf16.msra.mxu0 %v5439
  %9841 = vmatprep.subr.bf16.mxu0 %v5456
  %9842 = vmatpush1.bf16.msra.mxu0 %v5455
  %9843 = vmatprep.subr.bf16.mxu0 %v5472
  %9844 = vmatpush1.bf16.msra.mxu0 %v5471
  %9845 = vmatprep.subr.bf16.mxu0 %v5488
  %9846 = vmatpush1.bf16.msra.mxu0 %v5487
  %9847 = vmatprep.subr.bf16.mxu0 %v5504
  %9848 = vmatpush1.bf16.msra.mxu0 %v5503
  %9849 = vmatprep.subr.bf16.mxu0 %v5520
  %9850 = vmatpush1.bf16.msra.mxu0 %v5519
  %9851 = vmatprep.subr.bf16.mxu0 %v5536
  %9852 = vmatpush1.bf16.msra.mxu0 %v5535
  %9853 = vmatprep.subr.bf16.mxu0 %v5552
  %9854 = vmatpush1.bf16.msra.mxu0 %v5551
  %9855 = vmatprep.subr.bf16.mxu0 %v5568
  %9856 = vmatpush1.bf16.msra.mxu0 %v5567
  %9857 = vmatprep.subr.bf16.mxu0 %v5584
  %9858 = vmatpush1.bf16.msra.mxu0 %v5583
  %9859 = vmatprep.subr.bf16.mxu0 %v5600
  %9860 = vmatpush1.bf16.msra.mxu0 %v5599
  %9861 = vmatprep.subr.bf16.mxu0 %v5616
  %9862 = vmatpush1.bf16.msra.mxu0 %v5615
  %9863 = vmatprep.subr.bf16.mxu0 %v5632
  %9864 = vmatpush1.bf16.msra.mxu0 %v5631
  %9865 = vmatprep.subr.bf16.mxu0 %v5648
  %9866 = vmatpush1.bf16.msra.mxu0 %v5647
  %9867 = vmatprep.subr.bf16.mxu0 %v5664
  %9868 = vmatpush1.bf16.msra.mxu0 %v5663
  %9869 = vmatprep.subr.bf16.mxu0 %v5680
  %9870 = vmatpush1.bf16.msra.mxu0 %v5679
  %9871 = vmatprep.mubr.bf16.mxu0 %v39
  %9872 = vmatmul.mubr.bf16.gmra.mrb[0].mxu0 %v38
  %v9873 = vpop.f32.mrb[0].mxu0
  %v9874 = vadd.f32 0.0, %v9873
  %v9875 = vpop.f32.mrb[0].mxu0
  %v9876 = vadd.f32 0.0, %v9875
  %v9877 = vpop.f32.mrb[0].mxu0
  %v9878 = vpop.f32.mrb[0].mxu0
  %9879 = vdwg.mxu0
  %9880 = vmatprep.subr.bf16.mxu0 %v5696
  %9881 = vmatpush1.bf16.msra.mxu0 %v5695
  %9882 = vmatprep.subr.bf16.mxu0 %v5712
  %9883 = vmatpush1.bf16.msra.mxu0 %v5711
  %9884 = vmatprep.subr.bf16.mxu0 %v5728
  %9885 = vmatpush1.bf16.msra.mxu0 %v5727
  %9886 = vmatprep.subr.bf16.mxu0 %v5744
  %9887 = vmatpush1.bf16.msra.mxu0 %v5743
  %9888 = vmatprep.subr.bf16.mxu0 %v5760
  %9889 = vmatpush1.bf16.msra.mxu0 %v5759
  %9890 = vmatprep.subr.bf16.mxu0 %v5776
  %9891 = vmatpush1.bf16.msra.mxu0 %v5775
  %9892 = vmatprep.subr.bf16.mxu0 %v5792
  %9893 = vmatpush1.bf16.msra.mxu0 %v5791
  %9894 = vmatprep.subr.bf16.mxu0 %v5808
  %9895 = vmatpush1.bf16.msra.mxu0 %v5807
  %9896 = vmatprep.subr.bf16.mxu0 %v5824
  %9897 = vmatpush1.bf16.msra.mxu0 %v5823
  %9898 = vmatprep.subr.bf16.mxu0 %v5840
  %9899 = vmatpush1.bf16.msra.mxu0 %v5839
  %9900 = vmatprep.subr.bf16.mxu0 %v5856
  %9901 = vmatpush1.bf16.msra.mxu0 %v5855
  %9902 = vmatprep.subr.bf16.mxu0 %v5872
  %9903 = vmatpush1.bf16.msra.mxu0 %v5871
  %9904 = vmatprep.subr.bf16.mxu0 %v5888
  %9905 = vmatpush1.bf16.msra.mxu0 %v5887
  %9906 = vmatprep.subr.bf16.mxu0 %v5904
  %9907 = vmatpush1.bf16.msra.mxu0 %v5903
  %9908 = vmatprep.subr.bf16.mxu0 %v5920
  %9909 = vmatpush1.bf16.msra.mxu0 %v5919
  %9910 = vmatprep.subr.bf16.mxu0 %v5936
  %9911 = vmatpush1.bf16.msra.mxu0 %v5935
  %9912 = vmatprep.mubr.bf16.mxu0 %v41
  %9913 = vmatmul.mubr.bf16.gmra.mrb[0].mxu0 %v40
  %v9914 = vpop.f32.mrb[0].mxu0
  %v9915 = vadd.f32 %v9874, %v9914
  %v9916 = vpop.f32.mrb[0].mxu0
  %v9917 = vadd.f32 %v9876, %v9916
  %v9918 = vpop.f32.mrb[0].mxu0
  %v9919 = vpop.f32.mrb[0].mxu0
  %9920 = vdwg.mxu0
  %9921 = vmatprep.subr.bf16.mxu0 %v5952
  %9922 = vmatpush1.bf16.msra.mxu0 %v5951
  %9923 = vmatprep.subr.bf16.mxu0 %v5968
  %9924 = vmatpush1.bf16.msra.mxu0 %v5967
  %9925 = vmatprep.subr.bf16.mxu0 %v5984
  %9926 = vmatpush1.bf16.msra.mxu0 %v5983
  %9927 = vmatprep.subr.bf16.mxu0 %v6000
  %9928 = vmatpush1.bf16.msra.mxu0 %v5999
  %9929 = vmatprep.subr.bf16.mxu0 %v6016
  %9930 = vmatpush1.bf16.msra.mxu0 %v6015
  %9931 = vmatprep.subr.bf16.mxu0 %v6032
  %9932 = vmatpush1.bf16.msra.mxu0 %v6031
  %9933 = vmatprep.subr.bf16.mxu0 %v6048
  %9934 = vmatpush1.bf16.msra.mxu0 %v6047
  %9935 = vmatprep.subr.bf16.mxu0 %v6064
  %9936 = vmatpush1.bf16.msra.mxu0 %v6063
  %9937 = vmatprep.subr.bf16.mxu0 %v6080
  %9938 = vmatpush1.bf16.msra.mxu0 %v6079
  %9939 = vmatprep.subr.bf16.mxu0 %v6096
  %9940 = vmatpush1.bf16.msra.mxu0 %v6095
  %9941 = vmatprep.subr.bf16.mxu0 %v6112
  %9942 = vmatpush1.bf16.msra.mxu0 %v6111
  %9943 = vmatprep.subr.bf16.mxu0 %v6128
  %9944 = vmatpush1.bf16.msra.mxu0 %v6127
  %9945 = vmatprep.subr.bf16.mxu0 %v6144
  %9946 = vmatpush1.bf16.msra.mxu0 %v6143
  %9947 = vmatprep.subr.bf16.mxu0 %v6160
  %9948 = vmatpush1.bf16.msra.mxu0 %v6159
  %9949 = vmatprep.subr.bf16.mxu0 %v6176
  %9950 = vmatpush1.bf16.msra.mxu0 %v6175
  %9951 = vmatprep.subr.bf16.mxu0 %v6192
  %9952 = vmatpush1.bf16.msra.mxu0 %v6191
  %9953 = vmatprep.mubr.bf16.mxu0 %v43
  %9954 = vmatmul.mubr.bf16.gmra.mrb[0].mxu0 %v42
  %v9955 = vpop.f32.mrb[0].mxu0
  %v9956 = vadd.f32 %v9915, %v9955
  %v9957 = vpop.f32.mrb[0].mxu0
  %v9958 = vadd.f32 %v9917, %v9957
  %v9959 = vpop.f32.mrb[0].mxu0
  %v9960 = vpop.f32.mrb[0].mxu0
  %9961 = vdwg.mxu0
  %9962 = vmatprep.subr.bf16.mxu0 %v6208
  %9963 = vmatpush1.bf16.msra.mxu0 %v6207
  %9964 = vmatprep.subr.bf16.mxu0 %v6224
  %9965 = vmatpush1.bf16.msra.mxu0 %v6223
  %9966 = vmatprep.subr.bf16.mxu0 %v6240
  %9967 = vmatpush1.bf16.msra.mxu0 %v6239
  %9968 = vmatprep.subr.bf16.mxu0 %v6256
  %9969 = vmatpush1.bf16.msra.mxu0 %v6255
  %9970 = vmatprep.subr.bf16.mxu0 %v6272
  %9971 = vmatpush1.bf16.msra.mxu0 %v6271
  %9972 = vmatprep.subr.bf16.mxu0 %v6288
  %9973 = vmatpush1.bf16.msra.mxu0 %v6287
  %9974 = vmatprep.subr.bf16.mxu0 %v6304
  %9975 = vmatpush1.bf16.msra.mxu0 %v6303
  %9976 = vmatprep.subr.bf16.mxu0 %v6320
  %9977 = vmatpush1.bf16.msra.mxu0 %v6319
  %9978 = vmatprep.subr.bf16.mxu0 %v6336
  %9979 = vmatpush1.bf16.msra.mxu0 %v6335
  %9980 = vmatprep.subr.bf16.mxu0 %v6352
  %9981 = vmatpush1.bf16.msra.mxu0 %v6351
  %9982 = vmatprep.subr.bf16.mxu0 %v6368
  %9983 = vmatpush1.bf16.msra.mxu0 %v6367
  %9984 = vmatprep.subr.bf16.mxu0 %v6384
  %9985 = vmatpush1.bf16.msra.mxu0 %v6383
  %9986 = vmatprep.subr.bf16.mxu0 %v6400
  %9987 = vmatpush1.bf16.msra.mxu0 %v6399
  %9988 = vmatprep.subr.bf16.mxu0 %v6416
  %9989 = vmatpush1.bf16.msra.mxu0 %v6415
  %9990 = vmatprep.subr.bf16.mxu0 %v6432
  %9991 = vmatpush1.bf16.msra.mxu0 %v6431
  %9992 = vmatprep.subr.bf16.mxu0 %v6448
  %9993 = vmatpush1.bf16.msra.mxu0 %v6447
  %9994 = vmatprep.mubr.bf16.mxu0 %v45
  %9995 = vmatmul.mubr.bf16.gmra.mrb[0].mxu0 %v44
  %v9996 = vpop.f32.mrb[0].mxu0
  %v9997 = vadd.f32 %v9956, %v9996
  %v9998 = vpop.f32.mrb[0].mxu0
  %v9999 = vadd.f32 %v9958, %v9998
  %v10000 = vpop.f32.mrb[0].mxu0
  %v10001 = vpop.f32.mrb[0].mxu0
  %10002 = vdwg.mxu0
  %10003 = vmatprep.subr.bf16.mxu0 %v6464
  %10004 = vmatpush1.bf16.msra.mxu0 %v6463
  %10005 = vmatprep.subr.bf16.mxu0 %v6480
  %10006 = vmatpush1.bf16.msra.mxu0 %v6479
  %10007 = vmatprep.subr.bf16.mxu0 %v6496
  %10008 = vmatpush1.bf16.msra.mxu0 %v6495
  %10009 = vmatprep.subr.bf16.mxu0 %v6512
  %10010 = vmatpush1.bf16.msra.mxu0 %v6511
  %10011 = vmatprep.subr.bf16.mxu0 %v6528
  %10012 = vmatpush1.bf16.msra.mxu0 %v6527
  %10013 = vmatprep.subr.bf16.mxu0 %v6544
  %10014 = vmatpush1.bf16.msra.mxu0 %v6543
  %10015 = vmatprep.subr.bf16.mxu0 %v6560
  %10016 = vmatpush1.bf16.msra.mxu0 %v6559
  %10017 = vmatprep.subr.bf16.mxu0 %v6576
  %10018 = vmatpush1.bf16.msra.mxu0 %v6575
  %10019 = vmatprep.subr.bf16.mxu0 %v6592
  %10020 = vmatpush1.bf16.msra.mxu0 %v6591
  %10021 = vmatprep.subr.bf16.mxu0 %v6608
  %10022 = vmatpush1.bf16.msra.mxu0 %v6607
  %10023 = vmatprep.subr.bf16.mxu0 %v6624
  %10024 = vmatpush1.bf16.msra.mxu0 %v6623
  %10025 = vmatprep.subr.bf16.mxu0 %v6640
  %10026 = vmatpush1.bf16.msra.mxu0 %v6639
  %10027 = vmatprep.subr.bf16.mxu0 %v6656
  %10028 = vmatpush1.bf16.msra.mxu0 %v6655
  %10029 = vmatprep.subr.bf16.mxu0 %v6672
  %10030 = vmatpush1.bf16.msra.mxu0 %v6671
  %10031 = vmatprep.subr.bf16.mxu0 %v6688
  %10032 = vmatpush1.bf16.msra.mxu0 %v6687
  %10033 = vmatprep.subr.bf16.mxu0 %v6704
  %10034 = vmatpush1.bf16.msra.mxu0 %v6703
  %10035 = vmatprep.mubr.bf16.mxu0 %v47
  %10036 = vmatmul.mubr.bf16.gmra.mrb[0].mxu0 %v46
  %v10037 = vpop.f32.mrb[0].mxu0
  %v10038 = vadd.f32 %v9997, %v10037
  %v10039 = vpop.f32.mrb[0].mxu0
  %v10040 = vadd.f32 %v9999, %v10039
  %v10041 = vpop.f32.mrb[0].mxu0
  %v10042 = vpop.f32.mrb[0].mxu0
  %10043 = vdwg.mxu0
  %10044 = vmatprep.subr.bf16.mxu0 %v6720
  %10045 = vmatpush1.bf16.msra.mxu0 %v6719
  %10046 = vmatprep.subr.bf16.mxu0 %v6736
  %10047 = vmatpush1.bf16.msra.mxu0 %v6735
  %10048 = vmatprep.subr.bf16.mxu0 %v6752
  %10049 = vmatpush1.bf16.msra.mxu0 %v6751
  %10050 = vmatprep.subr.bf16.mxu0 %v6768
  %10051 = vmatpush1.bf16.msra.mxu0 %v6767
  %10052 = vmatprep.subr.bf16.mxu0 0
  %10053 = vmatpush1.bf16.msra.mxu0 0
  %10054 = vmatprep.subr.bf16.mxu0 0
  %10055 = vmatpush1.bf16.msra.mxu0 0
  %10056 = vmatprep.subr.bf16.mxu0 0
  %10057 = vmatpush1.bf16.msra.mxu0 0
  %10058 = vmatprep.subr.bf16.mxu0 0
  %10059 = vmatpush1.bf16.msra.mxu0 0
  %10060 = vmatprep.subr.bf16.mxu0 0
  %10061 = vmatpush1.bf16.msra.mxu0 0
  %10062 = vmatprep.subr.bf16.mxu0 0
  %10063 = vmatpush1.bf16.msra.mxu0 0
  %10064 = vmatprep.subr.bf16.mxu0 0
  %10065 = vmatpush1.bf16.msra.mxu0 0
  %10066 = vmatprep.subr.bf16.mxu0 0
  %10067 = vmatpush1.bf16.msra.mxu0 0
  %10068 = vmatprep.subr.bf16.mxu0 0
  %10069 = vmatpush1.bf16.msra.mxu0 0
  %10070 = vmatprep.subr.bf16.mxu0 0
  %10071 = vmatpush1.bf16.msra.mxu0 0
  %10072 = vmatprep.subr.bf16.mxu0 0
  %10073 = vmatpush1.bf16.msra.mxu0 0
  %10074 = vmatprep.subr.bf16.mxu0 0
  %10075 = vmatpush1.bf16.msra.mxu0 0
  %10076 = vmatprep.mubr.bf16.mxu0 0
  %10077 = vmatmul.mubr.bf16.gmra.mrb[0].mxu0 %v8115
  %v10078 = vpop.f32.mrb[0].mxu0
  %v10079 = vadd.f32 %v10038, %v10078
  %v10080 = vpop.f32.mrb[0].mxu0
  %v10081 = vadd.f32 %v10040, %v10080
  %v10082 = vpop.f32.mrb[0].mxu0
  %v10083 = vpop.f32.mrb[0].mxu0
  %10084 = vdwg.mxu0
  %v10085 = vmax.f32 %v8357, %v8849
  %v10086 = vmax.f32 %v8359, %v8851
  %v10087 = vmax.f32 %v8603, %v9095
  %v10088 = vmax.f32 %v8605, %v9097
  %v10089 = vmax.f32 %v9341, %v9833
  %v10090 = vmax.f32 %v9343, %v9835
  %v10091 = vmax.f32 %v9587, %v10079
  %v10092 = vmax.f32 %v9589, %v10081
  %v10093 = vmax.f32 %v10085, %v10089
  %v10094 = vmax.f32 %v10086, %v10090
  %v10095 = vmax.f32 %v10087, %v10091
  %v10096 = vmax.f32 %v10088, %v10092
  %v10097 = vld [vmem:[%s3] sm:$0xf]
  %v10099 = vlaneseq
  %v10100 = vshrl.u32 %v10099, 7
  %v10101 = vsub.s32 0, %v10100
  %v10102 = vrot.slane %v10097, %v10101
  %v10103 = vlaneseq
  %v10104 = vshrl.u32 %v10103, 7
  %v10105 = vsub.s32 1, %v10104
  %v10106 = vrot.slane %v10097, %v10105
  %v10107 = vlaneseq
  %v10108 = vshrl.u32 %v10107, 7
  %v10109 = vsub.s32 2, %v10108
  %v10110 = vrot.slane %v10097, %v10109
  %v10111 = vlaneseq
  %v10112 = vshrl.u32 %v10111, 7
  %v10113 = vsub.s32 3, %v10112
  %v10114 = vrot.slane %v10097, %v10113
  %v10119 = vadd.f32 %v10093, %v10102
  %v10120 = vadd.f32 %v10094, %v10106
  %v10121 = vadd.f32 %v10095, %v10110
  %v10122 = vadd.f32 %v10096, %v10114
  %v10123 = vmax.f32 %v10119, 0.0
  %v10124 = vmax.f32 %v10120, 0.0
  %v10125 = vmax.f32 %v10121, 0.0
  %v10126 = vmax.f32 %v10122, 0.0
  %v10127 = vpack.c.bf16 %v10123, %v10123
  %v10128 = vpack.c.bf16 %v10124, %v10124
  %v10129 = vpack.c.bf16 %v10125, %v10125
  %v10130 = vpack.c.bf16 %v10126, %v10126
  %v10131 = vld [vmem:[%s4] sm:$0xff]
  %v10132 = vld [vmem:[%s4 + $0x8] sm:$0xff]
  %v10133 = vld [vmem:[%s4 + $0x10] sm:$0xff]
  %v10134 = vld [vmem:[%s4 + $0x18] sm:$0xff]
  %v10135 = vld [vmem:[%s4 + $0x20] sm:$0xff]
  %v10136 = vld [vmem:[%s4 + $0x28] sm:$0xff]
  %v10137 = vld [vmem:[%s4 + $0x30] sm:$0xff]
  %v10138 = vld [vmem:[%s4 + $0x38] sm:$0xff]
  %v10139 = vld [vmem:[%s4 + $0x40] sm:$0xff]
  %v10140 = vld [vmem:[%s4 + $0x48] sm:$0xff]
  %v10141 = vld [vmem:[%s4 + $0x50] sm:$0xff]
  %v10142 = vld [vmem:[%s4 + $0x58] sm:$0xff]
  %v10143 = vld [vmem:[%s4 + $0x60] sm:$0xff]
  %v10144 = vld [vmem:[%s4 + $0x68] sm:$0xff]
  %v10145 = vld [vmem:[%s4 + $0x70] sm:$0xff]
  %v10146 = vld [vmem:[%s4 + $0x78] sm:$0xff]
  %v10147 = vld [vmem:[%s4 + $0x80] sm:$0xff]
  %v10148 = vld [vmem:[%s4 + $0x88] sm:$0xff]
  %v10149 = vld [vmem:[%s4 + $0x90] sm:$0xff]
  %v10150 = vld [vmem:[%s4 + $0x98] sm:$0xff]
  %v10151 = vld [vmem:[%s4 + $0xa0] sm:$0xff]
  %v10152 = vld [vmem:[%s4 + $0xa8] sm:$0xff]
  %v10153 = vld [vmem:[%s4 + $0xb0] sm:$0xff]
  %v10154 = vld [vmem:[%s4 + $0xb8] sm:$0xff]
  %v10155 = vld [vmem:[%s4 + $0xc0] sm:$0xff]
  %v10156 = vld [vmem:[%s4 + $0xc8] sm:$0xff]
  %v10157 = vld [vmem:[%s4 + $0xd0] sm:$0xff]
  %v10158 = vld [vmem:[%s4 + $0xd8] sm:$0xff]
  %v10159 = vld [vmem:[%s4 + $0xe0] sm:$0xff]
  %v10160 = vld [vmem:[%s4 + $0xe8] sm:$0xff]
  %v10161 = vld [vmem:[%s4 + $0xf0] sm:$0xff]
  %v10162 = vld [vmem:[%s4 + $0xf8] sm:$0xff]
  %v10163 = vld [vmem:[%s4 + $0x100] sm:$0xff]
  %v10164 = vld [vmem:[%s4 + $0x108] sm:$0xff]
  %v10165 = vld [vmem:[%s4 + $0x110] sm:$0xff]
  %v10166 = vld [vmem:[%s4 + $0x118] sm:$0xff]
  %v10167 = vld [vmem:[%s4 + $0x120] sm:$0xff]
  %v10168 = vld [vmem:[%s4 + $0x128] sm:$0xff]
  %v10169 = vld [vmem:[%s4 + $0x130] sm:$0xff]
  %v10170 = vld [vmem:[%s4 + $0x138] sm:$0xff]
  %v10171 = vld [vmem:[%s4 + $0x140] sm:$0xff]
  %v10172 = vld [vmem:[%s4 + $0x148] sm:$0xff]
  %v10173 = vld [vmem:[%s4 + $0x150] sm:$0xff]
  %v10174 = vld [vmem:[%s4 + $0x158] sm:$0xff]
  %v10175 = vld [vmem:[%s4 + $0x160] sm:$0xff]
  %v10176 = vld [vmem:[%s4 + $0x168] sm:$0xff]
  %v10177 = vld [vmem:[%s4 + $0x170] sm:$0xff]
  %v10178 = vld [vmem:[%s4 + $0x178] sm:$0xff]
  %v10179 = vld [vmem:[%s4 + $0x180] sm:$0xff]
  %v10180 = vld [vmem:[%s4 + $0x188] sm:$0xff]
  %v10181 = vld [vmem:[%s4 + $0x190] sm:$0xff]
  %v10182 = vld [vmem:[%s4 + $0x198] sm:$0xff]
  %v10183 = vld [vmem:[%s4 + $0x1a0] sm:$0xff]
  %v10184 = vld [vmem:[%s4 + $0x1a8] sm:$0xff]
  %v10185 = vld [vmem:[%s4 + $0x1b0] sm:$0xff]
  %v10186 = vld [vmem:[%s4 + $0x1b8] sm:$0xff]
  %v10187 = vld [vmem:[%s4 + $0x1c0] sm:$0xff]
  %v10188 = vld [vmem:[%s4 + $0x1c8] sm:$0xff]
  %v10189 = vld [vmem:[%s4 + $0x1d0] sm:$0xff]
  %v10190 = vld [vmem:[%s4 + $0x1d8] sm:$0xff]
  %v10191 = vld [vmem:[%s4 + $0x1e0] sm:$0xff]
  %v10192 = vld [vmem:[%s4 + $0x1e8] sm:$0xff]
  %v10193 = vld [vmem:[%s4 + $0x1f0] sm:$0xff]
  %v10194 = vld [vmem:[%s4 + $0x1f8] sm:$0xff]
  %v10195 = vld [vmem:[%s4 + $0x200] sm:$0xff]
  %v10196 = vld [vmem:[%s4 + $0x208] sm:$0xff]
  %v10197 = vld [vmem:[%s4 + $0x210] sm:$0xff]
  %v10198 = vld [vmem:[%s4 + $0x218] sm:$0xff]
  %v10199 = vld [vmem:[%s4 + $0x220] sm:$0xff]
  %v10200 = vld [vmem:[%s4 + $0x228] sm:$0xff]
  %v10201 = vld [vmem:[%s4 + $0x230] sm:$0xff]
  %v10202 = vld [vmem:[%s4 + $0x238] sm:$0xff]
  %v10203 = vld [vmem:[%s4 + $0x240] sm:$0xff]
  %v10204 = vld [vmem:[%s4 + $0x248] sm:$0xff]
  %v10205 = vld [vmem:[%s4 + $0x250] sm:$0xff]
  %v10206 = vld [vmem:[%s4 + $0x258] sm:$0xff]
  %v10207 = vld [vmem:[%s4 + $0x260] sm:$0xff]
  %v10208 = vld [vmem:[%s4 + $0x268] sm:$0xff]
  %v10209 = vld [vmem:[%s4 + $0x270] sm:$0xff]
  %v10210 = vld [vmem:[%s4 + $0x278] sm:$0xff]
  %v10211 = vld [vmem:[%s4 + $0x280] sm:$0xff]
  %v10212 = vld [vmem:[%s4 + $0x288] sm:$0xff]
  %v10213 = vld [vmem:[%s4 + $0x290] sm:$0xff]
  %v10214 = vld [vmem:[%s4 + $0x298] sm:$0xff]
  %v10215 = vld [vmem:[%s4 + $0x2a0] sm:$0xff]
  %v10216 = vld [vmem:[%s4 + $0x2a8] sm:$0xff]
  %v10217 = vld [vmem:[%s4 + $0x2b0] sm:$0xff]
  %v10218 = vld [vmem:[%s4 + $0x2b8] sm:$0xff]
  %v10219 = vld [vmem:[%s4 + $0x2c0] sm:$0xff]
  %v10220 = vld [vmem:[%s4 + $0x2c8] sm:$0xff]
  %v10221 = vld [vmem:[%s4 + $0x2d0] sm:$0xff]
  %v10222 = vld [vmem:[%s4 + $0x2d8] sm:$0xff]
  %v10223 = vld [vmem:[%s4 + $0x2e0] sm:$0xff]
  %v10224 = vld [vmem:[%s4 + $0x2e8] sm:$0xff]
  %v10225 = vld [vmem:[%s4 + $0x2f0] sm:$0xff]
  %v10226 = vld [vmem:[%s4 + $0x2f8] sm:$0xff]
  %v10227 = vld [vmem:[%s4 + $0x300] sm:$0xff]
  %v10228 = vld [vmem:[%s4 + $0x308] sm:$0xff]
  %v10229 = vld [vmem:[%s4 + $0x310] sm:$0xff]
  %v10230 = vld [vmem:[%s4 + $0x318] sm:$0xff]
  %v10231 = vld [vmem:[%s4 + $0x320] sm:$0xff]
  %v10232 = vld [vmem:[%s4 + $0x328] sm:$0xff]
  %v10233 = vld [vmem:[%s4 + $0x330] sm:$0xff]
  %v10234 = vld [vmem:[%s4 + $0x338] sm:$0xff]
  %v10235 = vld [vmem:[%s4 + $0x340] sm:$0xff]
  %v10236 = vld [vmem:[%s4 + $0x348] sm:$0xff]
  %v10237 = vld [vmem:[%s4 + $0x350] sm:$0xff]
  %v10238 = vld [vmem:[%s4 + $0x358] sm:$0xff]
  %v10239 = vld [vmem:[%s4 + $0x360] sm:$0xff]
  %v10240 = vld [vmem:[%s4 + $0x368] sm:$0xff]
  %v10241 = vld [vmem:[%s4 + $0x370] sm:$0xff]
  %v10242 = vld [vmem:[%s4 + $0x378] sm:$0xff]
  %v10243 = vld [vmem:[%s4 + $0x380] sm:$0xff]
  %v10244 = vld [vmem:[%s4 + $0x388] sm:$0xff]
  %v10245 = vld [vmem:[%s4 + $0x390] sm:$0xff]
  %v10246 = vld [vmem:[%s4 + $0x398] sm:$0xff]
  %v10247 = vld [vmem:[%s4 + $0x3a0] sm:$0xff]
  %v10248 = vld [vmem:[%s4 + $0x3a8] sm:$0xff]
  %v10249 = vld [vmem:[%s4 + $0x3b0] sm:$0xff]
  %v10250 = vld [vmem:[%s4 + $0x3b8] sm:$0xff]
  %v10251 = vld [vmem:[%s4 + $0x3c0] sm:$0xff]
  %v10252 = vld [vmem:[%s4 + $0x3c8] sm:$0xff]
  %v10253 = vld [vmem:[%s4 + $0x3d0] sm:$0xff]
  %v10254 = vld [vmem:[%s4 + $0x3d8] sm:$0xff]
  %v10255 = vld [vmem:[%s4 + $0x3e0] sm:$0xff]
  %v10256 = vld [vmem:[%s4 + $0x3e8] sm:$0xff]
  %v10257 = vld [vmem:[%s4 + $0x3f0] sm:$0xff]
  %v10258 = vld [vmem:[%s4 + $0x3f8] sm:$0xff]
  %v10387 = vunpack.c.l.b16 %v10131
  %v10388 = vunpack.c.h.b16 %v10131
  %v10389 = vunpack.c.l.b16 %v10132
  %v10390 = vunpack.c.h.b16 %v10132
  %v10391 = vunpack.c.l.b16 %v10133
  %v10392 = vunpack.c.h.b16 %v10133
  %v10393 = vunpack.c.l.b16 %v10134
  %v10394 = vunpack.c.h.b16 %v10134
  %v10395 = vunpack.c.l.b16 %v10135
  %v10396 = vunpack.c.h.b16 %v10135
  %v10397 = vunpack.c.l.b16 %v10136
  %v10398 = vunpack.c.h.b16 %v10136
  %v10399 = vunpack.c.l.b16 %v10137
  %v10400 = vunpack.c.h.b16 %v10137
  %v10401 = vunpack.c.l.b16 %v10138
  %v10402 = vunpack.c.h.b16 %v10138
  %v10403 = vunpack.c.l.b16 %v10139
  %v10404 = vunpack.c.h.b16 %v10139
  %v10405 = vunpack.c.l.b16 %v10140
  %v10406 = vunpack.c.h.b16 %v10140
  %v10407 = vunpack.c.l.b16 %v10141
  %v10408 = vunpack.c.h.b16 %v10141
  %v10409 = vunpack.c.l.b16 %v10142
  %v10410 = vunpack.c.h.b16 %v10142
  %v10411 = vunpack.c.l.b16 %v10143
  %v10412 = vunpack.c.h.b16 %v10143
  %v10413 = vunpack.c.l.b16 %v10144
  %v10414 = vunpack.c.h.b16 %v10144
  %v10415 = vunpack.c.l.b16 %v10145
  %v10416 = vunpack.c.h.b16 %v10145
  %v10417 = vunpack.c.l.b16 %v10146
  %v10418 = vunpack.c.h.b16 %v10146
  %v10419 = vunpack.c.l.b16 %v10147
  %v10420 = vunpack.c.h.b16 %v10147
  %v10421 = vunpack.c.l.b16 %v10148
  %v10422 = vunpack.c.h.b16 %v10148
  %v10423 = vunpack.c.l.b16 %v10149
  %v10424 = vunpack.c.h.b16 %v10149
  %v10425 = vunpack.c.l.b16 %v10150
  %v10426 = vunpack.c.h.b16 %v10150
  %v10427 = vunpack.c.l.b16 %v10151
  %v10428 = vunpack.c.h.b16 %v10151
  %v10429 = vunpack.c.l.b16 %v10152
  %v10430 = vunpack.c.h.b16 %v10152
  %v10431 = vunpack.c.l.b16 %v10153
  %v10432 = vunpack.c.h.b16 %v10153
  %v10433 = vunpack.c.l.b16 %v10154
  %v10434 = vunpack.c.h.b16 %v10154
  %v10435 = vunpack.c.l.b16 %v10155
  %v10436 = vunpack.c.h.b16 %v10155
  %v10437 = vunpack.c.l.b16 %v10156
  %v10438 = vunpack.c.h.b16 %v10156
  %v10439 = vunpack.c.l.b16 %v10157
  %v10440 = vunpack.c.h.b16 %v10157
  %v10441 = vunpack.c.l.b16 %v10158
  %v10442 = vunpack.c.h.b16 %v10158
  %v10443 = vunpack.c.l.b16 %v10159
  %v10444 = vunpack.c.h.b16 %v10159
  %v10445 = vunpack.c.l.b16 %v10160
  %v10446 = vunpack.c.h.b16 %v10160
  %v10447 = vunpack.c.l.b16 %v10161
  %v10448 = vunpack.c.h.b16 %v10161
  %v10449 = vunpack.c.l.b16 %v10162
  %v10450 = vunpack.c.h.b16 %v10162
  %v10451 = vunpack.c.l.b16 %v10163
  %v10452 = vunpack.c.h.b16 %v10163
  %v10453 = vunpack.c.l.b16 %v10164
  %v10454 = vunpack.c.h.b16 %v10164
  %v10455 = vunpack.c.l.b16 %v10165
  %v10456 = vunpack.c.h.b16 %v10165
  %v10457 = vunpack.c.l.b16 %v10166
  %v10458 = vunpack.c.h.b16 %v10166
  %v10459 = vunpack.c.l.b16 %v10167
  %v10460 = vunpack.c.h.b16 %v10167
  %v10461 = vunpack.c.l.b16 %v10168
  %v10462 = vunpack.c.h.b16 %v10168
  %v10463 = vunpack.c.l.b16 %v10169
  %v10464 = vunpack.c.h.b16 %v10169
  %v10465 = vunpack.c.l.b16 %v10170
  %v10466 = vunpack.c.h.b16 %v10170
  %v10467 = vunpack.c.l.b16 %v10171
  %v10468 = vunpack.c.h.b16 %v10171
  %v10469 = vunpack.c.l.b16 %v10172
  %v10470 = vunpack.c.h.b16 %v10172
  %v10471 = vunpack.c.l.b16 %v10173
  %v10472 = vunpack.c.h.b16 %v10173
  %v10473 = vunpack.c.l.b16 %v10174
  %v10474 = vunpack.c.h.b16 %v10174
  %v10475 = vunpack.c.l.b16 %v10175
  %v10476 = vunpack.c.h.b16 %v10175
  %v10477 = vunpack.c.l.b16 %v10176
  %v10478 = vunpack.c.h.b16 %v10176
  %v10479 = vunpack.c.l.b16 %v10177
  %v10480 = vunpack.c.h.b16 %v10177
  %v10481 = vunpack.c.l.b16 %v10178
  %v10482 = vunpack.c.h.b16 %v10178
  %v10483 = vunpack.c.l.b16 %v10179
  %v10484 = vunpack.c.h.b16 %v10179
  %v10485 = vunpack.c.l.b16 %v10180
  %v10486 = vunpack.c.h.b16 %v10180
  %v10487 = vunpack.c.l.b16 %v10181
  %v10488 = vunpack.c.h.b16 %v10181
  %v10489 = vunpack.c.l.b16 %v10182
  %v10490 = vunpack.c.h.b16 %v10182
  %v10491 = vunpack.c.l.b16 %v10183
  %v10492 = vunpack.c.h.b16 %v10183
  %v10493 = vunpack.c.l.b16 %v10184
  %v10494 = vunpack.c.h.b16 %v10184
  %v10495 = vunpack.c.l.b16 %v10185
  %v10496 = vunpack.c.h.b16 %v10185
  %v10497 = vunpack.c.l.b16 %v10186
  %v10498 = vunpack.c.h.b16 %v10186
  %v10499 = vunpack.c.l.b16 %v10187
  %v10500 = vunpack.c.h.b16 %v10187
  %v10501 = vunpack.c.l.b16 %v10188
  %v10502 = vunpack.c.h.b16 %v10188
  %v10503 = vunpack.c.l.b16 %v10189
  %v10504 = vunpack.c.h.b16 %v10189
  %v10505 = vunpack.c.l.b16 %v10190
  %v10506 = vunpack.c.h.b16 %v10190
  %v10507 = vunpack.c.l.b16 %v10191
  %v10508 = vunpack.c.h.b16 %v10191
  %v10509 = vunpack.c.l.b16 %v10192
  %v10510 = vunpack.c.h.b16 %v10192
  %v10511 = vunpack.c.l.b16 %v10193
  %v10512 = vunpack.c.h.b16 %v10193
  %v10513 = vunpack.c.l.b16 %v10194
  %v10514 = vunpack.c.h.b16 %v10194
  %v10515 = vunpack.c.l.b16 %v10195
  %v10516 = vunpack.c.h.b16 %v10195
  %v10517 = vunpack.c.l.b16 %v10196
  %v10518 = vunpack.c.h.b16 %v10196
  %v10519 = vunpack.c.l.b16 %v10197
  %v10520 = vunpack.c.h.b16 %v10197
  %v10521 = vunpack.c.l.b16 %v10198
  %v10522 = vunpack.c.h.b16 %v10198
  %v10523 = vunpack.c.l.b16 %v10199
  %v10524 = vunpack.c.h.b16 %v10199
  %v10525 = vunpack.c.l.b16 %v10200
  %v10526 = vunpack.c.h.b16 %v10200
  %v10527 = vunpack.c.l.b16 %v10201
  %v10528 = vunpack.c.h.b16 %v10201
  %v10529 = vunpack.c.l.b16 %v10202
  %v10530 = vunpack.c.h.b16 %v10202
  %v10531 = vunpack.c.l.b16 %v10203
  %v10532 = vunpack.c.h.b16 %v10203
  %v10533 = vunpack.c.l.b16 %v10204
  %v10534 = vunpack.c.h.b16 %v10204
  %v10535 = vunpack.c.l.b16 %v10205
  %v10536 = vunpack.c.h.b16 %v10205
  %v10537 = vunpack.c.l.b16 %v10206
  %v10538 = vunpack.c.h.b16 %v10206
  %v10539 = vunpack.c.l.b16 %v10207
  %v10540 = vunpack.c.h.b16 %v10207
  %v10541 = vunpack.c.l.b16 %v10208
  %v10542 = vunpack.c.h.b16 %v10208
  %v10543 = vunpack.c.l.b16 %v10209
  %v10544 = vunpack.c.h.b16 %v10209
  %v10545 = vunpack.c.l.b16 %v10210
  %v10546 = vunpack.c.h.b16 %v10210
  %v10547 = vunpack.c.l.b16 %v10211
  %v10548 = vunpack.c.h.b16 %v10211
  %v10549 = vunpack.c.l.b16 %v10212
  %v10550 = vunpack.c.h.b16 %v10212
  %v10551 = vunpack.c.l.b16 %v10213
  %v10552 = vunpack.c.h.b16 %v10213
  %v10553 = vunpack.c.l.b16 %v10214
  %v10554 = vunpack.c.h.b16 %v10214
  %v10555 = vunpack.c.l.b16 %v10215
  %v10556 = vunpack.c.h.b16 %v10215
  %v10557 = vunpack.c.l.b16 %v10216
  %v10558 = vunpack.c.h.b16 %v10216
  %v10559 = vunpack.c.l.b16 %v10217
  %v10560 = vunpack.c.h.b16 %v10217
  %v10561 = vunpack.c.l.b16 %v10218
  %v10562 = vunpack.c.h.b16 %v10218
  %v10563 = vunpack.c.l.b16 %v10219
  %v10564 = vunpack.c.h.b16 %v10219
  %v10565 = vunpack.c.l.b16 %v10220
  %v10566 = vunpack.c.h.b16 %v10220
  %v10567 = vunpack.c.l.b16 %v10221
  %v10568 = vunpack.c.h.b16 %v10221
  %v10569 = vunpack.c.l.b16 %v10222
  %v10570 = vunpack.c.h.b16 %v10222
  %v10571 = vunpack.c.l.b16 %v10223
  %v10572 = vunpack.c.h.b16 %v10223
  %v10573 = vunpack.c.l.b16 %v10224
  %v10574 = vunpack.c.h.b16 %v10224
  %v10575 = vunpack.c.l.b16 %v10225
  %v10576 = vunpack.c.h.b16 %v10225
  %v10577 = vunpack.c.l.b16 %v10226
  %v10578 = vunpack.c.h.b16 %v10226
  %v10579 = vunpack.c.l.b16 %v10227
  %v10580 = vunpack.c.h.b16 %v10227
  %v10581 = vunpack.c.l.b16 %v10228
  %v10582 = vunpack.c.h.b16 %v10228
  %v10583 = vunpack.c.l.b16 %v10229
  %v10584 = vunpack.c.h.b16 %v10229
  %v10585 = vunpack.c.l.b16 %v10230
  %v10586 = vunpack.c.h.b16 %v10230
  %v10587 = vunpack.c.l.b16 %v10231
  %v10588 = vunpack.c.h.b16 %v10231
  %v10589 = vunpack.c.l.b16 %v10232
  %v10590 = vunpack.c.h.b16 %v10232
  %v10591 = vunpack.c.l.b16 %v10233
  %v10592 = vunpack.c.h.b16 %v10233
  %v10593 = vunpack.c.l.b16 %v10234
  %v10594 = vunpack.c.h.b16 %v10234
  %v10595 = vunpack.c.l.b16 %v10235
  %v10596 = vunpack.c.h.b16 %v10235
  %v10597 = vunpack.c.l.b16 %v10236
  %v10598 = vunpack.c.h.b16 %v10236
  %v10599 = vunpack.c.l.b16 %v10237
  %v10600 = vunpack.c.h.b16 %v10237
  %v10601 = vunpack.c.l.b16 %v10238
  %v10602 = vunpack.c.h.b16 %v10238
  %v10603 = vunpack.c.l.b16 %v10239
  %v10604 = vunpack.c.h.b16 %v10239
  %v10605 = vunpack.c.l.b16 %v10240
  %v10606 = vunpack.c.h.b16 %v10240
  %v10607 = vunpack.c.l.b16 %v10241
  %v10608 = vunpack.c.h.b16 %v10241
  %v10609 = vunpack.c.l.b16 %v10242
  %v10610 = vunpack.c.h.b16 %v10242
  %v10611 = vunpack.c.l.b16 %v10243
  %v10612 = vunpack.c.h.b16 %v10243
  %v10613 = vunpack.c.l.b16 %v10244
  %v10614 = vunpack.c.h.b16 %v10244
  %v10615 = vunpack.c.l.b16 %v10245
  %v10616 = vunpack.c.h.b16 %v10245
  %v10617 = vunpack.c.l.b16 %v10246
  %v10618 = vunpack.c.h.b16 %v10246
  %v10619 = vunpack.c.l.b16 %v10247
  %v10620 = vunpack.c.h.b16 %v10247
  %v10621 = vunpack.c.l.b16 %v10248
  %v10622 = vunpack.c.h.b16 %v10248
  %v10623 = vunpack.c.l.b16 %v10249
  %v10624 = vunpack.c.h.b16 %v10249
  %v10625 = vunpack.c.l.b16 %v10250
  %v10626 = vunpack.c.h.b16 %v10250
  %v10627 = vunpack.c.l.b16 %v10251
  %v10628 = vunpack.c.h.b16 %v10251
  %v10629 = vunpack.c.l.b16 %v10252
  %v10630 = vunpack.c.h.b16 %v10252
  %v10631 = vunpack.c.l.b16 %v10253
  %v10632 = vunpack.c.h.b16 %v10253
  %v10633 = vunpack.c.l.b16 %v10254
  %v10634 = vunpack.c.h.b16 %v10254
  %v10635 = vunpack.c.l.b16 %v10255
  %v10636 = vunpack.c.h.b16 %v10255
  %v10637 = vunpack.c.l.b16 %v10256
  %v10638 = vunpack.c.h.b16 %v10256
  %v10639 = vunpack.c.l.b16 %v10257
  %v10640 = vunpack.c.h.b16 %v10257
  %v10641 = vunpack.c.l.b16 %v10258
  %v10642 = vunpack.c.h.b16 %v10258
  %v10643 = vpack.c.b16 %v10391, %v10387
  %v10644 = vpack.c.b16 %v10392, %v10388
  %v10645 = vpack.c.b16 %v10393, %v10389
  %v10646 = vpack.c.b16 %v10394, %v10390
  %v10647 = vpack.c.b16 %v10399, %v10395
  %v10648 = vpack.c.b16 %v10400, %v10396
  %v10649 = vpack.c.b16 %v10401, %v10397
  %v10650 = vpack.c.b16 %v10402, %v10398
  %v10651 = vpack.c.b16 %v10407, %v10403
  %v10652 = vpack.c.b16 %v10408, %v10404
  %v10653 = vpack.c.b16 %v10409, %v10405
  %v10654 = vpack.c.b16 %v10410, %v10406
  %v10655 = vpack.c.b16 %v10415, %v10411
  %v10656 = vpack.c.b16 %v10416, %v10412
  %v10657 = vpack.c.b16 %v10417, %v10413
  %v10658 = vpack.c.b16 %v10418, %v10414
  %v10659 = vpack.c.b16 %v10423, %v10419
  %v10660 = vpack.c.b16 %v10424, %v10420
  %v10661 = vpack.c.b16 %v10425, %v10421
  %v10662 = vpack.c.b16 %v10426, %v10422
  %v10663 = vpack.c.b16 %v10431, %v10427
  %v10664 = vpack.c.b16 %v10432, %v10428
  %v10665 = vpack.c.b16 %v10433, %v10429
  %v10666 = vpack.c.b16 %v10434, %v10430
  %v10667 = vpack.c.b16 %v10439, %v10435
  %v10668 = vpack.c.b16 %v10440, %v10436
  %v10669 = vpack.c.b16 %v10441, %v10437
  %v10670 = vpack.c.b16 %v10442, %v10438
  %v10671 = vpack.c.b16 %v10447, %v10443
  %v10672 = vpack.c.b16 %v10448, %v10444
  %v10673 = vpack.c.b16 %v10449, %v10445
  %v10674 = vpack.c.b16 %v10450, %v10446
  %v10675 = vpack.c.b16 %v10455, %v10451
  %v10676 = vpack.c.b16 %v10456, %v10452
  %v10677 = vpack.c.b16 %v10457, %v10453
  %v10678 = vpack.c.b16 %v10458, %v10454
  %v10679 = vpack.c.b16 %v10463, %v10459
  %v10680 = vpack.c.b16 %v10464, %v10460
  %v10681 = vpack.c.b16 %v10465, %v10461
  %v10682 = vpack.c.b16 %v10466, %v10462
  %v10683 = vpack.c.b16 %v10471, %v10467
  %v10684 = vpack.c.b16 %v10472, %v10468
  %v10685 = vpack.c.b16 %v10473, %v10469
  %v10686 = vpack.c.b16 %v10474, %v10470
  %v10687 = vpack.c.b16 %v10479, %v10475
  %v10688 = vpack.c.b16 %v10480, %v10476
  %v10689 = vpack.c.b16 %v10481, %v10477
  %v10690 = vpack.c.b16 %v10482, %v10478
  %v10691 = vpack.c.b16 %v10487, %v10483
  %v10692 = vpack.c.b16 %v10488, %v10484
  %v10693 = vpack.c.b16 %v10489, %v10485
  %v10694 = vpack.c.b16 %v10490, %v10486
  %v10695 = vpack.c.b16 %v10495, %v10491
  %v10696 = vpack.c.b16 %v10496, %v10492
  %v10697 = vpack.c.b16 %v10497, %v10493
  %v10698 = vpack.c.b16 %v10498, %v10494
  %v10699 = vpack.c.b16 %v10503, %v10499
  %v10700 = vpack.c.b16 %v10504, %v10500
  %v10701 = vpack.c.b16 %v10505, %v10501
  %v10702 = vpack.c.b16 %v10506, %v10502
  %v10703 = vpack.c.b16 %v10511, %v10507
  %v10704 = vpack.c.b16 %v10512, %v10508
  %v10705 = vpack.c.b16 %v10513, %v10509
  %v10706 = vpack.c.b16 %v10514, %v10510
  %v10707 = vpack.c.b16 %v10519, %v10515
  %v10708 = vpack.c.b16 %v10520, %v10516
  %v10709 = vpack.c.b16 %v10521, %v10517
  %v10710 = vpack.c.b16 %v10522, %v10518
  %v10711 = vpack.c.b16 %v10527, %v10523
  %v10712 = vpack.c.b16 %v10528, %v10524
  %v10713 = vpack.c.b16 %v10529, %v10525
  %v10714 = vpack.c.b16 %v10530, %v10526
  %v10715 = vpack.c.b16 %v10535, %v10531
  %v10716 = vpack.c.b16 %v10536, %v10532
  %v10717 = vpack.c.b16 %v10537, %v10533
  %v10718 = vpack.c.b16 %v10538, %v10534
  %v10719 = vpack.c.b16 %v10543, %v10539
  %v10720 = vpack.c.b16 %v10544, %v10540
  %v10721 = vpack.c.b16 %v10545, %v10541
  %v10722 = vpack.c.b16 %v10546, %v10542
  %v10723 = vpack.c.b16 %v10551, %v10547
  %v10724 = vpack.c.b16 %v10552, %v10548
  %v10725 = vpack.c.b16 %v10553, %v10549
  %v10726 = vpack.c.b16 %v10554, %v10550
  %v10727 = vpack.c.b16 %v10559, %v10555
  %v10728 = vpack.c.b16 %v10560, %v10556
  %v10729 = vpack.c.b16 %v10561, %v10557
  %v10730 = vpack.c.b16 %v10562, %v10558
  %v10731 = vpack.c.b16 %v10567, %v10563
  %v10732 = vpack.c.b16 %v10568, %v10564
  %v10733 = vpack.c.b16 %v10569, %v10565
  %v10734 = vpack.c.b16 %v10570, %v10566
  %v10735 = vpack.c.b16 %v10575, %v10571
  %v10736 = vpack.c.b16 %v10576, %v10572
  %v10737 = vpack.c.b16 %v10577, %v10573
  %v10738 = vpack.c.b16 %v10578, %v10574
  %v10739 = vpack.c.b16 %v10583, %v10579
  %v10740 = vpack.c.b16 %v10584, %v10580
  %v10741 = vpack.c.b16 %v10585, %v10581
  %v10742 = vpack.c.b16 %v10586, %v10582
  %v10743 = vpack.c.b16 %v10591, %v10587
  %v10744 = vpack.c.b16 %v10592, %v10588
  %v10745 = vpack.c.b16 %v10593, %v10589
  %v10746 = vpack.c.b16 %v10594, %v10590
  %v10747 = vpack.c.b16 %v10599, %v10595
  %v10748 = vpack.c.b16 %v10600, %v10596
  %v10749 = vpack.c.b16 %v10601, %v10597
  %v10750 = vpack.c.b16 %v10602, %v10598
  %v10751 = vpack.c.b16 %v10607, %v10603
  %v10752 = vpack.c.b16 %v10608, %v10604
  %v10753 = vpack.c.b16 %v10609, %v10605
  %v10754 = vpack.c.b16 %v10610, %v10606
  %v10755 = vpack.c.b16 %v10615, %v10611
  %v10756 = vpack.c.b16 %v10616, %v10612
  %v10757 = vpack.c.b16 %v10617, %v10613
  %v10758 = vpack.c.b16 %v10618, %v10614
  %v10759 = vpack.c.b16 %v10623, %v10619
  %v10760 = vpack.c.b16 %v10624, %v10620
  %v10761 = vpack.c.b16 %v10625, %v10621
  %v10762 = vpack.c.b16 %v10626, %v10622
  %v10763 = vpack.c.b16 %v10631, %v10627
  %v10764 = vpack.c.b16 %v10632, %v10628
  %v10765 = vpack.c.b16 %v10633, %v10629
  %v10766 = vpack.c.b16 %v10634, %v10630
  %v10767 = vpack.c.b16 %v10639, %v10635
  %v10768 = vpack.c.b16 %v10640, %v10636
  %v10769 = vpack.c.b16 %v10641, %v10637
  %v10770 = vpack.c.b16 %v10642, %v10638
  %10899 = vmatprep.subr.bf16.mxu0 %v10644
  %10900 = vmatpush1.bf16.msra.mxu0 %v10643
  %10901 = vmatprep.subr.bf16.mxu0 %v10648
  %10902 = vmatpush1.bf16.msra.mxu0 %v10647
  %10903 = vmatprep.subr.bf16.mxu0 %v10652
  %10904 = vmatpush1.bf16.msra.mxu0 %v10651
  %10905 = vmatprep.subr.bf16.mxu0 %v10656
  %10906 = vmatpush1.bf16.msra.mxu0 %v10655
  %10907 = vmatprep.subr.bf16.mxu0 %v10660
  %10908 = vmatpush1.bf16.msra.mxu0 %v10659
  %10909 = vmatprep.subr.bf16.mxu0 %v10664
  %10910 = vmatpush1.bf16.msra.mxu0 %v10663
  %10911 = vmatprep.subr.bf16.mxu0 %v10668
  %10912 = vmatpush1.bf16.msra.mxu0 %v10667
  %10913 = vmatprep.subr.bf16.mxu0 %v10672
  %10914 = vmatpush1.bf16.msra.mxu0 %v10671
  %10915 = vmatprep.subr.bf16.mxu0 %v10676
  %10916 = vmatpush1.bf16.msra.mxu0 %v10675
  %10917 = vmatprep.subr.bf16.mxu0 %v10680
  %10918 = vmatpush1.bf16.msra.mxu0 %v10679
  %10919 = vmatprep.subr.bf16.mxu0 %v10684
  %10920 = vmatpush1.bf16.msra.mxu0 %v10683
  %10921 = vmatprep.subr.bf16.mxu0 %v10688
  %10922 = vmatpush1.bf16.msra.mxu0 %v10687
  %10923 = vmatprep.subr.bf16.mxu0 %v10692
  %10924 = vmatpush1.bf16.msra.mxu0 %v10691
  %10925 = vmatprep.subr.bf16.mxu0 %v10696
  %10926 = vmatpush1.bf16.msra.mxu0 %v10695
  %10927 = vmatprep.subr.bf16.mxu0 %v10700
  %10928 = vmatpush1.bf16.msra.mxu0 %v10699
  %10929 = vmatprep.subr.bf16.mxu0 %v10704
  %10930 = vmatpush1.bf16.msra.mxu0 %v10703
  %10931 = vmatprep.mubr.bf16.mxu0 %v10128
  %10932 = vmatmul.mubr.bf16.gmra.mrb[0].mxu0 %v10127
  %v10933 = vpop.f32.mrb[0].mxu0
  %v10934 = vadd.f32 0.0, %v10933
  %v10935 = vpop.f32.mrb[0].mxu0
  %v10936 = vadd.f32 0.0, %v10935
  %v10937 = vpop.f32.mrb[0].mxu0
  %v10938 = vpop.f32.mrb[0].mxu0
  %10939 = vdwg.mxu0
  %10940 = vmatprep.subr.bf16.mxu0 %v10708
  %10941 = vmatpush1.bf16.msra.mxu0 %v10707
  %10942 = vmatprep.subr.bf16.mxu0 %v10712
  %10943 = vmatpush1.bf16.msra.mxu0 %v10711
  %10944 = vmatprep.subr.bf16.mxu0 %v10716
  %10945 = vmatpush1.bf16.msra.mxu0 %v10715
  %10946 = vmatprep.subr.bf16.mxu0 %v10720
  %10947 = vmatpush1.bf16.msra.mxu0 %v10719
  %10948 = vmatprep.subr.bf16.mxu0 %v10724
  %10949 = vmatpush1.bf16.msra.mxu0 %v10723
  %10950 = vmatprep.subr.bf16.mxu0 %v10728
  %10951 = vmatpush1.bf16.msra.mxu0 %v10727
  %10952 = vmatprep.subr.bf16.mxu0 %v10732
  %10953 = vmatpush1.bf16.msra.mxu0 %v10731
  %10954 = vmatprep.subr.bf16.mxu0 %v10736
  %10955 = vmatpush1.bf16.msra.mxu0 %v10735
  %10956 = vmatprep.subr.bf16.mxu0 %v10740
  %10957 = vmatpush1.bf16.msra.mxu0 %v10739
  %10958 = vmatprep.subr.bf16.mxu0 %v10744
  %10959 = vmatpush1.bf16.msra.mxu0 %v10743
  %10960 = vmatprep.subr.bf16.mxu0 %v10748
  %10961 = vmatpush1.bf16.msra.mxu0 %v10747
  %10962 = vmatprep.subr.bf16.mxu0 %v10752
  %10963 = vmatpush1.bf16.msra.mxu0 %v10751
  %10964 = vmatprep.subr.bf16.mxu0 %v10756
  %10965 = vmatpush1.bf16.msra.mxu0 %v10755
  %10966 = vmatprep.subr.bf16.mxu0 %v10760
  %10967 = vmatpush1.bf16.msra.mxu0 %v10759
  %10968 = vmatprep.subr.bf16.mxu0 %v10764
  %10969 = vmatpush1.bf16.msra.mxu0 %v10763
  %10970 = vmatprep.subr.bf16.mxu0 %v10768
  %10971 = vmatpush1.bf16.msra.mxu0 %v10767
  %10972 = vmatprep.mubr.bf16.mxu0 %v10130
  %10973 = vmatmul.mubr.bf16.gmra.mrb[0].mxu0 %v10129
  %v10974 = vpop.f32.mrb[0].mxu0
  %v10975 = vadd.f32 %v10934, %v10974
  %v10976 = vpop.f32.mrb[0].mxu0
  %v10977 = vadd.f32 %v10936, %v10976
  %v10978 = vpop.f32.mrb[0].mxu0
  %v10979 = vpop.f32.mrb[0].mxu0
  %10980 = vdwg.mxu0
  %10981 = vmatprep.subr.bf16.mxu0 %v10646
  %10982 = vmatpush1.bf16.msra.mxu0 %v10645
  %10983 = vmatprep.subr.bf16.mxu0 %v10650
  %10984 = vmatpush1.bf16.msra.mxu0 %v10649
  %10985 = vmatprep.subr.bf16.mxu0 %v10654
  %10986 = vmatpush1.bf16.msra.mxu0 %v10653
  %10987 = vmatprep.subr.bf16.mxu0 %v10658
  %10988 = vmatpush1.bf16.msra.mxu0 %v10657
  %10989 = vmatprep.subr.bf16.mxu0 %v10662
  %10990 = vmatpush1.bf16.msra.mxu0 %v10661
  %10991 = vmatprep.subr.bf16.mxu0 %v10666
  %10992 = vmatpush1.bf16.msra.mxu0 %v10665
  %10993 = vmatprep.subr.bf16.mxu0 %v10670
  %10994 = vmatpush1.bf16.msra.mxu0 %v10669
  %10995 = vmatprep.subr.bf16.mxu0 %v10674
  %10996 = vmatpush1.bf16.msra.mxu0 %v10673
  %10997 = vmatprep.subr.bf16.mxu0 %v10678
  %10998 = vmatpush1.bf16.msra.mxu0 %v10677
  %10999 = vmatprep.subr.bf16.mxu0 %v10682
  %11000 = vmatpush1.bf16.msra.mxu0 %v10681
  %11001 = vmatprep.subr.bf16.mxu0 %v10686
  %11002 = vmatpush1.bf16.msra.mxu0 %v10685
  %11003 = vmatprep.subr.bf16.mxu0 %v10690
  %11004 = vmatpush1.bf16.msra.mxu0 %v10689
  %11005 = vmatprep.subr.bf16.mxu0 %v10694
  %11006 = vmatpush1.bf16.msra.mxu0 %v10693
  %11007 = vmatprep.subr.bf16.mxu0 %v10698
  %11008 = vmatpush1.bf16.msra.mxu0 %v10697
  %11009 = vmatprep.subr.bf16.mxu0 %v10702
  %11010 = vmatpush1.bf16.msra.mxu0 %v10701
  %11011 = vmatprep.subr.bf16.mxu0 %v10706
  %11012 = vmatpush1.bf16.msra.mxu0 %v10705
  %11013 = vmatprep.mubr.bf16.mxu0 %v10128
  %11014 = vmatmul.mubr.bf16.gmra.mrb[0].mxu0 %v10127
  %v11015 = vpop.f32.mrb[0].mxu0
  %v11016 = vadd.f32 0.0, %v11015
  %v11017 = vpop.f32.mrb[0].mxu0
  %v11018 = vadd.f32 0.0, %v11017
  %v11019 = vpop.f32.mrb[0].mxu0
  %v11020 = vpop.f32.mrb[0].mxu0
  %11021 = vdwg.mxu0
  %11022 = vmatprep.subr.bf16.mxu0 %v10710
  %11023 = vmatpush1.bf16.msra.mxu0 %v10709
  %11024 = vmatprep.subr.bf16.mxu0 %v10714
  %11025 = vmatpush1.bf16.msra.mxu0 %v10713
  %11026 = vmatprep.subr.bf16.mxu0 %v10718
  %11027 = vmatpush1.bf16.msra.mxu0 %v10717
  %11028 = vmatprep.subr.bf16.mxu0 %v10722
  %11029 = vmatpush1.bf16.msra.mxu0 %v10721
  %11030 = vmatprep.subr.bf16.mxu0 %v10726
  %11031 = vmatpush1.bf16.msra.mxu0 %v10725
  %11032 = vmatprep.subr.bf16.mxu0 %v10730
  %11033 = vmatpush1.bf16.msra.mxu0 %v10729
  %11034 = vmatprep.subr.bf16.mxu0 %v10734
  %11035 = vmatpush1.bf16.msra.mxu0 %v10733
  %11036 = vmatprep.subr.bf16.mxu0 %v10738
  %11037 = vmatpush1.bf16.msra.mxu0 %v10737
  %11038 = vmatprep.subr.bf16.mxu0 %v10742
  %11039 = vmatpush1.bf16.msra.mxu0 %v10741
  %11040 = vmatprep.subr.bf16.mxu0 %v10746
  %11041 = vmatpush1.bf16.msra.mxu0 %v10745
  %11042 = vmatprep.subr.bf16.mxu0 %v10750
  %11043 = vmatpush1.bf16.msra.mxu0 %v10749
  %11044 = vmatprep.subr.bf16.mxu0 %v10754
  %11045 = vmatpush1.bf16.msra.mxu0 %v10753
  %11046 = vmatprep.subr.bf16.mxu0 %v10758
  %11047 = vmatpush1.bf16.msra.mxu0 %v10757
  %11048 = vmatprep.subr.bf16.mxu0 %v10762
  %11049 = vmatpush1.bf16.msra.mxu0 %v10761
  %11050 = vmatprep.subr.bf16.mxu0 %v10766
  %11051 = vmatpush1.bf16.msra.mxu0 %v10765
  %11052 = vmatprep.subr.bf16.mxu0 %v10770
  %11053 = vmatpush1.bf16.msra.mxu0 %v10769
  %11054 = vmatprep.mubr.bf16.mxu0 %v10130
  %11055 = vmatmul.mubr.bf16.gmra.mrb[0].mxu0 %v10129
  %v11056 = vpop.f32.mrb[0].mxu0
  %v11057 = vadd.f32 %v11016, %v11056
  %v11058 = vpop.f32.mrb[0].mxu0
  %v11059 = vadd.f32 %v11018, %v11058
  %v11060 = vpop.f32.mrb[0].mxu0
  %v11061 = vpop.f32.mrb[0].mxu0
  %11062 = vdwg.mxu0
  %v11063 = vmax.f32 %v10975, %v10977
  %v11064 = vmax.f32 %v11057, %v11059
  %v11065 = vmax.f32 %v11063, %v11064
  %v11066 = vld [vmem:[%s5] sm:$0x1]
  %v11068 = vlaneseq
  %v11069 = vshrl.u32 %v11068, 7
  %v11070 = vsub.s32 0, %v11069
  %v11071 = vrot.slane %v11066, %v11070
  %v11073 = vadd.f32 %v11065, %v11071
  %v11074 = vmax.f32 %v11073, 0.0
  %v11075 = vld [vmem:[%s6] sm:$0xff]
  %v11076 = vld [vmem:[%s6 + $0x8] sm:$0xff]
  %v11077 = vld [vmem:[%s6 + $0x10] sm:$0xff]
  %v11078 = vld [vmem:[%s6 + $0x18] sm:$0xff]
  %v11079 = vld [vmem:[%s6 + $0x20] sm:$0xff]
  %v11080 = vld [vmem:[%s6 + $0x28] sm:$0xff]
  %v11081 = vld [vmem:[%s6 + $0x30] sm:$0xff]
  %v11082 = vld [vmem:[%s6 + $0x38] sm:$0xff]
  %v11083 = vld [vmem:[%s6 + $0x40] sm:$0xff]
  %v11084 = vld [vmem:[%s6 + $0x48] sm:$0xff]
  %v11085 = vld [vmem:[%s6 + $0x50] sm:$0xff]
  %v11086 = vld [vmem:[%s6 + $0x58] sm:$0xff]
  %v11087 = vld [vmem:[%s6 + $0x60] sm:$0xff]
  %v11088 = vld [vmem:[%s6 + $0x68] sm:$0xff]
  %v11089 = vld [vmem:[%s6 + $0x70] sm:$0xff]
  %v11090 = vld [vmem:[%s6 + $0x78] sm:$0xff]
  %v11091 = vld [vmem:[%s1] sm:$0xff]
  %11092 = vmatprep.subr.mxu0 0.0
  %11093 = vmatpush1.msra.mxu0 %v11075
  %11094 = vmatprep.subr.mxu0 0.0
  %11095 = vmatpush1.msra.mxu0 %v11076
  %11096 = vmatprep.subr.mxu0 0.0
  %11097 = vmatpush1.msra.mxu0 %v11077
  %11098 = vmatprep.subr.mxu0 0.0
  %11099 = vmatpush1.msra.mxu0 %v11078
  %11100 = vmatprep.subr.mxu0 0.0
  %11101 = vmatpush1.msra.mxu0 %v11079
  %11102 = vmatprep.subr.mxu0 0.0
  %11103 = vmatpush1.msra.mxu0 %v11080
  %11104 = vmatprep.subr.mxu0 0.0
  %11105 = vmatpush1.msra.mxu0 %v11081
  %11106 = vmatprep.subr.mxu0 0.0
  %11107 = vmatpush1.msra.mxu0 %v11082
  %11108 = vmatprep.subr.mxu0 0.0
  %11109 = vmatpush1.msra.mxu0 %v11083
  %11110 = vmatprep.subr.mxu0 0.0
  %11111 = vmatpush1.msra.mxu0 %v11084
  %11112 = vmatprep.subr.mxu0 0.0
  %11113 = vmatpush1.msra.mxu0 %v11085
  %11114 = vmatprep.subr.mxu0 0.0
  %11115 = vmatpush1.msra.mxu0 %v11086
  %11116 = vmatprep.subr.mxu0 0.0
  %11117 = vmatpush1.msra.mxu0 %v11087
  %11118 = vmatprep.subr.mxu0 0.0
  %11119 = vmatpush1.msra.mxu0 %v11088
  %11120 = vmatprep.subr.mxu0 0.0
  %11121 = vmatpush1.msra.mxu0 %v11089
  %11122 = vmatprep.subr.mxu0 0.0
  %11123 = vmatpush1.msra.mxu0 %v11090
  %11124 = vmatprep.subr.mxu0 0.0
  %11125 = vmatpush1.msra.mxu0 0.0
  %11126 = vmatprep.subr.mxu0 0.0
  %11127 = vmatpush1.msra.mxu0 0.0
  %11128 = vmatprep.subr.mxu0 0.0
  %11129 = vmatpush1.msra.mxu0 0.0
  %11130 = vmatprep.subr.mxu0 0.0
  %11131 = vmatpush1.msra.mxu0 0.0
  %11132 = vmatprep.subr.mxu0 0.0
  %11133 = vmatpush1.msra.mxu0 0.0
  %11134 = vmatprep.subr.mxu0 0.0
  %11135 = vmatpush1.msra.mxu0 0.0
  %11136 = vmatprep.subr.mxu0 0.0
  %11137 = vmatpush1.msra.mxu0 0.0
  %11138 = vmatprep.subr.mxu0 0.0
  %11139 = vmatpush1.msra.mxu0 0.0
  %11140 = vmatprep.subr.mxu0 0.0
  %11141 = vmatpush1.msra.mxu0 0.0
  %11142 = vmatprep.subr.mxu0 0.0
  %11143 = vmatpush1.msra.mxu0 0.0
  %11144 = vmatprep.subr.mxu0 0.0
  %11145 = vmatpush1.msra.mxu0 0.0
  %11146 = vmatprep.subr.mxu0 0.0
  %11147 = vmatpush1.msra.mxu0 0.0
  %11148 = vmatprep.subr.mxu0 0.0
  %11149 = vmatpush1.msra.mxu0 0.0
  %11150 = vmatprep.subr.mxu0 0.0
  %11151 = vmatpush1.msra.mxu0 0.0
  %11152 = vmatprep.subr.mxu0 0.0
  %11153 = vmatpush1.msra.mxu0 0.0
  %11154 = vmatprep.subr.mxu0 0.0
  %11155 = vmatpush1.msra.mxu0 0.0
  %11156 = vmatprep.mubr.f32.mxu0 0.0
  %11157 = vmatmul.mubr.f32.gmra.mrb[0].mxu0 %v11074
  %v11158 = vpop.f32.mrb[0].mxu0
  %v11159 = vadd.f32 %v11091, %v11158
  %v11160 = vpop.f32.mrb[0].mxu0
  %11161 = vdwg.mxu0
  %11162 = vst [vmem:[%s7] sm:$0xff] %v11159
  // Predicated region
  $region30: #{forward.1} parent=0 // pred_check
    _
  $region31: #{forward.1} parent=0 // pred_check_branch
    %11164 = sbr.rel (0) target = $region33
  $region32: #{forward.1} parent=0 // pred_region
    _
  $region33: #{forward.1} parent=0 // pred_fallthru
    _
  // Predicated region
  $region34: #{forward.1} parent=0 // pred_check
    _
  $region35: #{forward.1} parent=0 // pred_check_branch
    %11166 = sbr.rel (0) target = $region37
  $region36: #{forward.1} parent=0 // pred_region
    _
  $region37: #{forward.1} parent=0 // pred_fallthru
    _

</llo_original>
